<compile_context>
chip_gen: v6e
topology: v6e:2x2x1
jax: 0.10.0
libtpu: 0.0.40
codegen_flags: <defaults>
</compile_context>

<pallas_src>
import math
import jax
import jax.numpy as jnp
from jax.experimental import pallas as pl
from jax.experimental.pallas import tpu as pltpu

# Dimensions fixed by the PyTorch module: d_model=200, nhead=10, 12 layers,
# fc input = 48 * embedding_dim  =>  seq_len = 48, embedding_dim = 200.
SEQ = 48
D_MODEL = 200
N_HEADS = 10
HEAD_DIM = D_MODEL // N_HEADS      # 20
FFN_DIM = 2048                     # nn.TransformerEncoderLayer default
N_LAYERS = 12
LN_EPS = 1e-5

QKV_PAD = 256                      # lane-aligned width of each q/k/v segment
QKV_W = 3 * QKV_PAD                # 768: fused QKV output width

# Packed small-param array: (L, 4, 2048) f32, every lane offset a multiple of 128.
#   row 0: b1   [0:2048]
#   row 1: s1   [0:2048]   (FFN1 int8 per-output-channel dequant scales)
#   row 2: bqkv [0:768] | bo [768:968] | ln1w [1024:1224] | ln1b [1280:1480]
#          | b2 [1536:1736] | ln2w [1792:1992]
#   row 3: ln2b [0:200] | s2 [256:456]
PACK_W = 2048
PACK_ROWS = 4
OFF_BO, OFF_LN1W, OFF_LN1B, OFF_B2, OFF_LN2W = 768, 1024, 1280, 1536, 1792
OFF_LN2B, OFF_S2 = 0, 256


# ---------------------------------------------------------------------------
# Pallas kernel: one grid step == one post-norm nn.TransformerEncoderLayer;
# the fused flatten+fc head runs under pl.when on the last step.
# ---------------------------------------------------------------------------
def _encoder_kernel(x_ref, mask_ref, wqkv_ref, wo_ref, w1q_ref, w2q_ref,
                    smalls_ref, fcw_ref, fcb_ref, o_ref, x_sc):
    layer = pl.program_id(0)

    @pl.when(layer == 0)
    def _():
        x_sc[...] = x_ref[...]

    x = x_sc[...]                                   # (SEQ, D) f32, resident
    x_bf = x.astype(jnp.bfloat16)

    # ---- single packed DMA of all per-layer vectors; 128-aligned lane slices ----
    sp = smalls_ref[0]                              # (4, 2048) f32
    b1 = sp[0:1, :]                                 # (1, 2048)
    s1 = sp[1:2, :]                                 # (1, 2048)
    bqkv = sp[2:3, 0:QKV_W]                         # (1, 768)
    bo = sp[2:3, OFF_BO:OFF_BO + D_MODEL]
    ln1w = sp[2:3, OFF_LN1W:OFF_LN1W + D_MODEL]
    ln1b = sp[2:3, OFF_LN1B:OFF_LN1B + D_MODEL]
    b2 = sp[2:3, OFF_B2:OFF_B2 + D_MODEL]
    ln2w = sp[2:3, OFF_LN2W:OFF_LN2W + D_MODEL]
    ln2b = sp[3:4, OFF_LN2B:OFF_LN2B + D_MODEL]
    s2 = sp[3:4, OFF_S2:OFF_S2 + D_MODEL]

    # ---- fused Q/K/V projection: one (48,200)@(200,768) matmul ----
    # (1/sqrt(head_dim) is folded into the q segment of wqkv/bqkv at prep time;
    #  segments start at 128-lane-aligned offsets 0 / 256 / 512.)
    qkv = jnp.dot(x_bf, wqkv_ref[0],
                  preferred_element_type=jnp.float32) + bqkv    # (48, 768) f32
    q = qkv[:, 0:D_MODEL]
    k = qkv[:, QKV_PAD:QKV_PAD + D_MODEL]
    v = qkv[:, 2 * QKV_PAD:2 * QKV_PAD + D_MODEL]

    mask = mask_ref[...]                            # (H, 1, D) f32 0/1 head masks

    # ---- stacked per-head attention: one score matmul, one softmax, one ctx matmul ----
    # Qm row h*SEQ+i = q[i] masked to head h's 20 columns, so
    #   S[h*SEQ+i, j]  = exact head-h scores,
    #   C[h*SEQ+i, :]  = P_h @ v, and ctx = sum_h mask_h * C_h (heads disjoint+covering).
    qm = (q[None, :, :] * mask).reshape(N_HEADS * SEQ, D_MODEL).astype(jnp.bfloat16)
    s = jnp.einsum('nd,kd->nk', qm, k.astype(jnp.bfloat16),
                   preferred_element_type=jnp.float32)          # (480, 48) f32
    s = s - jnp.max(s, axis=-1, keepdims=True)
    p = jnp.exp(s)
    p = p * pl.reciprocal(jnp.sum(p, axis=-1, keepdims=True), approx=True)

    c = jnp.dot(p.astype(jnp.bfloat16), v.astype(jnp.bfloat16),
                preferred_element_type=jnp.float32)             # (480, 200) f32
    ctx = jnp.sum(c.reshape(N_HEADS, SEQ, D_MODEL) * mask, axis=0)   # (48, 200)

    attn = jnp.dot(ctx.astype(jnp.bfloat16), wo_ref[0],
                   preferred_element_type=jnp.float32) + bo

    # ---- residual + LayerNorm1 (dropout = identity, eval mode) ----
    y = x + attn
    mu = jnp.mean(y, axis=-1, keepdims=True)
    var = jnp.mean((y - mu) * (y - mu), axis=-1, keepdims=True)
    y = (y - mu) * jax.lax.rsqrt(var + LN_EPS) * ln1w + ln1b

    # ---- feed-forward: int8 weight-only dequant -> bf16 matmul -> scale fold ----
    w1 = w1q_ref[0].astype(jnp.bfloat16)            # (200, 2048)
    h1 = jnp.dot(y.astype(jnp.bfloat16), w1,
                 preferred_element_type=jnp.float32) * s1 + b1
    h1 = jnp.maximum(h1, 0.0)
    w2 = w2q_ref[0].astype(jnp.bfloat16)            # (2048, 200)
    h2 = jnp.dot(h1.astype(jnp.bfloat16), w2,
                 preferred_element_type=jnp.float32) * s2 + b2

    # ---- residual + LayerNorm2 ----
    z = y + h2
    mu2 = jnp.mean(z, axis=-1, keepdims=True)
    var2 = jnp.mean((z - mu2) * (z - mu2), axis=-1, keepdims=True)
    z = (z - mu2) * jax.lax.rsqrt(var2 + LN_EPS) * ln2w + ln2b

    x_sc[...] = z

    # ---- fused flatten + fc head on the last layer (dropout p=0.5 = identity) ----
    @pl.when(layer == pl.num_programs(0) - 1)
    def _():
        w = fcw_ref[...]                            # (OUT, SEQ, D) f32
        acc = jnp.sum(w * z[None, :, :], axis=-1)   # (OUT, SEQ)
        o_ref[...] = jnp.sum(acc, axis=-1, keepdims=True) + fcb_ref[...]


# ---------------------------------------------------------------------------
# Wrappers
# ---------------------------------------------------------------------------
def encoder_forward(embedded, prep):
    out_dim = prep['fcb'].shape[0]
    m3 = lambda l: (l, 0, 0)
    c2 = lambda l: (0, 0)
    c3 = lambda l: (0, 0, 0)
    return pl.pallas_call(
        _encoder_kernel,
        out_shape=jax.ShapeDtypeStruct((out_dim, 1), jnp.float32),
        grid_spec=pltpu.PrefetchScalarGridSpec(
            num_scalar_prefetch=0,
            grid=(N_LAYERS,),
            in_specs=[
                pl.BlockSpec((SEQ, D_MODEL), c2),              # x (fetched once)
                pl.BlockSpec((N_HEADS, 1, D_MODEL), c3),       # head masks (once)
                pl.BlockSpec((1, D_MODEL, QKV_W), m3),         # fused QKV weight bf16
                pl.BlockSpec((1, D_MODEL, D_MODEL), m3),       # out-proj weight bf16
                pl.BlockSpec((1, D_MODEL, FFN_DIM), m3),       # FFN1 weight int8
                pl.BlockSpec((1, FFN_DIM, D_MODEL), m3),       # FFN2 weight int8
                pl.BlockSpec((1, PACK_ROWS, PACK_W), m3),      # packed small params
                pl.BlockSpec((out_dim, SEQ, D_MODEL), c3),     # fc weight (once)
                pl.BlockSpec((out_dim, 1), c2),                # fc bias (once)
            ],
            out_specs=pl.BlockSpec((out_dim, 1), c2),
            scratch_shapes=[pltpu.VMEM((SEQ, D_MODEL), jnp.float32)],
        ),
        compiler_params=pltpu.CompilerParams(
            dimension_semantics=("arbitrary",),
            vmem_limit_bytes=32 * 1024 * 1024),
    )(embedded, prep['head_mask'], prep['wqkv'], prep['wo'],
      prep['w1q'], prep['w2q'], prep['smalls'], prep['fcw'], prep['fcb'])


def init_params(key, vocab, out_dim):
    """PyTorch-layout parameters (as a state_dict-like pytree)."""
    def nrm(k, shape, scale=0.02):
        return jax.random.normal(k, shape, jnp.float32) * scale
    ks = jax.random.split(key, 11)
    return dict(
        emb=nrm(ks[0], (vocab, D_MODEL), 0.1),
        in_proj_w=nrm(ks[1], (N_LAYERS, 3 * D_MODEL, D_MODEL)),
        in_proj_b=nrm(ks[2], (N_LAYERS, 3 * D_MODEL)),
        out_proj_w=nrm(ks[3], (N_LAYERS, D_MODEL, D_MODEL)),
        out_proj_b=nrm(ks[4], (N_LAYERS, D_MODEL)),
        lin1_w=nrm(ks[5], (N_LAYERS, FFN_DIM, D_MODEL)),
        lin1_b=nrm(ks[6], (N_LAYERS, FFN_DIM)),
        lin2_w=nrm(ks[7], (N_LAYERS, D_MODEL, FFN_DIM)),
        lin2_b=nrm(ks[8], (N_LAYERS, D_MODEL)),
        ln1_w=jnp.ones((N_LAYERS, D_MODEL), jnp.float32),
        ln1_b=jnp.zeros((N_LAYERS, D_MODEL), jnp.float32),
        ln2_w=jnp.ones((N_LAYERS, D_MODEL), jnp.float32),
        ln2_b=jnp.zeros((N_LAYERS, D_MODEL), jnp.float32),
        fc_w=nrm(ks[9], (out_dim, SEQ * D_MODEL)),
        fc_b=nrm(ks[10], (out_dim,)),
    )


def prepare_params(p):
    """One-time weight re-layout (hoisted out of the forward path):
       transpose to (in, out), fold softmax scale into Q, concat+pad QKV to 768
       lanes, int8-quantize FFN weights (per-output-channel scales), pack all
       small per-layer vectors into one (L,4,2048) array, cast matmul weights."""
    L, D = N_LAYERS, D_MODEL
    scale = 1.0 / math.sqrt(HEAD_DIM)
    ipw, ipb = p['in_proj_w'], p['in_proj_b']

    wq = jnp.transpose(ipw[:, 0:D, :], (0, 2, 1)) * scale          # (L, D, D)
    wk = jnp.transpose(ipw[:, D:2 * D, :], (0, 2, 1))
    wv = jnp.transpose(ipw[:, 2 * D:3 * D, :], (0, 2, 1))
    pad_w = jnp.zeros((L, D, QKV_PAD - D), jnp.float32)
    wqkv = jnp.concatenate([wq, pad_w, wk, pad_w, wv, pad_w],
                           axis=2).astype(jnp.bfloat16)            # (L, D, 768)
    pad_b = jnp.zeros((L, QKV_PAD - D), jnp.float32)
    bqkv = jnp.concatenate([ipb[:, 0:D] * scale, pad_b,
                            ipb[:, D:2 * D], pad_b,
                            ipb[:, 2 * D:3 * D], pad_b], axis=1)   # (L, 768)

    wo = jnp.transpose(p['out_proj_w'], (0, 2, 1)).astype(jnp.bfloat16)   # (L, D, D)

    # FFN weight-only int8 quantization with per-output-channel scales.
    w1 = jnp.transpose(p['lin1_w'], (0, 2, 1))                     # (L, D, FFN)
    w2 = jnp.transpose(p['lin2_w'], (0, 2, 1))                     # (L, FFN, D)
    s1 = jnp.maximum(jnp.max(jnp.abs(w1), axis=1), 1e-12) / 127.0  # (L, FFN)
    s2 = jnp.maximum(jnp.max(jnp.abs(w2), axis=1), 1e-12) / 127.0  # (L, D)
    w1q = jnp.clip(jnp.round(w1 / s1[:, None, :]), -127, 127).astype(jnp.int8)
    w2q = jnp.clip(jnp.round(w2 / s2[:, None, :]), -127, 127).astype(jnp.int8)

    def place(pieces):
        row = jnp.zeros((L, PACK_W), jnp.float32)
        for off, arr in pieces:
            row = row.at[:, off:off + arr.shape[1]].set(arr)
        return row

    row0 = p['lin1_b'].astype(jnp.float32)                         # b1, (L, 2048)
    row1 = s1.astype(jnp.float32)
    row2 = place([(0, bqkv), (OFF_BO, p['out_proj_b']),
                  (OFF_LN1W, p['ln1_w']), (OFF_LN1B, p['ln1_b']),
                  (OFF_B2, p['lin2_b']), (OFF_LN2W, p['ln2_w'])])
    row3 = place([(OFF_LN2B, p['ln2_b']), (OFF_S2, s2)])
    smalls = jnp.stack([row0, row1, row2, row3], axis=1)           # (L, 4, 2048)

    # 0/1 mask per head over the 200 feature columns (head h owns [20h, 20h+20)).
    head_ids = jnp.arange(D, dtype=jnp.int32) // HEAD_DIM
    head_mask = (head_ids[None, :] == jnp.arange(N_HEADS, dtype=jnp.int32)[:, None])
    head_mask = head_mask.astype(jnp.float32).reshape(N_HEADS, 1, D)

    out_dim = p['fc_w'].shape[0]
    return dict(
        emb=p['emb'].astype(jnp.float32),
        head_mask=head_mask,
        wqkv=wqkv, wo=wo, w1q=w1q, w2q=w2q, smalls=smalls,
        fcw=p['fc_w'].reshape(out_dim, SEQ, D).astype(jnp.float32),  # row-major flatten
        fcb=p['fc_b'].reshape(out_dim, 1).astype(jnp.float32),
    )


def transformer_forward(text, prep):
    # Embedding lookup is a gather (glue, not a hot path) -> plain JAX.
    embedded = jnp.take(prep['emb'], text, axis=0).astype(jnp.float32)   # (48, 200)
    # TODO(synk): dropout (p=0.1 in encoder, p=0.5 before fc) is identity (eval mode).
    logits = encoder_forward(embedded, prep)                             # (out_dim, 1)
    return logits[:, 0]                                                  # (output_dim,)


if __name__ == "__main__":
    INPUT_DIM = 5      # small vocab (e.g. A, C, G, T, N)
    OUTPUT_DIM = 2     # binary promoter classification

    key = jax.random.PRNGKey(0)
    pkey, tkey = jax.random.split(key)
    params = init_params(pkey, INPUT_DIM, OUTPUT_DIM)
    prep = prepare_params(params)            # one-time re-layout / quant / pack (hoisted)
    prep = jax.tree_util.tree_map(jax.block_until_ready, prep)

    text = jax.random.randint(tkey, (SEQ,), 0, INPUT_DIM, dtype=jnp.int32)

    out = jax.jit(transformer_forward)(text, prep)
    jax.block_until_ready(out)
    assert out.shape == (OUTPUT_DIM,)
    assert bool(jnp.all(jnp.isfinite(out)))
    print("KERNEL_OK")
</pallas_src>

<mosaic_0001>
module attributes {stable_mosaic.version = 11 : i64} {
  func.func @_encoder_kernel(%arg0: i32, %arg1: memref<48x200xf32, #tpu.memory_space<vmem>>, %arg2: memref<10x1x200xf32, #tpu.memory_space<vmem>>, %arg3: memref<1x200x768xbf16, #tpu.memory_space<vmem>>, %arg4: memref<1x200x200xbf16, #tpu.memory_space<vmem>>, %arg5: memref<1x200x2048xi8, #tpu.memory_space<vmem>>, %arg6: memref<1x2048x200xi8, #tpu.memory_space<vmem>>, %arg7: memref<1x4x2048xf32, #tpu.memory_space<vmem>>, %arg8: memref<2x48x200xf32, #tpu.memory_space<vmem>>, %arg9: memref<2x1xf32, #tpu.memory_space<vmem>>, %arg10: memref<2x1xf32, #tpu.memory_space<vmem>>, %arg11: memref<48x200xf32, #tpu.memory_space<vmem>>) attributes {dimension_semantics = [#tpu.dimension_semantics<arbitrary>], iteration_bounds = array<i64: 12>, scalar_prefetch = 0 : i64, scratch_operands = 1 : i64, tpu.core_type = #tpu.core_type<tc>, window_params = [{pipeline_mode = #tpu.pipeline_mode<synchronous>, transform_indices = @transform_0, window_bounds = array<i64: 48, 200>}, {pipeline_mode = #tpu.pipeline_mode<synchronous>, transform_indices = @transform_1, window_bounds = array<i64: 10, 1, 200>}, {transform_indices = @transform_2, window_bounds = array<i64: 1, 200, 768>}, {transform_indices = @transform_3, window_bounds = array<i64: 1, 200, 200>}, {transform_indices = @transform_4, window_bounds = array<i64: 1, 200, 2048>}, {transform_indices = @transform_5, window_bounds = array<i64: 1, 2048, 200>}, {transform_indices = @transform_6, window_bounds = array<i64: 1, 4, 2048>}, {pipeline_mode = #tpu.pipeline_mode<synchronous>, transform_indices = @transform_7, window_bounds = array<i64: 2, 48, 200>}, {pipeline_mode = #tpu.pipeline_mode<synchronous>, transform_indices = @transform_8, window_bounds = array<i64: 2, 1>}, {pipeline_mode = #tpu.pipeline_mode<synchronous>, transform_indices = @transform_9, window_bounds = array<i64: 2, 1>}]} {
    %c0_i32 = arith.constant 0 : i32
    %0 = arith.cmpi eq, %arg0, %c0_i32 : i32
    %1 = arith.extui %0 : i1 to i32
    %c0_i32_0 = arith.constant 0 : i32
    %2 = arith.cmpi ne, %1, %c0_i32_0 : i32
    scf.if %2 {
      %c0_42 = arith.constant 0 : index
      %c0_43 = arith.constant 0 : index
      %131 = vector.load %arg1[%c0_42, %c0_43] : memref<48x200xf32, #tpu.memory_space<vmem>>, vector<48x200xf32>
      %c0_44 = arith.constant 0 : index
      %c0_45 = arith.constant 0 : index
      %132 = vector.load %arg11[%c0_44, %c0_45] : memref<48x200xf32, #tpu.memory_space<vmem>>, vector<48x200xf32>
      tpu.vector_store %arg11[%c0_44, %c0_45], %131 {strides = array<i32>} : memref<48x200xf32, #tpu.memory_space<vmem>>, vector<48x200xf32>,
    } else {
    }
    %c0 = arith.constant 0 : index
    %c0_1 = arith.constant 0 : index
    %3 = vector.load %arg11[%c0, %c0_1] : memref<48x200xf32, #tpu.memory_space<vmem>>, vector<48x200xf32>
    %4 = arith.truncf %3 : vector<48x200xf32> to vector<48x200xbf16>
    %c0_2 = arith.constant 0 : index
    %c0_3 = arith.constant 0 : index
    %c0_4 = arith.constant 0 : index
    %5 = vector.load %arg7[%c0_2, %c0_3, %c0_4] : memref<1x4x2048xf32, #tpu.memory_space<vmem>>, vector<1x4x2048xf32>
    %6 = vector.shape_cast %5 : vector<1x4x2048xf32> to vector<4x2048xf32>
    %7 = vector.extract_strided_slice %6 {offsets = [0, 0], sizes = [1, 2048], strides = [1, 1]} : vector<4x2048xf32> to vector<1x2048xf32>
    %8 = vector.extract_strided_slice %6 {offsets = [1, 0], sizes = [1, 2048], strides = [1, 1]} : vector<4x2048xf32> to vector<1x2048xf32>
    %9 = vector.extract_strided_slice %6 {offsets = [2, 0], sizes = [1, 768], strides = [1, 1]} : vector<4x2048xf32> to vector<1x768xf32>
    %10 = vector.extract_strided_slice %6 {offsets = [2, 768], sizes = [1, 200], strides = [1, 1]} : vector<4x2048xf32> to vector<1x200xf32>
    %11 = vector.extract_strided_slice %6 {offsets = [2, 1024], sizes = [1, 200], strides = [1, 1]} : vector<4x2048xf32> to vector<1x200xf32>
    %12 = vector.extract_strided_slice %6 {offsets = [2, 1280], sizes = [1, 200], strides = [1, 1]} : vector<4x2048xf32> to vector<1x200xf32>
    %13 = vector.extract_strided_slice %6 {offsets = [2, 1536], sizes = [1, 200], strides = [1, 1]} : vector<4x2048xf32> to vector<1x200xf32>
    %14 = vector.extract_strided_slice %6 {offsets = [2, 1792], sizes = [1, 200], strides = [1, 1]} : vector<4x2048xf32> to vector<1x200xf32>
    %15 = vector.extract_strided_slice %6 {offsets = [3, 0], sizes = [1, 200], strides = [1, 1]} : vector<4x2048xf32> to vector<1x200xf32>
    %16 = vector.extract_strided_slice %6 {offsets = [3, 256], sizes = [1, 200], strides = [1, 1]} : vector<4x2048xf32> to vector<1x200xf32>
    %c0_5 = arith.constant 0 : index
    %c0_6 = arith.constant 0 : index
    %c0_7 = arith.constant 0 : index
    %17 = vector.load %arg3[%c0_5, %c0_6, %c0_7] : memref<1x200x768xbf16, #tpu.memory_space<vmem>>, vector<1x200x768xbf16>
    %18 = vector.shape_cast %17 : vector<1x200x768xbf16> to vector<200x768xbf16>
    %cst = arith.constant dense<0.000000e+00> : vector<48x768xf32>
    %19 = tpu.matmul %4, %18, %cst {dimension_numbers = #tpu.dot_dimension_numbers<[1], [0], [0], [1], [0, 0, 1, 1], [], []>} : vector<48x200xbf16>, vector<200x768xbf16>, vector<48x768xf32> -> vector<48x768xf32>
    %20 = vector.broadcast %9 : vector<1x768xf32> to vector<48x768xf32>
    %21 = arith.addf %19, %20 : vector<48x768xf32>
    %22 = vector.extract_strided_slice %21 {offsets = [0, 0], sizes = [48, 200], strides = [1, 1]} : vector<48x768xf32> to vector<48x200xf32>
    %23 = vector.extract_strided_slice %21 {offsets = [0, 256], sizes = [48, 200], strides = [1, 1]} : vector<48x768xf32> to vector<48x200xf32>
    %24 = vector.extract_strided_slice %21 {offsets = [0, 512], sizes = [48, 200], strides = [1, 1]} : vector<48x768xf32> to vector<48x200xf32>
    %c0_8 = arith.constant 0 : index
    %c0_9 = arith.constant 0 : index
    %c0_10 = arith.constant 0 : index
    %25 = vector.load %arg2[%c0_8, %c0_9, %c0_10] : memref<10x1x200xf32, #tpu.memory_space<vmem>>, vector<10x1x200xf32>
    %26 = vector.shape_cast %22 : vector<48x200xf32> to vector<1x48x200xf32>
    %27 = vector.broadcast %26 : vector<1x48x200xf32> to vector<10x48x200xf32>
    %28 = vector.broadcast %25 : vector<10x1x200xf32> to vector<10x48x200xf32>
    %29 = arith.mulf %27, %28 : vector<10x48x200xf32>
    %30 = vector.shape_cast %29 : vector<10x48x200xf32> to vector<480x200xf32>
    %31 = arith.truncf %30 : vector<480x200xf32> to vector<480x200xbf16>
    %32 = arith.truncf %23 : vector<48x200xf32> to vector<48x200xbf16>
    "tpu.trace_start"() <{level = 10 : i32, message = "nd,kd->nk"}> : () -> ()
    %cst_11 = arith.constant dense<0.000000e+00> : vector<480x48xf32>
    %33 = tpu.matmul %31, %32, %cst_11 {dimension_numbers = #tpu.dot_dimension_numbers<[1], [1], [0], [0], [0, 0, 1, 0], [], []>} : vector<480x200xbf16>, vector<48x200xbf16>, vector<480x48xf32> -> vector<480x48xf32>
    "tpu.trace_stop"() : () -> ()
    %cst_12 = arith.constant dense<0xFF800000> : vector<480xf32>
    %34 = vector.multi_reduction <maximumf>, %33, %cst_12 [1] : vector<480x48xf32> to vector<480xf32>
    %35 = vector.shape_cast %34 : vector<480xf32> to vector<480x1xf32>
    %36 = vector.broadcast %35 : vector<480x1xf32> to vector<480x48xf32>
    %37 = arith.subf %33, %36 : vector<480x48xf32>
    %38 = math.exp %37 : vector<480x48xf32>
    %cst_13 = arith.constant dense<0.000000e+00> : vector<480xf32>
    %39 = vector.multi_reduction <add>, %38, %cst_13 [1] : vector<480x48xf32> to vector<480xf32>
    %40 = vector.shape_cast %39 : vector<480xf32> to vector<480x1xf32>
    %41 = tpu.reciprocal %40 {approx = true} : vector<480x1xf32> -> vector<480x1xf32>
    %42 = vector.broadcast %41 : vector<480x1xf32> to vector<480x48xf32>
    %43 = arith.mulf %38, %42 : vector<480x48xf32>
    %44 = arith.truncf %43 : vector<480x48xf32> to vector<480x48xbf16>
    %45 = arith.truncf %24 : vector<48x200xf32> to vector<48x200xbf16>
    %cst_14 = arith.constant dense<0.000000e+00> : vector<480x200xf32>
    %46 = tpu.matmul %44, %45, %cst_14 {dimension_numbers = #tpu.dot_dimension_numbers<[1], [0], [0], [1], [0, 0, 1, 1], [], []>} : vector<480x48xbf16>, vector<48x200xbf16>, vector<480x200xf32> -> vector<480x200xf32>
    %47 = vector.shape_cast %46 : vector<480x200xf32> to vector<10x48x200xf32>
    %48 = vector.broadcast %25 : vector<10x1x200xf32> to vector<10x48x200xf32>
    %49 = arith.mulf %47, %48 : vector<10x48x200xf32>
    %cst_15 = arith.constant dense<0.000000e+00> : vector<48x200xf32>
    %50 = vector.multi_reduction <add>, %49, %cst_15 [0] : vector<10x48x200xf32> to vector<48x200xf32>
    %51 = arith.truncf %50 : vector<48x200xf32> to vector<48x200xbf16>
    %c0_16 = arith.constant 0 : index
    %c0_17 = arith.constant 0 : index
    %c0_18 = arith.constant 0 : index
    %52 = vector.load %arg4[%c0_16, %c0_17, %c0_18] : memref<1x200x200xbf16, #tpu.memory_space<vmem>>, vector<1x200x200xbf16>
    %53 = vector.shape_cast %52 : vector<1x200x200xbf16> to vector<200x200xbf16>
    %cst_19 = arith.constant dense<0.000000e+00> : vector<48x200xf32>
    %54 = tpu.matmul %51, %53, %cst_19 {dimension_numbers = #tpu.dot_dimension_numbers<[1], [0], [0], [1], [0, 0, 1, 1], [], []>} : vector<48x200xbf16>, vector<200x200xbf16>, vector<48x200xf32> -> vector<48x200xf32>
    %55 = vector.broadcast %10 : vector<1x200xf32> to vector<48x200xf32>
    %56 = arith.addf %54, %55 : vector<48x200xf32>
    %57 = arith.addf %3, %56 : vector<48x200xf32>
    %cst_20 = arith.constant dense<0.000000e+00> : vector<48xf32>
    %58 = vector.multi_reduction <add>, %57, %cst_20 [1] : vector<48x200xf32> to vector<48xf32>
    %59 = vector.shape_cast %58 : vector<48xf32> to vector<48x1xf32>
    %cst_21 = arith.constant 2.000000e+02 : f32
    %60 = vector.broadcast %cst_21 : f32 to vector<48x1xf32>
    %61 = arith.divf %59, %60 : vector<48x1xf32>
    %62 = vector.broadcast %61 : vector<48x1xf32> to vector<48x200xf32>
    %63 = arith.subf %57, %62 : vector<48x200xf32>
    %64 = vector.broadcast %61 : vector<48x1xf32> to vector<48x200xf32>
    %65 = arith.subf %57, %64 : vector<48x200xf32>
    %66 = arith.mulf %63, %65 : vector<48x200xf32>
    %cst_22 = arith.constant dense<0.000000e+00> : vector<48xf32>
    %67 = vector.multi_reduction <add>, %66, %cst_22 [1] : vector<48x200xf32> to vector<48xf32>
    %68 = vector.shape_cast %67 : vector<48xf32> to vector<48x1xf32>
    %cst_23 = arith.constant 2.000000e+02 : f32
    %69 = vector.broadcast %cst_23 : f32 to vector<48x1xf32>
    %70 = arith.divf %68, %69 : vector<48x1xf32>
    %71 = vector.broadcast %61 : vector<48x1xf32> to vector<48x200xf32>
    %72 = arith.subf %57, %71 : vector<48x200xf32>
    %cst_24 = arith.constant 9.99999974E-6 : f32
    %73 = vector.broadcast %cst_24 : f32 to vector<48x1xf32>
    %74 = arith.addf %70, %73 : vector<48x1xf32>
    %75 = math.rsqrt %74 : vector<48x1xf32>
    %76 = vector.broadcast %75 : vector<48x1xf32> to vector<48x200xf32>
    %77 = arith.mulf %72, %76 : vector<48x200xf32>
    %78 = vector.broadcast %11 : vector<1x200xf32> to vector<48x200xf32>
    %79 = arith.mulf %77, %78 : vector<48x200xf32>
    %80 = vector.broadcast %12 : vector<1x200xf32> to vector<48x200xf32>
    %81 = arith.addf %79, %80 : vector<48x200xf32>
    %c0_25 = arith.constant 0 : index
    %c0_26 = arith.constant 0 : index
    %c0_27 = arith.constant 0 : index
    %82 = vector.load %arg5[%c0_25, %c0_26, %c0_27] : memref<1x200x2048xi8, #tpu.memory_space<vmem>>, vector<1x200x2048xi8>
    %83 = vector.shape_cast %82 : vector<1x200x2048xi8> to vector<200x2048xi8>
    %84 = arith.sitofp %83 : vector<200x2048xi8> to vector<200x2048xbf16>
    %85 = arith.truncf %81 : vector<48x200xf32> to vector<48x200xbf16>
    %cst_28 = arith.constant dense<0.000000e+00> : vector<48x2048xf32>
    %86 = tpu.matmul %85, %84, %cst_28 {dimension_numbers = #tpu.dot_dimension_numbers<[1], [0], [0], [1], [0, 0, 1, 1], [], []>} : vector<48x200xbf16>, vector<200x2048xbf16>, vector<48x2048xf32> -> vector<48x2048xf32>
    %87 = vector.broadcast %8 : vector<1x2048xf32> to vector<48x2048xf32>
    %88 = arith.mulf %86, %87 : vector<48x2048xf32>
    %89 = vector.broadcast %7 : vector<1x2048xf32> to vector<48x2048xf32>
    %90 = arith.addf %88, %89 : vector<48x2048xf32>
    %cst_29 = arith.constant 0.000000e+00 : f32
    %91 = vector.broadcast %cst_29 : f32 to vector<48x2048xf32>
    %92 = arith.maximumf %90, %91 : vector<48x2048xf32>
    %c0_30 = arith.constant 0 : index
    %c0_31 = arith.constant 0 : index
    %c0_32 = arith.constant 0 : index
    %93 = vector.load %arg6[%c0_30, %c0_31, %c0_32] : memref<1x2048x200xi8, #tpu.memory_space<vmem>>, vector<1x2048x200xi8>
    %94 = vector.shape_cast %93 : vector<1x2048x200xi8> to vector<2048x200xi8>
    %95 = arith.sitofp %94 : vector<2048x200xi8> to vector<2048x200xbf16>
    %96 = arith.truncf %92 : vector<48x2048xf32> to vector<48x2048xbf16>
    %cst_33 = arith.constant dense<0.000000e+00> : vector<48x200xf32>
    %97 = tpu.matmul %96, %95, %cst_33 {dimension_numbers = #tpu.dot_dimension_numbers<[1], [0], [0], [1], [0, 0, 1, 1], [], []>} : vector<48x2048xbf16>, vector<2048x200xbf16>, vector<48x200xf32> -> vector<48x200xf32>
    %98 = vector.broadcast %16 : vector<1x200xf32> to vector<48x200xf32>
    %99 = arith.mulf %97, %98 : vector<48x200xf32>
    %100 = vector.broadcast %13 : vector<1x200xf32> to vector<48x200xf32>
    %101 = arith.addf %99, %100 : vector<48x200xf32>
    %102 = arith.addf %81, %101 : vector<48x200xf32>
    %cst_34 = arith.constant dense<0.000000e+00> : vector<48xf32>
    %103 = vector.multi_reduction <add>, %102, %cst_34 [1] : vector<48x200xf32> to vector<48xf32>
    %104 = vector.shape_cast %103 : vector<48xf32> to vector<48x1xf32>
    %cst_35 = arith.constant 2.000000e+02 : f32
    %105 = vector.broadcast %cst_35 : f32 to vector<48x1xf32>
    %106 = arith.divf %104, %105 : vector<48x1xf32>
    %107 = vector.broadcast %106 : vector<48x1xf32> to vector<48x200xf32>
    %108 = arith.subf %102, %107 : vector<48x200xf32>
    %109 = vector.broadcast %106 : vector<48x1xf32> to vector<48x200xf32>
    %110 = arith.subf %102, %109 : vector<48x200xf32>
    %111 = arith.mulf %108, %110 : vector<48x200xf32>
    %cst_36 = arith.constant dense<0.000000e+00> : vector<48xf32>
    %112 = vector.multi_reduction <add>, %111, %cst_36 [1] : vector<48x200xf32> to vector<48xf32>
    %113 = vector.shape_cast %112 : vector<48xf32> to vector<48x1xf32>
    %cst_37 = arith.constant 2.000000e+02 : f32
    %114 = vector.broadcast %cst_37 : f32 to vector<48x1xf32>
    %115 = arith.divf %113, %114 : vector<48x1xf32>
    %116 = vector.broadcast %106 : vector<48x1xf32> to vector<48x200xf32>
    %117 = arith.subf %102, %116 : vector<48x200xf32>
    %cst_38 = arith.constant 9.99999974E-6 : f32
    %118 = vector.broadcast %cst_38 : f32 to vector<48x1xf32>
    %119 = arith.addf %115, %118 : vector<48x1xf32>
    %120 = math.rsqrt %119 : vector<48x1xf32>
    %121 = vector.broadcast %120 : vector<48x1xf32> to vector<48x200xf32>
    %122 = arith.mulf %117, %121 : vector<48x200xf32>
    %123 = vector.broadcast %14 : vector<1x200xf32> to vector<48x200xf32>
    %124 = arith.mulf %122, %123 : vector<48x200xf32>
    %125 = vector.broadcast %15 : vector<1x200xf32> to vector<48x200xf32>
    %126 = arith.addf %124, %125 : vector<48x200xf32>
    %c0_39 = arith.constant 0 : index
    %c0_40 = arith.constant 0 : index
    %127 = vector.load %arg11[%c0_39, %c0_40] : memref<48x200xf32, #tpu.memory_space<vmem>>, vector<48x200xf32>
    tpu.vector_store %arg11[%c0_39, %c0_40], %126 {strides = array<i32>} : memref<48x200xf32, #tpu.memory_space<vmem>>, vector<48x200xf32>,
    %c11_i32 = arith.constant 11 : i32
    %128 = arith.cmpi eq, %arg0, %c11_i32 : i32
    %129 = arith.extui %128 : i1 to i32
    %c0_i32_41 = arith.constant 0 : i32
    %130 = arith.cmpi ne, %129, %c0_i32_41 : i32
    scf.if %130 {
      %c0_42 = arith.constant 0 : index
      %c0_43 = arith.constant 0 : index
      %c0_44 = arith.constant 0 : index
      %131 = vector.load %arg8[%c0_42, %c0_43, %c0_44] : memref<2x48x200xf32, #tpu.memory_space<vmem>>, vector<2x48x200xf32>
      %132 = vector.shape_cast %126 : vector<48x200xf32> to vector<1x48x200xf32>
      %133 = vector.broadcast %132 : vector<1x48x200xf32> to vector<2x48x200xf32>
      %134 = arith.mulf %131, %133 : vector<2x48x200xf32>
      %cst_45 = arith.constant dense<0.000000e+00> : vector<2x48xf32>
      %135 = vector.multi_reduction <add>, %134, %cst_45 [2] : vector<2x48x200xf32> to vector<2x48xf32>
      %cst_46 = arith.constant dense<0.000000e+00> : vector<2xf32>
      %136 = vector.multi_reduction <add>, %135, %cst_46 [1] : vector<2x48xf32> to vector<2xf32>
      %137 = vector.shape_cast %136 : vector<2xf32> to vector<2x1xf32>
      %c0_47 = arith.constant 0 : index
      %c0_48 = arith.constant 0 : index
      %138 = vector.load %arg9[%c0_47, %c0_48] : memref<2x1xf32, #tpu.memory_space<vmem>>, vector<2x1xf32>
      %139 = arith.addf %137, %138 : vector<2x1xf32>
      %c0_49 = arith.constant 0 : index
      %c0_50 = arith.constant 0 : index
      %140 = vector.load %arg10[%c0_49, %c0_50] : memref<2x1xf32, #tpu.memory_space<vmem>>, vector<2x1xf32>
      tpu.vector_store %arg10[%c0_49, %c0_50], %139 {strides = array<i32>} : memref<2x1xf32, #tpu.memory_space<vmem>>, vector<2x1xf32>,
    } else {
    }
    return
  }
  func.func @transform_0(%arg0: i32) -> (i32, i32) {
    %c0_i32 = arith.constant 0 : i32
    %c0_i32_0 = arith.constant 0 : i32
    %c0_i32_1 = arith.constant 0 : i32
    return %c0_i32, %c0_i32_0 : i32, i32
  }
  func.func @transform_1(%arg0: i32) -> (i32, i32, i32) {
    %c0_i32 = arith.constant 0 : i32
    %c0_i32_0 = arith.constant 0 : i32
    %c0_i32_1 = arith.constant 0 : i32
    %c0_i32_2 = arith.constant 0 : i32
    return %c0_i32, %c0_i32_0, %c0_i32_1 : i32, i32, i32
  }
  func.func @transform_2(%arg0: i32) -> (i32, i32, i32) {
    %c0_i32 = arith.constant 0 : i32
    %c0_i32_0 = arith.constant 0 : i32
    %c0_i32_1 = arith.constant 0 : i32
    return %arg0, %c0_i32, %c0_i32_0 : i32, i32, i32
  }
  func.func @transform_3(%arg0: i32) -> (i32, i32, i32) {
    %c0_i32 = arith.constant 0 : i32
    %c0_i32_0 = arith.constant 0 : i32
    %c0_i32_1 = arith.constant 0 : i32
    return %arg0, %c0_i32, %c0_i32_0 : i32, i32, i32
  }
  func.func @transform_4(%arg0: i32) -> (i32, i32, i32) {
    %c0_i32 = arith.constant 0 : i32
    %c0_i32_0 = arith.constant 0 : i32
    %c0_i32_1 = arith.constant 0 : i32
    return %arg0, %c0_i32, %c0_i32_0 : i32, i32, i32
  }
  func.func @transform_5(%arg0: i32) -> (i32, i32, i32) {
    %c0_i32 = arith.constant 0 : i32
    %c0_i32_0 = arith.constant 0 : i32
    %c0_i32_1 = arith.constant 0 : i32
    return %arg0, %c0_i32, %c0_i32_0 : i32, i32, i32
  }
  func.func @transform_6(%arg0: i32) -> (i32, i32, i32) {
    %c0_i32 = arith.constant 0 : i32
    %c0_i32_0 = arith.constant 0 : i32
    %c0_i32_1 = arith.constant 0 : i32
    return %arg0, %c0_i32, %c0_i32_0 : i32, i32, i32
  }
  func.func @transform_7(%arg0: i32) -> (i32, i32, i32) {
    %c0_i32 = arith.constant 0 : i32
    %c0_i32_0 = arith.constant 0 : i32
    %c0_i32_1 = arith.constant 0 : i32
    %c0_i32_2 = arith.constant 0 : i32
    return %c0_i32, %c0_i32_0, %c0_i32_1 : i32, i32, i32
  }
  func.func @transform_8(%arg0: i32) -> (i32, i32) {
    %c0_i32 = arith.constant 0 : i32
    %c0_i32_0 = arith.constant 0 : i32
    %c0_i32_1 = arith.constant 0 : i32
    return %c0_i32, %c0_i32_0 : i32, i32
  }
  func.func @transform_9(%arg0: i32) -> (i32, i32) {
    %c0_i32 = arith.constant 0 : i32
    %c0_i32_0 = arith.constant 0 : i32
    %c0_i32_1 = arith.constant 0 : i32
    return %c0_i32, %c0_i32_0 : i32, i32
  }
}

</mosaic_0001>

<llo_original>
// kernel: transformer_forward.1
$region0: #{transformer_forward.1}
  #allocation0 [shape = 'u32[]', space=smem, size = 0x4, offset = 0x4, fixed_abs, tag = 'smem constant byte address 0x4 - core index']
  #allocation1 [shape = 'u32[144,128]{1,0:T(1,128)}', space=vmem, size = 0x12000, scoped, tag = 'internal scratch']
  #allocation2 [shape = 'f32[48,200]{1,0:T(8,128)}', space=vmem, size = 0xc000, scoped, tag = 'scratch operand']
  %s0 = inlined_call_operand.vmem [shape: f32[48,200], index: 0, kind: input, shape index: {}]
  %s1 = inlined_call_operand.vmem [shape: f32[10,1,200], index: 1, kind: input, shape index: {}]
  %s2 = inlined_call_operand.vmem [shape: bf16[12,200,768], index: 2, kind: input, shape index: {}]
  %s3 = inlined_call_operand.vmem [shape: bf16[12,200,200], index: 3, kind: input, shape index: {}]
  %s4 = inlined_call_operand.vmem [shape: s8[12,200,2048], index: 4, kind: input, shape index: {}]
  %s5 = inlined_call_operand.vmem [shape: s8[12,2048,200], index: 5, kind: input, shape index: {}]
  %s6 = inlined_call_operand.vmem [shape: f32[12,4,2048], index: 6, kind: input, shape index: {}]
  %s7 = inlined_call_operand.vmem [shape: f32[2,48,200], index: 7, kind: input, shape index: {}]
  %s8 = inlined_call_operand.vmem [shape: f32[2,1], index: 8, kind: input, shape index: {}]
  %s9 = inlined_call_operand.vmem [shape: f32[2,1], index: 9, kind: output, shape index: {}]
  %s10 = sld [smem:[#allocation0]]
  $region77: #{transformer_forward.1} parent=0
    _
  %s12 = ssub.s32 1, %s10
  %s13 = scalar_select 0, %s12, %s10
  loop: start=0, step=1, limit=14
  $region2: #{transformer_forward.1} parent=0 // loop_pre_header
    _
  $region3: #{transformer_forward.1} parent=0 // loop_header
    %s15 = sphi 0, %s19
    %p16 = scmp.ge.s32.totalorder %s15, 14
    %s23 = sphi 0, %s23
    %s25 = sphi 0, %s23
    %s26 = sphi 0, %s25
    %s40 = sphi 0, %s26
    %s44 = sphi 0, %s44
    %s46 = sphi 0, %s44
    %s47 = sphi 0, %s46
    %s61 = sphi 0, %s47
    %s67 = sphi 0, %s69
    %s70 = sphi 0, %s67
    %s71 = sphi 0, %s70
    %s87 = sphi 0, %s71
    %s93 = sphi 0, %s95
    %s96 = sphi 0, %s93
    %s97 = sphi 0, %s96
    %s113 = sphi 0, %s97
    %s119 = sphi 0, %s121
    %s122 = sphi 0, %s119
    %s123 = sphi 0, %s122
    %s139 = sphi 0, %s123
    %s145 = sphi 0, %s147
    %s148 = sphi 0, %s145
    %s149 = sphi 0, %s148
    %s165 = sphi 0, %s149
    %s171 = sphi 0, %s173
    %s174 = sphi 0, %s171
    %s175 = sphi 0, %s174
    %s191 = sphi 0, %s175
    %s195 = sphi 0, %s195
    %s197 = sphi 0, %s195
    %s198 = sphi 0, %s197
    %s212 = sphi 0, %s198
    %s216 = sphi 0, %s216
    %s218 = sphi 0, %s216
    %s219 = sphi 0, %s218
    %s233 = sphi 0, %s219
    %s237 = sphi 0, %s237
    %s239 = sphi 0, %s237
    %s240 = sphi 0, %s239
    %s254 = sphi 0, %s240
  $region4: #{transformer_forward.1} parent=0 // loop_header_branch
    %18 = sbr.rel (%p16) target = $region8
  $region5: #{transformer_forward.1} parent=0 // loop_body
    %s20 = ssub.s32 %s15, 1
    %s21 = ssub.s32 %s15, 2
    %s22 = sadd.s32 %s15, 1
    %s24 = sadd.s32 %s23, 1
    %p27 = scmp.eq.s32.totalorder %s15, 11
    %p28 = scmp.ne.s32.totalorder %s23, %s25
    %p29 = scmp.eq.s32.totalorder %s15, 0
    %p30 = por %p28, %p29
    %p31 = scmp.ne.s32.totalorder %s23, %s25
    %p32 = scmp.eq.s32.totalorder %s20, 11
    %p33 = por %p31, %p32
    %p34 = scmp.ne.s32.totalorder %s25, %s26
    %p35 = scmp.eq.s32.totalorder %s20, 0
    %p36 = por %p34, %p35
    %p37 = scmp.ne.s32.totalorder %s25, %s26
    %p38 = scmp.eq.s32.totalorder %s21, 11
    %p39 = por %p37, %p38
    %p41 = scmp.ne.s32.totalorder %s26, %s40
    %p42 = scmp.eq.s32.totalorder %s21, 0
    %p43 = por %p41, %p42
    %s45 = sadd.s32 %s44, 1
    %p48 = scmp.eq.s32.totalorder %s15, 11
    %p49 = scmp.ne.s32.totalorder %s44, %s46
    %p50 = scmp.eq.s32.totalorder %s15, 0
    %p51 = por %p49, %p50
    %p52 = scmp.ne.s32.totalorder %s44, %s46
    %p53 = scmp.eq.s32.totalorder %s20, 11
    %p54 = por %p52, %p53
    %p55 = scmp.ne.s32.totalorder %s46, %s47
    %p56 = scmp.eq.s32.totalorder %s20, 0
    %p57 = por %p55, %p56
    %p58 = scmp.ne.s32.totalorder %s46, %s47
    %p59 = scmp.eq.s32.totalorder %s21, 11
    %p60 = por %p58, %p59
    %p62 = scmp.ne.s32.totalorder %s47, %s61
    %p63 = scmp.eq.s32.totalorder %s21, 0
    %p64 = por %p62, %p63
    %s65 = ssub.s32 %s15, %s22
    %p66 = scmp.eq.s32.totalorder %s65, 0
    %s68 = sadd.s32 %s67, 1
    %s69 = scalar_select %p66, %s67, %s68
    %p72 = pneg %p66
    %p73 = scmp.eq.s32.totalorder %s15, 11
    %p74 = por %p72, %p73
    %p75 = scmp.ne.s32.totalorder %s67, %s70
    %p76 = scmp.eq.s32.totalorder %s15, 0
    %p77 = por %p75, %p76
    %p78 = scmp.ne.s32.totalorder %s67, %s70
    %p79 = scmp.eq.s32.totalorder %s20, 11
    %p80 = por %p78, %p79
    %p81 = scmp.ne.s32.totalorder %s70, %s71
    %p82 = scmp.eq.s32.totalorder %s20, 0
    %p83 = por %p81, %p82
    %p84 = scmp.ne.s32.totalorder %s70, %s71
    %p85 = scmp.eq.s32.totalorder %s21, 11
    %p86 = por %p84, %p85
    %p88 = scmp.ne.s32.totalorder %s71, %s87
    %p89 = scmp.eq.s32.totalorder %s21, 0
    %p90 = por %p88, %p89
    %s91 = ssub.s32 %s15, %s22
    %p92 = scmp.eq.s32.totalorder %s91, 0
    %s94 = sadd.s32 %s93, 1
    %s95 = scalar_select %p92, %s93, %s94
    %p98 = pneg %p92
    %p99 = scmp.eq.s32.totalorder %s15, 11
    %p100 = por %p98, %p99
    %p101 = scmp.ne.s32.totalorder %s93, %s96
    %p102 = scmp.eq.s32.totalorder %s15, 0
    %p103 = por %p101, %p102
    %p104 = scmp.ne.s32.totalorder %s93, %s96
    %p105 = scmp.eq.s32.totalorder %s20, 11
    %p106 = por %p104, %p105
    %p107 = scmp.ne.s32.totalorder %s96, %s97
    %p108 = scmp.eq.s32.totalorder %s20, 0
    %p109 = por %p107, %p108
    %p110 = scmp.ne.s32.totalorder %s96, %s97
    %p111 = scmp.eq.s32.totalorder %s21, 11
    %p112 = por %p110, %p111
    %p114 = scmp.ne.s32.totalorder %s97, %s113
    %p115 = scmp.eq.s32.totalorder %s21, 0
    %p116 = por %p114, %p115
    %s117 = ssub.s32 %s15, %s22
    %p118 = scmp.eq.s32.totalorder %s117, 0
    %s120 = sadd.s32 %s119, 1
    %s121 = scalar_select %p118, %s119, %s120
    %p124 = pneg %p118
    %p125 = scmp.eq.s32.totalorder %s15, 11
    %p126 = por %p124, %p125
    %p127 = scmp.ne.s32.totalorder %s119, %s122
    %p128 = scmp.eq.s32.totalorder %s15, 0
    %p129 = por %p127, %p128
    %p130 = scmp.ne.s32.totalorder %s119, %s122
    %p131 = scmp.eq.s32.totalorder %s20, 11
    %p132 = por %p130, %p131
    %p133 = scmp.ne.s32.totalorder %s122, %s123
    %p134 = scmp.eq.s32.totalorder %s20, 0
    %p135 = por %p133, %p134
    %p136 = scmp.ne.s32.totalorder %s122, %s123
    %p137 = scmp.eq.s32.totalorder %s21, 11
    %p138 = por %p136, %p137
    %p140 = scmp.ne.s32.totalorder %s123, %s139
    %p141 = scmp.eq.s32.totalorder %s21, 0
    %p142 = por %p140, %p141
    %s143 = ssub.s32 %s15, %s22
    %p144 = scmp.eq.s32.totalorder %s143, 0
    %s146 = sadd.s32 %s145, 1
    %s147 = scalar_select %p144, %s145, %s146
    %p150 = pneg %p144
    %p151 = scmp.eq.s32.totalorder %s15, 11
    %p152 = por %p150, %p151
    %p153 = scmp.ne.s32.totalorder %s145, %s148
    %p154 = scmp.eq.s32.totalorder %s15, 0
    %p155 = por %p153, %p154
    %p156 = scmp.ne.s32.totalorder %s145, %s148
    %p157 = scmp.eq.s32.totalorder %s20, 11
    %p158 = por %p156, %p157
    %p159 = scmp.ne.s32.totalorder %s148, %s149
    %p160 = scmp.eq.s32.totalorder %s20, 0
    %p161 = por %p159, %p160
    %p162 = scmp.ne.s32.totalorder %s148, %s149
    %p163 = scmp.eq.s32.totalorder %s21, 11
    %p164 = por %p162, %p163
    %p166 = scmp.ne.s32.totalorder %s149, %s165
    %p167 = scmp.eq.s32.totalorder %s21, 0
    %p168 = por %p166, %p167
    %s169 = ssub.s32 %s15, %s22
    %p170 = scmp.eq.s32.totalorder %s169, 0
    %s172 = sadd.s32 %s171, 1
    %s173 = scalar_select %p170, %s171, %s172
    %p176 = pneg %p170
    %p177 = scmp.eq.s32.totalorder %s15, 11
    %p178 = por %p176, %p177
    %p179 = scmp.ne.s32.totalorder %s171, %s174
    %p180 = scmp.eq.s32.totalorder %s15, 0
    %p181 = por %p179, %p180
    %p182 = scmp.ne.s32.totalorder %s171, %s174
    %p183 = scmp.eq.s32.totalorder %s20, 11
    %p184 = por %p182, %p183
    %p185 = scmp.ne.s32.totalorder %s174, %s175
    %p186 = scmp.eq.s32.totalorder %s20, 0
    %p187 = por %p185, %p186
    %p188 = scmp.ne.s32.totalorder %s174, %s175
    %p189 = scmp.eq.s32.totalorder %s21, 11
    %p190 = por %p188, %p189
    %p192 = scmp.ne.s32.totalorder %s175, %s191
    %p193 = scmp.eq.s32.totalorder %s21, 0
    %p194 = por %p192, %p193
    %s196 = sadd.s32 %s195, 1
    %p199 = scmp.eq.s32.totalorder %s15, 11
    %p200 = scmp.ne.s32.totalorder %s195, %s197
    %p201 = scmp.eq.s32.totalorder %s15, 0
    %p202 = por %p200, %p201
    %p203 = scmp.ne.s32.totalorder %s195, %s197
    %p204 = scmp.eq.s32.totalorder %s20, 11
    %p205 = por %p203, %p204
    %p206 = scmp.ne.s32.totalorder %s197, %s198
    %p207 = scmp.eq.s32.totalorder %s20, 0
    %p208 = por %p206, %p207
    %p209 = scmp.ne.s32.totalorder %s197, %s198
    %p210 = scmp.eq.s32.totalorder %s21, 11
    %p211 = por %p209, %p210
    %p213 = scmp.ne.s32.totalorder %s198, %s212
    %p214 = scmp.eq.s32.totalorder %s21, 0
    %p215 = por %p213, %p214
    %s217 = sadd.s32 %s216, 1
    %p220 = scmp.eq.s32.totalorder %s15, 11
    %p221 = scmp.ne.s32.totalorder %s216, %s218
    %p222 = scmp.eq.s32.totalorder %s15, 0
    %p223 = por %p221, %p222
    %p224 = scmp.ne.s32.totalorder %s216, %s218
    %p225 = scmp.eq.s32.totalorder %s20, 11
    %p226 = por %p224, %p225
    %p227 = scmp.ne.s32.totalorder %s218, %s219
    %p228 = scmp.eq.s32.totalorder %s20, 0
    %p229 = por %p227, %p228
    %p230 = scmp.ne.s32.totalorder %s218, %s219
    %p231 = scmp.eq.s32.totalorder %s21, 11
    %p232 = por %p230, %p231
    %p234 = scmp.ne.s32.totalorder %s219, %s233
    %p235 = scmp.eq.s32.totalorder %s21, 0
    %p236 = por %p234, %p235
    %s238 = sadd.s32 %s237, 1
    %p241 = scmp.eq.s32.totalorder %s15, 11
    %p242 = scmp.ne.s32.totalorder %s237, %s239
    %p243 = scmp.eq.s32.totalorder %s15, 0
    %p244 = por %p242, %p243
    %p245 = scmp.ne.s32.totalorder %s237, %s239
    %p246 = scmp.eq.s32.totalorder %s20, 11
    %p247 = por %p245, %p246
    %p248 = scmp.ne.s32.totalorder %s239, %s240
    %p249 = scmp.eq.s32.totalorder %s20, 0
    %p250 = por %p248, %p249
    %p251 = scmp.ne.s32.totalorder %s239, %s240
    %p252 = scmp.eq.s32.totalorder %s21, 11
    %p253 = por %p251, %p252
    %p255 = scmp.ne.s32.totalorder %s240, %s254
    %p256 = scmp.eq.s32.totalorder %s21, 0
    %p257 = por %p255, %p256
    %p258 = scmp.le.s32.totalorder 1, %s15
    %p259 = scmp.lt.s32.totalorder %s15, 13
    %p260 = pnand %p258, %p259
    %p261 = pneg %p260
    // Predicated region
    $region9: #{transformer_forward.1} parent=5 // pred_check
      _
    $region10: #{transformer_forward.1} parent=5 // pred_check_branch
      %263 = sbr.rel (%p260) target = $region12
    $region11: #{transformer_forward.1} parent=5 // pred_region
      %s264 = ssub.s32 %s15, 1
      // Predicated region
      $region13: #{transformer_forward.1} parent=11 // pred_check
        %p265 = pneg %p36
      $region14: #{transformer_forward.1} parent=11 // pred_check_branch
        %267 = sbr.rel (%p265) target = $region16
      $region15: #{transformer_forward.1} parent=11 // pred_region
        _
      $region16: #{transformer_forward.1} parent=11 // pred_fallthru
        _
      // Predicated region
      $region17: #{transformer_forward.1} parent=11 // pred_check
        %p268 = pneg %p57
      $region18: #{transformer_forward.1} parent=11 // pred_check_branch
        %270 = sbr.rel (%p268) target = $region20
      $region19: #{transformer_forward.1} parent=11 // pred_region
        _
      $region20: #{transformer_forward.1} parent=11 // pred_fallthru
        _
      // Predicated region
      $region21: #{transformer_forward.1} parent=11 // pred_check
        %p271 = pneg %p208
      $region22: #{transformer_forward.1} parent=11 // pred_check_branch
        %273 = sbr.rel (%p271) target = $region24
      $region23: #{transformer_forward.1} parent=11 // pred_region
        _
      $region24: #{transformer_forward.1} parent=11 // pred_fallthru
        _
      // Predicated region
      $region25: #{transformer_forward.1} parent=11 // pred_check
        %p274 = pneg %p229
      $region26: #{transformer_forward.1} parent=11 // pred_check_branch
        %276 = sbr.rel (%p274) target = $region28
      $region27: #{transformer_forward.1} parent=11 // pred_region
        _
      $region28: #{transformer_forward.1} parent=11 // pred_fallthru
        _
    $region12: #{transformer_forward.1} parent=5 // pred_fallthru
      _
    %p277 = scmp.lt.s32.totalorder %s15, 12
    // Predicated region
    $region29: #{transformer_forward.1} parent=5 // pred_check
      %p278 = pneg %p277
    $region30: #{transformer_forward.1} parent=5 // pred_check_branch
      %280 = sbr.rel (%p278) target = $region32
    $region31: #{transformer_forward.1} parent=5 // pred_region
      // Predicated region
      $region33: #{transformer_forward.1} parent=31 // pred_check
        %p281 = pneg %p77
      $region34: #{transformer_forward.1} parent=31 // pred_check_branch
        %283 = sbr.rel (%p281) target = $region36
      $region35: #{transformer_forward.1} parent=31 // pred_region
        %p284 = scmp.lt.s32.totalorder %s15, 11
        %s285 = scalar_select %p284, %s15, 11
        %s286 = smul.addr %s285, 150
        %s287 = smul.addr %s286, 4
        %s288 = scalar_lea.vmem %s2, %s287
      $region36: #{transformer_forward.1} parent=31 // pred_fallthru
        _
      // Predicated region
      $region37: #{transformer_forward.1} parent=31 // pred_check
        %p289 = pneg %p103
      $region38: #{transformer_forward.1} parent=31 // pred_check_branch
        %291 = sbr.rel (%p289) target = $region40
      $region39: #{transformer_forward.1} parent=31 // pred_region
        %p292 = scmp.lt.s32.totalorder %s15, 11
        %s293 = scalar_select %p292, %s15, 11
        %s294 = smul.addr %s293, 50
        %s295 = smul.addr %s294, 4
        %s296 = scalar_lea.vmem %s3, %s295
      $region40: #{transformer_forward.1} parent=31 // pred_fallthru
        _
      // Predicated region
      $region41: #{transformer_forward.1} parent=31 // pred_check
        %p297 = pneg %p129
      $region42: #{transformer_forward.1} parent=31 // pred_check_branch
        %299 = sbr.rel (%p297) target = $region44
      $region43: #{transformer_forward.1} parent=31 // pred_region
        %p300 = scmp.lt.s32.totalorder %s15, 11
        %s301 = scalar_select %p300, %s15, 11
        %s302 = smul.addr %s301, 400
        %s303 = smul.addr %s302, 2
        %s304 = scalar_lea.vmem %s4, %s303
      $region44: #{transformer_forward.1} parent=31 // pred_fallthru
        _
      // Predicated region
      $region45: #{transformer_forward.1} parent=31 // pred_check
        %p305 = pneg %p155
      $region46: #{transformer_forward.1} parent=31 // pred_check_branch
        %307 = sbr.rel (%p305) target = $region48
      $region47: #{transformer_forward.1} parent=31 // pred_region
        %p308 = scmp.lt.s32.totalorder %s15, 11
        %s309 = scalar_select %p308, %s15, 11
        %s310 = smul.addr %s309, 128
        %s311 = smul.addr %s310, 8
        %s312 = scalar_lea.vmem %s5, %s311
      $region48: #{transformer_forward.1} parent=31 // pred_fallthru
        _
      // Predicated region
      $region49: #{transformer_forward.1} parent=31 // pred_check
        %p313 = pneg %p181
      $region50: #{transformer_forward.1} parent=31 // pred_check_branch
        %315 = sbr.rel (%p313) target = $region52
      $region51: #{transformer_forward.1} parent=31 // pred_region
        %p316 = scmp.lt.s32.totalorder %s15, 11
        %s317 = scalar_select %p316, %s15, 11
        %s318 = smul.addr %s317, 16
        %s319 = smul.addr %s318, 4
        %s320 = scalar_lea.vmem %s6, %s319
      $region52: #{transformer_forward.1} parent=31 // pred_fallthru
        _
    $region32: #{transformer_forward.1} parent=5 // pred_fallthru
      _
    %p321 = scmp.le.s32.totalorder 1, %s15
    %p322 = scmp.lt.s32.totalorder %s15, 13
    %p323 = pnand %p321, %p322
    %p324 = pneg %p323
    // Predicated region
    $region53: #{transformer_forward.1} parent=5 // pred_check
      _
    $region54: #{transformer_forward.1} parent=5 // pred_check_branch
      %326 = sbr.rel (%p323) target = $region56
    $region55: #{transformer_forward.1} parent=5 // pred_region
      %s327 = ssub.s32 %s15, 1
      %p328 = pneg %p36
      %p329 = pneg %p33
      %p330 = pneg %p57
      %p331 = pneg %p54
      %p332 = scmp.lt.s32.totalorder %s20, 11
      %s333 = scalar_select %p332, %s20, 11
      %s334 = smul.addr %s333, 150
      %s335 = smul.addr %s334, 4
      %s336 = scalar_lea.vmem %s2, %s335
      %p337 = pneg %p83
      %p338 = pneg %p80
      %p339 = scmp.lt.s32.totalorder %s20, 11
      %s340 = scalar_select %p339, %s20, 11
      %s341 = smul.addr %s340, 50
      %s342 = smul.addr %s341, 4
      %s343 = scalar_lea.vmem %s3, %s342
      %p344 = pneg %p109
      %p345 = pneg %p106
      %p346 = scmp.lt.s32.totalorder %s20, 11
      %s347 = scalar_select %p346, %s20, 11
      %s348 = smul.addr %s347, 400
      %s349 = smul.addr %s348, 2
      %s350 = scalar_lea.vmem %s4, %s349
      %p351 = pneg %p135
      %p352 = pneg %p132
      %p353 = scmp.lt.s32.totalorder %s20, 11
      %s354 = scalar_select %p353, %s20, 11
      %s355 = smul.addr %s354, 128
      %s356 = smul.addr %s355, 8
      %s357 = scalar_lea.vmem %s5, %s356
      %p358 = pneg %p161
      %p359 = pneg %p158
      %p360 = scmp.lt.s32.totalorder %s20, 11
      %s361 = scalar_select %p360, %s20, 11
      %s362 = smul.addr %s361, 16
      %s363 = smul.addr %s362, 4
      %s364 = scalar_lea.vmem %s6, %s363
      %p365 = pneg %p187
      %p366 = pneg %p184
      %p367 = pneg %p208
      %p368 = pneg %p205
      %p369 = pneg %p229
      %p370 = pneg %p226
      %p371 = pneg %p250
      %p372 = pneg %p247
      %p373 = scmp.lt.s32.totalorder %s20, 11
      %s374 = scalar_select %p373, %s20, 11
      %s375 = smul.addr %s374, 150
      %s376 = smul.addr %s375, 4
      %s377 = scalar_lea.vmem %s2, %s376
      %p378 = scmp.lt.s32.totalorder %s20, 11
      %s379 = scalar_select %p378, %s20, 11
      %s380 = smul.addr %s379, 50
      %s381 = smul.addr %s380, 4
      %s382 = scalar_lea.vmem %s3, %s381
      %p383 = scmp.lt.s32.totalorder %s20, 11
      %s384 = scalar_select %p383, %s20, 11
      %s385 = smul.addr %s384, 400
      %s386 = smul.addr %s385, 2
      %s387 = scalar_lea.vmem %s4, %s386
      %p388 = scmp.lt.s32.totalorder %s20, 11
      %s389 = scalar_select %p388, %s20, 11
      %s390 = smul.addr %s389, 128
      %s391 = smul.addr %s390, 8
      %s392 = scalar_lea.vmem %s5, %s391
      %p393 = scmp.lt.s32.totalorder %s20, 11
      %s394 = scalar_select %p393, %s20, 11
      %s395 = smul.addr %s394, 16
      %s396 = smul.addr %s395, 4
      %s397 = scalar_lea.vmem %s6, %s396
      %p399 = scmp.eq.s32.totalorder %s20, 0
      // Predicated region
      $region57: #{transformer_forward.1} parent=55 // pred_check
        %p400 = pneg %p399
      $region58: #{transformer_forward.1} parent=55 // pred_check_branch
        %402 = sbr.rel (%p400) target = $region60
      $region59: #{transformer_forward.1} parent=55 // pred_region
        %v403 = vld [vmem:[%s0] sm:$0xff]
        %v404 = vld [vmem:[%s0 + $0x8] sm:$0xff]
        %v405 = vld [vmem:[%s0 + $0x10] sm:$0xff]
        %v406 = vld [vmem:[%s0 + $0x18] sm:$0xff]
        %v407 = vld [vmem:[%s0 + $0x20] sm:$0xff]
        %v408 = vld [vmem:[%s0 + $0x28] sm:$0xff]
        %v409 = vld [vmem:[%s0 + $0x30] sm:$0xff]
        %v410 = vld [vmem:[%s0 + $0x38] sm:$0xff]
        %v411 = vld [vmem:[%s0 + $0x40] sm:$0xff]
        %v412 = vld [vmem:[%s0 + $0x48] sm:$0xff]
        %v413 = vld [vmem:[%s0 + $0x50] sm:$0xff]
        %v414 = vld [vmem:[%s0 + $0x58] sm:$0xff]
        %415 = vst [vmem:[#allocation2] sm:$0xff] %v403
        %vm416 = vcmask 588800
        %417 = vst.msk [vmem:[#allocation2 + $0x8] sm:$0xff] %vm416, %v404
        %418 = vst [vmem:[#allocation2 + $0x10] sm:$0xff] %v405
        %419 = vst.msk [vmem:[#allocation2 + $0x18] sm:$0xff] %vm416, %v406
        %420 = vst [vmem:[#allocation2 + $0x20] sm:$0xff] %v407
        %421 = vst.msk [vmem:[#allocation2 + $0x28] sm:$0xff] %vm416, %v408
        %422 = vst [vmem:[#allocation2 + $0x30] sm:$0xff] %v409
        %423 = vst.msk [vmem:[#allocation2 + $0x38] sm:$0xff] %vm416, %v410
        %424 = vst [vmem:[#allocation2 + $0x40] sm:$0xff] %v411
        %425 = vst.msk [vmem:[#allocation2 + $0x48] sm:$0xff] %vm416, %v412
        %426 = vst [vmem:[#allocation2 + $0x50] sm:$0xff] %v413
        %427 = vst.msk [vmem:[#allocation2 + $0x58] sm:$0xff] %vm416, %v414
      $region60: #{transformer_forward.1} parent=55 // pred_fallthru
        _
      %v428 = vld [vmem:[#allocation2] sm:$0xff]
      %v429 = vld [vmem:[#allocation2 + $0x8] sm:$0xff]
      %v430 = vld [vmem:[#allocation2 + $0x10] sm:$0xff]
      %v431 = vld [vmem:[#allocation2 + $0x18] sm:$0xff]
      %v432 = vld [vmem:[#allocation2 + $0x20] sm:$0xff]
      %v433 = vld [vmem:[#allocation2 + $0x28] sm:$0xff]
      %v434 = vld [vmem:[#allocation2 + $0x30] sm:$0xff]
      %v435 = vld [vmem:[#allocation2 + $0x38] sm:$0xff]
      %v436 = vld [vmem:[#allocation2 + $0x40] sm:$0xff]
      %v437 = vld [vmem:[#allocation2 + $0x48] sm:$0xff]
      %v438 = vld [vmem:[#allocation2 + $0x50] sm:$0xff]
      %v439 = vld [vmem:[#allocation2 + $0x58] sm:$0xff]
      %v440 = vpack.c.bf16 %v430, %v428
      %v441 = vpack.c.bf16 %v431, %v429
      %v442 = vpack.c.bf16 %v434, %v432
      %v443 = vpack.c.bf16 %v435, %v433
      %v444 = vpack.c.bf16 %v438, %v436
      %v445 = vpack.c.bf16 %v439, %v437
      %v446 = vld [vmem:[%s397] sm:$0xff]
      %v447 = vld [vmem:[%s397 + $0x8] sm:$0xff]
      %v448 = vld [vmem:[%s397 + $0x10] sm:$0xff]
      %v449 = vld [vmem:[%s397 + $0x18] sm:$0xff]
      %v450 = vld [vmem:[%s397 + $0x20] sm:$0xff]
      %v451 = vld [vmem:[%s397 + $0x28] sm:$0xff]
      %v452 = vld [vmem:[%s397 + $0x30] sm:$0xff]
      %v453 = vld [vmem:[%s397 + $0x38] sm:$0xff]
      %v454 = vld [vmem:[%s377] sm:$0xff]
      %v455 = vld [vmem:[%s377 + $0x8] sm:$0xff]
      %v456 = vld [vmem:[%s377 + $0x10] sm:$0xff]
      %v457 = vld [vmem:[%s377 + $0x18] sm:$0xff]
      %v458 = vld [vmem:[%s377 + $0x20] sm:$0xff]
      %v459 = vld [vmem:[%s377 + $0x28] sm:$0xff]
      %v460 = vld [vmem:[%s377 + $0x30] sm:$0xff]
      %v461 = vld [vmem:[%s377 + $0x38] sm:$0xff]
      %v462 = vld [vmem:[%s377 + $0x40] sm:$0xff]
      %v463 = vld [vmem:[%s377 + $0x48] sm:$0xff]
      %v464 = vld [vmem:[%s377 + $0x50] sm:$0xff]
      %v465 = vld [vmem:[%s377 + $0x58] sm:$0xff]
      %v466 = vld [vmem:[%s377 + $0x60] sm:$0xff]
      %v467 = vld [vmem:[%s377 + $0x68] sm:$0xff]
      %v468 = vld [vmem:[%s377 + $0x70] sm:$0xff]
      %v469 = vld [vmem:[%s377 + $0x78] sm:$0xff]
      %v470 = vld [vmem:[%s377 + $0x80] sm:$0xff]
      %v471 = vld [vmem:[%s377 + $0x88] sm:$0xff]
      %v472 = vld [vmem:[%s377 + $0x90] sm:$0xff]
      %v473 = vld [vmem:[%s377 + $0x98] sm:$0xff]
      %v474 = vld [vmem:[%s377 + $0xa0] sm:$0xff]
      %v475 = vld [vmem:[%s377 + $0xa8] sm:$0xff]
      %v476 = vld [vmem:[%s377 + $0xb0] sm:$0xff]
      %v477 = vld [vmem:[%s377 + $0xb8] sm:$0xff]
      %v478 = vld [vmem:[%s377 + $0xc0] sm:$0xff]
      %v479 = vld [vmem:[%s377 + $0xc8] sm:$0xff]
      %v480 = vld [vmem:[%s377 + $0xd0] sm:$0xff]
      %v481 = vld [vmem:[%s377 + $0xd8] sm:$0xff]
      %v482 = vld [vmem:[%s377 + $0xe0] sm:$0xff]
      %v483 = vld [vmem:[%s377 + $0xe8] sm:$0xff]
      %v484 = vld [vmem:[%s377 + $0xf0] sm:$0xff]
      %v485 = vld [vmem:[%s377 + $0xf8] sm:$0xff]
      %v486 = vld [vmem:[%s377 + $0x100] sm:$0xff]
      %v487 = vld [vmem:[%s377 + $0x108] sm:$0xff]
      %v488 = vld [vmem:[%s377 + $0x110] sm:$0xff]
      %v489 = vld [vmem:[%s377 + $0x118] sm:$0xff]
      %v490 = vld [vmem:[%s377 + $0x120] sm:$0xff]
      %v491 = vld [vmem:[%s377 + $0x128] sm:$0xff]
      %v492 = vld [vmem:[%s377 + $0x130] sm:$0xff]
      %v493 = vld [vmem:[%s377 + $0x138] sm:$0xff]
      %v494 = vld [vmem:[%s377 + $0x140] sm:$0xff]
      %v495 = vld [vmem:[%s377 + $0x148] sm:$0xff]
      %v496 = vld [vmem:[%s377 + $0x150] sm:$0xff]
      %v497 = vld [vmem:[%s377 + $0x158] sm:$0xff]
      %v498 = vld [vmem:[%s377 + $0x160] sm:$0xff]
      %v499 = vld [vmem:[%s377 + $0x168] sm:$0xff]
      %v500 = vld [vmem:[%s377 + $0x170] sm:$0xff]
      %v501 = vld [vmem:[%s377 + $0x178] sm:$0xff]
      %v502 = vld [vmem:[%s377 + $0x180] sm:$0xff]
      %v503 = vld [vmem:[%s377 + $0x188] sm:$0xff]
      %v504 = vld [vmem:[%s377 + $0x190] sm:$0xff]
      %v505 = vld [vmem:[%s377 + $0x198] sm:$0xff]
      %v506 = vld [vmem:[%s377 + $0x1a0] sm:$0xff]
      %v507 = vld [vmem:[%s377 + $0x1a8] sm:$0xff]
      %v508 = vld [vmem:[%s377 + $0x1b0] sm:$0xff]
      %v509 = vld [vmem:[%s377 + $0x1b8] sm:$0xff]
      %v510 = vld [vmem:[%s377 + $0x1c0] sm:$0xff]
      %v511 = vld [vmem:[%s377 + $0x1c8] sm:$0xff]
      %v512 = vld [vmem:[%s377 + $0x1d0] sm:$0xff]
      %v513 = vld [vmem:[%s377 + $0x1d8] sm:$0xff]
      %v514 = vld [vmem:[%s377 + $0x1e0] sm:$0xff]
      %v515 = vld [vmem:[%s377 + $0x1e8] sm:$0xff]
      %v516 = vld [vmem:[%s377 + $0x1f0] sm:$0xff]
      %v517 = vld [vmem:[%s377 + $0x1f8] sm:$0xff]
      %v518 = vld [vmem:[%s377 + $0x200] sm:$0xff]
      %v519 = vld [vmem:[%s377 + $0x208] sm:$0xff]
      %v520 = vld [vmem:[%s377 + $0x210] sm:$0xff]
      %v521 = vld [vmem:[%s377 + $0x218] sm:$0xff]
      %v522 = vld [vmem:[%s377 + $0x220] sm:$0xff]
      %v523 = vld [vmem:[%s377 + $0x228] sm:$0xff]
      %v524 = vld [vmem:[%s377 + $0x230] sm:$0xff]
      %v525 = vld [vmem:[%s377 + $0x238] sm:$0xff]
      %v526 = vld [vmem:[%s377 + $0x240] sm:$0xff]
      %v527 = vld [vmem:[%s377 + $0x248] sm:$0xff]
      %v528 = vld [vmem:[%s377 + $0x250] sm:$0xff]
      %v532 = vlaneseq
      %v533 = vshrl.u32 %v532, 7
      %v534 = vsub.s32 2, %v533
      %v535 = vrot.slane %v446, %v534
      %v536 = vlaneseq
      %v537 = vshrl.u32 %v536, 7
      %v538 = vsub.s32 6, %v537
      %v539 = vrot.slane %v446, %v538
      %v540 = vlaneseq
      %v541 = vshrl.u32 %v540, 7
      %v542 = vsub.s32 2, %v541
      %v543 = vrot.slane %v447, %v542
      %v544 = vlaneseq
      %v545 = vshrl.u32 %v544, 7
      %v546 = vsub.s32 6, %v545
      %v547 = vrot.slane %v447, %v546
      %v548 = vlaneseq
      %v549 = vshrl.u32 %v548, 7
      %v550 = vsub.s32 2, %v549
      %v551 = vrot.slane %v448, %v550
      %v552 = vlaneseq
      %v553 = vshrl.u32 %v552, 7
      %v554 = vsub.s32 6, %v553
      %v555 = vrot.slane %v448, %v554
      %v562 = vlaneseq
      %v563 = vshrl.u32 %v562, 7
      %v564 = vsub.s32 2, %v563
      %v565 = vrot.slane %v535, %v564
      %v566 = vlaneseq
      %v567 = vshrl.u32 %v566, 7
      %v568 = vsub.s32 2, %v567
      %v569 = vrot.slane %v539, %v568
      %v570 = vlaneseq
      %v571 = vshrl.u32 %v570, 7
      %v572 = vsub.s32 2, %v571
      %v573 = vrot.slane %v543, %v572
      %v574 = vlaneseq
      %v575 = vshrl.u32 %v574, 7
      %v576 = vsub.s32 2, %v575
      %v577 = vrot.slane %v547, %v576
      %v578 = vlaneseq
      %v579 = vshrl.u32 %v578, 7
      %v580 = vsub.s32 2, %v579
      %v581 = vrot.slane %v551, %v580
      %v582 = vlaneseq
      %v583 = vshrl.u32 %v582, 7
      %v584 = vsub.s32 2, %v583
      %v585 = vrot.slane %v555, %v584
      %v661 = vunpack.c.l.b16 %v454
      %v662 = vunpack.c.h.b16 %v454
      %v663 = vunpack.c.l.b16 %v455
      %v664 = vunpack.c.h.b16 %v455
      %v665 = vunpack.c.l.b16 %v456
      %v666 = vunpack.c.h.b16 %v456
      %v667 = vunpack.c.l.b16 %v457
      %v668 = vunpack.c.h.b16 %v457
      %v669 = vunpack.c.l.b16 %v458
      %v670 = vunpack.c.h.b16 %v458
      %v671 = vunpack.c.l.b16 %v459
      %v672 = vunpack.c.h.b16 %v459
      %v673 = vunpack.c.l.b16 %v460
      %v674 = vunpack.c.h.b16 %v460
      %v675 = vunpack.c.l.b16 %v461
      %v676 = vunpack.c.h.b16 %v461
      %v677 = vunpack.c.l.b16 %v462
      %v678 = vunpack.c.h.b16 %v462
      %v679 = vunpack.c.l.b16 %v463
      %v680 = vunpack.c.h.b16 %v463
      %v681 = vunpack.c.l.b16 %v464
      %v682 = vunpack.c.h.b16 %v464
      %v683 = vunpack.c.l.b16 %v465
      %v684 = vunpack.c.h.b16 %v465
      %v685 = vunpack.c.l.b16 %v466
      %v686 = vunpack.c.h.b16 %v466
      %v687 = vunpack.c.l.b16 %v467
      %v688 = vunpack.c.h.b16 %v467
      %v689 = vunpack.c.l.b16 %v468
      %v690 = vunpack.c.h.b16 %v468
      %v691 = vunpack.c.l.b16 %v469
      %v692 = vunpack.c.h.b16 %v469
      %v693 = vunpack.c.l.b16 %v470
      %v694 = vunpack.c.h.b16 %v470
      %v695 = vunpack.c.l.b16 %v471
      %v696 = vunpack.c.h.b16 %v471
      %v697 = vunpack.c.l.b16 %v472
      %v698 = vunpack.c.h.b16 %v472
      %v699 = vunpack.c.l.b16 %v473
      %v700 = vunpack.c.h.b16 %v473
      %v701 = vunpack.c.l.b16 %v474
      %v702 = vunpack.c.h.b16 %v474
      %v703 = vunpack.c.l.b16 %v475
      %v704 = vunpack.c.h.b16 %v475
      %v705 = vunpack.c.l.b16 %v476
      %v706 = vunpack.c.h.b16 %v476
      %v707 = vunpack.c.l.b16 %v477
      %v708 = vunpack.c.h.b16 %v477
      %v709 = vunpack.c.l.b16 %v478
      %v710 = vunpack.c.h.b16 %v478
      %v711 = vunpack.c.l.b16 %v479
      %v712 = vunpack.c.h.b16 %v479
      %v713 = vunpack.c.l.b16 %v480
      %v714 = vunpack.c.h.b16 %v480
      %v715 = vunpack.c.l.b16 %v481
      %v716 = vunpack.c.h.b16 %v481
      %v717 = vunpack.c.l.b16 %v482
      %v718 = vunpack.c.h.b16 %v482
      %v719 = vunpack.c.l.b16 %v483
      %v720 = vunpack.c.h.b16 %v483
      %v721 = vunpack.c.l.b16 %v484
      %v722 = vunpack.c.h.b16 %v484
      %v723 = vunpack.c.l.b16 %v485
      %v724 = vunpack.c.h.b16 %v485
      %v725 = vunpack.c.l.b16 %v486
      %v726 = vunpack.c.h.b16 %v486
      %v727 = vunpack.c.l.b16 %v487
      %v728 = vunpack.c.h.b16 %v487
      %v729 = vunpack.c.l.b16 %v488
      %v730 = vunpack.c.h.b16 %v488
      %v731 = vunpack.c.l.b16 %v489
      %v732 = vunpack.c.h.b16 %v489
      %v733 = vunpack.c.l.b16 %v490
      %v734 = vunpack.c.h.b16 %v490
      %v735 = vunpack.c.l.b16 %v491
      %v736 = vunpack.c.h.b16 %v491
      %v737 = vunpack.c.l.b16 %v492
      %v738 = vunpack.c.h.b16 %v492
      %v739 = vunpack.c.l.b16 %v493
      %v740 = vunpack.c.h.b16 %v493
      %v741 = vunpack.c.l.b16 %v494
      %v742 = vunpack.c.h.b16 %v494
      %v743 = vunpack.c.l.b16 %v495
      %v744 = vunpack.c.h.b16 %v495
      %v745 = vunpack.c.l.b16 %v496
      %v746 = vunpack.c.h.b16 %v496
      %v747 = vunpack.c.l.b16 %v497
      %v748 = vunpack.c.h.b16 %v497
      %v749 = vunpack.c.l.b16 %v498
      %v750 = vunpack.c.h.b16 %v498
      %v751 = vunpack.c.l.b16 %v499
      %v752 = vunpack.c.h.b16 %v499
      %v753 = vunpack.c.l.b16 %v500
      %v754 = vunpack.c.h.b16 %v500
      %v755 = vunpack.c.l.b16 %v501
      %v756 = vunpack.c.h.b16 %v501
      %v757 = vunpack.c.l.b16 %v502
      %v758 = vunpack.c.h.b16 %v502
      %v759 = vunpack.c.l.b16 %v503
      %v760 = vunpack.c.h.b16 %v503
      %v761 = vunpack.c.l.b16 %v504
      %v762 = vunpack.c.h.b16 %v504
      %v763 = vunpack.c.l.b16 %v505
      %v764 = vunpack.c.h.b16 %v505
      %v765 = vunpack.c.l.b16 %v506
      %v766 = vunpack.c.h.b16 %v506
      %v767 = vunpack.c.l.b16 %v507
      %v768 = vunpack.c.h.b16 %v507
      %v769 = vunpack.c.l.b16 %v508
      %v770 = vunpack.c.h.b16 %v508
      %v771 = vunpack.c.l.b16 %v509
      %v772 = vunpack.c.h.b16 %v509
      %v773 = vunpack.c.l.b16 %v510
      %v774 = vunpack.c.h.b16 %v510
      %v775 = vunpack.c.l.b16 %v511
      %v776 = vunpack.c.h.b16 %v511
      %v777 = vunpack.c.l.b16 %v512
      %v778 = vunpack.c.h.b16 %v512
      %v779 = vunpack.c.l.b16 %v513
      %v780 = vunpack.c.h.b16 %v513
      %v781 = vunpack.c.l.b16 %v514
      %v782 = vunpack.c.h.b16 %v514
      %v783 = vunpack.c.l.b16 %v515
      %v784 = vunpack.c.h.b16 %v515
      %v785 = vunpack.c.l.b16 %v516
      %v786 = vunpack.c.h.b16 %v516
      %v787 = vunpack.c.l.b16 %v517
      %v788 = vunpack.c.h.b16 %v517
      %v789 = vunpack.c.l.b16 %v518
      %v790 = vunpack.c.h.b16 %v518
      %v791 = vunpack.c.l.b16 %v519
      %v792 = vunpack.c.h.b16 %v519
      %v793 = vunpack.c.l.b16 %v520
      %v794 = vunpack.c.h.b16 %v520
      %v795 = vunpack.c.l.b16 %v521
      %v796 = vunpack.c.h.b16 %v521
      %v797 = vunpack.c.l.b16 %v522
      %v798 = vunpack.c.h.b16 %v522
      %v799 = vunpack.c.l.b16 %v523
      %v800 = vunpack.c.h.b16 %v523
      %v801 = vunpack.c.l.b16 %v524
      %v802 = vunpack.c.h.b16 %v524
      %v803 = vunpack.c.l.b16 %v525
      %v804 = vunpack.c.h.b16 %v525
      %v805 = vunpack.c.l.b16 %v526
      %v806 = vunpack.c.h.b16 %v526
      %v807 = vunpack.c.l.b16 %v527
      %v808 = vunpack.c.h.b16 %v527
      %v809 = vunpack.c.l.b16 %v528
      %v810 = vunpack.c.h.b16 %v528
      %v811 = vpack.c.b16 %v667, %v661
      %v812 = vpack.c.b16 %v668, %v662
      %v813 = vpack.c.b16 %v669, %v663
      %v814 = vpack.c.b16 %v670, %v664
      %v815 = vpack.c.b16 %v671, %v665
      %v816 = vpack.c.b16 %v672, %v666
      %v817 = vpack.c.b16 %v679, %v673
      %v818 = vpack.c.b16 %v680, %v674
      %v819 = vpack.c.b16 %v681, %v675
      %v820 = vpack.c.b16 %v682, %v676
      %v821 = vpack.c.b16 %v683, %v677
      %v822 = vpack.c.b16 %v684, %v678
      %v823 = vpack.c.b16 %v691, %v685
      %v824 = vpack.c.b16 %v692, %v686
      %v825 = vpack.c.b16 %v693, %v687
      %v826 = vpack.c.b16 %v694, %v688
      %v827 = vpack.c.b16 %v695, %v689
      %v828 = vpack.c.b16 %v696, %v690
      %v829 = vpack.c.b16 %v703, %v697
      %v830 = vpack.c.b16 %v704, %v698
      %v831 = vpack.c.b16 %v705, %v699
      %v832 = vpack.c.b16 %v706, %v700
      %v833 = vpack.c.b16 %v707, %v701
      %v834 = vpack.c.b16 %v708, %v702
      %v835 = vpack.c.b16 %v715, %v709
      %v836 = vpack.c.b16 %v716, %v710
      %v837 = vpack.c.b16 %v717, %v711
      %v838 = vpack.c.b16 %v718, %v712
      %v839 = vpack.c.b16 %v719, %v713
      %v840 = vpack.c.b16 %v720, %v714
      %v841 = vpack.c.b16 %v727, %v721
      %v842 = vpack.c.b16 %v728, %v722
      %v843 = vpack.c.b16 %v729, %v723
      %v844 = vpack.c.b16 %v730, %v724
      %v845 = vpack.c.b16 %v731, %v725
      %v846 = vpack.c.b16 %v732, %v726
      %v847 = vpack.c.b16 %v739, %v733
      %v848 = vpack.c.b16 %v740, %v734
      %v849 = vpack.c.b16 %v741, %v735
      %v850 = vpack.c.b16 %v742, %v736
      %v851 = vpack.c.b16 %v743, %v737
      %v852 = vpack.c.b16 %v744, %v738
      %v853 = vpack.c.b16 %v751, %v745
      %v854 = vpack.c.b16 %v752, %v746
      %v855 = vpack.c.b16 %v753, %v747
      %v856 = vpack.c.b16 %v754, %v748
      %v857 = vpack.c.b16 %v755, %v749
      %v858 = vpack.c.b16 %v756, %v750
      %v859 = vpack.c.b16 %v763, %v757
      %v860 = vpack.c.b16 %v764, %v758
      %v861 = vpack.c.b16 %v765, %v759
      %v862 = vpack.c.b16 %v766, %v760
      %v863 = vpack.c.b16 %v767, %v761
      %v864 = vpack.c.b16 %v768, %v762
      %v865 = vpack.c.b16 %v775, %v769
      %v866 = vpack.c.b16 %v776, %v770
      %v867 = vpack.c.b16 %v777, %v771
      %v868 = vpack.c.b16 %v778, %v772
      %v869 = vpack.c.b16 %v779, %v773
      %v870 = vpack.c.b16 %v780, %v774
      %v871 = vpack.c.b16 %v787, %v781
      %v872 = vpack.c.b16 %v788, %v782
      %v873 = vpack.c.b16 %v789, %v783
      %v874 = vpack.c.b16 %v790, %v784
      %v875 = vpack.c.b16 %v791, %v785
      %v876 = vpack.c.b16 %v792, %v786
      %v877 = vpack.c.b16 %v799, %v793
      %v878 = vpack.c.b16 %v800, %v794
      %v879 = vpack.c.b16 %v801, %v795
      %v880 = vpack.c.b16 %v802, %v796
      %v881 = vpack.c.b16 %v803, %v797
      %v882 = vpack.c.b16 %v804, %v798
      %v883 = vpack.c.b16 %v805, %v805
      %v884 = vpack.c.b16 %v806, %v806
      %v885 = vpack.c.b16 %v807, %v807
      %v886 = vpack.c.b16 %v808, %v808
      %v887 = vpack.c.b16 %v809, %v809
      %v888 = vpack.c.b16 %v810, %v810
      %vm961 = vcmask 588800
      %v963 = vsel %vm961, %v441, 0
      %v966 = vsel %vm961, %v443, 0
      %v969 = vsel %vm961, %v445, 0
      %vm971 = vcmask 1043456
      %v973 = vsel %vm971, %v883, 0
      %v976 = vsel %vm971, %v884, 0
      %v979 = vsel %vm971, %v885, 0
      %v982 = vsel %vm971, %v886, 0
      %v985 = vsel %vm971, %v887, 0
      %v988 = vsel %vm971, %v888, 0
      %990 = vmatprep.subr.bf16.mxu0 %v854
      %991 = vmatpush1.bf16.msra.mxu0 %v853
      %992 = vmatprep.subr.bf16.mxu0 %v848
      %993 = vmatpush1.bf16.msra.mxu0 %v847
      %994 = vmatprep.subr.bf16.mxu0 %v842
      %995 = vmatpush1.bf16.msra.mxu0 %v841
      %996 = vmatprep.subr.bf16.mxu0 %v836
      %997 = vmatpush1.bf16.msra.mxu0 %v835
      %998 = vmatprep.subr.bf16.mxu0 %v830
      %999 = vmatpush1.bf16.msra.mxu0 %v829
      %1000 = vmatprep.subr.bf16.mxu0 %v824
      %1001 = vmatpush1.bf16.msra.mxu0 %v823
      %1002 = vmatprep.subr.bf16.mxu0 %v818
      %1003 = vmatpush1.bf16.msra.mxu0 %v817
      %1004 = vmatprep.subr.bf16.mxu0 %v812
      %1005 = vmatpush1.bf16.msra.mxu0 %v811
      %1006 = vmatprep.subr.bf16.mxu0 0
      %1007 = vmatpush2.bf16.msra.mxu0 0
      %1008 = vmatprep.subr.bf16.mxu0 0
      %1009 = vmatpush2.bf16.msra.mxu0 0
      %1010 = vmatprep.subr.bf16.mxu0 0
      %1011 = vmatpush2.bf16.msra.mxu0 0
      %1012 = vmatprep.subr.bf16.mxu0 %v976
      %1013 = vmatpush2.bf16.msra.mxu0 %v973
      %1014 = vmatprep.subr.bf16.mxu0 %v878
      %1015 = vmatpush2.bf16.msra.mxu0 %v877
      %1016 = vmatprep.subr.bf16.mxu0 %v872
      %1017 = vmatpush2.bf16.msra.mxu0 %v871
      %1018 = vmatprep.subr.bf16.mxu0 %v866
      %1019 = vmatpush2.bf16.msra.mxu0 %v865
      %1020 = vmatprep.subr.bf16.mxu0 %v860
      %1021 = vmatpush2.bf16.msra.mxu0 %v859
      %1022 = vmatprep.mubr.bf16.mxu0 %v963
      %1023 = vmatmul.mubr.bf16.gmra.mxu0 %v440
      %v1024 = vpop.f32.mrf.mxu0
      %v1025 = vadd.f32 %v565, %v1024
      %v1026 = vpop.f32.mrf.mxu0
      %v1027 = vadd.f32 %v569, %v1026
      %v1028 = vpop.f32.mrf.mxu0
      %v1029 = vadd.f32 %v565, %v1028
      %v1030 = vpop.f32.mrf.mxu0
      %v1031 = vadd.f32 %v569, %v1030
      %1032 = vmatprep.mubr.bf16.mxu0 %v966
      %1033 = vmatmul.mubr.bf16.gmra.mxu0 %v442
      %v1034 = vpop.f32.mrf.mxu0
      %v1035 = vadd.f32 %v565, %v1034
      %v1036 = vpop.f32.mrf.mxu0
      %v1037 = vadd.f32 %v569, %v1036
      %v1038 = vpop.f32.mrf.mxu0
      %v1039 = vadd.f32 %v565, %v1038
      %v1040 = vpop.f32.mrf.mxu0
      %v1041 = vadd.f32 %v569, %v1040
      %1042 = vmatprep.mubr.bf16.mxu0 %v969
      %1043 = vmatmul.mubr.bf16.gmra.mxu0 %v444
      %v1044 = vpop.f32.mrf.mxu0
      %v1045 = vadd.f32 %v565, %v1044
      %v1046 = vpop.f32.mrf.mxu0
      %v1047 = vadd.f32 %v569, %v1046
      %v1048 = vpop.f32.mrf.mxu0
      %v1049 = vadd.f32 %v565, %v1048
      %v1050 = vpop.f32.mrf.mxu0
      %v1051 = vadd.f32 %v569, %v1050
      %1052 = vdwg.mxu0
      %1053 = vmatprep.subr.bf16.mxu0 %v856
      %1054 = vmatpush1.bf16.msra.mxu0 %v855
      %1055 = vmatprep.subr.bf16.mxu0 %v850
      %1056 = vmatpush1.bf16.msra.mxu0 %v849
      %1057 = vmatprep.subr.bf16.mxu0 %v844
      %1058 = vmatpush1.bf16.msra.mxu0 %v843
      %1059 = vmatprep.subr.bf16.mxu0 %v838
      %1060 = vmatpush1.bf16.msra.mxu0 %v837
      %1061 = vmatprep.subr.bf16.mxu0 %v832
      %1062 = vmatpush1.bf16.msra.mxu0 %v831
      %1063 = vmatprep.subr.bf16.mxu0 %v826
      %1064 = vmatpush1.bf16.msra.mxu0 %v825
      %1065 = vmatprep.subr.bf16.mxu0 %v820
      %1066 = vmatpush1.bf16.msra.mxu0 %v819
      %1067 = vmatprep.subr.bf16.mxu0 %v814
      %1068 = vmatpush1.bf16.msra.mxu0 %v813
      %1069 = vmatprep.subr.bf16.mxu0 0
      %1070 = vmatpush2.bf16.msra.mxu0 0
      %1071 = vmatprep.subr.bf16.mxu0 0
      %1072 = vmatpush2.bf16.msra.mxu0 0
      %1073 = vmatprep.subr.bf16.mxu0 0
      %1074 = vmatpush2.bf16.msra.mxu0 0
      %1075 = vmatprep.subr.bf16.mxu0 %v982
      %1076 = vmatpush2.bf16.msra.mxu0 %v979
      %1077 = vmatprep.subr.bf16.mxu0 %v880
      %1078 = vmatpush2.bf16.msra.mxu0 %v879
      %1079 = vmatprep.subr.bf16.mxu0 %v874
      %1080 = vmatpush2.bf16.msra.mxu0 %v873
      %1081 = vmatprep.subr.bf16.mxu0 %v868
      %1082 = vmatpush2.bf16.msra.mxu0 %v867
      %1083 = vmatprep.subr.bf16.mxu0 %v862
      %1084 = vmatpush2.bf16.msra.mxu0 %v861
      %1085 = vmatprep.mubr.bf16.mxu0 %v963
      %1086 = vmatmul.mubr.bf16.gmra.mxu0 %v440
      %v1087 = vpop.f32.mrf.mxu0
      %v1088 = vadd.f32 %v573, %v1087
      %v1089 = vpop.f32.mrf.mxu0
      %v1090 = vadd.f32 %v577, %v1089
      %v1091 = vpop.f32.mrf.mxu0
      %v1092 = vadd.f32 %v573, %v1091
      %v1093 = vpop.f32.mrf.mxu0
      %v1094 = vadd.f32 %v577, %v1093
      %1095 = vmatprep.mubr.bf16.mxu0 %v966
      %1096 = vmatmul.mubr.bf16.gmra.mxu0 %v442
      %v1097 = vpop.f32.mrf.mxu0
      %v1098 = vadd.f32 %v573, %v1097
      %v1099 = vpop.f32.mrf.mxu0
      %v1100 = vadd.f32 %v577, %v1099
      %v1101 = vpop.f32.mrf.mxu0
      %v1102 = vadd.f32 %v573, %v1101
      %v1103 = vpop.f32.mrf.mxu0
      %v1104 = vadd.f32 %v577, %v1103
      %1105 = vmatprep.mubr.bf16.mxu0 %v969
      %1106 = vmatmul.mubr.bf16.gmra.mxu0 %v444
      %v1107 = vpop.f32.mrf.mxu0
      %v1108 = vadd.f32 %v573, %v1107
      %v1109 = vpop.f32.mrf.mxu0
      %v1110 = vadd.f32 %v577, %v1109
      %v1111 = vpop.f32.mrf.mxu0
      %v1112 = vadd.f32 %v573, %v1111
      %v1113 = vpop.f32.mrf.mxu0
      %v1114 = vadd.f32 %v577, %v1113
      %1115 = vdwg.mxu0
      %1116 = vmatprep.subr.bf16.mxu0 %v858
      %1117 = vmatpush1.bf16.msra.mxu0 %v857
      %1118 = vmatprep.subr.bf16.mxu0 %v852
      %1119 = vmatpush1.bf16.msra.mxu0 %v851
      %1120 = vmatprep.subr.bf16.mxu0 %v846
      %1121 = vmatpush1.bf16.msra.mxu0 %v845
      %1122 = vmatprep.subr.bf16.mxu0 %v840
      %1123 = vmatpush1.bf16.msra.mxu0 %v839
      %1124 = vmatprep.subr.bf16.mxu0 %v834
      %1125 = vmatpush1.bf16.msra.mxu0 %v833
      %1126 = vmatprep.subr.bf16.mxu0 %v828
      %1127 = vmatpush1.bf16.msra.mxu0 %v827
      %1128 = vmatprep.subr.bf16.mxu0 %v822
      %1129 = vmatpush1.bf16.msra.mxu0 %v821
      %1130 = vmatprep.subr.bf16.mxu0 %v816
      %1131 = vmatpush1.bf16.msra.mxu0 %v815
      %1132 = vmatprep.subr.bf16.mxu0 0
      %1133 = vmatpush2.bf16.msra.mxu0 0
      %1134 = vmatprep.subr.bf16.mxu0 0
      %1135 = vmatpush2.bf16.msra.mxu0 0
      %1136 = vmatprep.subr.bf16.mxu0 0
      %1137 = vmatpush2.bf16.msra.mxu0 0
      %1138 = vmatprep.subr.bf16.mxu0 %v988
      %1139 = vmatpush2.bf16.msra.mxu0 %v985
      %1140 = vmatprep.subr.bf16.mxu0 %v882
      %1141 = vmatpush2.bf16.msra.mxu0 %v881
      %1142 = vmatprep.subr.bf16.mxu0 %v876
      %1143 = vmatpush2.bf16.msra.mxu0 %v875
      %1144 = vmatprep.subr.bf16.mxu0 %v870
      %1145 = vmatpush2.bf16.msra.mxu0 %v869
      %1146 = vmatprep.subr.bf16.mxu0 %v864
      %1147 = vmatpush2.bf16.msra.mxu0 %v863
      %1148 = vmatprep.mubr.bf16.mxu0 %v963
      %1149 = vmatmul.mubr.bf16.gmra.mxu0 %v440
      %v1150 = vpop.f32.mrf.mxu0
      %v1151 = vadd.f32 %v581, %v1150
      %v1152 = vpop.f32.mrf.mxu0
      %v1153 = vadd.f32 %v585, %v1152
      %v1154 = vpop.f32.mrf.mxu0
      %v1155 = vadd.f32 %v581, %v1154
      %v1156 = vpop.f32.mrf.mxu0
      %v1157 = vadd.f32 %v585, %v1156
      %1158 = vmatprep.mubr.bf16.mxu0 %v966
      %1159 = vmatmul.mubr.bf16.gmra.mxu0 %v442
      %v1160 = vpop.f32.mrf.mxu0
      %v1161 = vadd.f32 %v581, %v1160
      %v1162 = vpop.f32.mrf.mxu0
      %v1163 = vadd.f32 %v585, %v1162
      %v1164 = vpop.f32.mrf.mxu0
      %v1165 = vadd.f32 %v581, %v1164
      %v1166 = vpop.f32.mrf.mxu0
      %v1167 = vadd.f32 %v585, %v1166
      %1168 = vmatprep.mubr.bf16.mxu0 %v969
      %1169 = vmatmul.mubr.bf16.gmra.mxu0 %v444
      %v1170 = vpop.f32.mrf.mxu0
      %v1171 = vadd.f32 %v581, %v1170
      %v1172 = vpop.f32.mrf.mxu0
      %v1173 = vadd.f32 %v585, %v1172
      %v1174 = vpop.f32.mrf.mxu0
      %v1175 = vadd.f32 %v581, %v1174
      %v1176 = vpop.f32.mrf.mxu0
      %v1177 = vadd.f32 %v585, %v1176
      %1178 = vdwg.mxu0
      %v1179 = vld [vmem:[%s1] sm:$0x3]
      %v1180 = vld [vmem:[%s1 + $0x2] sm:$0x3]
      %v1181 = vld [vmem:[%s1 + $0x4] sm:$0x3]
      %v1182 = vld [vmem:[%s1 + $0x6] sm:$0x3]
      %v1183 = vld [vmem:[%s1 + $0x8] sm:$0x3]
      %v1184 = vld [vmem:[%s1 + $0xa] sm:$0x3]
      %v1185 = vld [vmem:[%s1 + $0xc] sm:$0x3]
      %v1186 = vld [vmem:[%s1 + $0xe] sm:$0x3]
      %v1187 = vld [vmem:[%s1 + $0x10] sm:$0x3]
      %v1188 = vld [vmem:[%s1 + $0x12] sm:$0x3]
      %v1199 = vlaneseq
      %v1200 = vshrl.u32 %v1199, 7
      %v1201 = vsub.s32 0, %v1200
      %v1202 = vrot.slane %v1179, %v1201
      %v1203 = vlaneseq
      %v1204 = vshrl.u32 %v1203, 7
      %v1205 = vsub.s32 1, %v1204
      %v1206 = vrot.slane %v1179, %v1205
      %v1207 = vlaneseq
      %v1208 = vshrl.u32 %v1207, 7
      %v1209 = vsub.s32 0, %v1208
      %v1210 = vrot.slane %v1180, %v1209
      %v1211 = vlaneseq
      %v1212 = vshrl.u32 %v1211, 7
      %v1213 = vsub.s32 1, %v1212
      %v1214 = vrot.slane %v1180, %v1213
      %v1215 = vlaneseq
      %v1216 = vshrl.u32 %v1215, 7
      %v1217 = vsub.s32 0, %v1216
      %v1218 = vrot.slane %v1181, %v1217
      %v1219 = vlaneseq
      %v1220 = vshrl.u32 %v1219, 7
      %v1221 = vsub.s32 1, %v1220
      %v1222 = vrot.slane %v1181, %v1221
      %v1223 = vlaneseq
      %v1224 = vshrl.u32 %v1223, 7
      %v1225 = vsub.s32 0, %v1224
      %v1226 = vrot.slane %v1182, %v1225
      %v1227 = vlaneseq
      %v1228 = vshrl.u32 %v1227, 7
      %v1229 = vsub.s32 1, %v1228
      %v1230 = vrot.slane %v1182, %v1229
      %v1231 = vlaneseq
      %v1232 = vshrl.u32 %v1231, 7
      %v1233 = vsub.s32 0, %v1232
      %v1234 = vrot.slane %v1183, %v1233
      %v1235 = vlaneseq
      %v1236 = vshrl.u32 %v1235, 7
      %v1237 = vsub.s32 1, %v1236
      %v1238 = vrot.slane %v1183, %v1237
      %v1239 = vlaneseq
      %v1240 = vshrl.u32 %v1239, 7
      %v1241 = vsub.s32 0, %v1240
      %v1242 = vrot.slane %v1184, %v1241
      %v1243 = vlaneseq
      %v1244 = vshrl.u32 %v1243, 7
      %v1245 = vsub.s32 1, %v1244
      %v1246 = vrot.slane %v1184, %v1245
      %v1247 = vlaneseq
      %v1248 = vshrl.u32 %v1247, 7
      %v1249 = vsub.s32 0, %v1248
      %v1250 = vrot.slane %v1185, %v1249
      %v1251 = vlaneseq
      %v1252 = vshrl.u32 %v1251, 7
      %v1253 = vsub.s32 1, %v1252
      %v1254 = vrot.slane %v1185, %v1253
      %v1255 = vlaneseq
      %v1256 = vshrl.u32 %v1255, 7
      %v1257 = vsub.s32 0, %v1256
      %v1258 = vrot.slane %v1186, %v1257
      %v1259 = vlaneseq
      %v1260 = vshrl.u32 %v1259, 7
      %v1261 = vsub.s32 1, %v1260
      %v1262 = vrot.slane %v1186, %v1261
      %v1263 = vlaneseq
      %v1264 = vshrl.u32 %v1263, 7
      %v1265 = vsub.s32 0, %v1264
      %v1266 = vrot.slane %v1187, %v1265
      %v1267 = vlaneseq
      %v1268 = vshrl.u32 %v1267, 7
      %v1269 = vsub.s32 1, %v1268
      %v1270 = vrot.slane %v1187, %v1269
      %v1271 = vlaneseq
      %v1272 = vshrl.u32 %v1271, 7
      %v1273 = vsub.s32 0, %v1272
      %v1274 = vrot.slane %v1188, %v1273
      %v1275 = vlaneseq
      %v1276 = vshrl.u32 %v1275, 7
      %v1277 = vsub.s32 1, %v1276
      %v1278 = vrot.slane %v1188, %v1277
      %v1299 = vmul.f32 %v1025, %v1202
      %v1300 = vmul.f32 %v1027, %v1206
      %v1301 = vmul.f32 %v1029, %v1202
      %v1302 = vmul.f32 %v1031, %v1206
      %v1303 = vmul.f32 %v1035, %v1202
      %v1304 = vmul.f32 %v1037, %v1206
      %v1305 = vmul.f32 %v1039, %v1202
      %v1306 = vmul.f32 %v1041, %v1206
      %v1307 = vmul.f32 %v1045, %v1202
      %v1308 = vmul.f32 %v1047, %v1206
      %v1309 = vmul.f32 %v1049, %v1202
      %v1310 = vmul.f32 %v1051, %v1206
      %v1311 = vmul.f32 %v1025, %v1210
      %v1312 = vmul.f32 %v1027, %v1214
      %v1313 = vmul.f32 %v1029, %v1210
      %v1314 = vmul.f32 %v1031, %v1214
      %v1315 = vmul.f32 %v1035, %v1210
      %v1316 = vmul.f32 %v1037, %v1214
      %v1317 = vmul.f32 %v1039, %v1210
      %v1318 = vmul.f32 %v1041, %v1214
      %v1319 = vmul.f32 %v1045, %v1210
      %v1320 = vmul.f32 %v1047, %v1214
      %v1321 = vmul.f32 %v1049, %v1210
      %v1322 = vmul.f32 %v1051, %v1214
      %v1323 = vmul.f32 %v1025, %v1218
      %v1324 = vmul.f32 %v1027, %v1222
      %v1325 = vmul.f32 %v1029, %v1218
      %v1326 = vmul.f32 %v1031, %v1222
      %v1327 = vmul.f32 %v1035, %v1218
      %v1328 = vmul.f32 %v1037, %v1222
      %v1329 = vmul.f32 %v1039, %v1218
      %v1330 = vmul.f32 %v1041, %v1222
      %v1331 = vmul.f32 %v1045, %v1218
      %v1332 = vmul.f32 %v1047, %v1222
      %v1333 = vmul.f32 %v1049, %v1218
      %v1334 = vmul.f32 %v1051, %v1222
      %v1335 = vmul.f32 %v1025, %v1226
      %v1336 = vmul.f32 %v1027, %v1230
      %v1337 = vmul.f32 %v1029, %v1226
      %v1338 = vmul.f32 %v1031, %v1230
      %v1339 = vmul.f32 %v1035, %v1226
      %v1340 = vmul.f32 %v1037, %v1230
      %v1341 = vmul.f32 %v1039, %v1226
      %v1342 = vmul.f32 %v1041, %v1230
      %v1343 = vmul.f32 %v1045, %v1226
      %v1344 = vmul.f32 %v1047, %v1230
      %v1345 = vmul.f32 %v1049, %v1226
      %v1346 = vmul.f32 %v1051, %v1230
      %v1347 = vmul.f32 %v1025, %v1234
      %v1348 = vmul.f32 %v1027, %v1238
      %v1349 = vmul.f32 %v1029, %v1234
      %v1350 = vmul.f32 %v1031, %v1238
      %v1351 = vmul.f32 %v1035, %v1234
      %v1352 = vmul.f32 %v1037, %v1238
      %v1353 = vmul.f32 %v1039, %v1234
      %v1354 = vmul.f32 %v1041, %v1238
      %v1355 = vmul.f32 %v1045, %v1234
      %v1356 = vmul.f32 %v1047, %v1238
      %v1357 = vmul.f32 %v1049, %v1234
      %v1358 = vmul.f32 %v1051, %v1238
      %v1359 = vmul.f32 %v1025, %v1242
      %v1360 = vmul.f32 %v1027, %v1246
      %v1361 = vmul.f32 %v1029, %v1242
      %v1362 = vmul.f32 %v1031, %v1246
      %v1363 = vmul.f32 %v1035, %v1242
      %v1364 = vmul.f32 %v1037, %v1246
      %v1365 = vmul.f32 %v1039, %v1242
      %v1366 = vmul.f32 %v1041, %v1246
      %v1367 = vmul.f32 %v1045, %v1242
      %v1368 = vmul.f32 %v1047, %v1246
      %v1369 = vmul.f32 %v1049, %v1242
      %v1370 = vmul.f32 %v1051, %v1246
      %v1371 = vmul.f32 %v1025, %v1250
      %v1372 = vmul.f32 %v1027, %v1254
      %v1373 = vmul.f32 %v1029, %v1250
      %v1374 = vmul.f32 %v1031, %v1254
      %v1375 = vmul.f32 %v1035, %v1250
      %v1376 = vmul.f32 %v1037, %v1254
      %v1377 = vmul.f32 %v1039, %v1250
      %v1378 = vmul.f32 %v1041, %v1254
      %v1379 = vmul.f32 %v1045, %v1250
      %v1380 = vmul.f32 %v1047, %v1254
      %v1381 = vmul.f32 %v1049, %v1250
      %v1382 = vmul.f32 %v1051, %v1254
      %v1383 = vmul.f32 %v1025, %v1258
      %v1384 = vmul.f32 %v1027, %v1262
      %v1385 = vmul.f32 %v1029, %v1258
      %v1386 = vmul.f32 %v1031, %v1262
      %v1387 = vmul.f32 %v1035, %v1258
      %v1388 = vmul.f32 %v1037, %v1262
      %v1389 = vmul.f32 %v1039, %v1258
      %v1390 = vmul.f32 %v1041, %v1262
      %v1391 = vmul.f32 %v1045, %v1258
      %v1392 = vmul.f32 %v1047, %v1262
      %v1393 = vmul.f32 %v1049, %v1258
      %v1394 = vmul.f32 %v1051, %v1262
      %v1395 = vmul.f32 %v1025, %v1266
      %v1396 = vmul.f32 %v1027, %v1270
      %v1397 = vmul.f32 %v1029, %v1266
      %v1398 = vmul.f32 %v1031, %v1270
      %v1399 = vmul.f32 %v1035, %v1266
      %v1400 = vmul.f32 %v1037, %v1270
      %v1401 = vmul.f32 %v1039, %v1266
      %v1402 = vmul.f32 %v1041, %v1270
      %v1403 = vmul.f32 %v1045, %v1266
      %v1404 = vmul.f32 %v1047, %v1270
      %v1405 = vmul.f32 %v1049, %v1266
      %v1406 = vmul.f32 %v1051, %v1270
      %v1407 = vmul.f32 %v1025, %v1274
      %v1408 = vmul.f32 %v1027, %v1278
      %v1409 = vmul.f32 %v1029, %v1274
      %v1410 = vmul.f32 %v1031, %v1278
      %v1411 = vmul.f32 %v1035, %v1274
      %v1412 = vmul.f32 %v1037, %v1278
      %v1413 = vmul.f32 %v1039, %v1274
      %v1414 = vmul.f32 %v1041, %v1278
      %v1415 = vmul.f32 %v1045, %v1274
      %v1416 = vmul.f32 %v1047, %v1278
      %v1417 = vmul.f32 %v1049, %v1274
      %v1418 = vmul.f32 %v1051, %v1278
      %v1419 = vpack.c.bf16 %v1301, %v1299
      %v1420 = vpack.c.bf16 %v1302, %v1300
      %v1421 = vpack.c.bf16 %v1305, %v1303
      %v1422 = vpack.c.bf16 %v1306, %v1304
      %v1423 = vpack.c.bf16 %v1309, %v1307
      %v1424 = vpack.c.bf16 %v1310, %v1308
      %v1425 = vpack.c.bf16 %v1313, %v1311
      %v1426 = vpack.c.bf16 %v1314, %v1312
      %v1427 = vpack.c.bf16 %v1317, %v1315
      %v1428 = vpack.c.bf16 %v1318, %v1316
      %v1429 = vpack.c.bf16 %v1321, %v1319
      %v1430 = vpack.c.bf16 %v1322, %v1320
      %v1431 = vpack.c.bf16 %v1325, %v1323
      %v1432 = vpack.c.bf16 %v1326, %v1324
      %v1433 = vpack.c.bf16 %v1329, %v1327
      %v1434 = vpack.c.bf16 %v1330, %v1328
      %v1435 = vpack.c.bf16 %v1333, %v1331
      %v1436 = vpack.c.bf16 %v1334, %v1332
      %v1437 = vpack.c.bf16 %v1337, %v1335
      %v1438 = vpack.c.bf16 %v1338, %v1336
      %v1439 = vpack.c.bf16 %v1341, %v1339
      %v1440 = vpack.c.bf16 %v1342, %v1340
      %v1441 = vpack.c.bf16 %v1345, %v1343
      %v1442 = vpack.c.bf16 %v1346, %v1344
      %v1443 = vpack.c.bf16 %v1349, %v1347
      %v1444 = vpack.c.bf16 %v1350, %v1348
      %v1445 = vpack.c.bf16 %v1353, %v1351
      %v1446 = vpack.c.bf16 %v1354, %v1352
      %v1447 = vpack.c.bf16 %v1357, %v1355
      %v1448 = vpack.c.bf16 %v1358, %v1356
      %v1449 = vpack.c.bf16 %v1361, %v1359
      %v1450 = vpack.c.bf16 %v1362, %v1360
      %v1451 = vpack.c.bf16 %v1365, %v1363
      %v1452 = vpack.c.bf16 %v1366, %v1364
      %v1453 = vpack.c.bf16 %v1369, %v1367
      %v1454 = vpack.c.bf16 %v1370, %v1368
      %v1455 = vpack.c.bf16 %v1373, %v1371
      %v1456 = vpack.c.bf16 %v1374, %v1372
      %v1457 = vpack.c.bf16 %v1377, %v1375
      %v1458 = vpack.c.bf16 %v1378, %v1376
      %v1459 = vpack.c.bf16 %v1381, %v1379
      %v1460 = vpack.c.bf16 %v1382, %v1380
      %v1461 = vpack.c.bf16 %v1385, %v1383
      %v1462 = vpack.c.bf16 %v1386, %v1384
      %v1463 = vpack.c.bf16 %v1389, %v1387
      %v1464 = vpack.c.bf16 %v1390, %v1388
      %v1465 = vpack.c.bf16 %v1393, %v1391
      %v1466 = vpack.c.bf16 %v1394, %v1392
      %v1467 = vpack.c.bf16 %v1397, %v1395
      %v1468 = vpack.c.bf16 %v1398, %v1396
      %v1469 = vpack.c.bf16 %v1401, %v1399
      %v1470 = vpack.c.bf16 %v1402, %v1400
      %v1471 = vpack.c.bf16 %v1405, %v1403
      %v1472 = vpack.c.bf16 %v1406, %v1404
      %v1473 = vpack.c.bf16 %v1409, %v1407
      %v1474 = vpack.c.bf16 %v1410, %v1408
      %v1475 = vpack.c.bf16 %v1413, %v1411
      %v1476 = vpack.c.bf16 %v1414, %v1412
      %v1477 = vpack.c.bf16 %v1417, %v1415
      %v1478 = vpack.c.bf16 %v1418, %v1416
      %v1479 = vpack.c.bf16 %v1092, %v1088
      %v1480 = vpack.c.bf16 %v1094, %v1090
      %v1481 = vpack.c.bf16 %v1102, %v1098
      %v1482 = vpack.c.bf16 %v1104, %v1100
      %v1483 = vpack.c.bf16 %v1112, %v1108
      %v1484 = vpack.c.bf16 %v1114, %v1110
      %v1486 = vsel %vm961, %v1420, 0
      %v1489 = vsel %vm961, %v1422, 0
      %v1492 = vsel %vm961, %v1424, 0
      %v1495 = vsel %vm961, %v1426, 0
      %v1498 = vsel %vm961, %v1428, 0
      %v1501 = vsel %vm961, %v1430, 0
      %v1504 = vsel %vm961, %v1432, 0
      %v1507 = vsel %vm961, %v1434, 0
      %v1510 = vsel %vm961, %v1436, 0
      %v1513 = vsel %vm961, %v1438, 0
      %v1516 = vsel %vm961, %v1440, 0
      %v1519 = vsel %vm961, %v1442, 0
      %v1522 = vsel %vm961, %v1444, 0
      %v1525 = vsel %vm961, %v1446, 0
      %v1528 = vsel %vm961, %v1448, 0
      %v1531 = vsel %vm961, %v1450, 0
      %v1534 = vsel %vm961, %v1452, 0
      %v1537 = vsel %vm961, %v1454, 0
      %v1540 = vsel %vm961, %v1456, 0
      %v1543 = vsel %vm961, %v1458, 0
      %v1546 = vsel %vm961, %v1460, 0
      %v1549 = vsel %vm961, %v1462, 0
      %v1552 = vsel %vm961, %v1464, 0
      %v1555 = vsel %vm961, %v1466, 0
      %v1558 = vsel %vm961, %v1468, 0
      %v1561 = vsel %vm961, %v1470, 0
      %v1564 = vsel %vm961, %v1472, 0
      %v1567 = vsel %vm961, %v1474, 0
      %v1570 = vsel %vm961, %v1476, 0
      %v1573 = vsel %vm961, %v1478, 0
      %v1576 = vsel %vm961, %v1480, 0
      %v1579 = vsel %vm961, %v1482, 0
      %v1582 = vsel %vm961, %v1484, 0
      %1584 = vmatprep.subr.bf16.mxu0 0
      %1585 = vmatpush1.bf16.xpose.msra.mxu0 0
      %1586 = vmatprep.subr.bf16.mxu0 0
      %1587 = vmatpush1.bf16.xpose.msra.mxu0 0
      %1588 = vmatprep.subr.bf16.mxu0 0
      %1589 = vmatpush1.bf16.xpose.msra.mxu0 0
      %1590 = vmatprep.subr.bf16.mxu0 0
      %1591 = vmatpush1.bf16.xpose.msra.mxu0 0
      %1592 = vmatprep.subr.bf16.mxu0 0
      %1593 = vmatpush1.bf16.xpose.msra.mxu0 0
      %1594 = vmatprep.subr.bf16.mxu0 %v1582
      %1595 = vmatpush1.bf16.xpose.msra.mxu0 %v1483
      %1596 = vmatprep.subr.bf16.mxu0 %v1579
      %1597 = vmatpush1.bf16.xpose.msra.mxu0 %v1481
      %1598 = vmatprep.subr.bf16.mxu0 %v1576
      %1599 = vmatpush1.bf16.xpose.msra.mxu0 %v1479
      %1600 = vmatprep.subr.bf16.mxu0 0
      %1601 = vmatpush2.bf16.xpose.msra.mxu0 0
      %1602 = vmatprep.subr.bf16.mxu0 0
      %1603 = vmatpush2.bf16.xpose.msra.mxu0 0
      %1604 = vmatprep.subr.bf16.mxu0 0
      %1605 = vmatpush2.bf16.xpose.msra.mxu0 0
      %1606 = vmatprep.subr.bf16.mxu0 0
      %1607 = vmatpush2.bf16.xpose.msra.mxu0 0
      %1608 = vmatprep.subr.bf16.mxu0 0
      %1609 = vmatpush2.bf16.xpose.msra.mxu0 0
      %1610 = vmatprep.subr.bf16.mxu0 0
      %1611 = vmatpush2.bf16.xpose.msra.mxu0 0
      %1612 = vmatprep.subr.bf16.mxu0 0
      %1613 = vmatpush2.bf16.xpose.msra.mxu0 0
      %1614 = vmatprep.subr.bf16.mxu0 0
      %1615 = vmatpush2.bf16.xpose.msra.mxu0 0
      %1616 = vmatprep.mubr.bf16.mxu0 %v1486
      %1617 = vmatmul.mubr.bf16.gmra.mxu0 %v1419
      %v1618 = vpop.f32.mrf.mxu0
      %v1619 = vadd.f32 0.0, %v1618
      %v1620 = vpop.f32.mrf.mxu0
      %v1621 = vpop.f32.mrf.mxu0
      %v1622 = vadd.f32 0.0, %v1621
      %v1623 = vpop.f32.mrf.mxu0
      %1624 = vmatprep.mubr.bf16.mxu0 %v1489
      %1625 = vmatmul.mubr.bf16.gmra.mxu0 %v1421
      %v1626 = vpop.f32.mrf.mxu0
      %v1627 = vadd.f32 0.0, %v1626
      %v1628 = vpop.f32.mrf.mxu0
      %v1629 = vpop.f32.mrf.mxu0
      %v1630 = vadd.f32 0.0, %v1629
      %v1631 = vpop.f32.mrf.mxu0
      %1632 = vmatprep.mubr.bf16.mxu0 %v1492
      %1633 = vmatmul.mubr.bf16.gmra.mxu0 %v1423
      %v1634 = vpop.f32.mrf.mxu0
      %v1635 = vadd.f32 0.0, %v1634
      %v1636 = vpop.f32.mrf.mxu0
      %v1637 = vpop.f32.mrf.mxu0
      %v1638 = vadd.f32 0.0, %v1637
      %v1639 = vpop.f32.mrf.mxu0
      %1640 = vmatprep.mubr.bf16.mxu0 %v1495
      %1641 = vmatmul.mubr.bf16.gmra.mxu0 %v1425
      %v1642 = vpop.f32.mrf.mxu0
      %v1643 = vadd.f32 0.0, %v1642
      %v1644 = vpop.f32.mrf.mxu0
      %v1645 = vpop.f32.mrf.mxu0
      %v1646 = vadd.f32 0.0, %v1645
      %v1647 = vpop.f32.mrf.mxu0
      %1648 = vmatprep.mubr.bf16.mxu0 %v1498
      %1649 = vmatmul.mubr.bf16.gmra.mxu0 %v1427
      %v1650 = vpop.f32.mrf.mxu0
      %v1651 = vadd.f32 0.0, %v1650
      %v1652 = vpop.f32.mrf.mxu0
      %v1653 = vpop.f32.mrf.mxu0
      %v1654 = vadd.f32 0.0, %v1653
      %v1655 = vpop.f32.mrf.mxu0
      %1656 = vmatprep.mubr.bf16.mxu0 %v1501
      %1657 = vmatmul.mubr.bf16.gmra.mxu0 %v1429
      %v1658 = vpop.f32.mrf.mxu0
      %v1659 = vadd.f32 0.0, %v1658
      %v1660 = vpop.f32.mrf.mxu0
      %v1661 = vpop.f32.mrf.mxu0
      %v1662 = vadd.f32 0.0, %v1661
      %v1663 = vpop.f32.mrf.mxu0
      %1664 = vmatprep.mubr.bf16.mxu0 %v1504
      %1665 = vmatmul.mubr.bf16.gmra.mxu0 %v1431
      %v1666 = vpop.f32.mrf.mxu0
      %v1667 = vadd.f32 0.0, %v1666
      %v1668 = vpop.f32.mrf.mxu0
      %v1669 = vpop.f32.mrf.mxu0
      %v1670 = vadd.f32 0.0, %v1669
      %v1671 = vpop.f32.mrf.mxu0
      %1672 = vmatprep.mubr.bf16.mxu0 %v1507
      %1673 = vmatmul.mubr.bf16.gmra.mxu0 %v1433
      %v1674 = vpop.f32.mrf.mxu0
      %v1675 = vadd.f32 0.0, %v1674
      %v1676 = vpop.f32.mrf.mxu0
      %v1677 = vpop.f32.mrf.mxu0
      %v1678 = vadd.f32 0.0, %v1677
      %v1679 = vpop.f32.mrf.mxu0
      %1680 = vmatprep.mubr.bf16.mxu0 %v1510
      %1681 = vmatmul.mubr.bf16.gmra.mxu0 %v1435
      %v1682 = vpop.f32.mrf.mxu0
      %v1683 = vadd.f32 0.0, %v1682
      %v1684 = vpop.f32.mrf.mxu0
      %v1685 = vpop.f32.mrf.mxu0
      %v1686 = vadd.f32 0.0, %v1685
      %v1687 = vpop.f32.mrf.mxu0
      %1688 = vmatprep.mubr.bf16.mxu0 %v1513
      %1689 = vmatmul.mubr.bf16.gmra.mxu0 %v1437
      %v1690 = vpop.f32.mrf.mxu0
      %v1691 = vadd.f32 0.0, %v1690
      %v1692 = vpop.f32.mrf.mxu0
      %v1693 = vpop.f32.mrf.mxu0
      %v1694 = vadd.f32 0.0, %v1693
      %v1695 = vpop.f32.mrf.mxu0
      %1696 = vmatprep.mubr.bf16.mxu0 %v1516
      %1697 = vmatmul.mubr.bf16.gmra.mxu0 %v1439
      %v1698 = vpop.f32.mrf.mxu0
      %v1699 = vadd.f32 0.0, %v1698
      %v1700 = vpop.f32.mrf.mxu0
      %v1701 = vpop.f32.mrf.mxu0
      %v1702 = vadd.f32 0.0, %v1701
      %v1703 = vpop.f32.mrf.mxu0
      %1704 = vmatprep.mubr.bf16.mxu0 %v1519
      %1705 = vmatmul.mubr.bf16.gmra.mxu0 %v1441
      %v1706 = vpop.f32.mrf.mxu0
      %v1707 = vadd.f32 0.0, %v1706
      %v1708 = vpop.f32.mrf.mxu0
      %v1709 = vpop.f32.mrf.mxu0
      %v1710 = vadd.f32 0.0, %v1709
      %v1711 = vpop.f32.mrf.mxu0
      %1712 = vmatprep.mubr.bf16.mxu0 %v1522
      %1713 = vmatmul.mubr.bf16.gmra.mxu0 %v1443
      %v1714 = vpop.f32.mrf.mxu0
      %v1715 = vadd.f32 0.0, %v1714
      %v1716 = vpop.f32.mrf.mxu0
      %v1717 = vpop.f32.mrf.mxu0
      %v1718 = vadd.f32 0.0, %v1717
      %v1719 = vpop.f32.mrf.mxu0
      %1720 = vmatprep.mubr.bf16.mxu0 %v1525
      %1721 = vmatmul.mubr.bf16.gmra.mxu0 %v1445
      %v1722 = vpop.f32.mrf.mxu0
      %v1723 = vadd.f32 0.0, %v1722
      %v1724 = vpop.f32.mrf.mxu0
      %v1725 = vpop.f32.mrf.mxu0
      %v1726 = vadd.f32 0.0, %v1725
      %v1727 = vpop.f32.mrf.mxu0
      %1728 = vmatprep.mubr.bf16.mxu0 %v1528
      %1729 = vmatmul.mubr.bf16.gmra.mxu0 %v1447
      %v1730 = vpop.f32.mrf.mxu0
      %v1731 = vadd.f32 0.0, %v1730
      %v1732 = vpop.f32.mrf.mxu0
      %v1733 = vpop.f32.mrf.mxu0
      %v1734 = vadd.f32 0.0, %v1733
      %v1735 = vpop.f32.mrf.mxu0
      %1736 = vmatprep.mubr.bf16.mxu0 %v1531
      %1737 = vmatmul.mubr.bf16.gmra.mxu0 %v1449
      %v1738 = vpop.f32.mrf.mxu0
      %v1739 = vadd.f32 0.0, %v1738
      %v1740 = vpop.f32.mrf.mxu0
      %v1741 = vpop.f32.mrf.mxu0
      %v1742 = vadd.f32 0.0, %v1741
      %v1743 = vpop.f32.mrf.mxu0
      %1744 = vmatprep.mubr.bf16.mxu0 %v1534
      %1745 = vmatmul.mubr.bf16.gmra.mxu0 %v1451
      %v1746 = vpop.f32.mrf.mxu0
      %v1747 = vadd.f32 0.0, %v1746
      %v1748 = vpop.f32.mrf.mxu0
      %v1749 = vpop.f32.mrf.mxu0
      %v1750 = vadd.f32 0.0, %v1749
      %v1751 = vpop.f32.mrf.mxu0
      %1752 = vmatprep.mubr.bf16.mxu0 %v1537
      %1753 = vmatmul.mubr.bf16.gmra.mxu0 %v1453
      %v1754 = vpop.f32.mrf.mxu0
      %v1755 = vadd.f32 0.0, %v1754
      %v1756 = vpop.f32.mrf.mxu0
      %v1757 = vpop.f32.mrf.mxu0
      %v1758 = vadd.f32 0.0, %v1757
      %v1759 = vpop.f32.mrf.mxu0
      %1760 = vmatprep.mubr.bf16.mxu0 %v1540
      %1761 = vmatmul.mubr.bf16.gmra.mxu0 %v1455
      %v1762 = vpop.f32.mrf.mxu0
      %v1763 = vadd.f32 0.0, %v1762
      %v1764 = vpop.f32.mrf.mxu0
      %v1765 = vpop.f32.mrf.mxu0
      %v1766 = vadd.f32 0.0, %v1765
      %v1767 = vpop.f32.mrf.mxu0
      %1768 = vmatprep.mubr.bf16.mxu0 %v1543
      %1769 = vmatmul.mubr.bf16.gmra.mxu0 %v1457
      %v1770 = vpop.f32.mrf.mxu0
      %v1771 = vadd.f32 0.0, %v1770
      %v1772 = vpop.f32.mrf.mxu0
      %v1773 = vpop.f32.mrf.mxu0
      %v1774 = vadd.f32 0.0, %v1773
      %v1775 = vpop.f32.mrf.mxu0
      %1776 = vmatprep.mubr.bf16.mxu0 %v1546
      %1777 = vmatmul.mubr.bf16.gmra.mxu0 %v1459
      %v1778 = vpop.f32.mrf.mxu0
      %v1779 = vadd.f32 0.0, %v1778
      %v1780 = vpop.f32.mrf.mxu0
      %v1781 = vpop.f32.mrf.mxu0
      %v1782 = vadd.f32 0.0, %v1781
      %v1783 = vpop.f32.mrf.mxu0
      %1784 = vmatprep.mubr.bf16.mxu0 %v1549
      %1785 = vmatmul.mubr.bf16.gmra.mxu0 %v1461
      %v1786 = vpop.f32.mrf.mxu0
      %v1787 = vadd.f32 0.0, %v1786
      %v1788 = vpop.f32.mrf.mxu0
      %v1789 = vpop.f32.mrf.mxu0
      %v1790 = vadd.f32 0.0, %v1789
      %v1791 = vpop.f32.mrf.mxu0
      %1792 = vmatprep.mubr.bf16.mxu0 %v1552
      %1793 = vmatmul.mubr.bf16.gmra.mxu0 %v1463
      %v1794 = vpop.f32.mrf.mxu0
      %v1795 = vadd.f32 0.0, %v1794
      %v1796 = vpop.f32.mrf.mxu0
      %v1797 = vpop.f32.mrf.mxu0
      %v1798 = vadd.f32 0.0, %v1797
      %v1799 = vpop.f32.mrf.mxu0
      %1800 = vmatprep.mubr.bf16.mxu0 %v1555
      %1801 = vmatmul.mubr.bf16.gmra.mxu0 %v1465
      %v1802 = vpop.f32.mrf.mxu0
      %v1803 = vadd.f32 0.0, %v1802
      %v1804 = vpop.f32.mrf.mxu0
      %v1805 = vpop.f32.mrf.mxu0
      %v1806 = vadd.f32 0.0, %v1805
      %v1807 = vpop.f32.mrf.mxu0
      %1808 = vmatprep.mubr.bf16.mxu0 %v1558
      %1809 = vmatmul.mubr.bf16.gmra.mxu0 %v1467
      %v1810 = vpop.f32.mrf.mxu0
      %v1811 = vadd.f32 0.0, %v1810
      %v1812 = vpop.f32.mrf.mxu0
      %v1813 = vpop.f32.mrf.mxu0
      %v1814 = vadd.f32 0.0, %v1813
      %v1815 = vpop.f32.mrf.mxu0
      %1816 = vmatprep.mubr.bf16.mxu0 %v1561
      %1817 = vmatmul.mubr.bf16.gmra.mxu0 %v1469
      %v1818 = vpop.f32.mrf.mxu0
      %v1819 = vadd.f32 0.0, %v1818
      %v1820 = vpop.f32.mrf.mxu0
      %v1821 = vpop.f32.mrf.mxu0
      %v1822 = vadd.f32 0.0, %v1821
      %v1823 = vpop.f32.mrf.mxu0
      %1824 = vmatprep.mubr.bf16.mxu0 %v1564
      %1825 = vmatmul.mubr.bf16.gmra.mxu0 %v1471
      %v1826 = vpop.f32.mrf.mxu0
      %v1827 = vadd.f32 0.0, %v1826
      %v1828 = vpop.f32.mrf.mxu0
      %v1829 = vpop.f32.mrf.mxu0
      %v1830 = vadd.f32 0.0, %v1829
      %v1831 = vpop.f32.mrf.mxu0
      %1832 = vmatprep.mubr.bf16.mxu0 %v1567
      %1833 = vmatmul.mubr.bf16.gmra.mxu0 %v1473
      %v1834 = vpop.f32.mrf.mxu0
      %v1835 = vadd.f32 0.0, %v1834
      %v1836 = vpop.f32.mrf.mxu0
      %v1837 = vpop.f32.mrf.mxu0
      %v1838 = vadd.f32 0.0, %v1837
      %v1839 = vpop.f32.mrf.mxu0
      %1840 = vmatprep.mubr.bf16.mxu0 %v1570
      %1841 = vmatmul.mubr.bf16.gmra.mxu0 %v1475
      %v1842 = vpop.f32.mrf.mxu0
      %v1843 = vadd.f32 0.0, %v1842
      %v1844 = vpop.f32.mrf.mxu0
      %v1845 = vpop.f32.mrf.mxu0
      %v1846 = vadd.f32 0.0, %v1845
      %v1847 = vpop.f32.mrf.mxu0
      %1848 = vmatprep.mubr.bf16.mxu0 %v1573
      %1849 = vmatmul.mubr.bf16.gmra.mxu0 %v1477
      %v1850 = vpop.f32.mrf.mxu0
      %v1851 = vadd.f32 0.0, %v1850
      %v1852 = vpop.f32.mrf.mxu0
      %v1853 = vpop.f32.mrf.mxu0
      %v1854 = vadd.f32 0.0, %v1853
      %v1855 = vpop.f32.mrf.mxu0
      %1856 = vdwg.mxu0
      %vm1857 = vcmask 392192
      %v1858 = vsel %vm1857, %v1619, -inf
      %1859 = vmax.xlane.f32.xlu0 %v1858
      %v1860 = vpop.xlane.xlu0 %1859
      %v1861 = vsel %vm1857, %v1622, -inf
      %1862 = vmax.xlane.f32.xlu0 %v1861
      %v1863 = vpop.xlane.xlu0 %1862
      %v1864 = vsel %vm1857, %v1627, -inf
      %1865 = vmax.xlane.f32.xlu0 %v1864
      %v1866 = vpop.xlane.xlu0 %1865
      %v1867 = vsel %vm1857, %v1630, -inf
      %1868 = vmax.xlane.f32.xlu0 %v1867
      %v1869 = vpop.xlane.xlu0 %1868
      %v1870 = vsel %vm1857, %v1635, -inf
      %1871 = vmax.xlane.f32.xlu0 %v1870
      %v1872 = vpop.xlane.xlu0 %1871
      %v1873 = vsel %vm1857, %v1638, -inf
      %1874 = vmax.xlane.f32.xlu0 %v1873
      %v1875 = vpop.xlane.xlu0 %1874
      %v1876 = vsel %vm1857, %v1643, -inf
      %1877 = vmax.xlane.f32.xlu0 %v1876
      %v1878 = vpop.xlane.xlu0 %1877
      %v1879 = vsel %vm1857, %v1646, -inf
      %1880 = vmax.xlane.f32.xlu0 %v1879
      %v1881 = vpop.xlane.xlu0 %1880
      %v1882 = vsel %vm1857, %v1651, -inf
      %1883 = vmax.xlane.f32.xlu0 %v1882
      %v1884 = vpop.xlane.xlu0 %1883
      %v1885 = vsel %vm1857, %v1654, -inf
      %1886 = vmax.xlane.f32.xlu0 %v1885
      %v1887 = vpop.xlane.xlu0 %1886
      %v1888 = vsel %vm1857, %v1659, -inf
      %1889 = vmax.xlane.f32.xlu0 %v1888
      %v1890 = vpop.xlane.xlu0 %1889
      %v1891 = vsel %vm1857, %v1662, -inf
      %1892 = vmax.xlane.f32.xlu0 %v1891
      %v1893 = vpop.xlane.xlu0 %1892
      %v1894 = vsel %vm1857, %v1667, -inf
      %1895 = vmax.xlane.f32.xlu0 %v1894
      %v1896 = vpop.xlane.xlu0 %1895
      %v1897 = vsel %vm1857, %v1670, -inf
      %1898 = vmax.xlane.f32.xlu0 %v1897
      %v1899 = vpop.xlane.xlu0 %1898
      %v1900 = vsel %vm1857, %v1675, -inf
      %1901 = vmax.xlane.f32.xlu0 %v1900
      %v1902 = vpop.xlane.xlu0 %1901
      %v1903 = vsel %vm1857, %v1678, -inf
      %1904 = vmax.xlane.f32.xlu0 %v1903
      %v1905 = vpop.xlane.xlu0 %1904
      %v1906 = vsel %vm1857, %v1683, -inf
      %1907 = vmax.xlane.f32.xlu0 %v1906
      %v1908 = vpop.xlane.xlu0 %1907
      %v1909 = vsel %vm1857, %v1686, -inf
      %1910 = vmax.xlane.f32.xlu0 %v1909
      %v1911 = vpop.xlane.xlu0 %1910
      %v1912 = vsel %vm1857, %v1691, -inf
      %1913 = vmax.xlane.f32.xlu0 %v1912
      %v1914 = vpop.xlane.xlu0 %1913
      %v1915 = vsel %vm1857, %v1694, -inf
      %1916 = vmax.xlane.f32.xlu0 %v1915
      %v1917 = vpop.xlane.xlu0 %1916
      %v1918 = vsel %vm1857, %v1699, -inf
      %1919 = vmax.xlane.f32.xlu0 %v1918
      %v1920 = vpop.xlane.xlu0 %1919
      %v1921 = vsel %vm1857, %v1702, -inf
      %1922 = vmax.xlane.f32.xlu0 %v1921
      %v1923 = vpop.xlane.xlu0 %1922
      %v1924 = vsel %vm1857, %v1707, -inf
      %1925 = vmax.xlane.f32.xlu0 %v1924
      %v1926 = vpop.xlane.xlu0 %1925
      %v1927 = vsel %vm1857, %v1710, -inf
      %1928 = vmax.xlane.f32.xlu0 %v1927
      %v1929 = vpop.xlane.xlu0 %1928
      %v1930 = vsel %vm1857, %v1715, -inf
      %1931 = vmax.xlane.f32.xlu0 %v1930
      %v1932 = vpop.xlane.xlu0 %1931
      %v1933 = vsel %vm1857, %v1718, -inf
      %1934 = vmax.xlane.f32.xlu0 %v1933
      %v1935 = vpop.xlane.xlu0 %1934
      %v1936 = vsel %vm1857, %v1723, -inf
      %1937 = vmax.xlane.f32.xlu0 %v1936
      %v1938 = vpop.xlane.xlu0 %1937
      %v1939 = vsel %vm1857, %v1726, -inf
      %1940 = vmax.xlane.f32.xlu0 %v1939
      %v1941 = vpop.xlane.xlu0 %1940
      %v1942 = vsel %vm1857, %v1731, -inf
      %1943 = vmax.xlane.f32.xlu0 %v1942
      %v1944 = vpop.xlane.xlu0 %1943
      %v1945 = vsel %vm1857, %v1734, -inf
      %1946 = vmax.xlane.f32.xlu0 %v1945
      %v1947 = vpop.xlane.xlu0 %1946
      %v1948 = vsel %vm1857, %v1739, -inf
      %1949 = vmax.xlane.f32.xlu0 %v1948
      %v1950 = vpop.xlane.xlu0 %1949
      %v1951 = vsel %vm1857, %v1742, -inf
      %1952 = vmax.xlane.f32.xlu0 %v1951
      %v1953 = vpop.xlane.xlu0 %1952
      %v1954 = vsel %vm1857, %v1747, -inf
      %1955 = vmax.xlane.f32.xlu0 %v1954
      %v1956 = vpop.xlane.xlu0 %1955
      %v1957 = vsel %vm1857, %v1750, -inf
      %1958 = vmax.xlane.f32.xlu0 %v1957
      %v1959 = vpop.xlane.xlu0 %1958
      %v1960 = vsel %vm1857, %v1755, -inf
      %1961 = vmax.xlane.f32.xlu0 %v1960
      %v1962 = vpop.xlane.xlu0 %1961
      %v1963 = vsel %vm1857, %v1758, -inf
      %1964 = vmax.xlane.f32.xlu0 %v1963
      %v1965 = vpop.xlane.xlu0 %1964
      %v1966 = vsel %vm1857, %v1763, -inf
      %1967 = vmax.xlane.f32.xlu0 %v1966
      %v1968 = vpop.xlane.xlu0 %1967
      %v1969 = vsel %vm1857, %v1766, -inf
      %1970 = vmax.xlane.f32.xlu0 %v1969
      %v1971 = vpop.xlane.xlu0 %1970
      %v1972 = vsel %vm1857, %v1771, -inf
      %1973 = vmax.xlane.f32.xlu0 %v1972
      %v1974 = vpop.xlane.xlu0 %1973
      %v1975 = vsel %vm1857, %v1774, -inf
      %1976 = vmax.xlane.f32.xlu0 %v1975
      %v1977 = vpop.xlane.xlu0 %1976
      %v1978 = vsel %vm1857, %v1779, -inf
      %1979 = vmax.xlane.f32.xlu0 %v1978
      %v1980 = vpop.xlane.xlu0 %1979
      %v1981 = vsel %vm1857, %v1782, -inf
      %1982 = vmax.xlane.f32.xlu0 %v1981
      %v1983 = vpop.xlane.xlu0 %1982
      %v1984 = vsel %vm1857, %v1787, -inf
      %1985 = vmax.xlane.f32.xlu0 %v1984
      %v1986 = vpop.xlane.xlu0 %1985
      %v1987 = vsel %vm1857, %v1790, -inf
      %1988 = vmax.xlane.f32.xlu0 %v1987
      %v1989 = vpop.xlane.xlu0 %1988
      %v1990 = vsel %vm1857, %v1795, -inf
      %1991 = vmax.xlane.f32.xlu0 %v1990
      %v1992 = vpop.xlane.xlu0 %1991
      %v1993 = vsel %vm1857, %v1798, -inf
      %1994 = vmax.xlane.f32.xlu0 %v1993
      %v1995 = vpop.xlane.xlu0 %1994
      %v1996 = vsel %vm1857, %v1803, -inf
      %1997 = vmax.xlane.f32.xlu0 %v1996
      %v1998 = vpop.xlane.xlu0 %1997
      %v1999 = vsel %vm1857, %v1806, -inf
      %2000 = vmax.xlane.f32.xlu0 %v1999
      %v2001 = vpop.xlane.xlu0 %2000
      %v2002 = vsel %vm1857, %v1811, -inf
      %2003 = vmax.xlane.f32.xlu0 %v2002
      %v2004 = vpop.xlane.xlu0 %2003
      %v2005 = vsel %vm1857, %v1814, -inf
      %2006 = vmax.xlane.f32.xlu0 %v2005
      %v2007 = vpop.xlane.xlu0 %2006
      %v2008 = vsel %vm1857, %v1819, -inf
      %2009 = vmax.xlane.f32.xlu0 %v2008
      %v2010 = vpop.xlane.xlu0 %2009
      %v2011 = vsel %vm1857, %v1822, -inf
      %2012 = vmax.xlane.f32.xlu0 %v2011
      %v2013 = vpop.xlane.xlu0 %2012
      %v2014 = vsel %vm1857, %v1827, -inf
      %2015 = vmax.xlane.f32.xlu0 %v2014
      %v2016 = vpop.xlane.xlu0 %2015
      %v2017 = vsel %vm1857, %v1830, -inf
      %2018 = vmax.xlane.f32.xlu0 %v2017
      %v2019 = vpop.xlane.xlu0 %2018
      %v2020 = vsel %vm1857, %v1835, -inf
      %2021 = vmax.xlane.f32.xlu0 %v2020
      %v2022 = vpop.xlane.xlu0 %2021
      %v2023 = vsel %vm1857, %v1838, -inf
      %2024 = vmax.xlane.f32.xlu0 %v2023
      %v2025 = vpop.xlane.xlu0 %2024
      %v2026 = vsel %vm1857, %v1843, -inf
      %2027 = vmax.xlane.f32.xlu0 %v2026
      %v2028 = vpop.xlane.xlu0 %2027
      %v2029 = vsel %vm1857, %v1846, -inf
      %2030 = vmax.xlane.f32.xlu0 %v2029
      %v2031 = vpop.xlane.xlu0 %2030
      %v2032 = vsel %vm1857, %v1851, -inf
      %2033 = vmax.xlane.f32.xlu0 %v2032
      %v2034 = vpop.xlane.xlu0 %2033
      %v2035 = vsel %vm1857, %v1854, -inf
      %2036 = vmax.xlane.f32.xlu0 %v2035
      %v2037 = vpop.xlane.xlu0 %2036
      %v2038 = vsub.f32 %v1619, %v1860
      %v2039 = vsub.f32 %v1622, %v1863
      %v2040 = vsub.f32 %v1627, %v1866
      %v2041 = vsub.f32 %v1630, %v1869
      %v2042 = vsub.f32 %v1635, %v1872
      %v2043 = vsub.f32 %v1638, %v1875
      %v2044 = vsub.f32 %v1643, %v1878
      %v2045 = vsub.f32 %v1646, %v1881
      %v2046 = vsub.f32 %v1651, %v1884
      %v2047 = vsub.f32 %v1654, %v1887
      %v2048 = vsub.f32 %v1659, %v1890
      %v2049 = vsub.f32 %v1662, %v1893
      %v2050 = vsub.f32 %v1667, %v1896
      %v2051 = vsub.f32 %v1670, %v1899
      %v2052 = vsub.f32 %v1675, %v1902
      %v2053 = vsub.f32 %v1678, %v1905
      %v2054 = vsub.f32 %v1683, %v1908
      %v2055 = vsub.f32 %v1686, %v1911
      %v2056 = vsub.f32 %v1691, %v1914
      %v2057 = vsub.f32 %v1694, %v1917
      %v2058 = vsub.f32 %v1699, %v1920
      %v2059 = vsub.f32 %v1702, %v1923
      %v2060 = vsub.f32 %v1707, %v1926
      %v2061 = vsub.f32 %v1710, %v1929
      %v2062 = vsub.f32 %v1715, %v1932
      %v2063 = vsub.f32 %v1718, %v1935
      %v2064 = vsub.f32 %v1723, %v1938
      %v2065 = vsub.f32 %v1726, %v1941
      %v2066 = vsub.f32 %v1731, %v1944
      %v2067 = vsub.f32 %v1734, %v1947
      %v2068 = vsub.f32 %v1739, %v1950
      %v2069 = vsub.f32 %v1742, %v1953
      %v2070 = vsub.f32 %v1747, %v1956
      %v2071 = vsub.f32 %v1750, %v1959
      %v2072 = vsub.f32 %v1755, %v1962
      %v2073 = vsub.f32 %v1758, %v1965
      %v2074 = vsub.f32 %v1763, %v1968
      %v2075 = vsub.f32 %v1766, %v1971
      %v2076 = vsub.f32 %v1771, %v1974
      %v2077 = vsub.f32 %v1774, %v1977
      %v2078 = vsub.f32 %v1779, %v1980
      %v2079 = vsub.f32 %v1782, %v1983
      %v2080 = vsub.f32 %v1787, %v1986
      %v2081 = vsub.f32 %v1790, %v1989
      %v2082 = vsub.f32 %v1795, %v1992
      %v2083 = vsub.f32 %v1798, %v1995
      %v2084 = vsub.f32 %v1803, %v1998
      %v2085 = vsub.f32 %v1806, %v2001
      %v2086 = vsub.f32 %v1811, %v2004
      %v2087 = vsub.f32 %v1814, %v2007
      %v2088 = vsub.f32 %v1819, %v2010
      %v2089 = vsub.f32 %v1822, %v2013
      %v2090 = vsub.f32 %v1827, %v2016
      %v2091 = vsub.f32 %v1830, %v2019
      %v2092 = vsub.f32 %v1835, %v2022
      %v2093 = vsub.f32 %v1838, %v2025
      %v2094 = vsub.f32 %v1843, %v2028
      %v2095 = vsub.f32 %v1846, %v2031
      %v2096 = vsub.f32 %v1851, %v2034
      %v2097 = vsub.f32 %v1854, %v2037
      %v2098 = vmul.f32 %v2038, 1.442695
      %v2099 = vpow.pop %v2098
      %v2100 = vmul.f32 %v2039, 1.442695
      %v2101 = vpow.pop %v2100
      %v2102 = vmul.f32 %v2040, 1.442695
      %v2103 = vpow.pop %v2102
      %v2104 = vmul.f32 %v2041, 1.442695
      %v2105 = vpow.pop %v2104
      %v2106 = vmul.f32 %v2042, 1.442695
      %v2107 = vpow.pop %v2106
      %v2108 = vmul.f32 %v2043, 1.442695
      %v2109 = vpow.pop %v2108
      %v2110 = vmul.f32 %v2044, 1.442695
      %v2111 = vpow.pop %v2110
      %v2112 = vmul.f32 %v2045, 1.442695
      %v2113 = vpow.pop %v2112
      %v2114 = vmul.f32 %v2046, 1.442695
      %v2115 = vpow.pop %v2114
      %v2116 = vmul.f32 %v2047, 1.442695
      %v2117 = vpow.pop %v2116
      %v2118 = vmul.f32 %v2048, 1.442695
      %v2119 = vpow.pop %v2118
      %v2120 = vmul.f32 %v2049, 1.442695
      %v2121 = vpow.pop %v2120
      %v2122 = vmul.f32 %v2050, 1.442695
      %v2123 = vpow.pop %v2122
      %v2124 = vmul.f32 %v2051, 1.442695
      %v2125 = vpow.pop %v2124
      %v2126 = vmul.f32 %v2052, 1.442695
      %v2127 = vpow.pop %v2126
      %v2128 = vmul.f32 %v2053, 1.442695
      %v2129 = vpow.pop %v2128
      %v2130 = vmul.f32 %v2054, 1.442695
      %v2131 = vpow.pop %v2130
      %v2132 = vmul.f32 %v2055, 1.442695
      %v2133 = vpow.pop %v2132
      %v2134 = vmul.f32 %v2056, 1.442695
      %v2135 = vpow.pop %v2134
      %v2136 = vmul.f32 %v2057, 1.442695
      %v2137 = vpow.pop %v2136
      %v2138 = vmul.f32 %v2058, 1.442695
      %v2139 = vpow.pop %v2138
      %v2140 = vmul.f32 %v2059, 1.442695
      %v2141 = vpow.pop %v2140
      %v2142 = vmul.f32 %v2060, 1.442695
      %v2143 = vpow.pop %v2142
      %v2144 = vmul.f32 %v2061, 1.442695
      %v2145 = vpow.pop %v2144
      %v2146 = vmul.f32 %v2062, 1.442695
      %v2147 = vpow.pop %v2146
      %v2148 = vmul.f32 %v2063, 1.442695
      %v2149 = vpow.pop %v2148
      %v2150 = vmul.f32 %v2064, 1.442695
      %v2151 = vpow.pop %v2150
      %v2152 = vmul.f32 %v2065, 1.442695
      %v2153 = vpow.pop %v2152
      %v2154 = vmul.f32 %v2066, 1.442695
      %v2155 = vpow.pop %v2154
      %v2156 = vmul.f32 %v2067, 1.442695
      %v2157 = vpow.pop %v2156
      %v2158 = vmul.f32 %v2068, 1.442695
      %v2159 = vpow.pop %v2158
      %v2160 = vmul.f32 %v2069, 1.442695
      %v2161 = vpow.pop %v2160
      %v2162 = vmul.f32 %v2070, 1.442695
      %v2163 = vpow.pop %v2162
      %v2164 = vmul.f32 %v2071, 1.442695
      %v2165 = vpow.pop %v2164
      %v2166 = vmul.f32 %v2072, 1.442695
      %v2167 = vpow.pop %v2166
      %v2168 = vmul.f32 %v2073, 1.442695
      %v2169 = vpow.pop %v2168
      %v2170 = vmul.f32 %v2074, 1.442695
      %v2171 = vpow.pop %v2170
      %v2172 = vmul.f32 %v2075, 1.442695
      %v2173 = vpow.pop %v2172
      %v2174 = vmul.f32 %v2076, 1.442695
      %v2175 = vpow.pop %v2174
      %v2176 = vmul.f32 %v2077, 1.442695
      %v2177 = vpow.pop %v2176
      %v2178 = vmul.f32 %v2078, 1.442695
      %v2179 = vpow.pop %v2178
      %v2180 = vmul.f32 %v2079, 1.442695
      %v2181 = vpow.pop %v2180
      %v2182 = vmul.f32 %v2080, 1.442695
      %v2183 = vpow.pop %v2182
      %v2184 = vmul.f32 %v2081, 1.442695
      %v2185 = vpow.pop %v2184
      %v2186 = vmul.f32 %v2082, 1.442695
      %v2187 = vpow.pop %v2186
      %v2188 = vmul.f32 %v2083, 1.442695
      %v2189 = vpow.pop %v2188
      %v2190 = vmul.f32 %v2084, 1.442695
      %v2191 = vpow.pop %v2190
      %v2192 = vmul.f32 %v2085, 1.442695
      %v2193 = vpow.pop %v2192
      %v2194 = vmul.f32 %v2086, 1.442695
      %v2195 = vpow.pop %v2194
      %v2196 = vmul.f32 %v2087, 1.442695
      %v2197 = vpow.pop %v2196
      %v2198 = vmul.f32 %v2088, 1.442695
      %v2199 = vpow.pop %v2198
      %v2200 = vmul.f32 %v2089, 1.442695
      %v2201 = vpow.pop %v2200
      %v2202 = vmul.f32 %v2090, 1.442695
      %v2203 = vpow.pop %v2202
      %v2204 = vmul.f32 %v2091, 1.442695
      %v2205 = vpow.pop %v2204
      %v2206 = vmul.f32 %v2092, 1.442695
      %v2207 = vpow.pop %v2206
      %v2208 = vmul.f32 %v2093, 1.442695
      %v2209 = vpow.pop %v2208
      %v2210 = vmul.f32 %v2094, 1.442695
      %v2211 = vpow.pop %v2210
      %v2212 = vmul.f32 %v2095, 1.442695
      %v2213 = vpow.pop %v2212
      %v2214 = vmul.f32 %v2096, 1.442695
      %v2215 = vpow.pop %v2214
      %v2216 = vmul.f32 %v2097, 1.442695
      %v2217 = vpow.pop %v2216
      %v2218 = vsel %vm1857, %v2099, 0.0
      %2219 = vadd.xlane.f32.xlu0 %v2218
      %v2220 = vpop.xlane.xlu0 %2219
      %v2221 = vsel %vm1857, %v2101, 0.0
      %2222 = vadd.xlane.f32.xlu0 %v2221
      %v2223 = vpop.xlane.xlu0 %2222
      %v2224 = vsel %vm1857, %v2103, 0.0
      %2225 = vadd.xlane.f32.xlu0 %v2224
      %v2226 = vpop.xlane.xlu0 %2225
      %v2227 = vsel %vm1857, %v2105, 0.0
      %2228 = vadd.xlane.f32.xlu0 %v2227
      %v2229 = vpop.xlane.xlu0 %2228
      %v2230 = vsel %vm1857, %v2107, 0.0
      %2231 = vadd.xlane.f32.xlu0 %v2230
      %v2232 = vpop.xlane.xlu0 %2231
      %v2233 = vsel %vm1857, %v2109, 0.0
      %2234 = vadd.xlane.f32.xlu0 %v2233
      %v2235 = vpop.xlane.xlu0 %2234
      %v2236 = vsel %vm1857, %v2111, 0.0
      %2237 = vadd.xlane.f32.xlu0 %v2236
      %v2238 = vpop.xlane.xlu0 %2237
      %v2239 = vsel %vm1857, %v2113, 0.0
      %2240 = vadd.xlane.f32.xlu0 %v2239
      %v2241 = vpop.xlane.xlu0 %2240
      %v2242 = vsel %vm1857, %v2115, 0.0
      %2243 = vadd.xlane.f32.xlu0 %v2242
      %v2244 = vpop.xlane.xlu0 %2243
      %v2245 = vsel %vm1857, %v2117, 0.0
      %2246 = vadd.xlane.f32.xlu0 %v2245
      %v2247 = vpop.xlane.xlu0 %2246
      %v2248 = vsel %vm1857, %v2119, 0.0
      %2249 = vadd.xlane.f32.xlu0 %v2248
      %v2250 = vpop.xlane.xlu0 %2249
      %v2251 = vsel %vm1857, %v2121, 0.0
      %2252 = vadd.xlane.f32.xlu0 %v2251
      %v2253 = vpop.xlane.xlu0 %2252
      %v2254 = vsel %vm1857, %v2123, 0.0
      %2255 = vadd.xlane.f32.xlu0 %v2254
      %v2256 = vpop.xlane.xlu0 %2255
      %v2257 = vsel %vm1857, %v2125, 0.0
      %2258 = vadd.xlane.f32.xlu0 %v2257
      %v2259 = vpop.xlane.xlu0 %2258
      %v2260 = vsel %vm1857, %v2127, 0.0
      %2261 = vadd.xlane.f32.xlu0 %v2260
      %v2262 = vpop.xlane.xlu0 %2261
      %v2263 = vsel %vm1857, %v2129, 0.0
      %2264 = vadd.xlane.f32.xlu0 %v2263
      %v2265 = vpop.xlane.xlu0 %2264
      %v2266 = vsel %vm1857, %v2131, 0.0
      %2267 = vadd.xlane.f32.xlu0 %v2266
      %v2268 = vpop.xlane.xlu0 %2267
      %v2269 = vsel %vm1857, %v2133, 0.0
      %2270 = vadd.xlane.f32.xlu0 %v2269
      %v2271 = vpop.xlane.xlu0 %2270
      %v2272 = vsel %vm1857, %v2135, 0.0
      %2273 = vadd.xlane.f32.xlu0 %v2272
      %v2274 = vpop.xlane.xlu0 %2273
      %v2275 = vsel %vm1857, %v2137, 0.0
      %2276 = vadd.xlane.f32.xlu0 %v2275
      %v2277 = vpop.xlane.xlu0 %2276
      %v2278 = vsel %vm1857, %v2139, 0.0
      %2279 = vadd.xlane.f32.xlu0 %v2278
      %v2280 = vpop.xlane.xlu0 %2279
      %v2281 = vsel %vm1857, %v2141, 0.0
      %2282 = vadd.xlane.f32.xlu0 %v2281
      %v2283 = vpop.xlane.xlu0 %2282
      %v2284 = vsel %vm1857, %v2143, 0.0
      %2285 = vadd.xlane.f32.xlu0 %v2284
      %v2286 = vpop.xlane.xlu0 %2285
      %v2287 = vsel %vm1857, %v2145, 0.0
      %2288 = vadd.xlane.f32.xlu0 %v2287
      %v2289 = vpop.xlane.xlu0 %2288
      %v2290 = vsel %vm1857, %v2147, 0.0
      %2291 = vadd.xlane.f32.xlu0 %v2290
      %v2292 = vpop.xlane.xlu0 %2291
      %v2293 = vsel %vm1857, %v2149, 0.0
      %2294 = vadd.xlane.f32.xlu0 %v2293
      %v2295 = vpop.xlane.xlu0 %2294
      %v2296 = vsel %vm1857, %v2151, 0.0
      %2297 = vadd.xlane.f32.xlu0 %v2296
      %v2298 = vpop.xlane.xlu0 %2297
      %v2299 = vsel %vm1857, %v2153, 0.0
      %2300 = vadd.xlane.f32.xlu0 %v2299
      %v2301 = vpop.xlane.xlu0 %2300
      %v2302 = vsel %vm1857, %v2155, 0.0
      %2303 = vadd.xlane.f32.xlu0 %v2302
      %v2304 = vpop.xlane.xlu0 %2303
      %v2305 = vsel %vm1857, %v2157, 0.0
      %2306 = vadd.xlane.f32.xlu0 %v2305
      %v2307 = vpop.xlane.xlu0 %2306
      %v2308 = vsel %vm1857, %v2159, 0.0
      %2309 = vadd.xlane.f32.xlu0 %v2308
      %v2310 = vpop.xlane.xlu0 %2309
      %v2311 = vsel %vm1857, %v2161, 0.0
      %2312 = vadd.xlane.f32.xlu0 %v2311
      %v2313 = vpop.xlane.xlu0 %2312
      %v2314 = vsel %vm1857, %v2163, 0.0
      %2315 = vadd.xlane.f32.xlu0 %v2314
      %v2316 = vpop.xlane.xlu0 %2315
      %v2317 = vsel %vm1857, %v2165, 0.0
      %2318 = vadd.xlane.f32.xlu0 %v2317
      %v2319 = vpop.xlane.xlu0 %2318
      %v2320 = vsel %vm1857, %v2167, 0.0
      %2321 = vadd.xlane.f32.xlu0 %v2320
      %v2322 = vpop.xlane.xlu0 %2321
      %v2323 = vsel %vm1857, %v2169, 0.0
      %2324 = vadd.xlane.f32.xlu0 %v2323
      %v2325 = vpop.xlane.xlu0 %2324
      %v2326 = vsel %vm1857, %v2171, 0.0
      %2327 = vadd.xlane.f32.xlu0 %v2326
      %v2328 = vpop.xlane.xlu0 %2327
      %v2329 = vsel %vm1857, %v2173, 0.0
      %2330 = vadd.xlane.f32.xlu0 %v2329
      %v2331 = vpop.xlane.xlu0 %2330
      %v2332 = vsel %vm1857, %v2175, 0.0
      %2333 = vadd.xlane.f32.xlu0 %v2332
      %v2334 = vpop.xlane.xlu0 %2333
      %v2335 = vsel %vm1857, %v2177, 0.0
      %2336 = vadd.xlane.f32.xlu0 %v2335
      %v2337 = vpop.xlane.xlu0 %2336
      %v2338 = vsel %vm1857, %v2179, 0.0
      %2339 = vadd.xlane.f32.xlu0 %v2338
      %v2340 = vpop.xlane.xlu0 %2339
      %v2341 = vsel %vm1857, %v2181, 0.0
      %2342 = vadd.xlane.f32.xlu0 %v2341
      %v2343 = vpop.xlane.xlu0 %2342
      %v2344 = vsel %vm1857, %v2183, 0.0
      %2345 = vadd.xlane.f32.xlu0 %v2344
      %v2346 = vpop.xlane.xlu0 %2345
      %v2347 = vsel %vm1857, %v2185, 0.0
      %2348 = vadd.xlane.f32.xlu0 %v2347
      %v2349 = vpop.xlane.xlu0 %2348
      %v2350 = vsel %vm1857, %v2187, 0.0
      %2351 = vadd.xlane.f32.xlu0 %v2350
      %v2352 = vpop.xlane.xlu0 %2351
      %v2353 = vsel %vm1857, %v2189, 0.0
      %2354 = vadd.xlane.f32.xlu0 %v2353
      %v2355 = vpop.xlane.xlu0 %2354
      %v2356 = vsel %vm1857, %v2191, 0.0
      %2357 = vadd.xlane.f32.xlu0 %v2356
      %v2358 = vpop.xlane.xlu0 %2357
      %v2359 = vsel %vm1857, %v2193, 0.0
      %2360 = vadd.xlane.f32.xlu0 %v2359
      %v2361 = vpop.xlane.xlu0 %2360
      %v2362 = vsel %vm1857, %v2195, 0.0
      %2363 = vadd.xlane.f32.xlu0 %v2362
      %v2364 = vpop.xlane.xlu0 %2363
      %v2365 = vsel %vm1857, %v2197, 0.0
      %2366 = vadd.xlane.f32.xlu0 %v2365
      %v2367 = vpop.xlane.xlu0 %2366
      %v2368 = vsel %vm1857, %v2199, 0.0
      %2369 = vadd.xlane.f32.xlu0 %v2368
      %v2370 = vpop.xlane.xlu0 %2369
      %v2371 = vsel %vm1857, %v2201, 0.0
      %2372 = vadd.xlane.f32.xlu0 %v2371
      %v2373 = vpop.xlane.xlu0 %2372
      %v2374 = vsel %vm1857, %v2203, 0.0
      %2375 = vadd.xlane.f32.xlu0 %v2374
      %v2376 = vpop.xlane.xlu0 %2375
      %v2377 = vsel %vm1857, %v2205, 0.0
      %2378 = vadd.xlane.f32.xlu0 %v2377
      %v2379 = vpop.xlane.xlu0 %2378
      %v2380 = vsel %vm1857, %v2207, 0.0
      %2381 = vadd.xlane.f32.xlu0 %v2380
      %v2382 = vpop.xlane.xlu0 %2381
      %v2383 = vsel %vm1857, %v2209, 0.0
      %2384 = vadd.xlane.f32.xlu0 %v2383
      %v2385 = vpop.xlane.xlu0 %2384
      %v2386 = vsel %vm1857, %v2211, 0.0
      %2387 = vadd.xlane.f32.xlu0 %v2386
      %v2388 = vpop.xlane.xlu0 %2387
      %v2389 = vsel %vm1857, %v2213, 0.0
      %2390 = vadd.xlane.f32.xlu0 %v2389
      %v2391 = vpop.xlane.xlu0 %2390
      %v2392 = vsel %vm1857, %v2215, 0.0
      %2393 = vadd.xlane.f32.xlu0 %v2392
      %v2394 = vpop.xlane.xlu0 %2393
      %v2395 = vsel %vm1857, %v2217, 0.0
      %2396 = vadd.xlane.f32.xlu0 %v2395
      %v2397 = vpop.xlane.xlu0 %2396
      %v2398 = vrcp.pop %v2220
      %v2399 = vrcp.pop %v2223
      %v2400 = vrcp.pop %v2226
      %v2401 = vrcp.pop %v2229
      %v2402 = vrcp.pop %v2232
      %v2403 = vrcp.pop %v2235
      %v2404 = vrcp.pop %v2238
      %v2405 = vrcp.pop %v2241
      %v2406 = vrcp.pop %v2244
      %v2407 = vrcp.pop %v2247
      %v2408 = vrcp.pop %v2250
      %v2409 = vrcp.pop %v2253
      %v2410 = vrcp.pop %v2256
      %v2411 = vrcp.pop %v2259
      %v2412 = vrcp.pop %v2262
      %v2413 = vrcp.pop %v2265
      %v2414 = vrcp.pop %v2268
      %v2415 = vrcp.pop %v2271
      %v2416 = vrcp.pop %v2274
      %v2417 = vrcp.pop %v2277
      %v2418 = vrcp.pop %v2280
      %v2419 = vrcp.pop %v2283
      %v2420 = vrcp.pop %v2286
      %v2421 = vrcp.pop %v2289
      %v2422 = vrcp.pop %v2292
      %v2423 = vrcp.pop %v2295
      %v2424 = vrcp.pop %v2298
      %v2425 = vrcp.pop %v2301
      %v2426 = vrcp.pop %v2304
      %v2427 = vrcp.pop %v2307
      %v2428 = vrcp.pop %v2310
      %v2429 = vrcp.pop %v2313
      %v2430 = vrcp.pop %v2316
      %v2431 = vrcp.pop %v2319
      %v2432 = vrcp.pop %v2322
      %v2433 = vrcp.pop %v2325
      %v2434 = vrcp.pop %v2328
      %v2435 = vrcp.pop %v2331
      %v2436 = vrcp.pop %v2334
      %v2437 = vrcp.pop %v2337
      %v2438 = vrcp.pop %v2340
      %v2439 = vrcp.pop %v2343
      %v2440 = vrcp.pop %v2346
      %v2441 = vrcp.pop %v2349
      %v2442 = vrcp.pop %v2352
      %v2443 = vrcp.pop %v2355
      %v2444 = vrcp.pop %v2358
      %v2445 = vrcp.pop %v2361
      %v2446 = vrcp.pop %v2364
      %v2447 = vrcp.pop %v2367
      %v2448 = vrcp.pop %v2370
      %v2449 = vrcp.pop %v2373
      %v2450 = vrcp.pop %v2376
      %v2451 = vrcp.pop %v2379
      %v2452 = vrcp.pop %v2382
      %v2453 = vrcp.pop %v2385
      %v2454 = vrcp.pop %v2388
      %v2455 = vrcp.pop %v2391
      %v2456 = vrcp.pop %v2394
      %v2457 = vrcp.pop %v2397
      %v2458 = vmul.f32 %v2099, %v2398
      %v2459 = vmul.f32 %v2101, %v2399
      %v2460 = vmul.f32 %v2103, %v2400
      %v2461 = vmul.f32 %v2105, %v2401
      %v2462 = vmul.f32 %v2107, %v2402
      %v2463 = vmul.f32 %v2109, %v2403
      %v2464 = vmul.f32 %v2111, %v2404
      %v2465 = vmul.f32 %v2113, %v2405
      %v2466 = vmul.f32 %v2115, %v2406
      %v2467 = vmul.f32 %v2117, %v2407
      %v2468 = vmul.f32 %v2119, %v2408
      %v2469 = vmul.f32 %v2121, %v2409
      %v2470 = vmul.f32 %v2123, %v2410
      %v2471 = vmul.f32 %v2125, %v2411
      %v2472 = vmul.f32 %v2127, %v2412
      %v2473 = vmul.f32 %v2129, %v2413
      %v2474 = vmul.f32 %v2131, %v2414
      %v2475 = vmul.f32 %v2133, %v2415
      %v2476 = vmul.f32 %v2135, %v2416
      %v2477 = vmul.f32 %v2137, %v2417
      %v2478 = vmul.f32 %v2139, %v2418
      %v2479 = vmul.f32 %v2141, %v2419
      %v2480 = vmul.f32 %v2143, %v2420
      %v2481 = vmul.f32 %v2145, %v2421
      %v2482 = vmul.f32 %v2147, %v2422
      %v2483 = vmul.f32 %v2149, %v2423
      %v2484 = vmul.f32 %v2151, %v2424
      %v2485 = vmul.f32 %v2153, %v2425
      %v2486 = vmul.f32 %v2155, %v2426
      %v2487 = vmul.f32 %v2157, %v2427
      %v2488 = vmul.f32 %v2159, %v2428
      %v2489 = vmul.f32 %v2161, %v2429
      %v2490 = vmul.f32 %v2163, %v2430
      %v2491 = vmul.f32 %v2165, %v2431
      %v2492 = vmul.f32 %v2167, %v2432
      %v2493 = vmul.f32 %v2169, %v2433
      %v2494 = vmul.f32 %v2171, %v2434
      %v2495 = vmul.f32 %v2173, %v2435
      %v2496 = vmul.f32 %v2175, %v2436
      %v2497 = vmul.f32 %v2177, %v2437
      %v2498 = vmul.f32 %v2179, %v2438
      %v2499 = vmul.f32 %v2181, %v2439
      %v2500 = vmul.f32 %v2183, %v2440
      %v2501 = vmul.f32 %v2185, %v2441
      %v2502 = vmul.f32 %v2187, %v2442
      %v2503 = vmul.f32 %v2189, %v2443
      %v2504 = vmul.f32 %v2191, %v2444
      %v2505 = vmul.f32 %v2193, %v2445
      %v2506 = vmul.f32 %v2195, %v2446
      %v2507 = vmul.f32 %v2197, %v2447
      %v2508 = vmul.f32 %v2199, %v2448
      %v2509 = vmul.f32 %v2201, %v2449
      %v2510 = vmul.f32 %v2203, %v2450
      %v2511 = vmul.f32 %v2205, %v2451
      %v2512 = vmul.f32 %v2207, %v2452
      %v2513 = vmul.f32 %v2209, %v2453
      %v2514 = vmul.f32 %v2211, %v2454
      %v2515 = vmul.f32 %v2213, %v2455
      %v2516 = vmul.f32 %v2215, %v2456
      %v2517 = vmul.f32 %v2217, %v2457
      %v2518 = vpack.c.bf16 %v2459, %v2458
      %v2519 = vpack.c.bf16 %v2461, %v2460
      %v2520 = vpack.c.bf16 %v2463, %v2462
      %v2521 = vpack.c.bf16 %v2465, %v2464
      %v2522 = vpack.c.bf16 %v2467, %v2466
      %v2523 = vpack.c.bf16 %v2469, %v2468
      %v2524 = vpack.c.bf16 %v2471, %v2470
      %v2525 = vpack.c.bf16 %v2473, %v2472
      %v2526 = vpack.c.bf16 %v2475, %v2474
      %v2527 = vpack.c.bf16 %v2477, %v2476
      %v2528 = vpack.c.bf16 %v2479, %v2478
      %v2529 = vpack.c.bf16 %v2481, %v2480
      %v2530 = vpack.c.bf16 %v2483, %v2482
      %v2531 = vpack.c.bf16 %v2485, %v2484
      %v2532 = vpack.c.bf16 %v2487, %v2486
      %v2533 = vpack.c.bf16 %v2489, %v2488
      %v2534 = vpack.c.bf16 %v2491, %v2490
      %v2535 = vpack.c.bf16 %v2493, %v2492
      %v2536 = vpack.c.bf16 %v2495, %v2494
      %v2537 = vpack.c.bf16 %v2497, %v2496
      %v2538 = vpack.c.bf16 %v2499, %v2498
      %v2539 = vpack.c.bf16 %v2501, %v2500
      %v2540 = vpack.c.bf16 %v2503, %v2502
      %v2541 = vpack.c.bf16 %v2505, %v2504
      %v2542 = vpack.c.bf16 %v2507, %v2506
      %v2543 = vpack.c.bf16 %v2509, %v2508
      %v2544 = vpack.c.bf16 %v2511, %v2510
      %v2545 = vpack.c.bf16 %v2513, %v2512
      %v2546 = vpack.c.bf16 %v2515, %v2514
      %v2547 = vpack.c.bf16 %v2517, %v2516
      %v2548 = vpack.c.bf16 %v1155, %v1151
      %v2549 = vpack.c.bf16 %v1157, %v1153
      %v2550 = vpack.c.bf16 %v1165, %v1161
      %v2551 = vpack.c.bf16 %v1167, %v1163
      %v2552 = vpack.c.bf16 %v1175, %v1171
      %v2553 = vpack.c.bf16 %v1177, %v1173
      %v2555 = vsel %vm1857, %v2518, 0
      %v2558 = vsel %vm1857, %v2519, 0
      %v2561 = vsel %vm1857, %v2520, 0
      %v2564 = vsel %vm1857, %v2521, 0
      %v2567 = vsel %vm1857, %v2522, 0
      %v2570 = vsel %vm1857, %v2523, 0
      %v2573 = vsel %vm1857, %v2524, 0
      %v2576 = vsel %vm1857, %v2525, 0
      %v2579 = vsel %vm1857, %v2526, 0
      %v2582 = vsel %vm1857, %v2527, 0
      %v2585 = vsel %vm1857, %v2528, 0
      %v2588 = vsel %vm1857, %v2529, 0
      %v2591 = vsel %vm1857, %v2530, 0
      %v2594 = vsel %vm1857, %v2531, 0
      %v2597 = vsel %vm1857, %v2532, 0
      %v2600 = vsel %vm1857, %v2533, 0
      %v2603 = vsel %vm1857, %v2534, 0
      %v2606 = vsel %vm1857, %v2535, 0
      %v2609 = vsel %vm1857, %v2536, 0
      %v2612 = vsel %vm1857, %v2537, 0
      %v2615 = vsel %vm1857, %v2538, 0
      %v2618 = vsel %vm1857, %v2539, 0
      %v2621 = vsel %vm1857, %v2540, 0
      %v2624 = vsel %vm1857, %v2541, 0
      %v2627 = vsel %vm1857, %v2542, 0
      %v2630 = vsel %vm1857, %v2543, 0
      %v2633 = vsel %vm1857, %v2544, 0
      %v2636 = vsel %vm1857, %v2545, 0
      %v2639 = vsel %vm1857, %v2546, 0
      %v2642 = vsel %vm1857, %v2547, 0
      %2644 = vmatprep.subr.bf16.mxu0 0
      %2645 = vmatpush1.bf16.msra.mxu0 0
      %2646 = vmatprep.subr.bf16.mxu0 0
      %2647 = vmatpush1.bf16.msra.mxu0 0
      %2648 = vmatprep.subr.bf16.mxu0 0
      %2649 = vmatpush1.bf16.msra.mxu0 0
      %2650 = vmatprep.subr.bf16.mxu0 0
      %2651 = vmatpush1.bf16.msra.mxu0 0
      %2652 = vmatprep.subr.bf16.mxu0 0
      %2653 = vmatpush1.bf16.msra.mxu0 0
      %2654 = vmatprep.subr.bf16.mxu0 %v2553
      %2655 = vmatpush1.bf16.msra.mxu0 %v2552
      %2656 = vmatprep.subr.bf16.mxu0 %v2551
      %2657 = vmatpush1.bf16.msra.mxu0 %v2550
      %2658 = vmatprep.subr.bf16.mxu0 %v2549
      %2659 = vmatpush1.bf16.msra.mxu0 %v2548
      %2660 = vmatprep.subr.bf16.mxu0 0
      %2661 = vmatpush2.bf16.msra.mxu0 0
      %2662 = vmatprep.subr.bf16.mxu0 0
      %2663 = vmatpush2.bf16.msra.mxu0 0
      %2664 = vmatprep.subr.bf16.mxu0 0
      %2665 = vmatpush2.bf16.msra.mxu0 0
      %2666 = vmatprep.subr.bf16.mxu0 0
      %2667 = vmatpush2.bf16.msra.mxu0 0
      %2668 = vmatprep.subr.bf16.mxu0 0
      %2669 = vmatpush2.bf16.msra.mxu0 0
      %2670 = vmatprep.subr.bf16.mxu0 0
      %2671 = vmatpush2.bf16.msra.mxu0 0
      %2672 = vmatprep.subr.bf16.mxu0 0
      %2673 = vmatpush2.bf16.msra.mxu0 0
      %2674 = vmatprep.subr.bf16.mxu0 0
      %2675 = vmatpush2.bf16.msra.mxu0 0
      %2676 = vmatprep.mubr.bf16.mxu0 0
      %2677 = vmatmul.mubr.bf16.gmra.mxu0 %v2555
      %v2678 = vpop.f32.mrf.mxu0
      %v2679 = vadd.f32 0.0, %v2678
      %v2680 = vpop.f32.mrf.mxu0
      %v2681 = vadd.f32 0.0, %v2680
      %v2682 = vpop.f32.mrf.mxu0
      %v2683 = vadd.f32 0.0, %v2682
      %v2684 = vpop.f32.mrf.mxu0
      %v2685 = vadd.f32 0.0, %v2684
      %2686 = vmatprep.mubr.bf16.mxu0 0
      %2687 = vmatmul.mubr.bf16.gmra.mxu0 %v2558
      %v2688 = vpop.f32.mrf.mxu0
      %v2689 = vadd.f32 0.0, %v2688
      %v2690 = vpop.f32.mrf.mxu0
      %v2691 = vadd.f32 0.0, %v2690
      %v2692 = vpop.f32.mrf.mxu0
      %v2693 = vadd.f32 0.0, %v2692
      %v2694 = vpop.f32.mrf.mxu0
      %v2695 = vadd.f32 0.0, %v2694
      %2696 = vmatprep.mubr.bf16.mxu0 0
      %2697 = vmatmul.mubr.bf16.gmra.mxu0 %v2561
      %v2698 = vpop.f32.mrf.mxu0
      %v2699 = vadd.f32 0.0, %v2698
      %v2700 = vpop.f32.mrf.mxu0
      %v2701 = vadd.f32 0.0, %v2700
      %v2702 = vpop.f32.mrf.mxu0
      %v2703 = vadd.f32 0.0, %v2702
      %v2704 = vpop.f32.mrf.mxu0
      %v2705 = vadd.f32 0.0, %v2704
      %2706 = vmatprep.mubr.bf16.mxu0 0
      %2707 = vmatmul.mubr.bf16.gmra.mxu0 %v2564
      %v2708 = vpop.f32.mrf.mxu0
      %v2709 = vadd.f32 0.0, %v2708
      %v2710 = vpop.f32.mrf.mxu0
      %v2711 = vadd.f32 0.0, %v2710
      %v2712 = vpop.f32.mrf.mxu0
      %v2713 = vadd.f32 0.0, %v2712
      %v2714 = vpop.f32.mrf.mxu0
      %v2715 = vadd.f32 0.0, %v2714
      %2716 = vmatprep.mubr.bf16.mxu0 0
      %2717 = vmatmul.mubr.bf16.gmra.mxu0 %v2567
      %v2718 = vpop.f32.mrf.mxu0
      %v2719 = vadd.f32 0.0, %v2718
      %v2720 = vpop.f32.mrf.mxu0
      %v2721 = vadd.f32 0.0, %v2720
      %v2722 = vpop.f32.mrf.mxu0
      %v2723 = vadd.f32 0.0, %v2722
      %v2724 = vpop.f32.mrf.mxu0
      %v2725 = vadd.f32 0.0, %v2724
      %2726 = vmatprep.mubr.bf16.mxu0 0
      %2727 = vmatmul.mubr.bf16.gmra.mxu0 %v2570
      %v2728 = vpop.f32.mrf.mxu0
      %v2729 = vadd.f32 0.0, %v2728
      %v2730 = vpop.f32.mrf.mxu0
      %v2731 = vadd.f32 0.0, %v2730
      %v2732 = vpop.f32.mrf.mxu0
      %v2733 = vadd.f32 0.0, %v2732
      %v2734 = vpop.f32.mrf.mxu0
      %v2735 = vadd.f32 0.0, %v2734
      %2736 = vmatprep.mubr.bf16.mxu0 0
      %2737 = vmatmul.mubr.bf16.gmra.mxu0 %v2573
      %v2738 = vpop.f32.mrf.mxu0
      %v2739 = vadd.f32 0.0, %v2738
      %v2740 = vpop.f32.mrf.mxu0
      %v2741 = vadd.f32 0.0, %v2740
      %v2742 = vpop.f32.mrf.mxu0
      %v2743 = vadd.f32 0.0, %v2742
      %v2744 = vpop.f32.mrf.mxu0
      %v2745 = vadd.f32 0.0, %v2744
      %2746 = vmatprep.mubr.bf16.mxu0 0
      %2747 = vmatmul.mubr.bf16.gmra.mxu0 %v2576
      %v2748 = vpop.f32.mrf.mxu0
      %v2749 = vadd.f32 0.0, %v2748
      %v2750 = vpop.f32.mrf.mxu0
      %v2751 = vadd.f32 0.0, %v2750
      %v2752 = vpop.f32.mrf.mxu0
      %v2753 = vadd.f32 0.0, %v2752
      %v2754 = vpop.f32.mrf.mxu0
      %v2755 = vadd.f32 0.0, %v2754
      %2756 = vmatprep.mubr.bf16.mxu0 0
      %2757 = vmatmul.mubr.bf16.gmra.mxu0 %v2579
      %v2758 = vpop.f32.mrf.mxu0
      %v2759 = vadd.f32 0.0, %v2758
      %v2760 = vpop.f32.mrf.mxu0
      %v2761 = vadd.f32 0.0, %v2760
      %v2762 = vpop.f32.mrf.mxu0
      %v2763 = vadd.f32 0.0, %v2762
      %v2764 = vpop.f32.mrf.mxu0
      %v2765 = vadd.f32 0.0, %v2764
      %2766 = vmatprep.mubr.bf16.mxu0 0
      %2767 = vmatmul.mubr.bf16.gmra.mxu0 %v2582
      %v2768 = vpop.f32.mrf.mxu0
      %v2769 = vadd.f32 0.0, %v2768
      %v2770 = vpop.f32.mrf.mxu0
      %v2771 = vadd.f32 0.0, %v2770
      %v2772 = vpop.f32.mrf.mxu0
      %v2773 = vadd.f32 0.0, %v2772
      %v2774 = vpop.f32.mrf.mxu0
      %v2775 = vadd.f32 0.0, %v2774
      %2776 = vmatprep.mubr.bf16.mxu0 0
      %2777 = vmatmul.mubr.bf16.gmra.mxu0 %v2585
      %v2778 = vpop.f32.mrf.mxu0
      %v2779 = vadd.f32 0.0, %v2778
      %v2780 = vpop.f32.mrf.mxu0
      %v2781 = vadd.f32 0.0, %v2780
      %v2782 = vpop.f32.mrf.mxu0
      %v2783 = vadd.f32 0.0, %v2782
      %v2784 = vpop.f32.mrf.mxu0
      %v2785 = vadd.f32 0.0, %v2784
      %2786 = vmatprep.mubr.bf16.mxu0 0
      %2787 = vmatmul.mubr.bf16.gmra.mxu0 %v2588
      %v2788 = vpop.f32.mrf.mxu0
      %v2789 = vadd.f32 0.0, %v2788
      %v2790 = vpop.f32.mrf.mxu0
      %v2791 = vadd.f32 0.0, %v2790
      %v2792 = vpop.f32.mrf.mxu0
      %v2793 = vadd.f32 0.0, %v2792
      %v2794 = vpop.f32.mrf.mxu0
      %v2795 = vadd.f32 0.0, %v2794
      %2796 = vmatprep.mubr.bf16.mxu0 0
      %2797 = vmatmul.mubr.bf16.gmra.mxu0 %v2591
      %v2798 = vpop.f32.mrf.mxu0
      %v2799 = vadd.f32 0.0, %v2798
      %v2800 = vpop.f32.mrf.mxu0
      %v2801 = vadd.f32 0.0, %v2800
      %v2802 = vpop.f32.mrf.mxu0
      %v2803 = vadd.f32 0.0, %v2802
      %v2804 = vpop.f32.mrf.mxu0
      %v2805 = vadd.f32 0.0, %v2804
      %2806 = vmatprep.mubr.bf16.mxu0 0
      %2807 = vmatmul.mubr.bf16.gmra.mxu0 %v2594
      %v2808 = vpop.f32.mrf.mxu0
      %v2809 = vadd.f32 0.0, %v2808
      %v2810 = vpop.f32.mrf.mxu0
      %v2811 = vadd.f32 0.0, %v2810
      %v2812 = vpop.f32.mrf.mxu0
      %v2813 = vadd.f32 0.0, %v2812
      %v2814 = vpop.f32.mrf.mxu0
      %v2815 = vadd.f32 0.0, %v2814
      %2816 = vmatprep.mubr.bf16.mxu0 0
      %2817 = vmatmul.mubr.bf16.gmra.mxu0 %v2597
      %v2818 = vpop.f32.mrf.mxu0
      %v2819 = vadd.f32 0.0, %v2818
      %v2820 = vpop.f32.mrf.mxu0
      %v2821 = vadd.f32 0.0, %v2820
      %v2822 = vpop.f32.mrf.mxu0
      %v2823 = vadd.f32 0.0, %v2822
      %v2824 = vpop.f32.mrf.mxu0
      %v2825 = vadd.f32 0.0, %v2824
      %2826 = vmatprep.mubr.bf16.mxu0 0
      %2827 = vmatmul.mubr.bf16.gmra.mxu0 %v2600
      %v2828 = vpop.f32.mrf.mxu0
      %v2829 = vadd.f32 0.0, %v2828
      %v2830 = vpop.f32.mrf.mxu0
      %v2831 = vadd.f32 0.0, %v2830
      %v2832 = vpop.f32.mrf.mxu0
      %v2833 = vadd.f32 0.0, %v2832
      %v2834 = vpop.f32.mrf.mxu0
      %v2835 = vadd.f32 0.0, %v2834
      %2836 = vmatprep.mubr.bf16.mxu0 0
      %2837 = vmatmul.mubr.bf16.gmra.mxu0 %v2603
      %v2838 = vpop.f32.mrf.mxu0
      %v2839 = vadd.f32 0.0, %v2838
      %v2840 = vpop.f32.mrf.mxu0
      %v2841 = vadd.f32 0.0, %v2840
      %v2842 = vpop.f32.mrf.mxu0
      %v2843 = vadd.f32 0.0, %v2842
      %v2844 = vpop.f32.mrf.mxu0
      %v2845 = vadd.f32 0.0, %v2844
      %2846 = vmatprep.mubr.bf16.mxu0 0
      %2847 = vmatmul.mubr.bf16.gmra.mxu0 %v2606
      %v2848 = vpop.f32.mrf.mxu0
      %v2849 = vadd.f32 0.0, %v2848
      %v2850 = vpop.f32.mrf.mxu0
      %v2851 = vadd.f32 0.0, %v2850
      %v2852 = vpop.f32.mrf.mxu0
      %v2853 = vadd.f32 0.0, %v2852
      %v2854 = vpop.f32.mrf.mxu0
      %v2855 = vadd.f32 0.0, %v2854
      %2856 = vmatprep.mubr.bf16.mxu0 0
      %2857 = vmatmul.mubr.bf16.gmra.mxu0 %v2609
      %v2858 = vpop.f32.mrf.mxu0
      %v2859 = vadd.f32 0.0, %v2858
      %v2860 = vpop.f32.mrf.mxu0
      %v2861 = vadd.f32 0.0, %v2860
      %v2862 = vpop.f32.mrf.mxu0
      %v2863 = vadd.f32 0.0, %v2862
      %v2864 = vpop.f32.mrf.mxu0
      %v2865 = vadd.f32 0.0, %v2864
      %2866 = vmatprep.mubr.bf16.mxu0 0
      %2867 = vmatmul.mubr.bf16.gmra.mxu0 %v2612
      %v2868 = vpop.f32.mrf.mxu0
      %v2869 = vadd.f32 0.0, %v2868
      %v2870 = vpop.f32.mrf.mxu0
      %v2871 = vadd.f32 0.0, %v2870
      %v2872 = vpop.f32.mrf.mxu0
      %v2873 = vadd.f32 0.0, %v2872
      %v2874 = vpop.f32.mrf.mxu0
      %v2875 = vadd.f32 0.0, %v2874
      %2876 = vmatprep.mubr.bf16.mxu0 0
      %2877 = vmatmul.mubr.bf16.gmra.mxu0 %v2615
      %v2878 = vpop.f32.mrf.mxu0
      %v2879 = vadd.f32 0.0, %v2878
      %v2880 = vpop.f32.mrf.mxu0
      %v2881 = vadd.f32 0.0, %v2880
      %v2882 = vpop.f32.mrf.mxu0
      %v2883 = vadd.f32 0.0, %v2882
      %v2884 = vpop.f32.mrf.mxu0
      %v2885 = vadd.f32 0.0, %v2884
      %2886 = vmatprep.mubr.bf16.mxu0 0
      %2887 = vmatmul.mubr.bf16.gmra.mxu0 %v2618
      %v2888 = vpop.f32.mrf.mxu0
      %v2889 = vadd.f32 0.0, %v2888
      %v2890 = vpop.f32.mrf.mxu0
      %v2891 = vadd.f32 0.0, %v2890
      %v2892 = vpop.f32.mrf.mxu0
      %v2893 = vadd.f32 0.0, %v2892
      %v2894 = vpop.f32.mrf.mxu0
      %v2895 = vadd.f32 0.0, %v2894
      %2896 = vmatprep.mubr.bf16.mxu0 0
      %2897 = vmatmul.mubr.bf16.gmra.mxu0 %v2621
      %v2898 = vpop.f32.mrf.mxu0
      %v2899 = vadd.f32 0.0, %v2898
      %v2900 = vpop.f32.mrf.mxu0
      %v2901 = vadd.f32 0.0, %v2900
      %v2902 = vpop.f32.mrf.mxu0
      %v2903 = vadd.f32 0.0, %v2902
      %v2904 = vpop.f32.mrf.mxu0
      %v2905 = vadd.f32 0.0, %v2904
      %2906 = vmatprep.mubr.bf16.mxu0 0
      %2907 = vmatmul.mubr.bf16.gmra.mxu0 %v2624
      %v2908 = vpop.f32.mrf.mxu0
      %v2909 = vadd.f32 0.0, %v2908
      %v2910 = vpop.f32.mrf.mxu0
      %v2911 = vadd.f32 0.0, %v2910
      %v2912 = vpop.f32.mrf.mxu0
      %v2913 = vadd.f32 0.0, %v2912
      %v2914 = vpop.f32.mrf.mxu0
      %v2915 = vadd.f32 0.0, %v2914
      %2916 = vmatprep.mubr.bf16.mxu0 0
      %2917 = vmatmul.mubr.bf16.gmra.mxu0 %v2627
      %v2918 = vpop.f32.mrf.mxu0
      %v2919 = vadd.f32 0.0, %v2918
      %v2920 = vpop.f32.mrf.mxu0
      %v2921 = vadd.f32 0.0, %v2920
      %v2922 = vpop.f32.mrf.mxu0
      %v2923 = vadd.f32 0.0, %v2922
      %v2924 = vpop.f32.mrf.mxu0
      %v2925 = vadd.f32 0.0, %v2924
      %2926 = vmatprep.mubr.bf16.mxu0 0
      %2927 = vmatmul.mubr.bf16.gmra.mxu0 %v2630
      %v2928 = vpop.f32.mrf.mxu0
      %v2929 = vadd.f32 0.0, %v2928
      %v2930 = vpop.f32.mrf.mxu0
      %v2931 = vadd.f32 0.0, %v2930
      %v2932 = vpop.f32.mrf.mxu0
      %v2933 = vadd.f32 0.0, %v2932
      %v2934 = vpop.f32.mrf.mxu0
      %v2935 = vadd.f32 0.0, %v2934
      %2936 = vmatprep.mubr.bf16.mxu0 0
      %2937 = vmatmul.mubr.bf16.gmra.mxu0 %v2633
      %v2938 = vpop.f32.mrf.mxu0
      %v2939 = vadd.f32 0.0, %v2938
      %v2940 = vpop.f32.mrf.mxu0
      %v2941 = vadd.f32 0.0, %v2940
      %v2942 = vpop.f32.mrf.mxu0
      %v2943 = vadd.f32 0.0, %v2942
      %v2944 = vpop.f32.mrf.mxu0
      %v2945 = vadd.f32 0.0, %v2944
      %2946 = vmatprep.mubr.bf16.mxu0 0
      %2947 = vmatmul.mubr.bf16.gmra.mxu0 %v2636
      %v2948 = vpop.f32.mrf.mxu0
      %v2949 = vadd.f32 0.0, %v2948
      %v2950 = vpop.f32.mrf.mxu0
      %v2951 = vadd.f32 0.0, %v2950
      %v2952 = vpop.f32.mrf.mxu0
      %v2953 = vadd.f32 0.0, %v2952
      %v2954 = vpop.f32.mrf.mxu0
      %v2955 = vadd.f32 0.0, %v2954
      %2956 = vmatprep.mubr.bf16.mxu0 0
      %2957 = vmatmul.mubr.bf16.gmra.mxu0 %v2639
      %v2958 = vpop.f32.mrf.mxu0
      %v2959 = vadd.f32 0.0, %v2958
      %v2960 = vpop.f32.mrf.mxu0
      %v2961 = vadd.f32 0.0, %v2960
      %v2962 = vpop.f32.mrf.mxu0
      %v2963 = vadd.f32 0.0, %v2962
      %v2964 = vpop.f32.mrf.mxu0
      %v2965 = vadd.f32 0.0, %v2964
      %2966 = vmatprep.mubr.bf16.mxu0 0
      %2967 = vmatmul.mubr.bf16.gmra.mxu0 %v2642
      %v2968 = vpop.f32.mrf.mxu0
      %v2969 = vadd.f32 0.0, %v2968
      %v2970 = vpop.f32.mrf.mxu0
      %v2971 = vadd.f32 0.0, %v2970
      %v2972 = vpop.f32.mrf.mxu0
      %v2973 = vadd.f32 0.0, %v2972
      %v2974 = vpop.f32.mrf.mxu0
      %v2975 = vadd.f32 0.0, %v2974
      %2976 = vdwg.mxu0
      %v2977 = vmul.f32 %v2679, %v1202
      %v2978 = vmul.f32 %v2681, %v1206
      %v2979 = vmul.f32 %v2683, %v1202
      %v2980 = vmul.f32 %v2685, %v1206
      %v2981 = vmul.f32 %v2689, %v1202
      %v2982 = vmul.f32 %v2691, %v1206
      %v2983 = vmul.f32 %v2693, %v1202
      %v2984 = vmul.f32 %v2695, %v1206
      %v2985 = vmul.f32 %v2699, %v1202
      %v2986 = vmul.f32 %v2701, %v1206
      %v2987 = vmul.f32 %v2703, %v1202
      %v2988 = vmul.f32 %v2705, %v1206
      %v2989 = vmul.f32 %v2709, %v1210
      %v2990 = vmul.f32 %v2711, %v1214
      %v2991 = vmul.f32 %v2713, %v1210
      %v2992 = vmul.f32 %v2715, %v1214
      %v2993 = vmul.f32 %v2719, %v1210
      %v2994 = vmul.f32 %v2721, %v1214
      %v2995 = vmul.f32 %v2723, %v1210
      %v2996 = vmul.f32 %v2725, %v1214
      %v2997 = vmul.f32 %v2729, %v1210
      %v2998 = vmul.f32 %v2731, %v1214
      %v2999 = vmul.f32 %v2733, %v1210
      %v3000 = vmul.f32 %v2735, %v1214
      %v3001 = vmul.f32 %v2739, %v1218
      %v3002 = vmul.f32 %v2741, %v1222
      %v3003 = vmul.f32 %v2743, %v1218
      %v3004 = vmul.f32 %v2745, %v1222
      %v3005 = vmul.f32 %v2749, %v1218
      %v3006 = vmul.f32 %v2751, %v1222
      %v3007 = vmul.f32 %v2753, %v1218
      %v3008 = vmul.f32 %v2755, %v1222
      %v3009 = vmul.f32 %v2759, %v1218
      %v3010 = vmul.f32 %v2761, %v1222
      %v3011 = vmul.f32 %v2763, %v1218
      %v3012 = vmul.f32 %v2765, %v1222
      %v3013 = vmul.f32 %v2769, %v1226
      %v3014 = vmul.f32 %v2771, %v1230
      %v3015 = vmul.f32 %v2773, %v1226
      %v3016 = vmul.f32 %v2775, %v1230
      %v3017 = vmul.f32 %v2779, %v1226
      %v3018 = vmul.f32 %v2781, %v1230
      %v3019 = vmul.f32 %v2783, %v1226
      %v3020 = vmul.f32 %v2785, %v1230
      %v3021 = vmul.f32 %v2789, %v1226
      %v3022 = vmul.f32 %v2791, %v1230
      %v3023 = vmul.f32 %v2793, %v1226
      %v3024 = vmul.f32 %v2795, %v1230
      %v3025 = vmul.f32 %v2799, %v1234
      %v3026 = vmul.f32 %v2801, %v1238
      %v3027 = vmul.f32 %v2803, %v1234
      %v3028 = vmul.f32 %v2805, %v1238
      %v3029 = vmul.f32 %v2809, %v1234
      %v3030 = vmul.f32 %v2811, %v1238
      %v3031 = vmul.f32 %v2813, %v1234
      %v3032 = vmul.f32 %v2815, %v1238
      %v3033 = vmul.f32 %v2819, %v1234
      %v3034 = vmul.f32 %v2821, %v1238
      %v3035 = vmul.f32 %v2823, %v1234
      %v3036 = vmul.f32 %v2825, %v1238
      %v3037 = vmul.f32 %v2829, %v1242
      %v3038 = vmul.f32 %v2831, %v1246
      %v3039 = vmul.f32 %v2833, %v1242
      %v3040 = vmul.f32 %v2835, %v1246
      %v3041 = vmul.f32 %v2839, %v1242
      %v3042 = vmul.f32 %v2841, %v1246
      %v3043 = vmul.f32 %v2843, %v1242
      %v3044 = vmul.f32 %v2845, %v1246
      %v3045 = vmul.f32 %v2849, %v1242
      %v3046 = vmul.f32 %v2851, %v1246
      %v3047 = vmul.f32 %v2853, %v1242
      %v3048 = vmul.f32 %v2855, %v1246
      %v3049 = vmul.f32 %v2859, %v1250
      %v3050 = vmul.f32 %v2861, %v1254
      %v3051 = vmul.f32 %v2863, %v1250
      %v3052 = vmul.f32 %v2865, %v1254
      %v3053 = vmul.f32 %v2869, %v1250
      %v3054 = vmul.f32 %v2871, %v1254
      %v3055 = vmul.f32 %v2873, %v1250
      %v3056 = vmul.f32 %v2875, %v1254
      %v3057 = vmul.f32 %v2879, %v1250
      %v3058 = vmul.f32 %v2881, %v1254
      %v3059 = vmul.f32 %v2883, %v1250
      %v3060 = vmul.f32 %v2885, %v1254
      %v3061 = vmul.f32 %v2889, %v1258
      %v3062 = vmul.f32 %v2891, %v1262
      %v3063 = vmul.f32 %v2893, %v1258
      %v3064 = vmul.f32 %v2895, %v1262
      %v3065 = vmul.f32 %v2899, %v1258
      %v3066 = vmul.f32 %v2901, %v1262
      %v3067 = vmul.f32 %v2903, %v1258
      %v3068 = vmul.f32 %v2905, %v1262
      %v3069 = vmul.f32 %v2909, %v1258
      %v3070 = vmul.f32 %v2911, %v1262
      %v3071 = vmul.f32 %v2913, %v1258
      %v3072 = vmul.f32 %v2915, %v1262
      %v3073 = vmul.f32 %v2919, %v1266
      %v3074 = vmul.f32 %v2921, %v1270
      %v3075 = vmul.f32 %v2923, %v1266
      %v3076 = vmul.f32 %v2925, %v1270
      %v3077 = vmul.f32 %v2929, %v1266
      %v3078 = vmul.f32 %v2931, %v1270
      %v3079 = vmul.f32 %v2933, %v1266
      %v3080 = vmul.f32 %v2935, %v1270
      %v3081 = vmul.f32 %v2939, %v1266
      %v3082 = vmul.f32 %v2941, %v1270
      %v3083 = vmul.f32 %v2943, %v1266
      %v3084 = vmul.f32 %v2945, %v1270
      %v3085 = vmul.f32 %v2949, %v1274
      %v3086 = vmul.f32 %v2951, %v1278
      %v3087 = vmul.f32 %v2953, %v1274
      %v3088 = vmul.f32 %v2955, %v1278
      %v3089 = vmul.f32 %v2959, %v1274
      %v3090 = vmul.f32 %v2961, %v1278
      %v3091 = vmul.f32 %v2963, %v1274
      %v3092 = vmul.f32 %v2965, %v1278
      %v3093 = vmul.f32 %v2969, %v1274
      %v3094 = vmul.f32 %v2971, %v1278
      %v3095 = vmul.f32 %v2973, %v1274
      %v3096 = vmul.f32 %v2975, %v1278
      %v3097 = vadd.f32 %v2977, %v2989
      %v3098 = vadd.f32 %v3097, %v3001
      %v3099 = vadd.f32 %v3098, %v3013
      %v3100 = vadd.f32 %v3099, %v3025
      %v3101 = vadd.f32 %v3100, %v3037
      %v3102 = vadd.f32 %v3101, %v3049
      %v3103 = vadd.f32 %v3102, %v3061
      %v3104 = vadd.f32 %v3103, %v3073
      %v3105 = vadd.f32 %v3104, %v3085
      %v3106 = vsel %vm961, %v2978, 0.0
      %v3107 = vsel %vm961, %v2990, 0.0
      %v3108 = vadd.f32 %v3106, %v3107
      %v3109 = vsel %vm961, %v3002, 0.0
      %v3110 = vadd.f32 %v3108, %v3109
      %v3111 = vsel %vm961, %v3014, 0.0
      %v3112 = vadd.f32 %v3110, %v3111
      %v3113 = vsel %vm961, %v3026, 0.0
      %v3114 = vadd.f32 %v3112, %v3113
      %v3115 = vsel %vm961, %v3038, 0.0
      %v3116 = vadd.f32 %v3114, %v3115
      %v3117 = vsel %vm961, %v3050, 0.0
      %v3118 = vadd.f32 %v3116, %v3117
      %v3119 = vsel %vm961, %v3062, 0.0
      %v3120 = vadd.f32 %v3118, %v3119
      %v3121 = vsel %vm961, %v3074, 0.0
      %v3122 = vadd.f32 %v3120, %v3121
      %v3123 = vsel %vm961, %v3086, 0.0
      %v3124 = vadd.f32 %v3122, %v3123
      %v3125 = vadd.f32 %v2979, %v2991
      %v3126 = vadd.f32 %v3125, %v3003
      %v3127 = vadd.f32 %v3126, %v3015
      %v3128 = vadd.f32 %v3127, %v3027
      %v3129 = vadd.f32 %v3128, %v3039
      %v3130 = vadd.f32 %v3129, %v3051
      %v3131 = vadd.f32 %v3130, %v3063
      %v3132 = vadd.f32 %v3131, %v3075
      %v3133 = vadd.f32 %v3132, %v3087
      %v3134 = vsel %vm961, %v2980, 0.0
      %v3135 = vsel %vm961, %v2992, 0.0
      %v3136 = vadd.f32 %v3134, %v3135
      %v3137 = vsel %vm961, %v3004, 0.0
      %v3138 = vadd.f32 %v3136, %v3137
      %v3139 = vsel %vm961, %v3016, 0.0
      %v3140 = vadd.f32 %v3138, %v3139
      %v3141 = vsel %vm961, %v3028, 0.0
      %v3142 = vadd.f32 %v3140, %v3141
      %v3143 = vsel %vm961, %v3040, 0.0
      %v3144 = vadd.f32 %v3142, %v3143
      %v3145 = vsel %vm961, %v3052, 0.0
      %v3146 = vadd.f32 %v3144, %v3145
      %v3147 = vsel %vm961, %v3064, 0.0
      %v3148 = vadd.f32 %v3146, %v3147
      %v3149 = vsel %vm961, %v3076, 0.0
      %v3150 = vadd.f32 %v3148, %v3149
      %v3151 = vsel %vm961, %v3088, 0.0
      %v3152 = vadd.f32 %v3150, %v3151
      %v3153 = vadd.f32 %v2981, %v2993
      %v3154 = vadd.f32 %v3153, %v3005
      %v3155 = vadd.f32 %v3154, %v3017
      %v3156 = vadd.f32 %v3155, %v3029
      %v3157 = vadd.f32 %v3156, %v3041
      %v3158 = vadd.f32 %v3157, %v3053
      %v3159 = vadd.f32 %v3158, %v3065
      %v3160 = vadd.f32 %v3159, %v3077
      %v3161 = vadd.f32 %v3160, %v3089
      %v3162 = vsel %vm961, %v2982, 0.0
      %v3163 = vsel %vm961, %v2994, 0.0
      %v3164 = vadd.f32 %v3162, %v3163
      %v3165 = vsel %vm961, %v3006, 0.0
      %v3166 = vadd.f32 %v3164, %v3165
      %v3167 = vsel %vm961, %v3018, 0.0
      %v3168 = vadd.f32 %v3166, %v3167
      %v3169 = vsel %vm961, %v3030, 0.0
      %v3170 = vadd.f32 %v3168, %v3169
      %v3171 = vsel %vm961, %v3042, 0.0
      %v3172 = vadd.f32 %v3170, %v3171
      %v3173 = vsel %vm961, %v3054, 0.0
      %v3174 = vadd.f32 %v3172, %v3173
      %v3175 = vsel %vm961, %v3066, 0.0
      %v3176 = vadd.f32 %v3174, %v3175
      %v3177 = vsel %vm961, %v3078, 0.0
      %v3178 = vadd.f32 %v3176, %v3177
      %v3179 = vsel %vm961, %v3090, 0.0
      %v3180 = vadd.f32 %v3178, %v3179
      %v3181 = vadd.f32 %v2983, %v2995
      %v3182 = vadd.f32 %v3181, %v3007
      %v3183 = vadd.f32 %v3182, %v3019
      %v3184 = vadd.f32 %v3183, %v3031
      %v3185 = vadd.f32 %v3184, %v3043
      %v3186 = vadd.f32 %v3185, %v3055
      %v3187 = vadd.f32 %v3186, %v3067
      %v3188 = vadd.f32 %v3187, %v3079
      %v3189 = vadd.f32 %v3188, %v3091
      %v3190 = vsel %vm961, %v2984, 0.0
      %v3191 = vsel %vm961, %v2996, 0.0
      %v3192 = vadd.f32 %v3190, %v3191
      %v3193 = vsel %vm961, %v3008, 0.0
      %v3194 = vadd.f32 %v3192, %v3193
      %v3195 = vsel %vm961, %v3020, 0.0
      %v3196 = vadd.f32 %v3194, %v3195
      %v3197 = vsel %vm961, %v3032, 0.0
      %v3198 = vadd.f32 %v3196, %v3197
      %v3199 = vsel %vm961, %v3044, 0.0
      %v3200 = vadd.f32 %v3198, %v3199
      %v3201 = vsel %vm961, %v3056, 0.0
      %v3202 = vadd.f32 %v3200, %v3201
      %v3203 = vsel %vm961, %v3068, 0.0
      %v3204 = vadd.f32 %v3202, %v3203
      %v3205 = vsel %vm961, %v3080, 0.0
      %v3206 = vadd.f32 %v3204, %v3205
      %v3207 = vsel %vm961, %v3092, 0.0
      %v3208 = vadd.f32 %v3206, %v3207
      %v3209 = vadd.f32 %v2985, %v2997
      %v3210 = vadd.f32 %v3209, %v3009
      %v3211 = vadd.f32 %v3210, %v3021
      %v3212 = vadd.f32 %v3211, %v3033
      %v3213 = vadd.f32 %v3212, %v3045
      %v3214 = vadd.f32 %v3213, %v3057
      %v3215 = vadd.f32 %v3214, %v3069
      %v3216 = vadd.f32 %v3215, %v3081
      %v3217 = vadd.f32 %v3216, %v3093
      %v3218 = vsel %vm961, %v2986, 0.0
      %v3219 = vsel %vm961, %v2998, 0.0
      %v3220 = vadd.f32 %v3218, %v3219
      %v3221 = vsel %vm961, %v3010, 0.0
      %v3222 = vadd.f32 %v3220, %v3221
      %v3223 = vsel %vm961, %v3022, 0.0
      %v3224 = vadd.f32 %v3222, %v3223
      %v3225 = vsel %vm961, %v3034, 0.0
      %v3226 = vadd.f32 %v3224, %v3225
      %v3227 = vsel %vm961, %v3046, 0.0
      %v3228 = vadd.f32 %v3226, %v3227
      %v3229 = vsel %vm961, %v3058, 0.0
      %v3230 = vadd.f32 %v3228, %v3229
      %v3231 = vsel %vm961, %v3070, 0.0
      %v3232 = vadd.f32 %v3230, %v3231
      %v3233 = vsel %vm961, %v3082, 0.0
      %v3234 = vadd.f32 %v3232, %v3233
      %v3235 = vsel %vm961, %v3094, 0.0
      %v3236 = vadd.f32 %v3234, %v3235
      %v3237 = vadd.f32 %v2987, %v2999
      %v3238 = vadd.f32 %v3237, %v3011
      %v3239 = vadd.f32 %v3238, %v3023
      %v3240 = vadd.f32 %v3239, %v3035
      %v3241 = vadd.f32 %v3240, %v3047
      %v3242 = vadd.f32 %v3241, %v3059
      %v3243 = vadd.f32 %v3242, %v3071
      %v3244 = vadd.f32 %v3243, %v3083
      %v3245 = vadd.f32 %v3244, %v3095
      %v3246 = vsel %vm961, %v2988, 0.0
      %v3247 = vsel %vm961, %v3000, 0.0
      %v3248 = vadd.f32 %v3246, %v3247
      %v3249 = vsel %vm961, %v3012, 0.0
      %v3250 = vadd.f32 %v3248, %v3249
      %v3251 = vsel %vm961, %v3024, 0.0
      %v3252 = vadd.f32 %v3250, %v3251
      %v3253 = vsel %vm961, %v3036, 0.0
      %v3254 = vadd.f32 %v3252, %v3253
      %v3255 = vsel %vm961, %v3048, 0.0
      %v3256 = vadd.f32 %v3254, %v3255
      %v3257 = vsel %vm961, %v3060, 0.0
      %v3258 = vadd.f32 %v3256, %v3257
      %v3259 = vsel %vm961, %v3072, 0.0
      %v3260 = vadd.f32 %v3258, %v3259
      %v3261 = vsel %vm961, %v3084, 0.0
      %v3262 = vadd.f32 %v3260, %v3261
      %v3263 = vsel %vm961, %v3096, 0.0
      %v3264 = vadd.f32 %v3262, %v3263
      %v3265 = vpack.c.bf16 %v3133, %v3105
      %v3266 = vpack.c.bf16 %v3152, %v3124
      %v3267 = vpack.c.bf16 %v3189, %v3161
      %v3268 = vpack.c.bf16 %v3208, %v3180
      %v3269 = vpack.c.bf16 %v3245, %v3217
      %v3270 = vpack.c.bf16 %v3264, %v3236
      %v3271 = vld [vmem:[%s382] sm:$0xff]
      %v3272 = vld [vmem:[%s382 + $0x8] sm:$0xff]
      %v3273 = vld [vmem:[%s382 + $0x10] sm:$0xff]
      %v3274 = vld [vmem:[%s382 + $0x18] sm:$0xff]
      %v3275 = vld [vmem:[%s382 + $0x20] sm:$0xff]
      %v3276 = vld [vmem:[%s382 + $0x28] sm:$0xff]
      %v3277 = vld [vmem:[%s382 + $0x30] sm:$0xff]
      %v3278 = vld [vmem:[%s382 + $0x38] sm:$0xff]
      %v3279 = vld [vmem:[%s382 + $0x40] sm:$0xff]
      %v3280 = vld [vmem:[%s382 + $0x48] sm:$0xff]
      %v3281 = vld [vmem:[%s382 + $0x50] sm:$0xff]
      %v3282 = vld [vmem:[%s382 + $0x58] sm:$0xff]
      %v3283 = vld [vmem:[%s382 + $0x60] sm:$0xff]
      %v3284 = vld [vmem:[%s382 + $0x68] sm:$0xff]
      %v3285 = vld [vmem:[%s382 + $0x70] sm:$0xff]
      %v3286 = vld [vmem:[%s382 + $0x78] sm:$0xff]
      %v3287 = vld [vmem:[%s382 + $0x80] sm:$0xff]
      %v3288 = vld [vmem:[%s382 + $0x88] sm:$0xff]
      %v3289 = vld [vmem:[%s382 + $0x90] sm:$0xff]
      %v3290 = vld [vmem:[%s382 + $0x98] sm:$0xff]
      %v3291 = vld [vmem:[%s382 + $0xa0] sm:$0xff]
      %v3292 = vld [vmem:[%s382 + $0xa8] sm:$0xff]
      %v3293 = vld [vmem:[%s382 + $0xb0] sm:$0xff]
      %v3294 = vld [vmem:[%s382 + $0xb8] sm:$0xff]
      %v3295 = vld [vmem:[%s382 + $0xc0] sm:$0xff]
      %v3297 = vlaneseq
      %v3298 = vshrl.u32 %v3297, 7
      %v3299 = vsub.s32 2, %v3298
      %v3300 = vrot.slane %v449, %v3299
      %v3301 = vlaneseq
      %v3302 = vshrl.u32 %v3301, 7
      %v3303 = vsub.s32 6, %v3302
      %v3304 = vrot.slane %v449, %v3303
      %v3307 = vlaneseq
      %v3308 = vshrl.u32 %v3307, 7
      %v3309 = vsub.s32 2, %v3308
      %v3310 = vrot.slane %v3300, %v3309
      %v3311 = vlaneseq
      %v3312 = vshrl.u32 %v3311, 7
      %v3313 = vsub.s32 2, %v3312
      %v3314 = vrot.slane %v3304, %v3313
      %v3340 = vunpack.c.l.b16 %v3271
      %v3341 = vunpack.c.h.b16 %v3271
      %v3342 = vunpack.c.l.b16 %v3272
      %v3343 = vunpack.c.h.b16 %v3272
      %v3344 = vunpack.c.l.b16 %v3273
      %v3345 = vunpack.c.h.b16 %v3273
      %v3346 = vunpack.c.l.b16 %v3274
      %v3347 = vunpack.c.h.b16 %v3274
      %v3348 = vunpack.c.l.b16 %v3275
      %v3349 = vunpack.c.h.b16 %v3275
      %v3350 = vunpack.c.l.b16 %v3276
      %v3351 = vunpack.c.h.b16 %v3276
      %v3352 = vunpack.c.l.b16 %v3277
      %v3353 = vunpack.c.h.b16 %v3277
      %v3354 = vunpack.c.l.b16 %v3278
      %v3355 = vunpack.c.h.b16 %v3278
      %v3356 = vunpack.c.l.b16 %v3279
      %v3357 = vunpack.c.h.b16 %v3279
      %v3358 = vunpack.c.l.b16 %v3280
      %v3359 = vunpack.c.h.b16 %v3280
      %v3360 = vunpack.c.l.b16 %v3281
      %v3361 = vunpack.c.h.b16 %v3281
      %v3362 = vunpack.c.l.b16 %v3282
      %v3363 = vunpack.c.h.b16 %v3282
      %v3364 = vunpack.c.l.b16 %v3283
      %v3365 = vunpack.c.h.b16 %v3283
      %v3366 = vunpack.c.l.b16 %v3284
      %v3367 = vunpack.c.h.b16 %v3284
      %v3368 = vunpack.c.l.b16 %v3285
      %v3369 = vunpack.c.h.b16 %v3285
      %v3370 = vunpack.c.l.b16 %v3286
      %v3371 = vunpack.c.h.b16 %v3286
      %v3372 = vunpack.c.l.b16 %v3287
      %v3373 = vunpack.c.h.b16 %v3287
      %v3374 = vunpack.c.l.b16 %v3288
      %v3375 = vunpack.c.h.b16 %v3288
      %v3376 = vunpack.c.l.b16 %v3289
      %v3377 = vunpack.c.h.b16 %v3289
      %v3378 = vunpack.c.l.b16 %v3290
      %v3379 = vunpack.c.h.b16 %v3290
      %v3380 = vunpack.c.l.b16 %v3291
      %v3381 = vunpack.c.h.b16 %v3291
      %v3382 = vunpack.c.l.b16 %v3292
      %v3383 = vunpack.c.h.b16 %v3292
      %v3384 = vunpack.c.l.b16 %v3293
      %v3385 = vunpack.c.h.b16 %v3293
      %v3386 = vunpack.c.l.b16 %v3294
      %v3387 = vunpack.c.h.b16 %v3294
      %v3388 = vunpack.c.l.b16 %v3295
      %v3389 = vunpack.c.h.b16 %v3295
      %v3390 = vpack.c.b16 %v3342, %v3340
      %v3391 = vpack.c.b16 %v3343, %v3341
      %v3392 = vpack.c.b16 %v3346, %v3344
      %v3393 = vpack.c.b16 %v3347, %v3345
      %v3394 = vpack.c.b16 %v3350, %v3348
      %v3395 = vpack.c.b16 %v3351, %v3349
      %v3396 = vpack.c.b16 %v3354, %v3352
      %v3397 = vpack.c.b16 %v3355, %v3353
      %v3398 = vpack.c.b16 %v3358, %v3356
      %v3399 = vpack.c.b16 %v3359, %v3357
      %v3400 = vpack.c.b16 %v3362, %v3360
      %v3401 = vpack.c.b16 %v3363, %v3361
      %v3402 = vpack.c.b16 %v3366, %v3364
      %v3403 = vpack.c.b16 %v3367, %v3365
      %v3404 = vpack.c.b16 %v3370, %v3368
      %v3405 = vpack.c.b16 %v3371, %v3369
      %v3406 = vpack.c.b16 %v3374, %v3372
      %v3407 = vpack.c.b16 %v3375, %v3373
      %v3408 = vpack.c.b16 %v3378, %v3376
      %v3409 = vpack.c.b16 %v3379, %v3377
      %v3410 = vpack.c.b16 %v3382, %v3380
      %v3411 = vpack.c.b16 %v3383, %v3381
      %v3412 = vpack.c.b16 %v3386, %v3384
      %v3413 = vpack.c.b16 %v3387, %v3385
      %v3414 = vpack.c.b16 %v3388, %v3388
      %v3415 = vpack.c.b16 %v3389, %v3389
      %v3441 = vsel %vm961, %v3266, 0
      %v3444 = vsel %vm961, %v3268, 0
      %v3447 = vsel %vm961, %v3270, 0
      %v3450 = vsel %vm971, %v3414, 0
      %v3453 = vsel %vm971, %v3415, 0
      %3455 = vmatprep.subr.bf16.mxu0 %v3405
      %3456 = vmatpush1.bf16.msra.mxu0 %v3404
      %3457 = vmatprep.subr.bf16.mxu0 %v3403
      %3458 = vmatpush1.bf16.msra.mxu0 %v3402
      %3459 = vmatprep.subr.bf16.mxu0 %v3401
      %3460 = vmatpush1.bf16.msra.mxu0 %v3400
      %3461 = vmatprep.subr.bf16.mxu0 %v3399
      %3462 = vmatpush1.bf16.msra.mxu0 %v3398
      %3463 = vmatprep.subr.bf16.mxu0 %v3397
      %3464 = vmatpush1.bf16.msra.mxu0 %v3396
      %3465 = vmatprep.subr.bf16.mxu0 %v3395
      %3466 = vmatpush1.bf16.msra.mxu0 %v3394
      %3467 = vmatprep.subr.bf16.mxu0 %v3393
      %3468 = vmatpush1.bf16.msra.mxu0 %v3392
      %3469 = vmatprep.subr.bf16.mxu0 %v3391
      %3470 = vmatpush1.bf16.msra.mxu0 %v3390
      %3471 = vmatprep.subr.bf16.mxu0 0
      %3472 = vmatpush2.bf16.msra.mxu0 0
      %3473 = vmatprep.subr.bf16.mxu0 0
      %3474 = vmatpush2.bf16.msra.mxu0 0
      %3475 = vmatprep.subr.bf16.mxu0 0
      %3476 = vmatpush2.bf16.msra.mxu0 0
      %3477 = vmatprep.subr.bf16.mxu0 %v3453
      %3478 = vmatpush2.bf16.msra.mxu0 %v3450
      %3479 = vmatprep.subr.bf16.mxu0 %v3413
      %3480 = vmatpush2.bf16.msra.mxu0 %v3412
      %3481 = vmatprep.subr.bf16.mxu0 %v3411
      %3482 = vmatpush2.bf16.msra.mxu0 %v3410
      %3483 = vmatprep.subr.bf16.mxu0 %v3409
      %3484 = vmatpush2.bf16.msra.mxu0 %v3408
      %3485 = vmatprep.subr.bf16.mxu0 %v3407
      %3486 = vmatpush2.bf16.msra.mxu0 %v3406
      %3487 = vmatprep.mubr.bf16.mxu0 %v3441
      %3488 = vmatmul.mubr.bf16.gmra.mxu0 %v3265
      %v3489 = vpop.f32.mrf.mxu0
      %v3490 = vadd.f32 %v3310, %v3489
      %v3491 = vpop.f32.mrf.mxu0
      %v3492 = vadd.f32 %v3314, %v3491
      %v3493 = vpop.f32.mrf.mxu0
      %v3494 = vadd.f32 %v3310, %v3493
      %v3495 = vpop.f32.mrf.mxu0
      %v3496 = vadd.f32 %v3314, %v3495
      %3497 = vmatprep.mubr.bf16.mxu0 %v3444
      %3498 = vmatmul.mubr.bf16.gmra.mxu0 %v3267
      %v3499 = vpop.f32.mrf.mxu0
      %v3500 = vadd.f32 %v3310, %v3499
      %v3501 = vpop.f32.mrf.mxu0
      %v3502 = vadd.f32 %v3314, %v3501
      %v3503 = vpop.f32.mrf.mxu0
      %v3504 = vadd.f32 %v3310, %v3503
      %v3505 = vpop.f32.mrf.mxu0
      %v3506 = vadd.f32 %v3314, %v3505
      %3507 = vmatprep.mubr.bf16.mxu0 %v3447
      %3508 = vmatmul.mubr.bf16.gmra.mxu0 %v3269
      %v3509 = vpop.f32.mrf.mxu0
      %v3510 = vadd.f32 %v3310, %v3509
      %v3511 = vpop.f32.mrf.mxu0
      %v3512 = vadd.f32 %v3314, %v3511
      %v3513 = vpop.f32.mrf.mxu0
      %v3514 = vadd.f32 %v3310, %v3513
      %v3515 = vpop.f32.mrf.mxu0
      %v3516 = vadd.f32 %v3314, %v3515
      %3517 = vdwg.mxu0
      %v3518 = vadd.f32 %v428, %v3490
      %v3519 = vadd.f32 %v429, %v3492
      %v3520 = vadd.f32 %v430, %v3494
      %v3521 = vadd.f32 %v431, %v3496
      %v3522 = vadd.f32 %v432, %v3500
      %v3523 = vadd.f32 %v433, %v3502
      %v3524 = vadd.f32 %v434, %v3504
      %v3525 = vadd.f32 %v435, %v3506
      %v3526 = vadd.f32 %v436, %v3510
      %v3527 = vadd.f32 %v437, %v3512
      %v3528 = vadd.f32 %v438, %v3514
      %v3529 = vadd.f32 %v439, %v3516
      %v3530 = vsel %vm961, %v3519, 0.0
      %v3531 = vadd.f32 %v3518, %v3530
      %3532 = vadd.xlane.f32.xlu0 %v3531
      %v3533 = vpop.xlane.xlu0 %3532
      %v3534 = vsel %vm961, %v3521, 0.0
      %v3535 = vadd.f32 %v3520, %v3534
      %3536 = vadd.xlane.f32.xlu0 %v3535
      %v3537 = vpop.xlane.xlu0 %3536
      %v3538 = vsel %vm961, %v3523, 0.0
      %v3539 = vadd.f32 %v3522, %v3538
      %3540 = vadd.xlane.f32.xlu0 %v3539
      %v3541 = vpop.xlane.xlu0 %3540
      %v3542 = vsel %vm961, %v3525, 0.0
      %v3543 = vadd.f32 %v3524, %v3542
      %3544 = vadd.xlane.f32.xlu0 %v3543
      %v3545 = vpop.xlane.xlu0 %3544
      %v3546 = vsel %vm961, %v3527, 0.0
      %v3547 = vadd.f32 %v3526, %v3546
      %3548 = vadd.xlane.f32.xlu0 %v3547
      %v3549 = vpop.xlane.xlu0 %3548
      %v3550 = vsel %vm961, %v3529, 0.0
      %v3551 = vadd.f32 %v3528, %v3550
      %3552 = vadd.xlane.f32.xlu0 %v3551
      %v3553 = vpop.xlane.xlu0 %3552
      %v3554 = vrcp.pop 200.0
      %v3555 = vmul.f32 %v3533, %v3554
      %v3556 = vmul.f32 %v3537, %v3554
      %v3557 = vmul.f32 %v3541, %v3554
      %v3558 = vmul.f32 %v3545, %v3554
      %v3559 = vmul.f32 %v3549, %v3554
      %v3560 = vmul.f32 %v3553, %v3554
      %v3561 = vsub.f32 %v3518, %v3555
      %v3562 = vsub.f32 %v3519, %v3555
      %v3563 = vsub.f32 %v3520, %v3556
      %v3564 = vsub.f32 %v3521, %v3556
      %v3565 = vsub.f32 %v3522, %v3557
      %v3566 = vsub.f32 %v3523, %v3557
      %v3567 = vsub.f32 %v3524, %v3558
      %v3568 = vsub.f32 %v3525, %v3558
      %v3569 = vsub.f32 %v3526, %v3559
      %v3570 = vsub.f32 %v3527, %v3559
      %v3571 = vsub.f32 %v3528, %v3560
      %v3572 = vsub.f32 %v3529, %v3560
      %v3573 = vmul.f32 %v3561, %v3561
      %v3574 = vmul.f32 %v3562, %v3562
      %v3575 = vmul.f32 %v3563, %v3563
      %v3576 = vmul.f32 %v3564, %v3564
      %v3577 = vmul.f32 %v3565, %v3565
      %v3578 = vmul.f32 %v3566, %v3566
      %v3579 = vmul.f32 %v3567, %v3567
      %v3580 = vmul.f32 %v3568, %v3568
      %v3581 = vmul.f32 %v3569, %v3569
      %v3582 = vmul.f32 %v3570, %v3570
      %v3583 = vmul.f32 %v3571, %v3571
      %v3584 = vmul.f32 %v3572, %v3572
      %v3585 = vsel %vm961, %v3574, 0.0
      %v3586 = vadd.f32 %v3573, %v3585
      %3587 = vadd.xlane.f32.xlu0 %v3586
      %v3588 = vpop.xlane.xlu0 %3587
      %v3589 = vsel %vm961, %v3576, 0.0
      %v3590 = vadd.f32 %v3575, %v3589
      %3591 = vadd.xlane.f32.xlu0 %v3590
      %v3592 = vpop.xlane.xlu0 %3591
      %v3593 = vsel %vm961, %v3578, 0.0
      %v3594 = vadd.f32 %v3577, %v3593
      %3595 = vadd.xlane.f32.xlu0 %v3594
      %v3596 = vpop.xlane.xlu0 %3595
      %v3597 = vsel %vm961, %v3580, 0.0
      %v3598 = vadd.f32 %v3579, %v3597
      %3599 = vadd.xlane.f32.xlu0 %v3598
      %v3600 = vpop.xlane.xlu0 %3599
      %v3601 = vsel %vm961, %v3582, 0.0
      %v3602 = vadd.f32 %v3581, %v3601
      %3603 = vadd.xlane.f32.xlu0 %v3602
      %v3604 = vpop.xlane.xlu0 %3603
      %v3605 = vsel %vm961, %v3584, 0.0
      %v3606 = vadd.f32 %v3583, %v3605
      %3607 = vadd.xlane.f32.xlu0 %v3606
      %v3608 = vpop.xlane.xlu0 %3607
      %v3609 = vmul.f32 %v3588, %v3554
      %v3610 = vmul.f32 %v3592, %v3554
      %v3611 = vmul.f32 %v3596, %v3554
      %v3612 = vmul.f32 %v3600, %v3554
      %v3613 = vmul.f32 %v3604, %v3554
      %v3614 = vmul.f32 %v3608, %v3554
      %v3615 = vadd.f32 %v3609, 1e-05
      %v3616 = vadd.f32 %v3610, 1e-05
      %v3617 = vadd.f32 %v3611, 1e-05
      %v3618 = vadd.f32 %v3612, 1e-05
      %v3619 = vadd.f32 %v3613, 1e-05
      %v3620 = vadd.f32 %v3614, 1e-05
      %v3621 = vrsqrt.pop %v3615
      %v3622 = vrsqrt.pop %v3616
      %v3623 = vrsqrt.pop %v3617
      %v3624 = vrsqrt.pop %v3618
      %v3625 = vrsqrt.pop %v3619
      %v3626 = vrsqrt.pop %v3620
      %v3627 = vmul.f32 %v3561, %v3621
      %v3628 = vmul.f32 %v3562, %v3621
      %v3629 = vmul.f32 %v3563, %v3622
      %v3630 = vmul.f32 %v3564, %v3622
      %v3631 = vmul.f32 %v3565, %v3623
      %v3632 = vmul.f32 %v3566, %v3623
      %v3633 = vmul.f32 %v3567, %v3624
      %v3634 = vmul.f32 %v3568, %v3624
      %v3635 = vmul.f32 %v3569, %v3625
      %v3636 = vmul.f32 %v3570, %v3625
      %v3637 = vmul.f32 %v3571, %v3626
      %v3638 = vmul.f32 %v3572, %v3626
      %v3640 = vlaneseq
      %v3641 = vshrl.u32 %v3640, 7
      %v3642 = vsub.s32 2, %v3641
      %v3643 = vrot.slane %v450, %v3642
      %v3644 = vlaneseq
      %v3645 = vshrl.u32 %v3644, 7
      %v3646 = vsub.s32 6, %v3645
      %v3647 = vrot.slane %v450, %v3646
      %v3650 = vlaneseq
      %v3651 = vshrl.u32 %v3650, 7
      %v3652 = vsub.s32 2, %v3651
      %v3653 = vrot.slane %v3643, %v3652
      %v3654 = vlaneseq
      %v3655 = vshrl.u32 %v3654, 7
      %v3656 = vsub.s32 2, %v3655
      %v3657 = vrot.slane %v3647, %v3656
      %v3658 = vmul.f32 %v3627, %v3653
      %v3659 = vmul.f32 %v3628, %v3657
      %v3660 = vmul.f32 %v3629, %v3653
      %v3661 = vmul.f32 %v3630, %v3657
      %v3662 = vmul.f32 %v3631, %v3653
      %v3663 = vmul.f32 %v3632, %v3657
      %v3664 = vmul.f32 %v3633, %v3653
      %v3665 = vmul.f32 %v3634, %v3657
      %v3666 = vmul.f32 %v3635, %v3653
      %v3667 = vmul.f32 %v3636, %v3657
      %v3668 = vmul.f32 %v3637, %v3653
      %v3669 = vmul.f32 %v3638, %v3657
      %v3671 = vlaneseq
      %v3672 = vshrl.u32 %v3671, 7
      %v3673 = vsub.s32 2, %v3672
      %v3674 = vrot.slane %v451, %v3673
      %v3675 = vlaneseq
      %v3676 = vshrl.u32 %v3675, 7
      %v3677 = vsub.s32 6, %v3676
      %v3678 = vrot.slane %v451, %v3677
      %v3681 = vlaneseq
      %v3682 = vshrl.u32 %v3681, 7
      %v3683 = vsub.s32 2, %v3682
      %v3684 = vrot.slane %v3674, %v3683
      %v3685 = vlaneseq
      %v3686 = vshrl.u32 %v3685, 7
      %v3687 = vsub.s32 2, %v3686
      %v3688 = vrot.slane %v3678, %v3687
      %v3689 = vadd.f32 %v3658, %v3684
      %v3690 = vadd.f32 %v3659, %v3688
      %v3691 = vadd.f32 %v3660, %v3684
      %v3692 = vadd.f32 %v3661, %v3688
      %v3693 = vadd.f32 %v3662, %v3684
      %v3694 = vadd.f32 %v3663, %v3688
      %v3695 = vadd.f32 %v3664, %v3684
      %v3696 = vadd.f32 %v3665, %v3688
      %v3697 = vadd.f32 %v3666, %v3684
      %v3698 = vadd.f32 %v3667, %v3688
      %v3699 = vadd.f32 %v3668, %v3684
      %v3700 = vadd.f32 %v3669, %v3688
      %v3701 = vld [vmem:[%s387] sm:$0xff]
      %v3702 = vld [vmem:[%s387 + $0x8] sm:$0xff]
      %v3703 = vld [vmem:[%s387 + $0x10] sm:$0xff]
      %v3704 = vld [vmem:[%s387 + $0x18] sm:$0xff]
      %v3705 = vld [vmem:[%s387 + $0x20] sm:$0xff]
      %v3706 = vld [vmem:[%s387 + $0x28] sm:$0xff]
      %v3707 = vld [vmem:[%s387 + $0x30] sm:$0xff]
      %v3708 = vld [vmem:[%s387 + $0x38] sm:$0xff]
      %v3709 = vld [vmem:[%s387 + $0x40] sm:$0xff]
      %v3710 = vld [vmem:[%s387 + $0x48] sm:$0xff]
      %v3711 = vld [vmem:[%s387 + $0x50] sm:$0xff]
      %v3712 = vld [vmem:[%s387 + $0x58] sm:$0xff]
      %v3713 = vld [vmem:[%s387 + $0x60] sm:$0xff]
      %v3714 = vld [vmem:[%s387 + $0x68] sm:$0xff]
      %v3715 = vld [vmem:[%s387 + $0x70] sm:$0xff]
      %v3716 = vld [vmem:[%s387 + $0x78] sm:$0xff]
      %v3717 = vld [vmem:[%s387 + $0x80] sm:$0xff]
      %v3718 = vld [vmem:[%s387 + $0x88] sm:$0xff]
      %v3719 = vld [vmem:[%s387 + $0x90] sm:$0xff]
      %v3720 = vld [vmem:[%s387 + $0x98] sm:$0xff]
      %v3721 = vld [vmem:[%s387 + $0xa0] sm:$0xff]
      %v3722 = vld [vmem:[%s387 + $0xa8] sm:$0xff]
      %v3723 = vld [vmem:[%s387 + $0xb0] sm:$0xff]
      %v3724 = vld [vmem:[%s387 + $0xb8] sm:$0xff]
      %v3725 = vld [vmem:[%s387 + $0xc0] sm:$0xff]
      %v3726 = vld [vmem:[%s387 + $0xc8] sm:$0xff]
      %v3727 = vld [vmem:[%s387 + $0xd0] sm:$0xff]
      %v3728 = vld [vmem:[%s387 + $0xd8] sm:$0xff]
      %v3729 = vld [vmem:[%s387 + $0xe0] sm:$0xff]
      %v3730 = vld [vmem:[%s387 + $0xe8] sm:$0xff]
      %v3731 = vld [vmem:[%s387 + $0xf0] sm:$0xff]
      %v3732 = vld [vmem:[%s387 + $0xf8] sm:$0xff]
      %v3733 = vld [vmem:[%s387 + $0x100] sm:$0xff]
      %v3734 = vld [vmem:[%s387 + $0x108] sm:$0xff]
      %v3735 = vld [vmem:[%s387 + $0x110] sm:$0xff]
      %v3736 = vld [vmem:[%s387 + $0x118] sm:$0xff]
      %v3737 = vld [vmem:[%s387 + $0x120] sm:$0xff]
      %v3738 = vld [vmem:[%s387 + $0x128] sm:$0xff]
      %v3739 = vld [vmem:[%s387 + $0x130] sm:$0xff]
      %v3740 = vld [vmem:[%s387 + $0x138] sm:$0xff]
      %v3741 = vld [vmem:[%s387 + $0x140] sm:$0xff]
      %v3742 = vld [vmem:[%s387 + $0x148] sm:$0xff]
      %v3743 = vld [vmem:[%s387 + $0x150] sm:$0xff]
      %v3744 = vld [vmem:[%s387 + $0x158] sm:$0xff]
      %v3745 = vld [vmem:[%s387 + $0x160] sm:$0xff]
      %v3746 = vld [vmem:[%s387 + $0x168] sm:$0xff]
      %v3747 = vld [vmem:[%s387 + $0x170] sm:$0xff]
      %v3748 = vld [vmem:[%s387 + $0x178] sm:$0xff]
      %v3749 = vld [vmem:[%s387 + $0x180] sm:$0xff]
      %v3750 = vld [vmem:[%s387 + $0x188] sm:$0xff]
      %v3751 = vld [vmem:[%s387 + $0x190] sm:$0xff]
      %v3752 = vld [vmem:[%s387 + $0x198] sm:$0xff]
      %v3753 = vld [vmem:[%s387 + $0x1a0] sm:$0xff]
      %v3754 = vld [vmem:[%s387 + $0x1a8] sm:$0xff]
      %v3755 = vld [vmem:[%s387 + $0x1b0] sm:$0xff]
      %v3756 = vld [vmem:[%s387 + $0x1b8] sm:$0xff]
      %v3757 = vld [vmem:[%s387 + $0x1c0] sm:$0xff]
      %v3758 = vld [vmem:[%s387 + $0x1c8] sm:$0xff]
      %v3759 = vld [vmem:[%s387 + $0x1d0] sm:$0xff]
      %v3760 = vld [vmem:[%s387 + $0x1d8] sm:$0xff]
      %v3761 = vld [vmem:[%s387 + $0x1e0] sm:$0xff]
      %v3762 = vld [vmem:[%s387 + $0x1e8] sm:$0xff]
      %v3763 = vld [vmem:[%s387 + $0x1f0] sm:$0xff]
      %v3764 = vld [vmem:[%s387 + $0x1f8] sm:$0xff]
      %v3765 = vld [vmem:[%s387 + $0x200] sm:$0xff]
      %v3766 = vld [vmem:[%s387 + $0x208] sm:$0xff]
      %v3767 = vld [vmem:[%s387 + $0x210] sm:$0xff]
      %v3768 = vld [vmem:[%s387 + $0x218] sm:$0xff]
      %v3769 = vld [vmem:[%s387 + $0x220] sm:$0xff]
      %v3770 = vld [vmem:[%s387 + $0x228] sm:$0xff]
      %v3771 = vld [vmem:[%s387 + $0x230] sm:$0xff]
      %v3772 = vld [vmem:[%s387 + $0x238] sm:$0xff]
      %v3773 = vld [vmem:[%s387 + $0x240] sm:$0xff]
      %v3774 = vld [vmem:[%s387 + $0x248] sm:$0xff]
      %v3775 = vld [vmem:[%s387 + $0x250] sm:$0xff]
      %v3776 = vld [vmem:[%s387 + $0x258] sm:$0xff]
      %v3777 = vld [vmem:[%s387 + $0x260] sm:$0xff]
      %v3778 = vld [vmem:[%s387 + $0x268] sm:$0xff]
      %v3779 = vld [vmem:[%s387 + $0x270] sm:$0xff]
      %v3780 = vld [vmem:[%s387 + $0x278] sm:$0xff]
      %v3781 = vld [vmem:[%s387 + $0x280] sm:$0xff]
      %v3782 = vld [vmem:[%s387 + $0x288] sm:$0xff]
      %v3783 = vld [vmem:[%s387 + $0x290] sm:$0xff]
      %v3784 = vld [vmem:[%s387 + $0x298] sm:$0xff]
      %v3785 = vld [vmem:[%s387 + $0x2a0] sm:$0xff]
      %v3786 = vld [vmem:[%s387 + $0x2a8] sm:$0xff]
      %v3787 = vld [vmem:[%s387 + $0x2b0] sm:$0xff]
      %v3788 = vld [vmem:[%s387 + $0x2b8] sm:$0xff]
      %v3789 = vld [vmem:[%s387 + $0x2c0] sm:$0xff]
      %v3790 = vld [vmem:[%s387 + $0x2c8] sm:$0xff]
      %v3791 = vld [vmem:[%s387 + $0x2d0] sm:$0xff]
      %v3792 = vld [vmem:[%s387 + $0x2d8] sm:$0xff]
      %v3793 = vld [vmem:[%s387 + $0x2e0] sm:$0xff]
      %v3794 = vld [vmem:[%s387 + $0x2e8] sm:$0xff]
      %v3795 = vld [vmem:[%s387 + $0x2f0] sm:$0xff]
      %v3796 = vld [vmem:[%s387 + $0x2f8] sm:$0xff]
      %v3797 = vld [vmem:[%s387 + $0x300] sm:$0xff]
      %v3798 = vld [vmem:[%s387 + $0x308] sm:$0xff]
      %v3799 = vld [vmem:[%s387 + $0x310] sm:$0xff]
      %v3800 = vld [vmem:[%s387 + $0x318] sm:$0xff]
      %v3801 = vunpack.c.l.s8.bf16 %v3701
      %v3802 = vunpack.c.h.s8.bf16 %v3701
      %v3803 = vunpack.c.l.s8.bf16 %v3702
      %v3804 = vunpack.c.h.s8.bf16 %v3702
      %v3805 = vunpack.c.l.s8.bf16 %v3703
      %v3806 = vunpack.c.h.s8.bf16 %v3703
      %v3807 = vunpack.c.l.s8.bf16 %v3704
      %v3808 = vunpack.c.h.s8.bf16 %v3704
      %v3809 = vunpack.c.l.s8.bf16 %v3705
      %v3810 = vunpack.c.h.s8.bf16 %v3705
      %v3811 = vunpack.c.l.s8.bf16 %v3706
      %v3812 = vunpack.c.h.s8.bf16 %v3706
      %v3813 = vunpack.c.l.s8.bf16 %v3707
      %v3814 = vunpack.c.h.s8.bf16 %v3707
      %v3815 = vunpack.c.l.s8.bf16 %v3708
      %v3816 = vunpack.c.h.s8.bf16 %v3708
      %v3817 = vunpack.c.l.s8.bf16 %v3709
      %v3818 = vunpack.c.h.s8.bf16 %v3709
      %v3819 = vunpack.c.l.s8.bf16 %v3710
      %v3820 = vunpack.c.h.s8.bf16 %v3710
      %v3821 = vunpack.c.l.s8.bf16 %v3711
      %v3822 = vunpack.c.h.s8.bf16 %v3711
      %v3823 = vunpack.c.l.s8.bf16 %v3712
      %v3824 = vunpack.c.h.s8.bf16 %v3712
      %v3825 = vunpack.c.l.s8.bf16 %v3713
      %v3826 = vunpack.c.h.s8.bf16 %v3713
      %v3827 = vunpack.c.l.s8.bf16 %v3714
      %v3828 = vunpack.c.h.s8.bf16 %v3714
      %v3829 = vunpack.c.l.s8.bf16 %v3715
      %v3830 = vunpack.c.h.s8.bf16 %v3715
      %v3831 = vunpack.c.l.s8.bf16 %v3716
      %v3832 = vunpack.c.h.s8.bf16 %v3716
      %v3833 = vunpack.c.l.s8.bf16 %v3717
      %v3834 = vunpack.c.h.s8.bf16 %v3717
      %v3835 = vunpack.c.l.s8.bf16 %v3718
      %v3836 = vunpack.c.h.s8.bf16 %v3718
      %v3837 = vunpack.c.l.s8.bf16 %v3719
      %v3838 = vunpack.c.h.s8.bf16 %v3719
      %v3839 = vunpack.c.l.s8.bf16 %v3720
      %v3840 = vunpack.c.h.s8.bf16 %v3720
      %v3841 = vunpack.c.l.s8.bf16 %v3721
      %v3842 = vunpack.c.h.s8.bf16 %v3721
      %v3843 = vunpack.c.l.s8.bf16 %v3722
      %v3844 = vunpack.c.h.s8.bf16 %v3722
      %v3845 = vunpack.c.l.s8.bf16 %v3723
      %v3846 = vunpack.c.h.s8.bf16 %v3723
      %v3847 = vunpack.c.l.s8.bf16 %v3724
      %v3848 = vunpack.c.h.s8.bf16 %v3724
      %v3849 = vunpack.c.l.s8.bf16 %v3725
      %v3850 = vunpack.c.h.s8.bf16 %v3725
      %v3851 = vunpack.c.l.s8.bf16 %v3726
      %v3852 = vunpack.c.h.s8.bf16 %v3726
      %v3853 = vunpack.c.l.s8.bf16 %v3727
      %v3854 = vunpack.c.h.s8.bf16 %v3727
      %v3855 = vunpack.c.l.s8.bf16 %v3728
      %v3856 = vunpack.c.h.s8.bf16 %v3728
      %v3857 = vunpack.c.l.s8.bf16 %v3729
      %v3858 = vunpack.c.h.s8.bf16 %v3729
      %v3859 = vunpack.c.l.s8.bf16 %v3730
      %v3860 = vunpack.c.h.s8.bf16 %v3730
      %v3861 = vunpack.c.l.s8.bf16 %v3731
      %v3862 = vunpack.c.h.s8.bf16 %v3731
      %v3863 = vunpack.c.l.s8.bf16 %v3732
      %v3864 = vunpack.c.h.s8.bf16 %v3732
      %v3865 = vunpack.c.l.s8.bf16 %v3733
      %v3866 = vunpack.c.h.s8.bf16 %v3733
      %v3867 = vunpack.c.l.s8.bf16 %v3734
      %v3868 = vunpack.c.h.s8.bf16 %v3734
      %v3869 = vunpack.c.l.s8.bf16 %v3735
      %v3870 = vunpack.c.h.s8.bf16 %v3735
      %v3871 = vunpack.c.l.s8.bf16 %v3736
      %v3872 = vunpack.c.h.s8.bf16 %v3736
      %v3873 = vunpack.c.l.s8.bf16 %v3737
      %v3874 = vunpack.c.h.s8.bf16 %v3737
      %v3875 = vunpack.c.l.s8.bf16 %v3738
      %v3876 = vunpack.c.h.s8.bf16 %v3738
      %v3877 = vunpack.c.l.s8.bf16 %v3739
      %v3878 = vunpack.c.h.s8.bf16 %v3739
      %v3879 = vunpack.c.l.s8.bf16 %v3740
      %v3880 = vunpack.c.h.s8.bf16 %v3740
      %v3881 = vunpack.c.l.s8.bf16 %v3741
      %v3882 = vunpack.c.h.s8.bf16 %v3741
      %v3883 = vunpack.c.l.s8.bf16 %v3742
      %v3884 = vunpack.c.h.s8.bf16 %v3742
      %v3885 = vunpack.c.l.s8.bf16 %v3743
      %v3886 = vunpack.c.h.s8.bf16 %v3743
      %v3887 = vunpack.c.l.s8.bf16 %v3744
      %v3888 = vunpack.c.h.s8.bf16 %v3744
      %v3889 = vunpack.c.l.s8.bf16 %v3745
      %v3890 = vunpack.c.h.s8.bf16 %v3745
      %v3891 = vunpack.c.l.s8.bf16 %v3746
      %v3892 = vunpack.c.h.s8.bf16 %v3746
      %v3893 = vunpack.c.l.s8.bf16 %v3747
      %v3894 = vunpack.c.h.s8.bf16 %v3747
      %v3895 = vunpack.c.l.s8.bf16 %v3748
      %v3896 = vunpack.c.h.s8.bf16 %v3748
      %v3897 = vunpack.c.l.s8.bf16 %v3749
      %v3898 = vunpack.c.h.s8.bf16 %v3749
      %v3899 = vunpack.c.l.s8.bf16 %v3750
      %v3900 = vunpack.c.h.s8.bf16 %v3750
      %v3901 = vunpack.c.l.s8.bf16 %v3751
      %v3902 = vunpack.c.h.s8.bf16 %v3751
      %v3903 = vunpack.c.l.s8.bf16 %v3752
      %v3904 = vunpack.c.h.s8.bf16 %v3752
      %v3905 = vunpack.c.l.s8.bf16 %v3753
      %v3906 = vunpack.c.h.s8.bf16 %v3753
      %v3907 = vunpack.c.l.s8.bf16 %v3754
      %v3908 = vunpack.c.h.s8.bf16 %v3754
      %v3909 = vunpack.c.l.s8.bf16 %v3755
      %v3910 = vunpack.c.h.s8.bf16 %v3755
      %v3911 = vunpack.c.l.s8.bf16 %v3756
      %v3912 = vunpack.c.h.s8.bf16 %v3756
      %v3913 = vunpack.c.l.s8.bf16 %v3757
      %v3914 = vunpack.c.h.s8.bf16 %v3757
      %v3915 = vunpack.c.l.s8.bf16 %v3758
      %v3916 = vunpack.c.h.s8.bf16 %v3758
      %v3917 = vunpack.c.l.s8.bf16 %v3759
      %v3918 = vunpack.c.h.s8.bf16 %v3759
      %v3919 = vunpack.c.l.s8.bf16 %v3760
      %v3920 = vunpack.c.h.s8.bf16 %v3760
      %v3921 = vunpack.c.l.s8.bf16 %v3761
      %v3922 = vunpack.c.h.s8.bf16 %v3761
      %v3923 = vunpack.c.l.s8.bf16 %v3762
      %v3924 = vunpack.c.h.s8.bf16 %v3762
      %v3925 = vunpack.c.l.s8.bf16 %v3763
      %v3926 = vunpack.c.h.s8.bf16 %v3763
      %v3927 = vunpack.c.l.s8.bf16 %v3764
      %v3928 = vunpack.c.h.s8.bf16 %v3764
      %v3929 = vunpack.c.l.s8.bf16 %v3765
      %v3930 = vunpack.c.h.s8.bf16 %v3765
      %v3931 = vunpack.c.l.s8.bf16 %v3766
      %v3932 = vunpack.c.h.s8.bf16 %v3766
      %v3933 = vunpack.c.l.s8.bf16 %v3767
      %v3934 = vunpack.c.h.s8.bf16 %v3767
      %v3935 = vunpack.c.l.s8.bf16 %v3768
      %v3936 = vunpack.c.h.s8.bf16 %v3768
      %v3937 = vunpack.c.l.s8.bf16 %v3769
      %v3938 = vunpack.c.h.s8.bf16 %v3769
      %v3939 = vunpack.c.l.s8.bf16 %v3770
      %v3940 = vunpack.c.h.s8.bf16 %v3770
      %v3941 = vunpack.c.l.s8.bf16 %v3771
      %v3942 = vunpack.c.h.s8.bf16 %v3771
      %v3943 = vunpack.c.l.s8.bf16 %v3772
      %v3944 = vunpack.c.h.s8.bf16 %v3772
      %v3945 = vunpack.c.l.s8.bf16 %v3773
      %v3946 = vunpack.c.h.s8.bf16 %v3773
      %v3947 = vunpack.c.l.s8.bf16 %v3774
      %v3948 = vunpack.c.h.s8.bf16 %v3774
      %v3949 = vunpack.c.l.s8.bf16 %v3775
      %v3950 = vunpack.c.h.s8.bf16 %v3775
      %v3951 = vunpack.c.l.s8.bf16 %v3776
      %v3952 = vunpack.c.h.s8.bf16 %v3776
      %v3953 = vunpack.c.l.s8.bf16 %v3777
      %v3954 = vunpack.c.h.s8.bf16 %v3777
      %v3955 = vunpack.c.l.s8.bf16 %v3778
      %v3956 = vunpack.c.h.s8.bf16 %v3778
      %v3957 = vunpack.c.l.s8.bf16 %v3779
      %v3958 = vunpack.c.h.s8.bf16 %v3779
      %v3959 = vunpack.c.l.s8.bf16 %v3780
      %v3960 = vunpack.c.h.s8.bf16 %v3780
      %v3961 = vunpack.c.l.s8.bf16 %v3781
      %v3962 = vunpack.c.h.s8.bf16 %v3781
      %v3963 = vunpack.c.l.s8.bf16 %v3782
      %v3964 = vunpack.c.h.s8.bf16 %v3782
      %v3965 = vunpack.c.l.s8.bf16 %v3783
      %v3966 = vunpack.c.h.s8.bf16 %v3783
      %v3967 = vunpack.c.l.s8.bf16 %v3784
      %v3968 = vunpack.c.h.s8.bf16 %v3784
      %v3969 = vunpack.c.l.s8.bf16 %v3785
      %v3970 = vunpack.c.h.s8.bf16 %v3785
      %v3971 = vunpack.c.l.s8.bf16 %v3786
      %v3972 = vunpack.c.h.s8.bf16 %v3786
      %v3973 = vunpack.c.l.s8.bf16 %v3787
      %v3974 = vunpack.c.h.s8.bf16 %v3787
      %v3975 = vunpack.c.l.s8.bf16 %v3788
      %v3976 = vunpack.c.h.s8.bf16 %v3788
      %v3977 = vunpack.c.l.s8.bf16 %v3789
      %v3978 = vunpack.c.h.s8.bf16 %v3789
      %v3979 = vunpack.c.l.s8.bf16 %v3790
      %v3980 = vunpack.c.h.s8.bf16 %v3790
      %v3981 = vunpack.c.l.s8.bf16 %v3791
      %v3982 = vunpack.c.h.s8.bf16 %v3791
      %v3983 = vunpack.c.l.s8.bf16 %v3792
      %v3984 = vunpack.c.h.s8.bf16 %v3792
      %v3985 = vunpack.c.l.s8.bf16 %v3793
      %v3986 = vunpack.c.h.s8.bf16 %v3793
      %v3987 = vunpack.c.l.s8.bf16 %v3794
      %v3988 = vunpack.c.h.s8.bf16 %v3794
      %v3989 = vunpack.c.l.s8.bf16 %v3795
      %v3990 = vunpack.c.h.s8.bf16 %v3795
      %v3991 = vunpack.c.l.s8.bf16 %v3796
      %v3992 = vunpack.c.h.s8.bf16 %v3796
      %v3993 = vunpack.c.l.s8.bf16 %v3797
      %v3994 = vunpack.c.h.s8.bf16 %v3797
      %v3995 = vunpack.c.l.s8.bf16 %v3798
      %v3996 = vunpack.c.h.s8.bf16 %v3798
      %v3997 = vunpack.c.l.s8.bf16 %v3799
      %v3998 = vunpack.c.h.s8.bf16 %v3799
      %v3999 = vunpack.c.l.s8.bf16 %v3800
      %v4000 = vunpack.c.h.s8.bf16 %v3800
      %v4001 = vpack.c.bf16 %v3691, %v3689
      %v4002 = vpack.c.bf16 %v3692, %v3690
      %v4003 = vpack.c.bf16 %v3695, %v3693
      %v4004 = vpack.c.bf16 %v3696, %v3694
      %v4005 = vpack.c.bf16 %v3699, %v3697
      %v4006 = vpack.c.bf16 %v3700, %v3698
      %v4207 = vunpack.c.l.b16 %v3801
      %v4208 = vunpack.c.h.b16 %v3801
      %v4209 = vunpack.c.l.b16 %v3802
      %v4210 = vunpack.c.h.b16 %v3802
      %v4211 = vunpack.c.l.b16 %v3803
      %v4212 = vunpack.c.h.b16 %v3803
      %v4213 = vunpack.c.l.b16 %v3804
      %v4214 = vunpack.c.h.b16 %v3804
      %v4215 = vunpack.c.l.b16 %v3805
      %v4216 = vunpack.c.h.b16 %v3805
      %v4217 = vunpack.c.l.b16 %v3806
      %v4218 = vunpack.c.h.b16 %v3806
      %v4219 = vunpack.c.l.b16 %v3807
      %v4220 = vunpack.c.h.b16 %v3807
      %v4221 = vunpack.c.l.b16 %v3808
      %v4222 = vunpack.c.h.b16 %v3808
      %v4223 = vunpack.c.l.b16 %v3809
      %v4224 = vunpack.c.h.b16 %v3809
      %v4225 = vunpack.c.l.b16 %v3810
      %v4226 = vunpack.c.h.b16 %v3810
      %v4227 = vunpack.c.l.b16 %v3811
      %v4228 = vunpack.c.h.b16 %v3811
      %v4229 = vunpack.c.l.b16 %v3812
      %v4230 = vunpack.c.h.b16 %v3812
      %v4231 = vunpack.c.l.b16 %v3813
      %v4232 = vunpack.c.h.b16 %v3813
      %v4233 = vunpack.c.l.b16 %v3814
      %v4234 = vunpack.c.h.b16 %v3814
      %v4235 = vunpack.c.l.b16 %v3815
      %v4236 = vunpack.c.h.b16 %v3815
      %v4237 = vunpack.c.l.b16 %v3816
      %v4238 = vunpack.c.h.b16 %v3816
      %v4239 = vunpack.c.l.b16 %v3817
      %v4240 = vunpack.c.h.b16 %v3817
      %v4241 = vunpack.c.l.b16 %v3818
      %v4242 = vunpack.c.h.b16 %v3818
      %v4243 = vunpack.c.l.b16 %v3819
      %v4244 = vunpack.c.h.b16 %v3819
      %v4245 = vunpack.c.l.b16 %v3820
      %v4246 = vunpack.c.h.b16 %v3820
      %v4247 = vunpack.c.l.b16 %v3821
      %v4248 = vunpack.c.h.b16 %v3821
      %v4249 = vunpack.c.l.b16 %v3822
      %v4250 = vunpack.c.h.b16 %v3822
      %v4251 = vunpack.c.l.b16 %v3823
      %v4252 = vunpack.c.h.b16 %v3823
      %v4253 = vunpack.c.l.b16 %v3824
      %v4254 = vunpack.c.h.b16 %v3824
      %v4255 = vunpack.c.l.b16 %v3825
      %v4256 = vunpack.c.h.b16 %v3825
      %v4257 = vunpack.c.l.b16 %v3826
      %v4258 = vunpack.c.h.b16 %v3826
      %v4259 = vunpack.c.l.b16 %v3827
      %v4260 = vunpack.c.h.b16 %v3827
      %v4261 = vunpack.c.l.b16 %v3828
      %v4262 = vunpack.c.h.b16 %v3828
      %v4263 = vunpack.c.l.b16 %v3829
      %v4264 = vunpack.c.h.b16 %v3829
      %v4265 = vunpack.c.l.b16 %v3830
      %v4266 = vunpack.c.h.b16 %v3830
      %v4267 = vunpack.c.l.b16 %v3831
      %v4268 = vunpack.c.h.b16 %v3831
      %v4269 = vunpack.c.l.b16 %v3832
      %v4270 = vunpack.c.h.b16 %v3832
      %v4271 = vunpack.c.l.b16 %v3833
      %v4272 = vunpack.c.h.b16 %v3833
      %v4273 = vunpack.c.l.b16 %v3834
      %v4274 = vunpack.c.h.b16 %v3834
      %v4275 = vunpack.c.l.b16 %v3835
      %v4276 = vunpack.c.h.b16 %v3835
      %v4277 = vunpack.c.l.b16 %v3836
      %v4278 = vunpack.c.h.b16 %v3836
      %v4279 = vunpack.c.l.b16 %v3837
      %v4280 = vunpack.c.h.b16 %v3837
      %v4281 = vunpack.c.l.b16 %v3838
      %v4282 = vunpack.c.h.b16 %v3838
      %v4283 = vunpack.c.l.b16 %v3839
      %v4284 = vunpack.c.h.b16 %v3839
      %v4285 = vunpack.c.l.b16 %v3840
      %v4286 = vunpack.c.h.b16 %v3840
      %v4287 = vunpack.c.l.b16 %v3841
      %v4288 = vunpack.c.h.b16 %v3841
      %v4289 = vunpack.c.l.b16 %v3842
      %v4290 = vunpack.c.h.b16 %v3842
      %v4291 = vunpack.c.l.b16 %v3843
      %v4292 = vunpack.c.h.b16 %v3843
      %v4293 = vunpack.c.l.b16 %v3844
      %v4294 = vunpack.c.h.b16 %v3844
      %v4295 = vunpack.c.l.b16 %v3845
      %v4296 = vunpack.c.h.b16 %v3845
      %v4297 = vunpack.c.l.b16 %v3846
      %v4298 = vunpack.c.h.b16 %v3846
      %v4299 = vunpack.c.l.b16 %v3847
      %v4300 = vunpack.c.h.b16 %v3847
      %v4301 = vunpack.c.l.b16 %v3848
      %v4302 = vunpack.c.h.b16 %v3848
      %v4303 = vunpack.c.l.b16 %v3849
      %v4304 = vunpack.c.h.b16 %v3849
      %v4305 = vunpack.c.l.b16 %v3850
      %v4306 = vunpack.c.h.b16 %v3850
      %v4307 = vunpack.c.l.b16 %v3851
      %v4308 = vunpack.c.h.b16 %v3851
      %v4309 = vunpack.c.l.b16 %v3852
      %v4310 = vunpack.c.h.b16 %v3852
      %v4311 = vunpack.c.l.b16 %v3853
      %v4312 = vunpack.c.h.b16 %v3853
      %v4313 = vunpack.c.l.b16 %v3854
      %v4314 = vunpack.c.h.b16 %v3854
      %v4315 = vunpack.c.l.b16 %v3855
      %v4316 = vunpack.c.h.b16 %v3855
      %v4317 = vunpack.c.l.b16 %v3856
      %v4318 = vunpack.c.h.b16 %v3856
      %v4319 = vunpack.c.l.b16 %v3857
      %v4320 = vunpack.c.h.b16 %v3857
      %v4321 = vunpack.c.l.b16 %v3858
      %v4322 = vunpack.c.h.b16 %v3858
      %v4323 = vunpack.c.l.b16 %v3859
      %v4324 = vunpack.c.h.b16 %v3859
      %v4325 = vunpack.c.l.b16 %v3860
      %v4326 = vunpack.c.h.b16 %v3860
      %v4327 = vunpack.c.l.b16 %v3861
      %v4328 = vunpack.c.h.b16 %v3861
      %v4329 = vunpack.c.l.b16 %v3862
      %v4330 = vunpack.c.h.b16 %v3862
      %v4331 = vunpack.c.l.b16 %v3863
      %v4332 = vunpack.c.h.b16 %v3863
      %v4333 = vunpack.c.l.b16 %v3864
      %v4334 = vunpack.c.h.b16 %v3864
      %v4335 = vunpack.c.l.b16 %v3865
      %v4336 = vunpack.c.h.b16 %v3865
      %v4337 = vunpack.c.l.b16 %v3866
      %v4338 = vunpack.c.h.b16 %v3866
      %v4339 = vunpack.c.l.b16 %v3867
      %v4340 = vunpack.c.h.b16 %v3867
      %v4341 = vunpack.c.l.b16 %v3868
      %v4342 = vunpack.c.h.b16 %v3868
      %v4343 = vunpack.c.l.b16 %v3869
      %v4344 = vunpack.c.h.b16 %v3869
      %v4345 = vunpack.c.l.b16 %v3870
      %v4346 = vunpack.c.h.b16 %v3870
      %v4347 = vunpack.c.l.b16 %v3871
      %v4348 = vunpack.c.h.b16 %v3871
      %v4349 = vunpack.c.l.b16 %v3872
      %v4350 = vunpack.c.h.b16 %v3872
      %v4351 = vunpack.c.l.b16 %v3873
      %v4352 = vunpack.c.h.b16 %v3873
      %v4353 = vunpack.c.l.b16 %v3874
      %v4354 = vunpack.c.h.b16 %v3874
      %v4355 = vunpack.c.l.b16 %v3875
      %v4356 = vunpack.c.h.b16 %v3875
      %v4357 = vunpack.c.l.b16 %v3876
      %v4358 = vunpack.c.h.b16 %v3876
      %v4359 = vunpack.c.l.b16 %v3877
      %v4360 = vunpack.c.h.b16 %v3877
      %v4361 = vunpack.c.l.b16 %v3878
      %v4362 = vunpack.c.h.b16 %v3878
      %v4363 = vunpack.c.l.b16 %v3879
      %v4364 = vunpack.c.h.b16 %v3879
      %v4365 = vunpack.c.l.b16 %v3880
      %v4366 = vunpack.c.h.b16 %v3880
      %v4367 = vunpack.c.l.b16 %v3881
      %v4368 = vunpack.c.h.b16 %v3881
      %v4369 = vunpack.c.l.b16 %v3882
      %v4370 = vunpack.c.h.b16 %v3882
      %v4371 = vunpack.c.l.b16 %v3883
      %v4372 = vunpack.c.h.b16 %v3883
      %v4373 = vunpack.c.l.b16 %v3884
      %v4374 = vunpack.c.h.b16 %v3884
      %v4375 = vunpack.c.l.b16 %v3885
      %v4376 = vunpack.c.h.b16 %v3885
      %v4377 = vunpack.c.l.b16 %v3886
      %v4378 = vunpack.c.h.b16 %v3886
      %v4379 = vunpack.c.l.b16 %v3887
      %v4380 = vunpack.c.h.b16 %v3887
      %v4381 = vunpack.c.l.b16 %v3888
      %v4382 = vunpack.c.h.b16 %v3888
      %v4383 = vunpack.c.l.b16 %v3889
      %v4384 = vunpack.c.h.b16 %v3889
      %v4385 = vunpack.c.l.b16 %v3890
      %v4386 = vunpack.c.h.b16 %v3890
      %v4387 = vunpack.c.l.b16 %v3891
      %v4388 = vunpack.c.h.b16 %v3891
      %v4389 = vunpack.c.l.b16 %v3892
      %v4390 = vunpack.c.h.b16 %v3892
      %v4391 = vunpack.c.l.b16 %v3893
      %v4392 = vunpack.c.h.b16 %v3893
      %v4393 = vunpack.c.l.b16 %v3894
      %v4394 = vunpack.c.h.b16 %v3894
      %v4395 = vunpack.c.l.b16 %v3895
      %v4396 = vunpack.c.h.b16 %v3895
      %v4397 = vunpack.c.l.b16 %v3896
      %v4398 = vunpack.c.h.b16 %v3896
      %v4399 = vunpack.c.l.b16 %v3897
      %v4400 = vunpack.c.h.b16 %v3897
      %v4401 = vunpack.c.l.b16 %v3898
      %v4402 = vunpack.c.h.b16 %v3898
      %v4403 = vunpack.c.l.b16 %v3899
      %v4404 = vunpack.c.h.b16 %v3899
      %v4405 = vunpack.c.l.b16 %v3900
      %v4406 = vunpack.c.h.b16 %v3900
      %v4407 = vunpack.c.l.b16 %v3901
      %v4408 = vunpack.c.h.b16 %v3901
      %v4409 = vunpack.c.l.b16 %v3902
      %v4410 = vunpack.c.h.b16 %v3902
      %v4411 = vunpack.c.l.b16 %v3903
      %v4412 = vunpack.c.h.b16 %v3903
      %v4413 = vunpack.c.l.b16 %v3904
      %v4414 = vunpack.c.h.b16 %v3904
      %v4415 = vunpack.c.l.b16 %v3905
      %v4416 = vunpack.c.h.b16 %v3905
      %v4417 = vunpack.c.l.b16 %v3906
      %v4418 = vunpack.c.h.b16 %v3906
      %v4419 = vunpack.c.l.b16 %v3907
      %v4420 = vunpack.c.h.b16 %v3907
      %v4421 = vunpack.c.l.b16 %v3908
      %v4422 = vunpack.c.h.b16 %v3908
      %v4423 = vunpack.c.l.b16 %v3909
      %v4424 = vunpack.c.h.b16 %v3909
      %v4425 = vunpack.c.l.b16 %v3910
      %v4426 = vunpack.c.h.b16 %v3910
      %v4427 = vunpack.c.l.b16 %v3911
      %v4428 = vunpack.c.h.b16 %v3911
      %v4429 = vunpack.c.l.b16 %v3912
      %v4430 = vunpack.c.h.b16 %v3912
      %v4431 = vunpack.c.l.b16 %v3913
      %v4432 = vunpack.c.h.b16 %v3913
      %v4433 = vunpack.c.l.b16 %v3914
      %v4434 = vunpack.c.h.b16 %v3914
      %v4435 = vunpack.c.l.b16 %v3915
      %v4436 = vunpack.c.h.b16 %v3915
      %v4437 = vunpack.c.l.b16 %v3916
      %v4438 = vunpack.c.h.b16 %v3916
      %v4439 = vunpack.c.l.b16 %v3917
      %v4440 = vunpack.c.h.b16 %v3917
      %v4441 = vunpack.c.l.b16 %v3918
      %v4442 = vunpack.c.h.b16 %v3918
      %v4443 = vunpack.c.l.b16 %v3919
      %v4444 = vunpack.c.h.b16 %v3919
      %v4445 = vunpack.c.l.b16 %v3920
      %v4446 = vunpack.c.h.b16 %v3920
      %v4447 = vunpack.c.l.b16 %v3921
      %v4448 = vunpack.c.h.b16 %v3921
      %v4449 = vunpack.c.l.b16 %v3922
      %v4450 = vunpack.c.h.b16 %v3922
      %v4451 = vunpack.c.l.b16 %v3923
      %v4452 = vunpack.c.h.b16 %v3923
      %v4453 = vunpack.c.l.b16 %v3924
      %v4454 = vunpack.c.h.b16 %v3924
      %v4455 = vunpack.c.l.b16 %v3925
      %v4456 = vunpack.c.h.b16 %v3925
      %v4457 = vunpack.c.l.b16 %v3926
      %v4458 = vunpack.c.h.b16 %v3926
      %v4459 = vunpack.c.l.b16 %v3927
      %v4460 = vunpack.c.h.b16 %v3927
      %v4461 = vunpack.c.l.b16 %v3928
      %v4462 = vunpack.c.h.b16 %v3928
      %v4463 = vunpack.c.l.b16 %v3929
      %v4464 = vunpack.c.h.b16 %v3929
      %v4465 = vunpack.c.l.b16 %v3930
      %v4466 = vunpack.c.h.b16 %v3930
      %v4467 = vunpack.c.l.b16 %v3931
      %v4468 = vunpack.c.h.b16 %v3931
      %v4469 = vunpack.c.l.b16 %v3932
      %v4470 = vunpack.c.h.b16 %v3932
      %v4471 = vunpack.c.l.b16 %v3933
      %v4472 = vunpack.c.h.b16 %v3933
      %v4473 = vunpack.c.l.b16 %v3934
      %v4474 = vunpack.c.h.b16 %v3934
      %v4475 = vunpack.c.l.b16 %v3935
      %v4476 = vunpack.c.h.b16 %v3935
      %v4477 = vunpack.c.l.b16 %v3936
      %v4478 = vunpack.c.h.b16 %v3936
      %v4479 = vunpack.c.l.b16 %v3937
      %v4480 = vunpack.c.h.b16 %v3937
      %v4481 = vunpack.c.l.b16 %v3938
      %v4482 = vunpack.c.h.b16 %v3938
      %v4483 = vunpack.c.l.b16 %v3939
      %v4484 = vunpack.c.h.b16 %v3939
      %v4485 = vunpack.c.l.b16 %v3940
      %v4486 = vunpack.c.h.b16 %v3940
      %v4487 = vunpack.c.l.b16 %v3941
      %v4488 = vunpack.c.h.b16 %v3941
      %v4489 = vunpack.c.l.b16 %v3942
      %v4490 = vunpack.c.h.b16 %v3942
      %v4491 = vunpack.c.l.b16 %v3943
      %v4492 = vunpack.c.h.b16 %v3943
      %v4493 = vunpack.c.l.b16 %v3944
      %v4494 = vunpack.c.h.b16 %v3944
      %v4495 = vunpack.c.l.b16 %v3945
      %v4496 = vunpack.c.h.b16 %v3945
      %v4497 = vunpack.c.l.b16 %v3946
      %v4498 = vunpack.c.h.b16 %v3946
      %v4499 = vunpack.c.l.b16 %v3947
      %v4500 = vunpack.c.h.b16 %v3947
      %v4501 = vunpack.c.l.b16 %v3948
      %v4502 = vunpack.c.h.b16 %v3948
      %v4503 = vunpack.c.l.b16 %v3949
      %v4504 = vunpack.c.h.b16 %v3949
      %v4505 = vunpack.c.l.b16 %v3950
      %v4506 = vunpack.c.h.b16 %v3950
      %v4507 = vunpack.c.l.b16 %v3951
      %v4508 = vunpack.c.h.b16 %v3951
      %v4509 = vunpack.c.l.b16 %v3952
      %v4510 = vunpack.c.h.b16 %v3952
      %v4511 = vunpack.c.l.b16 %v3953
      %v4512 = vunpack.c.h.b16 %v3953
      %v4513 = vunpack.c.l.b16 %v3954
      %v4514 = vunpack.c.h.b16 %v3954
      %v4515 = vunpack.c.l.b16 %v3955
      %v4516 = vunpack.c.h.b16 %v3955
      %v4517 = vunpack.c.l.b16 %v3956
      %v4518 = vunpack.c.h.b16 %v3956
      %v4519 = vunpack.c.l.b16 %v3957
      %v4520 = vunpack.c.h.b16 %v3957
      %v4521 = vunpack.c.l.b16 %v3958
      %v4522 = vunpack.c.h.b16 %v3958
      %v4523 = vunpack.c.l.b16 %v3959
      %v4524 = vunpack.c.h.b16 %v3959
      %v4525 = vunpack.c.l.b16 %v3960
      %v4526 = vunpack.c.h.b16 %v3960
      %v4527 = vunpack.c.l.b16 %v3961
      %v4528 = vunpack.c.h.b16 %v3961
      %v4529 = vunpack.c.l.b16 %v3962
      %v4530 = vunpack.c.h.b16 %v3962
      %v4531 = vunpack.c.l.b16 %v3963
      %v4532 = vunpack.c.h.b16 %v3963
      %v4533 = vunpack.c.l.b16 %v3964
      %v4534 = vunpack.c.h.b16 %v3964
      %v4535 = vunpack.c.l.b16 %v3965
      %v4536 = vunpack.c.h.b16 %v3965
      %v4537 = vunpack.c.l.b16 %v3966
      %v4538 = vunpack.c.h.b16 %v3966
      %v4539 = vunpack.c.l.b16 %v3967
      %v4540 = vunpack.c.h.b16 %v3967
      %v4541 = vunpack.c.l.b16 %v3968
      %v4542 = vunpack.c.h.b16 %v3968
      %v4543 = vunpack.c.l.b16 %v3969
      %v4544 = vunpack.c.h.b16 %v3969
      %v4545 = vunpack.c.l.b16 %v3970
      %v4546 = vunpack.c.h.b16 %v3970
      %v4547 = vunpack.c.l.b16 %v3971
      %v4548 = vunpack.c.h.b16 %v3971
      %v4549 = vunpack.c.l.b16 %v3972
      %v4550 = vunpack.c.h.b16 %v3972
      %v4551 = vunpack.c.l.b16 %v3973
      %v4552 = vunpack.c.h.b16 %v3973
      %v4553 = vunpack.c.l.b16 %v3974
      %v4554 = vunpack.c.h.b16 %v3974
      %v4555 = vunpack.c.l.b16 %v3975
      %v4556 = vunpack.c.h.b16 %v3975
      %v4557 = vunpack.c.l.b16 %v3976
      %v4558 = vunpack.c.h.b16 %v3976
      %v4559 = vunpack.c.l.b16 %v3977
      %v4560 = vunpack.c.h.b16 %v3977
      %v4561 = vunpack.c.l.b16 %v3978
      %v4562 = vunpack.c.h.b16 %v3978
      %v4563 = vunpack.c.l.b16 %v3979
      %v4564 = vunpack.c.h.b16 %v3979
      %v4565 = vunpack.c.l.b16 %v3980
      %v4566 = vunpack.c.h.b16 %v3980
      %v4567 = vunpack.c.l.b16 %v3981
      %v4568 = vunpack.c.h.b16 %v3981
      %v4569 = vunpack.c.l.b16 %v3982
      %v4570 = vunpack.c.h.b16 %v3982
      %v4571 = vunpack.c.l.b16 %v3983
      %v4572 = vunpack.c.h.b16 %v3983
      %v4573 = vunpack.c.l.b16 %v3984
      %v4574 = vunpack.c.h.b16 %v3984
      %v4575 = vunpack.c.l.b16 %v3985
      %v4576 = vunpack.c.h.b16 %v3985
      %v4577 = vunpack.c.l.b16 %v3986
      %v4578 = vunpack.c.h.b16 %v3986
      %v4579 = vunpack.c.l.b16 %v3987
      %v4580 = vunpack.c.h.b16 %v3987
      %v4581 = vunpack.c.l.b16 %v3988
      %v4582 = vunpack.c.h.b16 %v3988
      %v4583 = vunpack.c.l.b16 %v3989
      %v4584 = vunpack.c.h.b16 %v3989
      %v4585 = vunpack.c.l.b16 %v3990
      %v4586 = vunpack.c.h.b16 %v3990
      %v4587 = vunpack.c.l.b16 %v3991
      %v4588 = vunpack.c.h.b16 %v3991
      %v4589 = vunpack.c.l.b16 %v3992
      %v4590 = vunpack.c.h.b16 %v3992
      %v4591 = vunpack.c.l.b16 %v3993
      %v4592 = vunpack.c.h.b16 %v3993
      %v4593 = vunpack.c.l.b16 %v3994
      %v4594 = vunpack.c.h.b16 %v3994
      %v4595 = vunpack.c.l.b16 %v3995
      %v4596 = vunpack.c.h.b16 %v3995
      %v4597 = vunpack.c.l.b16 %v3996
      %v4598 = vunpack.c.h.b16 %v3996
      %v4599 = vunpack.c.l.b16 %v3997
      %v4600 = vunpack.c.h.b16 %v3997
      %v4601 = vunpack.c.l.b16 %v3998
      %v4602 = vunpack.c.h.b16 %v3998
      %v4603 = vunpack.c.l.b16 %v3999
      %v4604 = vunpack.c.h.b16 %v3999
      %v4605 = vunpack.c.l.b16 %v4000
      %v4606 = vunpack.c.h.b16 %v4000
      %v4607 = vpack.c.b16 %v4223, %v4207
      %v4608 = vpack.c.b16 %v4224, %v4208
      %v4609 = vpack.c.b16 %v4225, %v4209
      %v4610 = vpack.c.b16 %v4226, %v4210
      %v4611 = vpack.c.b16 %v4227, %v4211
      %v4612 = vpack.c.b16 %v4228, %v4212
      %v4613 = vpack.c.b16 %v4229, %v4213
      %v4614 = vpack.c.b16 %v4230, %v4214
      %v4615 = vpack.c.b16 %v4231, %v4215
      %v4616 = vpack.c.b16 %v4232, %v4216
      %v4617 = vpack.c.b16 %v4233, %v4217
      %v4618 = vpack.c.b16 %v4234, %v4218
      %v4619 = vpack.c.b16 %v4235, %v4219
      %v4620 = vpack.c.b16 %v4236, %v4220
      %v4621 = vpack.c.b16 %v4237, %v4221
      %v4622 = vpack.c.b16 %v4238, %v4222
      %v4623 = vpack.c.b16 %v4255, %v4239
      %v4624 = vpack.c.b16 %v4256, %v4240
      %v4625 = vpack.c.b16 %v4257, %v4241
      %v4626 = vpack.c.b16 %v4258, %v4242
      %v4627 = vpack.c.b16 %v4259, %v4243
      %v4628 = vpack.c.b16 %v4260, %v4244
      %v4629 = vpack.c.b16 %v4261, %v4245
      %v4630 = vpack.c.b16 %v4262, %v4246
      %v4631 = vpack.c.b16 %v4263, %v4247
      %v4632 = vpack.c.b16 %v4264, %v4248
      %v4633 = vpack.c.b16 %v4265, %v4249
      %v4634 = vpack.c.b16 %v4266, %v4250
      %v4635 = vpack.c.b16 %v4267, %v4251
      %v4636 = vpack.c.b16 %v4268, %v4252
      %v4637 = vpack.c.b16 %v4269, %v4253
      %v4638 = vpack.c.b16 %v4270, %v4254
      %v4639 = vpack.c.b16 %v4287, %v4271
      %v4640 = vpack.c.b16 %v4288, %v4272
      %v4641 = vpack.c.b16 %v4289, %v4273
      %v4642 = vpack.c.b16 %v4290, %v4274
      %v4643 = vpack.c.b16 %v4291, %v4275
      %v4644 = vpack.c.b16 %v4292, %v4276
      %v4645 = vpack.c.b16 %v4293, %v4277
      %v4646 = vpack.c.b16 %v4294, %v4278
      %v4647 = vpack.c.b16 %v4295, %v4279
      %v4648 = vpack.c.b16 %v4296, %v4280
      %v4649 = vpack.c.b16 %v4297, %v4281
      %v4650 = vpack.c.b16 %v4298, %v4282
      %v4651 = vpack.c.b16 %v4299, %v4283
      %v4652 = vpack.c.b16 %v4300, %v4284
      %v4653 = vpack.c.b16 %v4301, %v4285
      %v4654 = vpack.c.b16 %v4302, %v4286
      %v4655 = vpack.c.b16 %v4319, %v4303
      %v4656 = vpack.c.b16 %v4320, %v4304
      %v4657 = vpack.c.b16 %v4321, %v4305
      %v4658 = vpack.c.b16 %v4322, %v4306
      %v4659 = vpack.c.b16 %v4323, %v4307
      %v4660 = vpack.c.b16 %v4324, %v4308
      %v4661 = vpack.c.b16 %v4325, %v4309
      %v4662 = vpack.c.b16 %v4326, %v4310
      %v4663 = vpack.c.b16 %v4327, %v4311
      %v4664 = vpack.c.b16 %v4328, %v4312
      %v4665 = vpack.c.b16 %v4329, %v4313
      %v4666 = vpack.c.b16 %v4330, %v4314
      %v4667 = vpack.c.b16 %v4331, %v4315
      %v4668 = vpack.c.b16 %v4332, %v4316
      %v4669 = vpack.c.b16 %v4333, %v4317
      %v4670 = vpack.c.b16 %v4334, %v4318
      %v4671 = vpack.c.b16 %v4351, %v4335
      %v4672 = vpack.c.b16 %v4352, %v4336
      %v4673 = vpack.c.b16 %v4353, %v4337
      %v4674 = vpack.c.b16 %v4354, %v4338
      %v4675 = vpack.c.b16 %v4355, %v4339
      %v4676 = vpack.c.b16 %v4356, %v4340
      %v4677 = vpack.c.b16 %v4357, %v4341
      %v4678 = vpack.c.b16 %v4358, %v4342
      %v4679 = vpack.c.b16 %v4359, %v4343
      %v4680 = vpack.c.b16 %v4360, %v4344
      %v4681 = vpack.c.b16 %v4361, %v4345
      %v4682 = vpack.c.b16 %v4362, %v4346
      %v4683 = vpack.c.b16 %v4363, %v4347
      %v4684 = vpack.c.b16 %v4364, %v4348
      %v4685 = vpack.c.b16 %v4365, %v4349
      %v4686 = vpack.c.b16 %v4366, %v4350
      %v4687 = vpack.c.b16 %v4383, %v4367
      %v4688 = vpack.c.b16 %v4384, %v4368
      %v4689 = vpack.c.b16 %v4385, %v4369
      %v4690 = vpack.c.b16 %v4386, %v4370
      %v4691 = vpack.c.b16 %v4387, %v4371
      %v4692 = vpack.c.b16 %v4388, %v4372
      %v4693 = vpack.c.b16 %v4389, %v4373
      %v4694 = vpack.c.b16 %v4390, %v4374
      %v4695 = vpack.c.b16 %v4391, %v4375
      %v4696 = vpack.c.b16 %v4392, %v4376
      %v4697 = vpack.c.b16 %v4393, %v4377
      %v4698 = vpack.c.b16 %v4394, %v4378
      %v4699 = vpack.c.b16 %v4395, %v4379
      %v4700 = vpack.c.b16 %v4396, %v4380
      %v4701 = vpack.c.b16 %v4397, %v4381
      %v4702 = vpack.c.b16 %v4398, %v4382
      %v4703 = vpack.c.b16 %v4415, %v4399
      %v4704 = vpack.c.b16 %v4416, %v4400
      %v4705 = vpack.c.b16 %v4417, %v4401
      %v4706 = vpack.c.b16 %v4418, %v4402
      %v4707 = vpack.c.b16 %v4419, %v4403
      %v4708 = vpack.c.b16 %v4420, %v4404
      %v4709 = vpack.c.b16 %v4421, %v4405
      %v4710 = vpack.c.b16 %v4422, %v4406
      %v4711 = vpack.c.b16 %v4423, %v4407
      %v4712 = vpack.c.b16 %v4424, %v4408
      %v4713 = vpack.c.b16 %v4425, %v4409
      %v4714 = vpack.c.b16 %v4426, %v4410
      %v4715 = vpack.c.b16 %v4427, %v4411
      %v4716 = vpack.c.b16 %v4428, %v4412
      %v4717 = vpack.c.b16 %v4429, %v4413
      %v4718 = vpack.c.b16 %v4430, %v4414
      %v4719 = vpack.c.b16 %v4447, %v4431
      %v4720 = vpack.c.b16 %v4448, %v4432
      %v4721 = vpack.c.b16 %v4449, %v4433
      %v4722 = vpack.c.b16 %v4450, %v4434
      %v4723 = vpack.c.b16 %v4451, %v4435
      %v4724 = vpack.c.b16 %v4452, %v4436
      %v4725 = vpack.c.b16 %v4453, %v4437
      %v4726 = vpack.c.b16 %v4454, %v4438
      %v4727 = vpack.c.b16 %v4455, %v4439
      %v4728 = vpack.c.b16 %v4456, %v4440
      %v4729 = vpack.c.b16 %v4457, %v4441
      %v4730 = vpack.c.b16 %v4458, %v4442
      %v4731 = vpack.c.b16 %v4459, %v4443
      %v4732 = vpack.c.b16 %v4460, %v4444
      %v4733 = vpack.c.b16 %v4461, %v4445
      %v4734 = vpack.c.b16 %v4462, %v4446
      %v4735 = vpack.c.b16 %v4479, %v4463
      %v4736 = vpack.c.b16 %v4480, %v4464
      %v4737 = vpack.c.b16 %v4481, %v4465
      %v4738 = vpack.c.b16 %v4482, %v4466
      %v4739 = vpack.c.b16 %v4483, %v4467
      %v4740 = vpack.c.b16 %v4484, %v4468
      %v4741 = vpack.c.b16 %v4485, %v4469
      %v4742 = vpack.c.b16 %v4486, %v4470
      %v4743 = vpack.c.b16 %v4487, %v4471
      %v4744 = vpack.c.b16 %v4488, %v4472
      %v4745 = vpack.c.b16 %v4489, %v4473
      %v4746 = vpack.c.b16 %v4490, %v4474
      %v4747 = vpack.c.b16 %v4491, %v4475
      %v4748 = vpack.c.b16 %v4492, %v4476
      %v4749 = vpack.c.b16 %v4493, %v4477
      %v4750 = vpack.c.b16 %v4494, %v4478
      %v4751 = vpack.c.b16 %v4511, %v4495
      %v4752 = vpack.c.b16 %v4512, %v4496
      %v4753 = vpack.c.b16 %v4513, %v4497
      %v4754 = vpack.c.b16 %v4514, %v4498
      %v4755 = vpack.c.b16 %v4515, %v4499
      %v4756 = vpack.c.b16 %v4516, %v4500
      %v4757 = vpack.c.b16 %v4517, %v4501
      %v4758 = vpack.c.b16 %v4518, %v4502
      %v4759 = vpack.c.b16 %v4519, %v4503
      %v4760 = vpack.c.b16 %v4520, %v4504
      %v4761 = vpack.c.b16 %v4521, %v4505
      %v4762 = vpack.c.b16 %v4522, %v4506
      %v4763 = vpack.c.b16 %v4523, %v4507
      %v4764 = vpack.c.b16 %v4524, %v4508
      %v4765 = vpack.c.b16 %v4525, %v4509
      %v4766 = vpack.c.b16 %v4526, %v4510
      %v4767 = vpack.c.b16 %v4543, %v4527
      %v4768 = vpack.c.b16 %v4544, %v4528
      %v4769 = vpack.c.b16 %v4545, %v4529
      %v4770 = vpack.c.b16 %v4546, %v4530
      %v4771 = vpack.c.b16 %v4547, %v4531
      %v4772 = vpack.c.b16 %v4548, %v4532
      %v4773 = vpack.c.b16 %v4549, %v4533
      %v4774 = vpack.c.b16 %v4550, %v4534
      %v4775 = vpack.c.b16 %v4551, %v4535
      %v4776 = vpack.c.b16 %v4552, %v4536
      %v4777 = vpack.c.b16 %v4553, %v4537
      %v4778 = vpack.c.b16 %v4554, %v4538
      %v4779 = vpack.c.b16 %v4555, %v4539
      %v4780 = vpack.c.b16 %v4556, %v4540
      %v4781 = vpack.c.b16 %v4557, %v4541
      %v4782 = vpack.c.b16 %v4558, %v4542
      %v4783 = vpack.c.b16 %v4575, %v4559
      %v4784 = vpack.c.b16 %v4576, %v4560
      %v4785 = vpack.c.b16 %v4577, %v4561
      %v4786 = vpack.c.b16 %v4578, %v4562
      %v4787 = vpack.c.b16 %v4579, %v4563
      %v4788 = vpack.c.b16 %v4580, %v4564
      %v4789 = vpack.c.b16 %v4581, %v4565
      %v4790 = vpack.c.b16 %v4582, %v4566
      %v4791 = vpack.c.b16 %v4583, %v4567
      %v4792 = vpack.c.b16 %v4584, %v4568
      %v4793 = vpack.c.b16 %v4585, %v4569
      %v4794 = vpack.c.b16 %v4586, %v4570
      %v4795 = vpack.c.b16 %v4587, %v4571
      %v4796 = vpack.c.b16 %v4588, %v4572
      %v4797 = vpack.c.b16 %v4589, %v4573
      %v4798 = vpack.c.b16 %v4590, %v4574
      %v4799 = vpack.c.b16 %v4591, %v4591
      %v4800 = vpack.c.b16 %v4592, %v4592
      %v4801 = vpack.c.b16 %v4593, %v4593
      %v4802 = vpack.c.b16 %v4594, %v4594
      %v4803 = vpack.c.b16 %v4595, %v4595
      %v4804 = vpack.c.b16 %v4596, %v4596
      %v4805 = vpack.c.b16 %v4597, %v4597
      %v4806 = vpack.c.b16 %v4598, %v4598
      %v4807 = vpack.c.b16 %v4599, %v4599
      %v4808 = vpack.c.b16 %v4600, %v4600
      %v4809 = vpack.c.b16 %v4601, %v4601
      %v4810 = vpack.c.b16 %v4602, %v4602
      %v4811 = vpack.c.b16 %v4603, %v4603
      %v4812 = vpack.c.b16 %v4604, %v4604
      %v4813 = vpack.c.b16 %v4605, %v4605
      %v4814 = vpack.c.b16 %v4606, %v4606
      %v5008 = vsel %vm961, %v4002, 0
      %v5011 = vsel %vm961, %v4004, 0
      %v5014 = vsel %vm961, %v4006, 0
      %v5017 = vsel %vm971, %v4799, 0
      %v5020 = vsel %vm971, %v4800, 0
      %v5023 = vsel %vm971, %v4801, 0
      %v5026 = vsel %vm971, %v4802, 0
      %v5029 = vsel %vm971, %v4803, 0
      %v5032 = vsel %vm971, %v4804, 0
      %v5035 = vsel %vm971, %v4805, 0
      %v5038 = vsel %vm971, %v4806, 0
      %v5041 = vsel %vm971, %v4807, 0
      %v5044 = vsel %vm971, %v4808, 0
      %v5047 = vsel %vm971, %v4809, 0
      %v5050 = vsel %vm971, %v4810, 0
      %v5053 = vsel %vm971, %v4811, 0
      %v5056 = vsel %vm971, %v4812, 0
      %v5059 = vsel %vm971, %v4813, 0
      %v5062 = vsel %vm971, %v4814, 0
      %5064 = vmatprep.subr.bf16.mxu0 %v4720
      %5065 = vmatpush1.bf16.msra.mxu0 %v4719
      %5066 = vmatprep.subr.bf16.mxu0 %v4704
      %5067 = vmatpush1.bf16.msra.mxu0 %v4703
      %5068 = vmatprep.subr.bf16.mxu0 %v4688
      %5069 = vmatpush1.bf16.msra.mxu0 %v4687
      %5070 = vmatprep.subr.bf16.mxu0 %v4672
      %5071 = vmatpush1.bf16.msra.mxu0 %v4671
      %5072 = vmatprep.subr.bf16.mxu0 %v4656
      %5073 = vmatpush1.bf16.msra.mxu0 %v4655
      %5074 = vmatprep.subr.bf16.mxu0 %v4640
      %5075 = vmatpush1.bf16.msra.mxu0 %v4639
      %5076 = vmatprep.subr.bf16.mxu0 %v4624
      %5077 = vmatpush1.bf16.msra.mxu0 %v4623
      %5078 = vmatprep.subr.bf16.mxu0 %v4608
      %5079 = vmatpush1.bf16.msra.mxu0 %v4607
      %5080 = vmatprep.subr.bf16.mxu0 0
      %5081 = vmatpush2.bf16.msra.mxu0 0
      %5082 = vmatprep.subr.bf16.mxu0 0
      %5083 = vmatpush2.bf16.msra.mxu0 0
      %5084 = vmatprep.subr.bf16.mxu0 0
      %5085 = vmatpush2.bf16.msra.mxu0 0
      %5086 = vmatprep.subr.bf16.mxu0 %v5020
      %5087 = vmatpush2.bf16.msra.mxu0 %v5017
      %5088 = vmatprep.subr.bf16.mxu0 %v4784
      %5089 = vmatpush2.bf16.msra.mxu0 %v4783
      %5090 = vmatprep.subr.bf16.mxu0 %v4768
      %5091 = vmatpush2.bf16.msra.mxu0 %v4767
      %5092 = vmatprep.subr.bf16.mxu0 %v4752
      %5093 = vmatpush2.bf16.msra.mxu0 %v4751
      %5094 = vmatprep.subr.bf16.mxu0 %v4736
      %5095 = vmatpush2.bf16.msra.mxu0 %v4735
      %5096 = vmatprep.mubr.bf16.mxu0 %v5008
      %5097 = vmatmul.mubr.bf16.gmra.mxu0 %v4001
      %v5098 = vpop.f32.mrf.mxu0
      %v5099 = vadd.f32 0.0, %v5098
      %v5100 = vpop.f32.mrf.mxu0
      %v5101 = vadd.f32 0.0, %v5100
      %v5102 = vpop.f32.mrf.mxu0
      %v5103 = vadd.f32 0.0, %v5102
      %v5104 = vpop.f32.mrf.mxu0
      %v5105 = vadd.f32 0.0, %v5104
      %5106 = vmatprep.mubr.bf16.mxu0 %v5011
      %5107 = vmatmul.mubr.bf16.gmra.mxu0 %v4003
      %v5108 = vpop.f32.mrf.mxu0
      %v5109 = vadd.f32 0.0, %v5108
      %v5110 = vpop.f32.mrf.mxu0
      %v5111 = vadd.f32 0.0, %v5110
      %v5112 = vpop.f32.mrf.mxu0
      %v5113 = vadd.f32 0.0, %v5112
      %v5114 = vpop.f32.mrf.mxu0
      %v5115 = vadd.f32 0.0, %v5114
      %5116 = vmatprep.mubr.bf16.mxu0 %v5014
      %5117 = vmatmul.mubr.bf16.gmra.mxu0 %v4005
      %v5118 = vpop.f32.mrf.mxu0
      %v5119 = vadd.f32 0.0, %v5118
      %v5120 = vpop.f32.mrf.mxu0
      %v5121 = vadd.f32 0.0, %v5120
      %v5122 = vpop.f32.mrf.mxu0
      %v5123 = vadd.f32 0.0, %v5122
      %v5124 = vpop.f32.mrf.mxu0
      %v5125 = vadd.f32 0.0, %v5124
      %5126 = vdwg.mxu0
      %5127 = vmatprep.subr.bf16.mxu0 %v4722
      %5128 = vmatpush1.bf16.msra.mxu0 %v4721
      %5129 = vmatprep.subr.bf16.mxu0 %v4706
      %5130 = vmatpush1.bf16.msra.mxu0 %v4705
      %5131 = vmatprep.subr.bf16.mxu0 %v4690
      %5132 = vmatpush1.bf16.msra.mxu0 %v4689
      %5133 = vmatprep.subr.bf16.mxu0 %v4674
      %5134 = vmatpush1.bf16.msra.mxu0 %v4673
      %5135 = vmatprep.subr.bf16.mxu0 %v4658
      %5136 = vmatpush1.bf16.msra.mxu0 %v4657
      %5137 = vmatprep.subr.bf16.mxu0 %v4642
      %5138 = vmatpush1.bf16.msra.mxu0 %v4641
      %5139 = vmatprep.subr.bf16.mxu0 %v4626
      %5140 = vmatpush1.bf16.msra.mxu0 %v4625
      %5141 = vmatprep.subr.bf16.mxu0 %v4610
      %5142 = vmatpush1.bf16.msra.mxu0 %v4609
      %5143 = vmatprep.subr.bf16.mxu0 0
      %5144 = vmatpush2.bf16.msra.mxu0 0
      %5145 = vmatprep.subr.bf16.mxu0 0
      %5146 = vmatpush2.bf16.msra.mxu0 0
      %5147 = vmatprep.subr.bf16.mxu0 0
      %5148 = vmatpush2.bf16.msra.mxu0 0
      %5149 = vmatprep.subr.bf16.mxu0 %v5026
      %5150 = vmatpush2.bf16.msra.mxu0 %v5023
      %5151 = vmatprep.subr.bf16.mxu0 %v4786
      %5152 = vmatpush2.bf16.msra.mxu0 %v4785
      %5153 = vmatprep.subr.bf16.mxu0 %v4770
      %5154 = vmatpush2.bf16.msra.mxu0 %v4769
      %5155 = vmatprep.subr.bf16.mxu0 %v4754
      %5156 = vmatpush2.bf16.msra.mxu0 %v4753
      %5157 = vmatprep.subr.bf16.mxu0 %v4738
      %5158 = vmatpush2.bf16.msra.mxu0 %v4737
      %5159 = vmatprep.mubr.bf16.mxu0 %v5008
      %5160 = vmatmul.mubr.bf16.gmra.mxu0 %v4001
      %v5161 = vpop.f32.mrf.mxu0
      %v5162 = vadd.f32 0.0, %v5161
      %v5163 = vpop.f32.mrf.mxu0
      %v5164 = vadd.f32 0.0, %v5163
      %v5165 = vpop.f32.mrf.mxu0
      %v5166 = vadd.f32 0.0, %v5165
      %v5167 = vpop.f32.mrf.mxu0
      %v5168 = vadd.f32 0.0, %v5167
      %5169 = vmatprep.mubr.bf16.mxu0 %v5011
      %5170 = vmatmul.mubr.bf16.gmra.mxu0 %v4003
      %v5171 = vpop.f32.mrf.mxu0
      %v5172 = vadd.f32 0.0, %v5171
      %v5173 = vpop.f32.mrf.mxu0
      %v5174 = vadd.f32 0.0, %v5173
      %v5175 = vpop.f32.mrf.mxu0
      %v5176 = vadd.f32 0.0, %v5175
      %v5177 = vpop.f32.mrf.mxu0
      %v5178 = vadd.f32 0.0, %v5177
      %5179 = vmatprep.mubr.bf16.mxu0 %v5014
      %5180 = vmatmul.mubr.bf16.gmra.mxu0 %v4005
      %v5181 = vpop.f32.mrf.mxu0
      %v5182 = vadd.f32 0.0, %v5181
      %v5183 = vpop.f32.mrf.mxu0
      %v5184 = vadd.f32 0.0, %v5183
      %v5185 = vpop.f32.mrf.mxu0
      %v5186 = vadd.f32 0.0, %v5185
      %v5187 = vpop.f32.mrf.mxu0
      %v5188 = vadd.f32 0.0, %v5187
      %5189 = vdwg.mxu0
      %5190 = vmatprep.subr.bf16.mxu0 %v4724
      %5191 = vmatpush1.bf16.msra.mxu0 %v4723
      %5192 = vmatprep.subr.bf16.mxu0 %v4708
      %5193 = vmatpush1.bf16.msra.mxu0 %v4707
      %5194 = vmatprep.subr.bf16.mxu0 %v4692
      %5195 = vmatpush1.bf16.msra.mxu0 %v4691
      %5196 = vmatprep.subr.bf16.mxu0 %v4676
      %5197 = vmatpush1.bf16.msra.mxu0 %v4675
      %5198 = vmatprep.subr.bf16.mxu0 %v4660
      %5199 = vmatpush1.bf16.msra.mxu0 %v4659
      %5200 = vmatprep.subr.bf16.mxu0 %v4644
      %5201 = vmatpush1.bf16.msra.mxu0 %v4643
      %5202 = vmatprep.subr.bf16.mxu0 %v4628
      %5203 = vmatpush1.bf16.msra.mxu0 %v4627
      %5204 = vmatprep.subr.bf16.mxu0 %v4612
      %5205 = vmatpush1.bf16.msra.mxu0 %v4611
      %5206 = vmatprep.subr.bf16.mxu0 0
      %5207 = vmatpush2.bf16.msra.mxu0 0
      %5208 = vmatprep.subr.bf16.mxu0 0
      %5209 = vmatpush2.bf16.msra.mxu0 0
      %5210 = vmatprep.subr.bf16.mxu0 0
      %5211 = vmatpush2.bf16.msra.mxu0 0
      %5212 = vmatprep.subr.bf16.mxu0 %v5032
      %5213 = vmatpush2.bf16.msra.mxu0 %v5029
      %5214 = vmatprep.subr.bf16.mxu0 %v4788
      %5215 = vmatpush2.bf16.msra.mxu0 %v4787
      %5216 = vmatprep.subr.bf16.mxu0 %v4772
      %5217 = vmatpush2.bf16.msra.mxu0 %v4771
      %5218 = vmatprep.subr.bf16.mxu0 %v4756
      %5219 = vmatpush2.bf16.msra.mxu0 %v4755
      %5220 = vmatprep.subr.bf16.mxu0 %v4740
      %5221 = vmatpush2.bf16.msra.mxu0 %v4739
      %5222 = vmatprep.mubr.bf16.mxu0 %v5008
      %5223 = vmatmul.mubr.bf16.gmra.mxu0 %v4001
      %v5224 = vpop.f32.mrf.mxu0
      %v5225 = vadd.f32 0.0, %v5224
      %v5226 = vpop.f32.mrf.mxu0
      %v5227 = vadd.f32 0.0, %v5226
      %v5228 = vpop.f32.mrf.mxu0
      %v5229 = vadd.f32 0.0, %v5228
      %v5230 = vpop.f32.mrf.mxu0
      %v5231 = vadd.f32 0.0, %v5230
      %5232 = vmatprep.mubr.bf16.mxu0 %v5011
      %5233 = vmatmul.mubr.bf16.gmra.mxu0 %v4003
      %v5234 = vpop.f32.mrf.mxu0
      %v5235 = vadd.f32 0.0, %v5234
      %v5236 = vpop.f32.mrf.mxu0
      %v5237 = vadd.f32 0.0, %v5236
      %v5238 = vpop.f32.mrf.mxu0
      %v5239 = vadd.f32 0.0, %v5238
      %v5240 = vpop.f32.mrf.mxu0
      %v5241 = vadd.f32 0.0, %v5240
      %5242 = vmatprep.mubr.bf16.mxu0 %v5014
      %5243 = vmatmul.mubr.bf16.gmra.mxu0 %v4005
      %v5244 = vpop.f32.mrf.mxu0
      %v5245 = vadd.f32 0.0, %v5244
      %v5246 = vpop.f32.mrf.mxu0
      %v5247 = vadd.f32 0.0, %v5246
      %v5248 = vpop.f32.mrf.mxu0
      %v5249 = vadd.f32 0.0, %v5248
      %v5250 = vpop.f32.mrf.mxu0
      %v5251 = vadd.f32 0.0, %v5250
      %5252 = vdwg.mxu0
      %5253 = vmatprep.subr.bf16.mxu0 %v4726
      %5254 = vmatpush1.bf16.msra.mxu0 %v4725
      %5255 = vmatprep.subr.bf16.mxu0 %v4710
      %5256 = vmatpush1.bf16.msra.mxu0 %v4709
      %5257 = vmatprep.subr.bf16.mxu0 %v4694
      %5258 = vmatpush1.bf16.msra.mxu0 %v4693
      %5259 = vmatprep.subr.bf16.mxu0 %v4678
      %5260 = vmatpush1.bf16.msra.mxu0 %v4677
      %5261 = vmatprep.subr.bf16.mxu0 %v4662
      %5262 = vmatpush1.bf16.msra.mxu0 %v4661
      %5263 = vmatprep.subr.bf16.mxu0 %v4646
      %5264 = vmatpush1.bf16.msra.mxu0 %v4645
      %5265 = vmatprep.subr.bf16.mxu0 %v4630
      %5266 = vmatpush1.bf16.msra.mxu0 %v4629
      %5267 = vmatprep.subr.bf16.mxu0 %v4614
      %5268 = vmatpush1.bf16.msra.mxu0 %v4613
      %5269 = vmatprep.subr.bf16.mxu0 0
      %5270 = vmatpush2.bf16.msra.mxu0 0
      %5271 = vmatprep.subr.bf16.mxu0 0
      %5272 = vmatpush2.bf16.msra.mxu0 0
      %5273 = vmatprep.subr.bf16.mxu0 0
      %5274 = vmatpush2.bf16.msra.mxu0 0
      %5275 = vmatprep.subr.bf16.mxu0 %v5038
      %5276 = vmatpush2.bf16.msra.mxu0 %v5035
      %5277 = vmatprep.subr.bf16.mxu0 %v4790
      %5278 = vmatpush2.bf16.msra.mxu0 %v4789
      %5279 = vmatprep.subr.bf16.mxu0 %v4774
      %5280 = vmatpush2.bf16.msra.mxu0 %v4773
      %5281 = vmatprep.subr.bf16.mxu0 %v4758
      %5282 = vmatpush2.bf16.msra.mxu0 %v4757
      %5283 = vmatprep.subr.bf16.mxu0 %v4742
      %5284 = vmatpush2.bf16.msra.mxu0 %v4741
      %5285 = vmatprep.mubr.bf16.mxu0 %v5008
      %5286 = vmatmul.mubr.bf16.gmra.mxu0 %v4001
      %v5287 = vpop.f32.mrf.mxu0
      %v5288 = vadd.f32 0.0, %v5287
      %v5289 = vpop.f32.mrf.mxu0
      %v5290 = vadd.f32 0.0, %v5289
      %v5291 = vpop.f32.mrf.mxu0
      %v5292 = vadd.f32 0.0, %v5291
      %v5293 = vpop.f32.mrf.mxu0
      %v5294 = vadd.f32 0.0, %v5293
      %5295 = vmatprep.mubr.bf16.mxu0 %v5011
      %5296 = vmatmul.mubr.bf16.gmra.mxu0 %v4003
      %v5297 = vpop.f32.mrf.mxu0
      %v5298 = vadd.f32 0.0, %v5297
      %v5299 = vpop.f32.mrf.mxu0
      %v5300 = vadd.f32 0.0, %v5299
      %v5301 = vpop.f32.mrf.mxu0
      %v5302 = vadd.f32 0.0, %v5301
      %v5303 = vpop.f32.mrf.mxu0
      %v5304 = vadd.f32 0.0, %v5303
      %5305 = vmatprep.mubr.bf16.mxu0 %v5014
      %5306 = vmatmul.mubr.bf16.gmra.mxu0 %v4005
      %v5307 = vpop.f32.mrf.mxu0
      %v5308 = vadd.f32 0.0, %v5307
      %v5309 = vpop.f32.mrf.mxu0
      %v5310 = vadd.f32 0.0, %v5309
      %v5311 = vpop.f32.mrf.mxu0
      %v5312 = vadd.f32 0.0, %v5311
      %v5313 = vpop.f32.mrf.mxu0
      %v5314 = vadd.f32 0.0, %v5313
      %5315 = vdwg.mxu0
      %5316 = vmatprep.subr.bf16.mxu0 %v4728
      %5317 = vmatpush1.bf16.msra.mxu0 %v4727
      %5318 = vmatprep.subr.bf16.mxu0 %v4712
      %5319 = vmatpush1.bf16.msra.mxu0 %v4711
      %5320 = vmatprep.subr.bf16.mxu0 %v4696
      %5321 = vmatpush1.bf16.msra.mxu0 %v4695
      %5322 = vmatprep.subr.bf16.mxu0 %v4680
      %5323 = vmatpush1.bf16.msra.mxu0 %v4679
      %5324 = vmatprep.subr.bf16.mxu0 %v4664
      %5325 = vmatpush1.bf16.msra.mxu0 %v4663
      %5326 = vmatprep.subr.bf16.mxu0 %v4648
      %5327 = vmatpush1.bf16.msra.mxu0 %v4647
      %5328 = vmatprep.subr.bf16.mxu0 %v4632
      %5329 = vmatpush1.bf16.msra.mxu0 %v4631
      %5330 = vmatprep.subr.bf16.mxu0 %v4616
      %5331 = vmatpush1.bf16.msra.mxu0 %v4615
      %5332 = vmatprep.subr.bf16.mxu0 0
      %5333 = vmatpush2.bf16.msra.mxu0 0
      %5334 = vmatprep.subr.bf16.mxu0 0
      %5335 = vmatpush2.bf16.msra.mxu0 0
      %5336 = vmatprep.subr.bf16.mxu0 0
      %5337 = vmatpush2.bf16.msra.mxu0 0
      %5338 = vmatprep.subr.bf16.mxu0 %v5044
      %5339 = vmatpush2.bf16.msra.mxu0 %v5041
      %5340 = vmatprep.subr.bf16.mxu0 %v4792
      %5341 = vmatpush2.bf16.msra.mxu0 %v4791
      %5342 = vmatprep.subr.bf16.mxu0 %v4776
      %5343 = vmatpush2.bf16.msra.mxu0 %v4775
      %5344 = vmatprep.subr.bf16.mxu0 %v4760
      %5345 = vmatpush2.bf16.msra.mxu0 %v4759
      %5346 = vmatprep.subr.bf16.mxu0 %v4744
      %5347 = vmatpush2.bf16.msra.mxu0 %v4743
      %5348 = vmatprep.mubr.bf16.mxu0 %v5008
      %5349 = vmatmul.mubr.bf16.gmra.mxu0 %v4001
      %v5350 = vpop.f32.mrf.mxu0
      %v5351 = vadd.f32 0.0, %v5350
      %v5352 = vpop.f32.mrf.mxu0
      %v5353 = vadd.f32 0.0, %v5352
      %v5354 = vpop.f32.mrf.mxu0
      %v5355 = vadd.f32 0.0, %v5354
      %v5356 = vpop.f32.mrf.mxu0
      %v5357 = vadd.f32 0.0, %v5356
      %5358 = vmatprep.mubr.bf16.mxu0 %v5011
      %5359 = vmatmul.mubr.bf16.gmra.mxu0 %v4003
      %v5360 = vpop.f32.mrf.mxu0
      %v5361 = vadd.f32 0.0, %v5360
      %v5362 = vpop.f32.mrf.mxu0
      %v5363 = vadd.f32 0.0, %v5362
      %v5364 = vpop.f32.mrf.mxu0
      %v5365 = vadd.f32 0.0, %v5364
      %v5366 = vpop.f32.mrf.mxu0
      %v5367 = vadd.f32 0.0, %v5366
      %5368 = vmatprep.mubr.bf16.mxu0 %v5014
      %5369 = vmatmul.mubr.bf16.gmra.mxu0 %v4005
      %v5370 = vpop.f32.mrf.mxu0
      %v5371 = vadd.f32 0.0, %v5370
      %v5372 = vpop.f32.mrf.mxu0
      %v5373 = vadd.f32 0.0, %v5372
      %v5374 = vpop.f32.mrf.mxu0
      %v5375 = vadd.f32 0.0, %v5374
      %v5376 = vpop.f32.mrf.mxu0
      %v5377 = vadd.f32 0.0, %v5376
      %5378 = vdwg.mxu0
      %5379 = vmatprep.subr.bf16.mxu0 %v4730
      %5380 = vmatpush1.bf16.msra.mxu0 %v4729
      %5381 = vmatprep.subr.bf16.mxu0 %v4714
      %5382 = vmatpush1.bf16.msra.mxu0 %v4713
      %5383 = vmatprep.subr.bf16.mxu0 %v4698
      %5384 = vmatpush1.bf16.msra.mxu0 %v4697
      %5385 = vmatprep.subr.bf16.mxu0 %v4682
      %5386 = vmatpush1.bf16.msra.mxu0 %v4681
      %5387 = vmatprep.subr.bf16.mxu0 %v4666
      %5388 = vmatpush1.bf16.msra.mxu0 %v4665
      %5389 = vmatprep.subr.bf16.mxu0 %v4650
      %5390 = vmatpush1.bf16.msra.mxu0 %v4649
      %5391 = vmatprep.subr.bf16.mxu0 %v4634
      %5392 = vmatpush1.bf16.msra.mxu0 %v4633
      %5393 = vmatprep.subr.bf16.mxu0 %v4618
      %5394 = vmatpush1.bf16.msra.mxu0 %v4617
      %5395 = vmatprep.subr.bf16.mxu0 0
      %5396 = vmatpush2.bf16.msra.mxu0 0
      %5397 = vmatprep.subr.bf16.mxu0 0
      %5398 = vmatpush2.bf16.msra.mxu0 0
      %5399 = vmatprep.subr.bf16.mxu0 0
      %5400 = vmatpush2.bf16.msra.mxu0 0
      %5401 = vmatprep.subr.bf16.mxu0 %v5050
      %5402 = vmatpush2.bf16.msra.mxu0 %v5047
      %5403 = vmatprep.subr.bf16.mxu0 %v4794
      %5404 = vmatpush2.bf16.msra.mxu0 %v4793
      %5405 = vmatprep.subr.bf16.mxu0 %v4778
      %5406 = vmatpush2.bf16.msra.mxu0 %v4777
      %5407 = vmatprep.subr.bf16.mxu0 %v4762
      %5408 = vmatpush2.bf16.msra.mxu0 %v4761
      %5409 = vmatprep.subr.bf16.mxu0 %v4746
      %5410 = vmatpush2.bf16.msra.mxu0 %v4745
      %5411 = vmatprep.mubr.bf16.mxu0 %v5008
      %5412 = vmatmul.mubr.bf16.gmra.mxu0 %v4001
      %v5413 = vpop.f32.mrf.mxu0
      %v5414 = vadd.f32 0.0, %v5413
      %v5415 = vpop.f32.mrf.mxu0
      %v5416 = vadd.f32 0.0, %v5415
      %v5417 = vpop.f32.mrf.mxu0
      %v5418 = vadd.f32 0.0, %v5417
      %v5419 = vpop.f32.mrf.mxu0
      %v5420 = vadd.f32 0.0, %v5419
      %5421 = vmatprep.mubr.bf16.mxu0 %v5011
      %5422 = vmatmul.mubr.bf16.gmra.mxu0 %v4003
      %v5423 = vpop.f32.mrf.mxu0
      %v5424 = vadd.f32 0.0, %v5423
      %v5425 = vpop.f32.mrf.mxu0
      %v5426 = vadd.f32 0.0, %v5425
      %v5427 = vpop.f32.mrf.mxu0
      %v5428 = vadd.f32 0.0, %v5427
      %v5429 = vpop.f32.mrf.mxu0
      %v5430 = vadd.f32 0.0, %v5429
      %5431 = vmatprep.mubr.bf16.mxu0 %v5014
      %5432 = vmatmul.mubr.bf16.gmra.mxu0 %v4005
      %v5433 = vpop.f32.mrf.mxu0
      %v5434 = vadd.f32 0.0, %v5433
      %v5435 = vpop.f32.mrf.mxu0
      %v5436 = vadd.f32 0.0, %v5435
      %v5437 = vpop.f32.mrf.mxu0
      %v5438 = vadd.f32 0.0, %v5437
      %v5439 = vpop.f32.mrf.mxu0
      %v5440 = vadd.f32 0.0, %v5439
      %5441 = vdwg.mxu0
      %5442 = vmatprep.subr.bf16.mxu0 %v4732
      %5443 = vmatpush1.bf16.msra.mxu0 %v4731
      %5444 = vmatprep.subr.bf16.mxu0 %v4716
      %5445 = vmatpush1.bf16.msra.mxu0 %v4715
      %5446 = vmatprep.subr.bf16.mxu0 %v4700
      %5447 = vmatpush1.bf16.msra.mxu0 %v4699
      %5448 = vmatprep.subr.bf16.mxu0 %v4684
      %5449 = vmatpush1.bf16.msra.mxu0 %v4683
      %5450 = vmatprep.subr.bf16.mxu0 %v4668
      %5451 = vmatpush1.bf16.msra.mxu0 %v4667
      %5452 = vmatprep.subr.bf16.mxu0 %v4652
      %5453 = vmatpush1.bf16.msra.mxu0 %v4651
      %5454 = vmatprep.subr.bf16.mxu0 %v4636
      %5455 = vmatpush1.bf16.msra.mxu0 %v4635
      %5456 = vmatprep.subr.bf16.mxu0 %v4620
      %5457 = vmatpush1.bf16.msra.mxu0 %v4619
      %5458 = vmatprep.subr.bf16.mxu0 0
      %5459 = vmatpush2.bf16.msra.mxu0 0
      %5460 = vmatprep.subr.bf16.mxu0 0
      %5461 = vmatpush2.bf16.msra.mxu0 0
      %5462 = vmatprep.subr.bf16.mxu0 0
      %5463 = vmatpush2.bf16.msra.mxu0 0
      %5464 = vmatprep.subr.bf16.mxu0 %v5056
      %5465 = vmatpush2.bf16.msra.mxu0 %v5053
      %5466 = vmatprep.subr.bf16.mxu0 %v4796
      %5467 = vmatpush2.bf16.msra.mxu0 %v4795
      %5468 = vmatprep.subr.bf16.mxu0 %v4780
      %5469 = vmatpush2.bf16.msra.mxu0 %v4779
      %5470 = vmatprep.subr.bf16.mxu0 %v4764
      %5471 = vmatpush2.bf16.msra.mxu0 %v4763
      %5472 = vmatprep.subr.bf16.mxu0 %v4748
      %5473 = vmatpush2.bf16.msra.mxu0 %v4747
      %5474 = vmatprep.mubr.bf16.mxu0 %v5008
      %5475 = vmatmul.mubr.bf16.gmra.mxu0 %v4001
      %v5476 = vpop.f32.mrf.mxu0
      %v5477 = vadd.f32 0.0, %v5476
      %v5478 = vpop.f32.mrf.mxu0
      %v5479 = vadd.f32 0.0, %v5478
      %v5480 = vpop.f32.mrf.mxu0
      %v5481 = vadd.f32 0.0, %v5480
      %v5482 = vpop.f32.mrf.mxu0
      %v5483 = vadd.f32 0.0, %v5482
      %5484 = vmatprep.mubr.bf16.mxu0 %v5011
      %5485 = vmatmul.mubr.bf16.gmra.mxu0 %v4003
      %v5486 = vpop.f32.mrf.mxu0
      %v5487 = vadd.f32 0.0, %v5486
      %v5488 = vpop.f32.mrf.mxu0
      %v5489 = vadd.f32 0.0, %v5488
      %v5490 = vpop.f32.mrf.mxu0
      %v5491 = vadd.f32 0.0, %v5490
      %v5492 = vpop.f32.mrf.mxu0
      %v5493 = vadd.f32 0.0, %v5492
      %5494 = vmatprep.mubr.bf16.mxu0 %v5014
      %5495 = vmatmul.mubr.bf16.gmra.mxu0 %v4005
      %v5496 = vpop.f32.mrf.mxu0
      %v5497 = vadd.f32 0.0, %v5496
      %v5498 = vpop.f32.mrf.mxu0
      %v5499 = vadd.f32 0.0, %v5498
      %v5500 = vpop.f32.mrf.mxu0
      %v5501 = vadd.f32 0.0, %v5500
      %v5502 = vpop.f32.mrf.mxu0
      %v5503 = vadd.f32 0.0, %v5502
      %5504 = vdwg.mxu0
      %5505 = vmatprep.subr.bf16.mxu0 %v4734
      %5506 = vmatpush1.bf16.msra.mxu0 %v4733
      %5507 = vmatprep.subr.bf16.mxu0 %v4718
      %5508 = vmatpush1.bf16.msra.mxu0 %v4717
      %5509 = vmatprep.subr.bf16.mxu0 %v4702
      %5510 = vmatpush1.bf16.msra.mxu0 %v4701
      %5511 = vmatprep.subr.bf16.mxu0 %v4686
      %5512 = vmatpush1.bf16.msra.mxu0 %v4685
      %5513 = vmatprep.subr.bf16.mxu0 %v4670
      %5514 = vmatpush1.bf16.msra.mxu0 %v4669
      %5515 = vmatprep.subr.bf16.mxu0 %v4654
      %5516 = vmatpush1.bf16.msra.mxu0 %v4653
      %5517 = vmatprep.subr.bf16.mxu0 %v4638
      %5518 = vmatpush1.bf16.msra.mxu0 %v4637
      %5519 = vmatprep.subr.bf16.mxu0 %v4622
      %5520 = vmatpush1.bf16.msra.mxu0 %v4621
      %5521 = vmatprep.subr.bf16.mxu0 0
      %5522 = vmatpush2.bf16.msra.mxu0 0
      %5523 = vmatprep.subr.bf16.mxu0 0
      %5524 = vmatpush2.bf16.msra.mxu0 0
      %5525 = vmatprep.subr.bf16.mxu0 0
      %5526 = vmatpush2.bf16.msra.mxu0 0
      %5527 = vmatprep.subr.bf16.mxu0 %v5062
      %5528 = vmatpush2.bf16.msra.mxu0 %v5059
      %5529 = vmatprep.subr.bf16.mxu0 %v4798
      %5530 = vmatpush2.bf16.msra.mxu0 %v4797
      %5531 = vmatprep.subr.bf16.mxu0 %v4782
      %5532 = vmatpush2.bf16.msra.mxu0 %v4781
      %5533 = vmatprep.subr.bf16.mxu0 %v4766
      %5534 = vmatpush2.bf16.msra.mxu0 %v4765
      %5535 = vmatprep.subr.bf16.mxu0 %v4750
      %5536 = vmatpush2.bf16.msra.mxu0 %v4749
      %5537 = vmatprep.mubr.bf16.mxu0 %v5008
      %5538 = vmatmul.mubr.bf16.gmra.mxu0 %v4001
      %v5539 = vpop.f32.mrf.mxu0
      %v5540 = vadd.f32 0.0, %v5539
      %v5541 = vpop.f32.mrf.mxu0
      %v5542 = vadd.f32 0.0, %v5541
      %v5543 = vpop.f32.mrf.mxu0
      %v5544 = vadd.f32 0.0, %v5543
      %v5545 = vpop.f32.mrf.mxu0
      %v5546 = vadd.f32 0.0, %v5545
      %5547 = vmatprep.mubr.bf16.mxu0 %v5011
      %5548 = vmatmul.mubr.bf16.gmra.mxu0 %v4003
      %v5549 = vpop.f32.mrf.mxu0
      %v5550 = vadd.f32 0.0, %v5549
      %v5551 = vpop.f32.mrf.mxu0
      %v5552 = vadd.f32 0.0, %v5551
      %v5553 = vpop.f32.mrf.mxu0
      %v5554 = vadd.f32 0.0, %v5553
      %v5555 = vpop.f32.mrf.mxu0
      %v5556 = vadd.f32 0.0, %v5555
      %5557 = vmatprep.mubr.bf16.mxu0 %v5014
      %5558 = vmatmul.mubr.bf16.gmra.mxu0 %v4005
      %v5559 = vpop.f32.mrf.mxu0
      %v5560 = vadd.f32 0.0, %v5559
      %v5561 = vpop.f32.mrf.mxu0
      %v5562 = vadd.f32 0.0, %v5561
      %v5563 = vpop.f32.mrf.mxu0
      %v5564 = vadd.f32 0.0, %v5563
      %v5565 = vpop.f32.mrf.mxu0
      %v5566 = vadd.f32 0.0, %v5565
      %5567 = vdwg.mxu0
      %v5570 = vlaneseq
      %v5571 = vshrl.u32 %v5570, 7
      %v5572 = vsub.s32 1, %v5571
      %v5573 = vrot.slane %v446, %v5572
      %v5574 = vlaneseq
      %v5575 = vshrl.u32 %v5574, 7
      %v5576 = vsub.s32 5, %v5575
      %v5577 = vrot.slane %v446, %v5576
      %v5578 = vlaneseq
      %v5579 = vshrl.u32 %v5578, 7
      %v5580 = vsub.s32 1, %v5579
      %v5581 = vrot.slane %v447, %v5580
      %v5582 = vlaneseq
      %v5583 = vshrl.u32 %v5582, 7
      %v5584 = vsub.s32 5, %v5583
      %v5585 = vrot.slane %v447, %v5584
      %v5586 = vlaneseq
      %v5587 = vshrl.u32 %v5586, 7
      %v5588 = vsub.s32 1, %v5587
      %v5589 = vrot.slane %v448, %v5588
      %v5590 = vlaneseq
      %v5591 = vshrl.u32 %v5590, 7
      %v5592 = vsub.s32 5, %v5591
      %v5593 = vrot.slane %v448, %v5592
      %v5594 = vlaneseq
      %v5595 = vshrl.u32 %v5594, 7
      %v5596 = vsub.s32 1, %v5595
      %v5597 = vrot.slane %v449, %v5596
      %v5598 = vlaneseq
      %v5599 = vshrl.u32 %v5598, 7
      %v5600 = vsub.s32 5, %v5599
      %v5601 = vrot.slane %v449, %v5600
      %v5602 = vlaneseq
      %v5603 = vshrl.u32 %v5602, 7
      %v5604 = vsub.s32 1, %v5603
      %v5605 = vrot.slane %v450, %v5604
      %v5606 = vlaneseq
      %v5607 = vshrl.u32 %v5606, 7
      %v5608 = vsub.s32 5, %v5607
      %v5609 = vrot.slane %v450, %v5608
      %v5610 = vlaneseq
      %v5611 = vshrl.u32 %v5610, 7
      %v5612 = vsub.s32 1, %v5611
      %v5613 = vrot.slane %v451, %v5612
      %v5614 = vlaneseq
      %v5615 = vshrl.u32 %v5614, 7
      %v5616 = vsub.s32 5, %v5615
      %v5617 = vrot.slane %v451, %v5616
      %v5618 = vlaneseq
      %v5619 = vshrl.u32 %v5618, 7
      %v5620 = vsub.s32 1, %v5619
      %v5621 = vrot.slane %v452, %v5620
      %v5622 = vlaneseq
      %v5623 = vshrl.u32 %v5622, 7
      %v5624 = vsub.s32 5, %v5623
      %v5625 = vrot.slane %v452, %v5624
      %v5626 = vlaneseq
      %v5627 = vshrl.u32 %v5626, 7
      %v5628 = vsub.s32 1, %v5627
      %v5629 = vrot.slane %v453, %v5628
      %v5630 = vlaneseq
      %v5631 = vshrl.u32 %v5630, 7
      %v5632 = vsub.s32 5, %v5631
      %v5633 = vrot.slane %v453, %v5632
      %v5650 = vlaneseq
      %v5651 = vshrl.u32 %v5650, 7
      %v5652 = vsub.s32 1, %v5651
      %v5653 = vrot.slane %v5573, %v5652
      %v5654 = vlaneseq
      %v5655 = vshrl.u32 %v5654, 7
      %v5656 = vsub.s32 1, %v5655
      %v5657 = vrot.slane %v5577, %v5656
      %v5658 = vlaneseq
      %v5659 = vshrl.u32 %v5658, 7
      %v5660 = vsub.s32 1, %v5659
      %v5661 = vrot.slane %v5581, %v5660
      %v5662 = vlaneseq
      %v5663 = vshrl.u32 %v5662, 7
      %v5664 = vsub.s32 1, %v5663
      %v5665 = vrot.slane %v5585, %v5664
      %v5666 = vlaneseq
      %v5667 = vshrl.u32 %v5666, 7
      %v5668 = vsub.s32 1, %v5667
      %v5669 = vrot.slane %v5589, %v5668
      %v5670 = vlaneseq
      %v5671 = vshrl.u32 %v5670, 7
      %v5672 = vsub.s32 1, %v5671
      %v5673 = vrot.slane %v5593, %v5672
      %v5674 = vlaneseq
      %v5675 = vshrl.u32 %v5674, 7
      %v5676 = vsub.s32 1, %v5675
      %v5677 = vrot.slane %v5597, %v5676
      %v5678 = vlaneseq
      %v5679 = vshrl.u32 %v5678, 7
      %v5680 = vsub.s32 1, %v5679
      %v5681 = vrot.slane %v5601, %v5680
      %v5682 = vlaneseq
      %v5683 = vshrl.u32 %v5682, 7
      %v5684 = vsub.s32 1, %v5683
      %v5685 = vrot.slane %v5605, %v5684
      %v5686 = vlaneseq
      %v5687 = vshrl.u32 %v5686, 7
      %v5688 = vsub.s32 1, %v5687
      %v5689 = vrot.slane %v5609, %v5688
      %v5690 = vlaneseq
      %v5691 = vshrl.u32 %v5690, 7
      %v5692 = vsub.s32 1, %v5691
      %v5693 = vrot.slane %v5613, %v5692
      %v5694 = vlaneseq
      %v5695 = vshrl.u32 %v5694, 7
      %v5696 = vsub.s32 1, %v5695
      %v5697 = vrot.slane %v5617, %v5696
      %v5698 = vlaneseq
      %v5699 = vshrl.u32 %v5698, 7
      %v5700 = vsub.s32 1, %v5699
      %v5701 = vrot.slane %v5621, %v5700
      %v5702 = vlaneseq
      %v5703 = vshrl.u32 %v5702, 7
      %v5704 = vsub.s32 1, %v5703
      %v5705 = vrot.slane %v5625, %v5704
      %v5706 = vlaneseq
      %v5707 = vshrl.u32 %v5706, 7
      %v5708 = vsub.s32 1, %v5707
      %v5709 = vrot.slane %v5629, %v5708
      %v5710 = vlaneseq
      %v5711 = vshrl.u32 %v5710, 7
      %v5712 = vsub.s32 1, %v5711
      %v5713 = vrot.slane %v5633, %v5712
      %v5714 = vmul.f32 %v5099, %v5653
      %v5715 = vmul.f32 %v5101, %v5657
      %v5716 = vmul.f32 %v5162, %v5661
      %v5717 = vmul.f32 %v5164, %v5665
      %v5718 = vmul.f32 %v5225, %v5669
      %v5719 = vmul.f32 %v5227, %v5673
      %v5720 = vmul.f32 %v5288, %v5677
      %v5721 = vmul.f32 %v5290, %v5681
      %v5722 = vmul.f32 %v5351, %v5685
      %v5723 = vmul.f32 %v5353, %v5689
      %v5724 = vmul.f32 %v5414, %v5693
      %v5725 = vmul.f32 %v5416, %v5697
      %v5726 = vmul.f32 %v5477, %v5701
      %v5727 = vmul.f32 %v5479, %v5705
      %v5728 = vmul.f32 %v5540, %v5709
      %v5729 = vmul.f32 %v5542, %v5713
      %v5730 = vmul.f32 %v5103, %v5653
      %v5731 = vmul.f32 %v5105, %v5657
      %v5732 = vmul.f32 %v5166, %v5661
      %v5733 = vmul.f32 %v5168, %v5665
      %v5734 = vmul.f32 %v5229, %v5669
      %v5735 = vmul.f32 %v5231, %v5673
      %v5736 = vmul.f32 %v5292, %v5677
      %v5737 = vmul.f32 %v5294, %v5681
      %v5738 = vmul.f32 %v5355, %v5685
      %v5739 = vmul.f32 %v5357, %v5689
      %v5740 = vmul.f32 %v5418, %v5693
      %v5741 = vmul.f32 %v5420, %v5697
      %v5742 = vmul.f32 %v5481, %v5701
      %v5743 = vmul.f32 %v5483, %v5705
      %v5744 = vmul.f32 %v5544, %v5709
      %v5745 = vmul.f32 %v5546, %v5713
      %v5746 = vmul.f32 %v5109, %v5653
      %v5747 = vmul.f32 %v5111, %v5657
      %v5748 = vmul.f32 %v5172, %v5661
      %v5749 = vmul.f32 %v5174, %v5665
      %v5750 = vmul.f32 %v5235, %v5669
      %v5751 = vmul.f32 %v5237, %v5673
      %v5752 = vmul.f32 %v5298, %v5677
      %v5753 = vmul.f32 %v5300, %v5681
      %v5754 = vmul.f32 %v5361, %v5685
      %v5755 = vmul.f32 %v5363, %v5689
      %v5756 = vmul.f32 %v5424, %v5693
      %v5757 = vmul.f32 %v5426, %v5697
      %v5758 = vmul.f32 %v5487, %v5701
      %v5759 = vmul.f32 %v5489, %v5705
      %v5760 = vmul.f32 %v5550, %v5709
      %v5761 = vmul.f32 %v5552, %v5713
      %v5762 = vmul.f32 %v5113, %v5653
      %v5763 = vmul.f32 %v5115, %v5657
      %v5764 = vmul.f32 %v5176, %v5661
      %v5765 = vmul.f32 %v5178, %v5665
      %v5766 = vmul.f32 %v5239, %v5669
      %v5767 = vmul.f32 %v5241, %v5673
      %v5768 = vmul.f32 %v5302, %v5677
      %v5769 = vmul.f32 %v5304, %v5681
      %v5770 = vmul.f32 %v5365, %v5685
      %v5771 = vmul.f32 %v5367, %v5689
      %v5772 = vmul.f32 %v5428, %v5693
      %v5773 = vmul.f32 %v5430, %v5697
      %v5774 = vmul.f32 %v5491, %v5701
      %v5775 = vmul.f32 %v5493, %v5705
      %v5776 = vmul.f32 %v5554, %v5709
      %v5777 = vmul.f32 %v5556, %v5713
      %v5778 = vmul.f32 %v5119, %v5653
      %v5779 = vmul.f32 %v5121, %v5657
      %v5780 = vmul.f32 %v5182, %v5661
      %v5781 = vmul.f32 %v5184, %v5665
      %v5782 = vmul.f32 %v5245, %v5669
      %v5783 = vmul.f32 %v5247, %v5673
      %v5784 = vmul.f32 %v5308, %v5677
      %v5785 = vmul.f32 %v5310, %v5681
      %v5786 = vmul.f32 %v5371, %v5685
      %v5787 = vmul.f32 %v5373, %v5689
      %v5788 = vmul.f32 %v5434, %v5693
      %v5789 = vmul.f32 %v5436, %v5697
      %v5790 = vmul.f32 %v5497, %v5701
      %v5791 = vmul.f32 %v5499, %v5705
      %v5792 = vmul.f32 %v5560, %v5709
      %v5793 = vmul.f32 %v5562, %v5713
      %v5794 = vmul.f32 %v5123, %v5653
      %v5795 = vmul.f32 %v5125, %v5657
      %v5796 = vmul.f32 %v5186, %v5661
      %v5797 = vmul.f32 %v5188, %v5665
      %v5798 = vmul.f32 %v5249, %v5669
      %v5799 = vmul.f32 %v5251, %v5673
      %v5800 = vmul.f32 %v5312, %v5677
      %v5801 = vmul.f32 %v5314, %v5681
      %v5802 = vmul.f32 %v5375, %v5685
      %v5803 = vmul.f32 %v5377, %v5689
      %v5804 = vmul.f32 %v5438, %v5693
      %v5805 = vmul.f32 %v5440, %v5697
      %v5806 = vmul.f32 %v5501, %v5701
      %v5807 = vmul.f32 %v5503, %v5705
      %v5808 = vmul.f32 %v5564, %v5709
      %v5809 = vmul.f32 %v5566, %v5713
      %v5810 = vlaneseq
      %v5811 = vshrl.u32 %v5810, 7
      %v5812 = vsub.s32 0, %v5811
      %v5813 = vrot.slane %v446, %v5812
      %v5814 = vlaneseq
      %v5815 = vshrl.u32 %v5814, 7
      %v5816 = vsub.s32 4, %v5815
      %v5817 = vrot.slane %v446, %v5816
      %v5818 = vlaneseq
      %v5819 = vshrl.u32 %v5818, 7
      %v5820 = vsub.s32 0, %v5819
      %v5821 = vrot.slane %v447, %v5820
      %v5822 = vlaneseq
      %v5823 = vshrl.u32 %v5822, 7
      %v5824 = vsub.s32 4, %v5823
      %v5825 = vrot.slane %v447, %v5824
      %v5826 = vlaneseq
      %v5827 = vshrl.u32 %v5826, 7
      %v5828 = vsub.s32 0, %v5827
      %v5829 = vrot.slane %v448, %v5828
      %v5830 = vlaneseq
      %v5831 = vshrl.u32 %v5830, 7
      %v5832 = vsub.s32 4, %v5831
      %v5833 = vrot.slane %v448, %v5832
      %v5834 = vlaneseq
      %v5835 = vshrl.u32 %v5834, 7
      %v5836 = vsub.s32 0, %v5835
      %v5837 = vrot.slane %v449, %v5836
      %v5838 = vlaneseq
      %v5839 = vshrl.u32 %v5838, 7
      %v5840 = vsub.s32 4, %v5839
      %v5841 = vrot.slane %v449, %v5840
      %v5842 = vlaneseq
      %v5843 = vshrl.u32 %v5842, 7
      %v5844 = vsub.s32 0, %v5843
      %v5845 = vrot.slane %v450, %v5844
      %v5846 = vlaneseq
      %v5847 = vshrl.u32 %v5846, 7
      %v5848 = vsub.s32 4, %v5847
      %v5849 = vrot.slane %v450, %v5848
      %v5850 = vlaneseq
      %v5851 = vshrl.u32 %v5850, 7
      %v5852 = vsub.s32 0, %v5851
      %v5853 = vrot.slane %v451, %v5852
      %v5854 = vlaneseq
      %v5855 = vshrl.u32 %v5854, 7
      %v5856 = vsub.s32 4, %v5855
      %v5857 = vrot.slane %v451, %v5856
      %v5858 = vlaneseq
      %v5859 = vshrl.u32 %v5858, 7
      %v5860 = vsub.s32 0, %v5859
      %v5861 = vrot.slane %v452, %v5860
      %v5862 = vlaneseq
      %v5863 = vshrl.u32 %v5862, 7
      %v5864 = vsub.s32 4, %v5863
      %v5865 = vrot.slane %v452, %v5864
      %v5866 = vlaneseq
      %v5867 = vshrl.u32 %v5866, 7
      %v5868 = vsub.s32 0, %v5867
      %v5869 = vrot.slane %v453, %v5868
      %v5870 = vlaneseq
      %v5871 = vshrl.u32 %v5870, 7
      %v5872 = vsub.s32 4, %v5871
      %v5873 = vrot.slane %v453, %v5872
      %v5890 = vlaneseq
      %v5891 = vshrl.u32 %v5890, 7
      %v5892 = vsub.s32 0, %v5891
      %v5893 = vrot.slane %v5813, %v5892
      %v5894 = vlaneseq
      %v5895 = vshrl.u32 %v5894, 7
      %v5896 = vsub.s32 0, %v5895
      %v5897 = vrot.slane %v5817, %v5896
      %v5898 = vlaneseq
      %v5899 = vshrl.u32 %v5898, 7
      %v5900 = vsub.s32 0, %v5899
      %v5901 = vrot.slane %v5821, %v5900
      %v5902 = vlaneseq
      %v5903 = vshrl.u32 %v5902, 7
      %v5904 = vsub.s32 0, %v5903
      %v5905 = vrot.slane %v5825, %v5904
      %v5906 = vlaneseq
      %v5907 = vshrl.u32 %v5906, 7
      %v5908 = vsub.s32 0, %v5907
      %v5909 = vrot.slane %v5829, %v5908
      %v5910 = vlaneseq
      %v5911 = vshrl.u32 %v5910, 7
      %v5912 = vsub.s32 0, %v5911
      %v5913 = vrot.slane %v5833, %v5912
      %v5914 = vlaneseq
      %v5915 = vshrl.u32 %v5914, 7
      %v5916 = vsub.s32 0, %v5915
      %v5917 = vrot.slane %v5837, %v5916
      %v5918 = vlaneseq
      %v5919 = vshrl.u32 %v5918, 7
      %v5920 = vsub.s32 0, %v5919
      %v5921 = vrot.slane %v5841, %v5920
      %v5922 = vlaneseq
      %v5923 = vshrl.u32 %v5922, 7
      %v5924 = vsub.s32 0, %v5923
      %v5925 = vrot.slane %v5845, %v5924
      %v5926 = vlaneseq
      %v5927 = vshrl.u32 %v5926, 7
      %v5928 = vsub.s32 0, %v5927
      %v5929 = vrot.slane %v5849, %v5928
      %v5930 = vlaneseq
      %v5931 = vshrl.u32 %v5930, 7
      %v5932 = vsub.s32 0, %v5931
      %v5933 = vrot.slane %v5853, %v5932
      %v5934 = vlaneseq
      %v5935 = vshrl.u32 %v5934, 7
      %v5936 = vsub.s32 0, %v5935
      %v5937 = vrot.slane %v5857, %v5936
      %v5938 = vlaneseq
      %v5939 = vshrl.u32 %v5938, 7
      %v5940 = vsub.s32 0, %v5939
      %v5941 = vrot.slane %v5861, %v5940
      %v5942 = vlaneseq
      %v5943 = vshrl.u32 %v5942, 7
      %v5944 = vsub.s32 0, %v5943
      %v5945 = vrot.slane %v5865, %v5944
      %v5946 = vlaneseq
      %v5947 = vshrl.u32 %v5946, 7
      %v5948 = vsub.s32 0, %v5947
      %v5949 = vrot.slane %v5869, %v5948
      %v5950 = vlaneseq
      %v5951 = vshrl.u32 %v5950, 7
      %v5952 = vsub.s32 0, %v5951
      %v5953 = vrot.slane %v5873, %v5952
      %v5954 = vadd.f32 %v5714, %v5893
      %v5955 = vadd.f32 %v5715, %v5897
      %v5956 = vadd.f32 %v5716, %v5901
      %v5957 = vadd.f32 %v5717, %v5905
      %v5958 = vadd.f32 %v5718, %v5909
      %v5959 = vadd.f32 %v5719, %v5913
      %v5960 = vadd.f32 %v5720, %v5917
      %v5961 = vadd.f32 %v5721, %v5921
      %v5962 = vadd.f32 %v5722, %v5925
      %v5963 = vadd.f32 %v5723, %v5929
      %v5964 = vadd.f32 %v5724, %v5933
      %v5965 = vadd.f32 %v5725, %v5937
      %v5966 = vadd.f32 %v5726, %v5941
      %v5967 = vadd.f32 %v5727, %v5945
      %v5968 = vadd.f32 %v5728, %v5949
      %v5969 = vadd.f32 %v5729, %v5953
      %v5970 = vadd.f32 %v5730, %v5893
      %v5971 = vadd.f32 %v5731, %v5897
      %v5972 = vadd.f32 %v5732, %v5901
      %v5973 = vadd.f32 %v5733, %v5905
      %v5974 = vadd.f32 %v5734, %v5909
      %v5975 = vadd.f32 %v5735, %v5913
      %v5976 = vadd.f32 %v5736, %v5917
      %v5977 = vadd.f32 %v5737, %v5921
      %v5978 = vadd.f32 %v5738, %v5925
      %v5979 = vadd.f32 %v5739, %v5929
      %v5980 = vadd.f32 %v5740, %v5933
      %v5981 = vadd.f32 %v5741, %v5937
      %v5982 = vadd.f32 %v5742, %v5941
      %v5983 = vadd.f32 %v5743, %v5945
      %v5984 = vadd.f32 %v5744, %v5949
      %v5985 = vadd.f32 %v5745, %v5953
      %v5986 = vadd.f32 %v5746, %v5893
      %v5987 = vadd.f32 %v5747, %v5897
      %v5988 = vadd.f32 %v5748, %v5901
      %v5989 = vadd.f32 %v5749, %v5905
      %v5990 = vadd.f32 %v5750, %v5909
      %v5991 = vadd.f32 %v5751, %v5913
      %v5992 = vadd.f32 %v5752, %v5917
      %v5993 = vadd.f32 %v5753, %v5921
      %v5994 = vadd.f32 %v5754, %v5925
      %v5995 = vadd.f32 %v5755, %v5929
      %v5996 = vadd.f32 %v5756, %v5933
      %v5997 = vadd.f32 %v5757, %v5937
      %v5998 = vadd.f32 %v5758, %v5941
      %v5999 = vadd.f32 %v5759, %v5945
      %v6000 = vadd.f32 %v5760, %v5949
      %v6001 = vadd.f32 %v5761, %v5953
      %v6002 = vadd.f32 %v5762, %v5893
      %v6003 = vadd.f32 %v5763, %v5897
      %v6004 = vadd.f32 %v5764, %v5901
      %v6005 = vadd.f32 %v5765, %v5905
      %v6006 = vadd.f32 %v5766, %v5909
      %v6007 = vadd.f32 %v5767, %v5913
      %v6008 = vadd.f32 %v5768, %v5917
      %v6009 = vadd.f32 %v5769, %v5921
      %v6010 = vadd.f32 %v5770, %v5925
      %v6011 = vadd.f32 %v5771, %v5929
      %v6012 = vadd.f32 %v5772, %v5933
      %v6013 = vadd.f32 %v5773, %v5937
      %v6014 = vadd.f32 %v5774, %v5941
      %v6015 = vadd.f32 %v5775, %v5945
      %v6016 = vadd.f32 %v5776, %v5949
      %v6017 = vadd.f32 %v5777, %v5953
      %v6018 = vadd.f32 %v5778, %v5893
      %v6019 = vadd.f32 %v5779, %v5897
      %v6020 = vadd.f32 %v5780, %v5901
      %v6021 = vadd.f32 %v5781, %v5905
      %v6022 = vadd.f32 %v5782, %v5909
      %v6023 = vadd.f32 %v5783, %v5913
      %v6024 = vadd.f32 %v5784, %v5917
      %v6025 = vadd.f32 %v5785, %v5921
      %v6026 = vadd.f32 %v5786, %v5925
      %v6027 = vadd.f32 %v5787, %v5929
      %v6028 = vadd.f32 %v5788, %v5933
      %v6029 = vadd.f32 %v5789, %v5937
      %v6030 = vadd.f32 %v5790, %v5941
      %v6031 = vadd.f32 %v5791, %v5945
      %v6032 = vadd.f32 %v5792, %v5949
      %v6033 = vadd.f32 %v5793, %v5953
      %v6034 = vadd.f32 %v5794, %v5893
      %v6035 = vadd.f32 %v5795, %v5897
      %v6036 = vadd.f32 %v5796, %v5901
      %v6037 = vadd.f32 %v5797, %v5905
      %v6038 = vadd.f32 %v5798, %v5909
      %v6039 = vadd.f32 %v5799, %v5913
      %v6040 = vadd.f32 %v5800, %v5917
      %v6041 = vadd.f32 %v5801, %v5921
      %v6042 = vadd.f32 %v5802, %v5925
      %v6043 = vadd.f32 %v5803, %v5929
      %v6044 = vadd.f32 %v5804, %v5933
      %v6045 = vadd.f32 %v5805, %v5937
      %v6046 = vadd.f32 %v5806, %v5941
      %v6047 = vadd.f32 %v5807, %v5945
      %v6048 = vadd.f32 %v5808, %v5949
      %v6049 = vadd.f32 %v5809, %v5953
      %v6050 = vmax.f32 %v5954, 0.0
      %v6051 = vmax.f32 %v5955, 0.0
      %v6052 = vmax.f32 %v5956, 0.0
      %v6053 = vmax.f32 %v5957, 0.0
      %v6054 = vmax.f32 %v5958, 0.0
      %v6055 = vmax.f32 %v5959, 0.0
      %v6056 = vmax.f32 %v5960, 0.0
      %v6057 = vmax.f32 %v5961, 0.0
      %v6058 = vmax.f32 %v5962, 0.0
      %v6059 = vmax.f32 %v5963, 0.0
      %v6060 = vmax.f32 %v5964, 0.0
      %v6061 = vmax.f32 %v5965, 0.0
      %v6062 = vmax.f32 %v5966, 0.0
      %v6063 = vmax.f32 %v5967, 0.0
      %v6064 = vmax.f32 %v5968, 0.0
      %v6065 = vmax.f32 %v5969, 0.0
      %v6066 = vmax.f32 %v5970, 0.0
      %v6067 = vmax.f32 %v5971, 0.0
      %v6068 = vmax.f32 %v5972, 0.0
      %v6069 = vmax.f32 %v5973, 0.0
      %v6070 = vmax.f32 %v5974, 0.0
      %v6071 = vmax.f32 %v5975, 0.0
      %v6072 = vmax.f32 %v5976, 0.0
      %v6073 = vmax.f32 %v5977, 0.0
      %v6074 = vmax.f32 %v5978, 0.0
      %v6075 = vmax.f32 %v5979, 0.0
      %v6076 = vmax.f32 %v5980, 0.0
      %v6077 = vmax.f32 %v5981, 0.0
      %v6078 = vmax.f32 %v5982, 0.0
      %v6079 = vmax.f32 %v5983, 0.0
      %v6080 = vmax.f32 %v5984, 0.0
      %v6081 = vmax.f32 %v5985, 0.0
      %v6082 = vmax.f32 %v5986, 0.0
      %v6083 = vmax.f32 %v5987, 0.0
      %v6084 = vmax.f32 %v5988, 0.0
      %v6085 = vmax.f32 %v5989, 0.0
      %v6086 = vmax.f32 %v5990, 0.0
      %v6087 = vmax.f32 %v5991, 0.0
      %v6088 = vmax.f32 %v5992, 0.0
      %v6089 = vmax.f32 %v5993, 0.0
      %v6090 = vmax.f32 %v5994, 0.0
      %v6091 = vmax.f32 %v5995, 0.0
      %v6092 = vmax.f32 %v5996, 0.0
      %v6093 = vmax.f32 %v5997, 0.0
      %v6094 = vmax.f32 %v5998, 0.0
      %v6095 = vmax.f32 %v5999, 0.0
      %v6096 = vmax.f32 %v6000, 0.0
      %v6097 = vmax.f32 %v6001, 0.0
      %v6098 = vmax.f32 %v6002, 0.0
      %v6099 = vmax.f32 %v6003, 0.0
      %v6100 = vmax.f32 %v6004, 0.0
      %v6101 = vmax.f32 %v6005, 0.0
      %v6102 = vmax.f32 %v6006, 0.0
      %v6103 = vmax.f32 %v6007, 0.0
      %v6104 = vmax.f32 %v6008, 0.0
      %v6105 = vmax.f32 %v6009, 0.0
      %v6106 = vmax.f32 %v6010, 0.0
      %v6107 = vmax.f32 %v6011, 0.0
      %v6108 = vmax.f32 %v6012, 0.0
      %v6109 = vmax.f32 %v6013, 0.0
      %v6110 = vmax.f32 %v6014, 0.0
      %v6111 = vmax.f32 %v6015, 0.0
      %v6112 = vmax.f32 %v6016, 0.0
      %v6113 = vmax.f32 %v6017, 0.0
      %v6114 = vmax.f32 %v6018, 0.0
      %v6115 = vmax.f32 %v6019, 0.0
      %v6116 = vmax.f32 %v6020, 0.0
      %v6117 = vmax.f32 %v6021, 0.0
      %v6118 = vmax.f32 %v6022, 0.0
      %v6119 = vmax.f32 %v6023, 0.0
      %v6120 = vmax.f32 %v6024, 0.0
      %v6121 = vmax.f32 %v6025, 0.0
      %v6122 = vmax.f32 %v6026, 0.0
      %v6123 = vmax.f32 %v6027, 0.0
      %v6124 = vmax.f32 %v6028, 0.0
      %v6125 = vmax.f32 %v6029, 0.0
      %v6126 = vmax.f32 %v6030, 0.0
      %v6127 = vmax.f32 %v6031, 0.0
      %v6128 = vmax.f32 %v6032, 0.0
      %v6129 = vmax.f32 %v6033, 0.0
      %v6130 = vmax.f32 %v6034, 0.0
      %v6131 = vmax.f32 %v6035, 0.0
      %v6132 = vmax.f32 %v6036, 0.0
      %v6133 = vmax.f32 %v6037, 0.0
      %v6134 = vmax.f32 %v6038, 0.0
      %v6135 = vmax.f32 %v6039, 0.0
      %v6136 = vmax.f32 %v6040, 0.0
      %v6137 = vmax.f32 %v6041, 0.0
      %v6138 = vmax.f32 %v6042, 0.0
      %v6139 = vmax.f32 %v6043, 0.0
      %v6140 = vmax.f32 %v6044, 0.0
      %v6141 = vmax.f32 %v6045, 0.0
      %v6142 = vmax.f32 %v6046, 0.0
      %v6143 = vmax.f32 %v6047, 0.0
      %v6144 = vmax.f32 %v6048, 0.0
      %v6145 = vmax.f32 %v6049, 0.0
      %v6146 = vld [vmem:[%s392] sm:$0xff]
      %v6147 = vld [vmem:[%s392 + $0x8] sm:$0xff]
      %v6148 = vld [vmem:[%s392 + $0x10] sm:$0xff]
      %v6149 = vld [vmem:[%s392 + $0x18] sm:$0xff]
      %v6150 = vld [vmem:[%s392 + $0x20] sm:$0xff]
      %v6151 = vld [vmem:[%s392 + $0x28] sm:$0xff]
      %v6152 = vld [vmem:[%s392 + $0x30] sm:$0xff]
      %v6153 = vld [vmem:[%s392 + $0x38] sm:$0xff]
      %v6154 = vld [vmem:[%s392 + $0x40] sm:$0xff]
      %v6155 = vld [vmem:[%s392 + $0x48] sm:$0xff]
      %v6156 = vld [vmem:[%s392 + $0x50] sm:$0xff]
      %v6157 = vld [vmem:[%s392 + $0x58] sm:$0xff]
      %v6158 = vld [vmem:[%s392 + $0x60] sm:$0xff]
      %v6159 = vld [vmem:[%s392 + $0x68] sm:$0xff]
      %v6160 = vld [vmem:[%s392 + $0x70] sm:$0xff]
      %v6161 = vld [vmem:[%s392 + $0x78] sm:$0xff]
      %v6162 = vld [vmem:[%s392 + $0x80] sm:$0xff]
      %v6163 = vld [vmem:[%s392 + $0x88] sm:$0xff]
      %v6164 = vld [vmem:[%s392 + $0x90] sm:$0xff]
      %v6165 = vld [vmem:[%s392 + $0x98] sm:$0xff]
      %v6166 = vld [vmem:[%s392 + $0xa0] sm:$0xff]
      %v6167 = vld [vmem:[%s392 + $0xa8] sm:$0xff]
      %v6168 = vld [vmem:[%s392 + $0xb0] sm:$0xff]
      %v6169 = vld [vmem:[%s392 + $0xb8] sm:$0xff]
      %v6170 = vld [vmem:[%s392 + $0xc0] sm:$0xff]
      %v6171 = vld [vmem:[%s392 + $0xc8] sm:$0xff]
      %v6172 = vld [vmem:[%s392 + $0xd0] sm:$0xff]
      %v6173 = vld [vmem:[%s392 + $0xd8] sm:$0xff]
      %v6174 = vld [vmem:[%s392 + $0xe0] sm:$0xff]
      %v6175 = vld [vmem:[%s392 + $0xe8] sm:$0xff]
      %v6176 = vld [vmem:[%s392 + $0xf0] sm:$0xff]
      %v6177 = vld [vmem:[%s392 + $0xf8] sm:$0xff]
      %v6178 = vld [vmem:[%s392 + $0x100] sm:$0xff]
      %v6179 = vld [vmem:[%s392 + $0x108] sm:$0xff]
      %v6180 = vld [vmem:[%s392 + $0x110] sm:$0xff]
      %v6181 = vld [vmem:[%s392 + $0x118] sm:$0xff]
      %v6182 = vld [vmem:[%s392 + $0x120] sm:$0xff]
      %v6183 = vld [vmem:[%s392 + $0x128] sm:$0xff]
      %v6184 = vld [vmem:[%s392 + $0x130] sm:$0xff]
      %v6185 = vld [vmem:[%s392 + $0x138] sm:$0xff]
      %v6186 = vld [vmem:[%s392 + $0x140] sm:$0xff]
      %v6187 = vld [vmem:[%s392 + $0x148] sm:$0xff]
      %v6188 = vld [vmem:[%s392 + $0x150] sm:$0xff]
      %v6189 = vld [vmem:[%s392 + $0x158] sm:$0xff]
      %v6190 = vld [vmem:[%s392 + $0x160] sm:$0xff]
      %v6191 = vld [vmem:[%s392 + $0x168] sm:$0xff]
      %v6192 = vld [vmem:[%s392 + $0x170] sm:$0xff]
      %v6193 = vld [vmem:[%s392 + $0x178] sm:$0xff]
      %v6194 = vld [vmem:[%s392 + $0x180] sm:$0xff]
      %v6195 = vld [vmem:[%s392 + $0x188] sm:$0xff]
      %v6196 = vld [vmem:[%s392 + $0x190] sm:$0xff]
      %v6197 = vld [vmem:[%s392 + $0x198] sm:$0xff]
      %v6198 = vld [vmem:[%s392 + $0x1a0] sm:$0xff]
      %v6199 = vld [vmem:[%s392 + $0x1a8] sm:$0xff]
      %v6200 = vld [vmem:[%s392 + $0x1b0] sm:$0xff]
      %v6201 = vld [vmem:[%s392 + $0x1b8] sm:$0xff]
      %v6202 = vld [vmem:[%s392 + $0x1c0] sm:$0xff]
      %v6203 = vld [vmem:[%s392 + $0x1c8] sm:$0xff]
      %v6204 = vld [vmem:[%s392 + $0x1d0] sm:$0xff]
      %v6205 = vld [vmem:[%s392 + $0x1d8] sm:$0xff]
      %v6206 = vld [vmem:[%s392 + $0x1e0] sm:$0xff]
      %v6207 = vld [vmem:[%s392 + $0x1e8] sm:$0xff]
      %v6208 = vld [vmem:[%s392 + $0x1f0] sm:$0xff]
      %v6209 = vld [vmem:[%s392 + $0x1f8] sm:$0xff]
      %v6210 = vld [vmem:[%s392 + $0x200] sm:$0xff]
      %v6211 = vld [vmem:[%s392 + $0x208] sm:$0xff]
      %v6212 = vld [vmem:[%s392 + $0x210] sm:$0xff]
      %v6213 = vld [vmem:[%s392 + $0x218] sm:$0xff]
      %v6214 = vld [vmem:[%s392 + $0x220] sm:$0xff]
      %v6215 = vld [vmem:[%s392 + $0x228] sm:$0xff]
      %v6216 = vld [vmem:[%s392 + $0x230] sm:$0xff]
      %v6217 = vld [vmem:[%s392 + $0x238] sm:$0xff]
      %v6218 = vld [vmem:[%s392 + $0x240] sm:$0xff]
      %v6219 = vld [vmem:[%s392 + $0x248] sm:$0xff]
      %v6220 = vld [vmem:[%s392 + $0x250] sm:$0xff]
      %v6221 = vld [vmem:[%s392 + $0x258] sm:$0xff]
      %v6222 = vld [vmem:[%s392 + $0x260] sm:$0xff]
      %v6223 = vld [vmem:[%s392 + $0x268] sm:$0xff]
      %v6224 = vld [vmem:[%s392 + $0x270] sm:$0xff]
      %v6225 = vld [vmem:[%s392 + $0x278] sm:$0xff]
      %v6226 = vld [vmem:[%s392 + $0x280] sm:$0xff]
      %v6227 = vld [vmem:[%s392 + $0x288] sm:$0xff]
      %v6228 = vld [vmem:[%s392 + $0x290] sm:$0xff]
      %v6229 = vld [vmem:[%s392 + $0x298] sm:$0xff]
      %v6230 = vld [vmem:[%s392 + $0x2a0] sm:$0xff]
      %v6231 = vld [vmem:[%s392 + $0x2a8] sm:$0xff]
      %v6232 = vld [vmem:[%s392 + $0x2b0] sm:$0xff]
      %v6233 = vld [vmem:[%s392 + $0x2b8] sm:$0xff]
      %v6234 = vld [vmem:[%s392 + $0x2c0] sm:$0xff]
      %v6235 = vld [vmem:[%s392 + $0x2c8] sm:$0xff]
      %v6236 = vld [vmem:[%s392 + $0x2d0] sm:$0xff]
      %v6237 = vld [vmem:[%s392 + $0x2d8] sm:$0xff]
      %v6238 = vld [vmem:[%s392 + $0x2e0] sm:$0xff]
      %v6239 = vld [vmem:[%s392 + $0x2e8] sm:$0xff]
      %v6240 = vld [vmem:[%s392 + $0x2f0] sm:$0xff]
      %v6241 = vld [vmem:[%s392 + $0x2f8] sm:$0xff]
      %v6242 = vld [vmem:[%s392 + $0x300] sm:$0xff]
      %v6243 = vld [vmem:[%s392 + $0x308] sm:$0xff]
      %v6244 = vld [vmem:[%s392 + $0x310] sm:$0xff]
      %v6245 = vld [vmem:[%s392 + $0x318] sm:$0xff]
      %v6246 = vld [vmem:[%s392 + $0x320] sm:$0xff]
      %v6247 = vld [vmem:[%s392 + $0x328] sm:$0xff]
      %v6248 = vld [vmem:[%s392 + $0x330] sm:$0xff]
      %v6249 = vld [vmem:[%s392 + $0x338] sm:$0xff]
      %v6250 = vld [vmem:[%s392 + $0x340] sm:$0xff]
      %v6251 = vld [vmem:[%s392 + $0x348] sm:$0xff]
      %v6252 = vld [vmem:[%s392 + $0x350] sm:$0xff]
      %v6253 = vld [vmem:[%s392 + $0x358] sm:$0xff]
      %v6254 = vld [vmem:[%s392 + $0x360] sm:$0xff]
      %v6255 = vld [vmem:[%s392 + $0x368] sm:$0xff]
      %v6256 = vld [vmem:[%s392 + $0x370] sm:$0xff]
      %v6257 = vld [vmem:[%s392 + $0x378] sm:$0xff]
      %v6258 = vld [vmem:[%s392 + $0x380] sm:$0xff]
      %v6259 = vld [vmem:[%s392 + $0x388] sm:$0xff]
      %v6260 = vld [vmem:[%s392 + $0x390] sm:$0xff]
      %v6261 = vld [vmem:[%s392 + $0x398] sm:$0xff]
      %v6262 = vld [vmem:[%s392 + $0x3a0] sm:$0xff]
      %v6263 = vld [vmem:[%s392 + $0x3a8] sm:$0xff]
      %v6264 = vld [vmem:[%s392 + $0x3b0] sm:$0xff]
      %v6265 = vld [vmem:[%s392 + $0x3b8] sm:$0xff]
      %v6266 = vld [vmem:[%s392 + $0x3c0] sm:$0xff]
      %v6267 = vld [vmem:[%s392 + $0x3c8] sm:$0xff]
      %v6268 = vld [vmem:[%s392 + $0x3d0] sm:$0xff]
      %v6269 = vld [vmem:[%s392 + $0x3d8] sm:$0xff]
      %v6270 = vld [vmem:[%s392 + $0x3e0] sm:$0xff]
      %v6271 = vld [vmem:[%s392 + $0x3e8] sm:$0xff]
      %v6272 = vld [vmem:[%s392 + $0x3f0] sm:$0xff]
      %v6273 = vld [vmem:[%s392 + $0x3f8] sm:$0xff]
      %v6274 = vunpack.c.l.s8.bf16 %v6146
      %v6275 = vunpack.c.l.s8.bf16 %v6147
      %v6276 = vunpack.c.h.s8.bf16 %v6146
      %v6277 = vunpack.c.h.s8.bf16 %v6147
      %v6278 = vunpack.c.l.s8.bf16 %v6148
      %v6279 = vunpack.c.l.s8.bf16 %v6149
      %v6280 = vunpack.c.h.s8.bf16 %v6148
      %v6281 = vunpack.c.h.s8.bf16 %v6149
      %v6282 = vunpack.c.l.s8.bf16 %v6150
      %v6283 = vunpack.c.l.s8.bf16 %v6151
      %v6284 = vunpack.c.h.s8.bf16 %v6150
      %v6285 = vunpack.c.h.s8.bf16 %v6151
      %v6286 = vunpack.c.l.s8.bf16 %v6152
      %v6287 = vunpack.c.l.s8.bf16 %v6153
      %v6288 = vunpack.c.h.s8.bf16 %v6152
      %v6289 = vunpack.c.h.s8.bf16 %v6153
      %v6290 = vunpack.c.l.s8.bf16 %v6154
      %v6291 = vunpack.c.l.s8.bf16 %v6155
      %v6292 = vunpack.c.h.s8.bf16 %v6154
      %v6293 = vunpack.c.h.s8.bf16 %v6155
      %v6294 = vunpack.c.l.s8.bf16 %v6156
      %v6295 = vunpack.c.l.s8.bf16 %v6157
      %v6296 = vunpack.c.h.s8.bf16 %v6156
      %v6297 = vunpack.c.h.s8.bf16 %v6157
      %v6298 = vunpack.c.l.s8.bf16 %v6158
      %v6299 = vunpack.c.l.s8.bf16 %v6159
      %v6300 = vunpack.c.h.s8.bf16 %v6158
      %v6301 = vunpack.c.h.s8.bf16 %v6159
      %v6302 = vunpack.c.l.s8.bf16 %v6160
      %v6303 = vunpack.c.l.s8.bf16 %v6161
      %v6304 = vunpack.c.h.s8.bf16 %v6160
      %v6305 = vunpack.c.h.s8.bf16 %v6161
      %v6306 = vunpack.c.l.s8.bf16 %v6162
      %v6307 = vunpack.c.l.s8.bf16 %v6163
      %v6308 = vunpack.c.h.s8.bf16 %v6162
      %v6309 = vunpack.c.h.s8.bf16 %v6163
      %v6310 = vunpack.c.l.s8.bf16 %v6164
      %v6311 = vunpack.c.l.s8.bf16 %v6165
      %v6312 = vunpack.c.h.s8.bf16 %v6164
      %v6313 = vunpack.c.h.s8.bf16 %v6165
      %v6314 = vunpack.c.l.s8.bf16 %v6166
      %v6315 = vunpack.c.l.s8.bf16 %v6167
      %v6316 = vunpack.c.h.s8.bf16 %v6166
      %v6317 = vunpack.c.h.s8.bf16 %v6167
      %v6318 = vunpack.c.l.s8.bf16 %v6168
      %v6319 = vunpack.c.l.s8.bf16 %v6169
      %v6320 = vunpack.c.h.s8.bf16 %v6168
      %v6321 = vunpack.c.h.s8.bf16 %v6169
      %v6322 = vunpack.c.l.s8.bf16 %v6170
      %v6323 = vunpack.c.l.s8.bf16 %v6171
      %v6324 = vunpack.c.h.s8.bf16 %v6170
      %v6325 = vunpack.c.h.s8.bf16 %v6171
      %v6326 = vunpack.c.l.s8.bf16 %v6172
      %v6327 = vunpack.c.l.s8.bf16 %v6173
      %v6328 = vunpack.c.h.s8.bf16 %v6172
      %v6329 = vunpack.c.h.s8.bf16 %v6173
      %v6330 = vunpack.c.l.s8.bf16 %v6174
      %v6331 = vunpack.c.l.s8.bf16 %v6175
      %v6332 = vunpack.c.h.s8.bf16 %v6174
      %v6333 = vunpack.c.h.s8.bf16 %v6175
      %v6334 = vunpack.c.l.s8.bf16 %v6176
      %v6335 = vunpack.c.l.s8.bf16 %v6177
      %v6336 = vunpack.c.h.s8.bf16 %v6176
      %v6337 = vunpack.c.h.s8.bf16 %v6177
      %v6338 = vunpack.c.l.s8.bf16 %v6178
      %v6339 = vunpack.c.l.s8.bf16 %v6179
      %v6340 = vunpack.c.h.s8.bf16 %v6178
      %v6341 = vunpack.c.h.s8.bf16 %v6179
      %v6342 = vunpack.c.l.s8.bf16 %v6180
      %v6343 = vunpack.c.l.s8.bf16 %v6181
      %v6344 = vunpack.c.h.s8.bf16 %v6180
      %v6345 = vunpack.c.h.s8.bf16 %v6181
      %v6346 = vunpack.c.l.s8.bf16 %v6182
      %v6347 = vunpack.c.l.s8.bf16 %v6183
      %v6348 = vunpack.c.h.s8.bf16 %v6182
      %v6349 = vunpack.c.h.s8.bf16 %v6183
      %v6350 = vunpack.c.l.s8.bf16 %v6184
      %v6351 = vunpack.c.l.s8.bf16 %v6185
      %v6352 = vunpack.c.h.s8.bf16 %v6184
      %v6353 = vunpack.c.h.s8.bf16 %v6185
      %v6354 = vunpack.c.l.s8.bf16 %v6186
      %v6355 = vunpack.c.l.s8.bf16 %v6187
      %v6356 = vunpack.c.h.s8.bf16 %v6186
      %v6357 = vunpack.c.h.s8.bf16 %v6187
      %v6358 = vunpack.c.l.s8.bf16 %v6188
      %v6359 = vunpack.c.l.s8.bf16 %v6189
      %v6360 = vunpack.c.h.s8.bf16 %v6188
      %v6361 = vunpack.c.h.s8.bf16 %v6189
      %v6362 = vunpack.c.l.s8.bf16 %v6190
      %v6363 = vunpack.c.l.s8.bf16 %v6191
      %v6364 = vunpack.c.h.s8.bf16 %v6190
      %v6365 = vunpack.c.h.s8.bf16 %v6191
      %v6366 = vunpack.c.l.s8.bf16 %v6192
      %v6367 = vunpack.c.l.s8.bf16 %v6193
      %v6368 = vunpack.c.h.s8.bf16 %v6192
      %v6369 = vunpack.c.h.s8.bf16 %v6193
      %v6370 = vunpack.c.l.s8.bf16 %v6194
      %v6371 = vunpack.c.l.s8.bf16 %v6195
      %v6372 = vunpack.c.h.s8.bf16 %v6194
      %v6373 = vunpack.c.h.s8.bf16 %v6195
      %v6374 = vunpack.c.l.s8.bf16 %v6196
      %v6375 = vunpack.c.l.s8.bf16 %v6197
      %v6376 = vunpack.c.h.s8.bf16 %v6196
      %v6377 = vunpack.c.h.s8.bf16 %v6197
      %v6378 = vunpack.c.l.s8.bf16 %v6198
      %v6379 = vunpack.c.l.s8.bf16 %v6199
      %v6380 = vunpack.c.h.s8.bf16 %v6198
      %v6381 = vunpack.c.h.s8.bf16 %v6199
      %v6382 = vunpack.c.l.s8.bf16 %v6200
      %v6383 = vunpack.c.l.s8.bf16 %v6201
      %v6384 = vunpack.c.h.s8.bf16 %v6200
      %v6385 = vunpack.c.h.s8.bf16 %v6201
      %v6386 = vunpack.c.l.s8.bf16 %v6202
      %v6387 = vunpack.c.l.s8.bf16 %v6203
      %v6388 = vunpack.c.h.s8.bf16 %v6202
      %v6389 = vunpack.c.h.s8.bf16 %v6203
      %v6390 = vunpack.c.l.s8.bf16 %v6204
      %v6391 = vunpack.c.l.s8.bf16 %v6205
      %v6392 = vunpack.c.h.s8.bf16 %v6204
      %v6393 = vunpack.c.h.s8.bf16 %v6205
      %v6394 = vunpack.c.l.s8.bf16 %v6206
      %v6395 = vunpack.c.l.s8.bf16 %v6207
      %v6396 = vunpack.c.h.s8.bf16 %v6206
      %v6397 = vunpack.c.h.s8.bf16 %v6207
      %v6398 = vunpack.c.l.s8.bf16 %v6208
      %v6399 = vunpack.c.l.s8.bf16 %v6209
      %v6400 = vunpack.c.h.s8.bf16 %v6208
      %v6401 = vunpack.c.h.s8.bf16 %v6209
      %v6402 = vunpack.c.l.s8.bf16 %v6210
      %v6403 = vunpack.c.l.s8.bf16 %v6211
      %v6404 = vunpack.c.h.s8.bf16 %v6210
      %v6405 = vunpack.c.h.s8.bf16 %v6211
      %v6406 = vunpack.c.l.s8.bf16 %v6212
      %v6407 = vunpack.c.l.s8.bf16 %v6213
      %v6408 = vunpack.c.h.s8.bf16 %v6212
      %v6409 = vunpack.c.h.s8.bf16 %v6213
      %v6410 = vunpack.c.l.s8.bf16 %v6214
      %v6411 = vunpack.c.l.s8.bf16 %v6215
      %v6412 = vunpack.c.h.s8.bf16 %v6214
      %v6413 = vunpack.c.h.s8.bf16 %v6215
      %v6414 = vunpack.c.l.s8.bf16 %v6216
      %v6415 = vunpack.c.l.s8.bf16 %v6217
      %v6416 = vunpack.c.h.s8.bf16 %v6216
      %v6417 = vunpack.c.h.s8.bf16 %v6217
      %v6418 = vunpack.c.l.s8.bf16 %v6218
      %v6419 = vunpack.c.l.s8.bf16 %v6219
      %v6420 = vunpack.c.h.s8.bf16 %v6218
      %v6421 = vunpack.c.h.s8.bf16 %v6219
      %v6422 = vunpack.c.l.s8.bf16 %v6220
      %v6423 = vunpack.c.l.s8.bf16 %v6221
      %v6424 = vunpack.c.h.s8.bf16 %v6220
      %v6425 = vunpack.c.h.s8.bf16 %v6221
      %v6426 = vunpack.c.l.s8.bf16 %v6222
      %v6427 = vunpack.c.l.s8.bf16 %v6223
      %v6428 = vunpack.c.h.s8.bf16 %v6222
      %v6429 = vunpack.c.h.s8.bf16 %v6223
      %v6430 = vunpack.c.l.s8.bf16 %v6224
      %v6431 = vunpack.c.l.s8.bf16 %v6225
      %v6432 = vunpack.c.h.s8.bf16 %v6224
      %v6433 = vunpack.c.h.s8.bf16 %v6225
      %v6434 = vunpack.c.l.s8.bf16 %v6226
      %v6435 = vunpack.c.l.s8.bf16 %v6227
      %v6436 = vunpack.c.h.s8.bf16 %v6226
      %v6437 = vunpack.c.h.s8.bf16 %v6227
      %v6438 = vunpack.c.l.s8.bf16 %v6228
      %v6439 = vunpack.c.l.s8.bf16 %v6229
      %v6440 = vunpack.c.h.s8.bf16 %v6228
      %v6441 = vunpack.c.h.s8.bf16 %v6229
      %v6442 = vunpack.c.l.s8.bf16 %v6230
      %v6443 = vunpack.c.l.s8.bf16 %v6231
      %v6444 = vunpack.c.h.s8.bf16 %v6230
      %v6445 = vunpack.c.h.s8.bf16 %v6231
      %v6446 = vunpack.c.l.s8.bf16 %v6232
      %v6447 = vunpack.c.l.s8.bf16 %v6233
      %v6448 = vunpack.c.h.s8.bf16 %v6232
      %v6449 = vunpack.c.h.s8.bf16 %v6233
      %v6450 = vunpack.c.l.s8.bf16 %v6234
      %v6451 = vunpack.c.l.s8.bf16 %v6235
      %v6452 = vunpack.c.h.s8.bf16 %v6234
      %v6453 = vunpack.c.h.s8.bf16 %v6235
      %v6454 = vunpack.c.l.s8.bf16 %v6236
      %v6455 = vunpack.c.l.s8.bf16 %v6237
      %v6456 = vunpack.c.h.s8.bf16 %v6236
      %v6457 = vunpack.c.h.s8.bf16 %v6237
      %v6458 = vunpack.c.l.s8.bf16 %v6238
      %v6459 = vunpack.c.l.s8.bf16 %v6239
      %v6460 = vunpack.c.h.s8.bf16 %v6238
      %v6461 = vunpack.c.h.s8.bf16 %v6239
      %v6462 = vunpack.c.l.s8.bf16 %v6240
      %v6463 = vunpack.c.l.s8.bf16 %v6241
      %v6464 = vunpack.c.h.s8.bf16 %v6240
      %v6465 = vunpack.c.h.s8.bf16 %v6241
      %v6466 = vunpack.c.l.s8.bf16 %v6242
      %v6467 = vunpack.c.l.s8.bf16 %v6243
      %v6468 = vunpack.c.h.s8.bf16 %v6242
      %v6469 = vunpack.c.h.s8.bf16 %v6243
      %v6470 = vunpack.c.l.s8.bf16 %v6244
      %v6471 = vunpack.c.l.s8.bf16 %v6245
      %v6472 = vunpack.c.h.s8.bf16 %v6244
      %v6473 = vunpack.c.h.s8.bf16 %v6245
      %v6474 = vunpack.c.l.s8.bf16 %v6246
      %v6475 = vunpack.c.l.s8.bf16 %v6247
      %v6476 = vunpack.c.h.s8.bf16 %v6246
      %v6477 = vunpack.c.h.s8.bf16 %v6247
      %v6478 = vunpack.c.l.s8.bf16 %v6248
      %v6479 = vunpack.c.l.s8.bf16 %v6249
      %v6480 = vunpack.c.h.s8.bf16 %v6248
      %v6481 = vunpack.c.h.s8.bf16 %v6249
      %v6482 = vunpack.c.l.s8.bf16 %v6250
      %v6483 = vunpack.c.l.s8.bf16 %v6251
      %v6484 = vunpack.c.h.s8.bf16 %v6250
      %v6485 = vunpack.c.h.s8.bf16 %v6251
      %v6486 = vunpack.c.l.s8.bf16 %v6252
      %v6487 = vunpack.c.l.s8.bf16 %v6253
      %v6488 = vunpack.c.h.s8.bf16 %v6252
      %v6489 = vunpack.c.h.s8.bf16 %v6253
      %v6490 = vunpack.c.l.s8.bf16 %v6254
      %v6491 = vunpack.c.l.s8.bf16 %v6255
      %v6492 = vunpack.c.h.s8.bf16 %v6254
      %v6493 = vunpack.c.h.s8.bf16 %v6255
      %v6494 = vunpack.c.l.s8.bf16 %v6256
      %v6495 = vunpack.c.l.s8.bf16 %v6257
      %v6496 = vunpack.c.h.s8.bf16 %v6256
      %v6497 = vunpack.c.h.s8.bf16 %v6257
      %v6498 = vunpack.c.l.s8.bf16 %v6258
      %v6499 = vunpack.c.l.s8.bf16 %v6259
      %v6500 = vunpack.c.h.s8.bf16 %v6258
      %v6501 = vunpack.c.h.s8.bf16 %v6259
      %v6502 = vunpack.c.l.s8.bf16 %v6260
      %v6503 = vunpack.c.l.s8.bf16 %v6261
      %v6504 = vunpack.c.h.s8.bf16 %v6260
      %v6505 = vunpack.c.h.s8.bf16 %v6261
      %v6506 = vunpack.c.l.s8.bf16 %v6262
      %v6507 = vunpack.c.l.s8.bf16 %v6263
      %v6508 = vunpack.c.h.s8.bf16 %v6262
      %v6509 = vunpack.c.h.s8.bf16 %v6263
      %v6510 = vunpack.c.l.s8.bf16 %v6264
      %v6511 = vunpack.c.l.s8.bf16 %v6265
      %v6512 = vunpack.c.h.s8.bf16 %v6264
      %v6513 = vunpack.c.h.s8.bf16 %v6265
      %v6514 = vunpack.c.l.s8.bf16 %v6266
      %v6515 = vunpack.c.l.s8.bf16 %v6267
      %v6516 = vunpack.c.h.s8.bf16 %v6266
      %v6517 = vunpack.c.h.s8.bf16 %v6267
      %v6518 = vunpack.c.l.s8.bf16 %v6268
      %v6519 = vunpack.c.l.s8.bf16 %v6269
      %v6520 = vunpack.c.h.s8.bf16 %v6268
      %v6521 = vunpack.c.h.s8.bf16 %v6269
      %v6522 = vunpack.c.l.s8.bf16 %v6270
      %v6523 = vunpack.c.l.s8.bf16 %v6271
      %v6524 = vunpack.c.h.s8.bf16 %v6270
      %v6525 = vunpack.c.h.s8.bf16 %v6271
      %v6526 = vunpack.c.l.s8.bf16 %v6272
      %v6527 = vunpack.c.l.s8.bf16 %v6273
      %v6528 = vunpack.c.h.s8.bf16 %v6272
      %v6529 = vunpack.c.h.s8.bf16 %v6273
      %v6530 = vpack.c.bf16 %v6066, %v6050
      %v6531 = vpack.c.bf16 %v6067, %v6051
      %v6532 = vpack.c.bf16 %v6068, %v6052
      %v6533 = vpack.c.bf16 %v6069, %v6053
      %v6534 = vpack.c.bf16 %v6070, %v6054
      %v6535 = vpack.c.bf16 %v6071, %v6055
      %v6536 = vpack.c.bf16 %v6072, %v6056
      %v6537 = vpack.c.bf16 %v6073, %v6057
      %v6538 = vpack.c.bf16 %v6074, %v6058
      %v6539 = vpack.c.bf16 %v6075, %v6059
      %v6540 = vpack.c.bf16 %v6076, %v6060
      %v6541 = vpack.c.bf16 %v6077, %v6061
      %v6542 = vpack.c.bf16 %v6078, %v6062
      %v6543 = vpack.c.bf16 %v6079, %v6063
      %v6544 = vpack.c.bf16 %v6080, %v6064
      %v6545 = vpack.c.bf16 %v6081, %v6065
      %v6546 = vpack.c.bf16 %v6098, %v6082
      %v6547 = vpack.c.bf16 %v6099, %v6083
      %v6548 = vpack.c.bf16 %v6100, %v6084
      %v6549 = vpack.c.bf16 %v6101, %v6085
      %v6550 = vpack.c.bf16 %v6102, %v6086
      %v6551 = vpack.c.bf16 %v6103, %v6087
      %v6552 = vpack.c.bf16 %v6104, %v6088
      %v6553 = vpack.c.bf16 %v6105, %v6089
      %v6554 = vpack.c.bf16 %v6106, %v6090
      %v6555 = vpack.c.bf16 %v6107, %v6091
      %v6556 = vpack.c.bf16 %v6108, %v6092
      %v6557 = vpack.c.bf16 %v6109, %v6093
      %v6558 = vpack.c.bf16 %v6110, %v6094
      %v6559 = vpack.c.bf16 %v6111, %v6095
      %v6560 = vpack.c.bf16 %v6112, %v6096
      %v6561 = vpack.c.bf16 %v6113, %v6097
      %v6562 = vpack.c.bf16 %v6130, %v6114
      %v6563 = vpack.c.bf16 %v6131, %v6115
      %v6564 = vpack.c.bf16 %v6132, %v6116
      %v6565 = vpack.c.bf16 %v6133, %v6117
      %v6566 = vpack.c.bf16 %v6134, %v6118
      %v6567 = vpack.c.bf16 %v6135, %v6119
      %v6568 = vpack.c.bf16 %v6136, %v6120
      %v6569 = vpack.c.bf16 %v6137, %v6121
      %v6570 = vpack.c.bf16 %v6138, %v6122
      %v6571 = vpack.c.bf16 %v6139, %v6123
      %v6572 = vpack.c.bf16 %v6140, %v6124
      %v6573 = vpack.c.bf16 %v6141, %v6125
      %v6574 = vpack.c.bf16 %v6142, %v6126
      %v6575 = vpack.c.bf16 %v6143, %v6127
      %v6576 = vpack.c.bf16 %v6144, %v6128
      %v6577 = vpack.c.bf16 %v6145, %v6129
      %6578 = vmatprep.subr.bf16.mxu0 %v6289
      %6579 = vmatpush1.bf16.msra.mxu0 %v6288
      %6580 = vmatprep.subr.bf16.mxu0 %v6287
      %6581 = vmatpush1.bf16.msra.mxu0 %v6286
      %6582 = vmatprep.subr.bf16.mxu0 %v6285
      %6583 = vmatpush1.bf16.msra.mxu0 %v6284
      %6584 = vmatprep.subr.bf16.mxu0 %v6283
      %6585 = vmatpush1.bf16.msra.mxu0 %v6282
      %6586 = vmatprep.subr.bf16.mxu0 %v6281
      %6587 = vmatpush1.bf16.msra.mxu0 %v6280
      %6588 = vmatprep.subr.bf16.mxu0 %v6279
      %6589 = vmatpush1.bf16.msra.mxu0 %v6278
      %6590 = vmatprep.subr.bf16.mxu0 %v6277
      %6591 = vmatpush1.bf16.msra.mxu0 %v6276
      %6592 = vmatprep.subr.bf16.mxu0 %v6275
      %6593 = vmatpush1.bf16.msra.mxu0 %v6274
      %6594 = vmatprep.subr.bf16.mxu0 %v6305
      %6595 = vmatpush2.bf16.msra.mxu0 %v6304
      %6596 = vmatprep.subr.bf16.mxu0 %v6303
      %6597 = vmatpush2.bf16.msra.mxu0 %v6302
      %6598 = vmatprep.subr.bf16.mxu0 %v6301
      %6599 = vmatpush2.bf16.msra.mxu0 %v6300
      %6600 = vmatprep.subr.bf16.mxu0 %v6299
      %6601 = vmatpush2.bf16.msra.mxu0 %v6298
      %6602 = vmatprep.subr.bf16.mxu0 %v6297
      %6603 = vmatpush2.bf16.msra.mxu0 %v6296
      %6604 = vmatprep.subr.bf16.mxu0 %v6295
      %6605 = vmatpush2.bf16.msra.mxu0 %v6294
      %6606 = vmatprep.subr.bf16.mxu0 %v6293
      %6607 = vmatpush2.bf16.msra.mxu0 %v6292
      %6608 = vmatprep.subr.bf16.mxu0 %v6291
      %6609 = vmatpush2.bf16.msra.mxu0 %v6290
      %6610 = vmatprep.mubr.bf16.mxu0 %v6531
      %6611 = vmatmul.mubr.bf16.gmra.mxu0 %v6530
      %v6612 = vpop.f32.mrf.mxu0
      %v6613 = vadd.f32 0.0, %v6612
      %v6614 = vpop.f32.mrf.mxu0
      %v6615 = vadd.f32 0.0, %v6614
      %v6616 = vpop.f32.mrf.mxu0
      %v6617 = vadd.f32 0.0, %v6616
      %v6618 = vpop.f32.mrf.mxu0
      %v6619 = vadd.f32 0.0, %v6618
      %6620 = vmatprep.mubr.bf16.mxu0 %v6547
      %6621 = vmatmul.mubr.bf16.gmra.mxu0 %v6546
      %v6622 = vpop.f32.mrf.mxu0
      %v6623 = vadd.f32 0.0, %v6622
      %v6624 = vpop.f32.mrf.mxu0
      %v6625 = vadd.f32 0.0, %v6624
      %v6626 = vpop.f32.mrf.mxu0
      %v6627 = vadd.f32 0.0, %v6626
      %v6628 = vpop.f32.mrf.mxu0
      %v6629 = vadd.f32 0.0, %v6628
      %6630 = vmatprep.mubr.bf16.mxu0 %v6563
      %6631 = vmatmul.mubr.bf16.gmra.mxu0 %v6562
      %v6632 = vpop.f32.mrf.mxu0
      %v6633 = vadd.f32 0.0, %v6632
      %v6634 = vpop.f32.mrf.mxu0
      %v6635 = vadd.f32 0.0, %v6634
      %v6636 = vpop.f32.mrf.mxu0
      %v6637 = vadd.f32 0.0, %v6636
      %v6638 = vpop.f32.mrf.mxu0
      %v6639 = vadd.f32 0.0, %v6638
      %6640 = vdwg.mxu0
      %6641 = vmatprep.subr.bf16.mxu0 %v6321
      %6642 = vmatpush1.bf16.msra.mxu0 %v6320
      %6643 = vmatprep.subr.bf16.mxu0 %v6319
      %6644 = vmatpush1.bf16.msra.mxu0 %v6318
      %6645 = vmatprep.subr.bf16.mxu0 %v6317
      %6646 = vmatpush1.bf16.msra.mxu0 %v6316
      %6647 = vmatprep.subr.bf16.mxu0 %v6315
      %6648 = vmatpush1.bf16.msra.mxu0 %v6314
      %6649 = vmatprep.subr.bf16.mxu0 %v6313
      %6650 = vmatpush1.bf16.msra.mxu0 %v6312
      %6651 = vmatprep.subr.bf16.mxu0 %v6311
      %6652 = vmatpush1.bf16.msra.mxu0 %v6310
      %6653 = vmatprep.subr.bf16.mxu0 %v6309
      %6654 = vmatpush1.bf16.msra.mxu0 %v6308
      %6655 = vmatprep.subr.bf16.mxu0 %v6307
      %6656 = vmatpush1.bf16.msra.mxu0 %v6306
      %6657 = vmatprep.subr.bf16.mxu0 %v6337
      %6658 = vmatpush2.bf16.msra.mxu0 %v6336
      %6659 = vmatprep.subr.bf16.mxu0 %v6335
      %6660 = vmatpush2.bf16.msra.mxu0 %v6334
      %6661 = vmatprep.subr.bf16.mxu0 %v6333
      %6662 = vmatpush2.bf16.msra.mxu0 %v6332
      %6663 = vmatprep.subr.bf16.mxu0 %v6331
      %6664 = vmatpush2.bf16.msra.mxu0 %v6330
      %6665 = vmatprep.subr.bf16.mxu0 %v6329
      %6666 = vmatpush2.bf16.msra.mxu0 %v6328
      %6667 = vmatprep.subr.bf16.mxu0 %v6327
      %6668 = vmatpush2.bf16.msra.mxu0 %v6326
      %6669 = vmatprep.subr.bf16.mxu0 %v6325
      %6670 = vmatpush2.bf16.msra.mxu0 %v6324
      %6671 = vmatprep.subr.bf16.mxu0 %v6323
      %6672 = vmatpush2.bf16.msra.mxu0 %v6322
      %6673 = vmatprep.mubr.bf16.mxu0 %v6533
      %6674 = vmatmul.mubr.bf16.gmra.mxu0 %v6532
      %v6675 = vpop.f32.mrf.mxu0
      %v6676 = vadd.f32 %v6613, %v6675
      %v6677 = vpop.f32.mrf.mxu0
      %v6678 = vadd.f32 %v6615, %v6677
      %v6679 = vpop.f32.mrf.mxu0
      %v6680 = vadd.f32 %v6617, %v6679
      %v6681 = vpop.f32.mrf.mxu0
      %v6682 = vadd.f32 %v6619, %v6681
      %6683 = vmatprep.mubr.bf16.mxu0 %v6549
      %6684 = vmatmul.mubr.bf16.gmra.mxu0 %v6548
      %v6685 = vpop.f32.mrf.mxu0
      %v6686 = vadd.f32 %v6623, %v6685
      %v6687 = vpop.f32.mrf.mxu0
      %v6688 = vadd.f32 %v6625, %v6687
      %v6689 = vpop.f32.mrf.mxu0
      %v6690 = vadd.f32 %v6627, %v6689
      %v6691 = vpop.f32.mrf.mxu0
      %v6692 = vadd.f32 %v6629, %v6691
      %6693 = vmatprep.mubr.bf16.mxu0 %v6565
      %6694 = vmatmul.mubr.bf16.gmra.mxu0 %v6564
      %v6695 = vpop.f32.mrf.mxu0
      %v6696 = vadd.f32 %v6633, %v6695
      %v6697 = vpop.f32.mrf.mxu0
      %v6698 = vadd.f32 %v6635, %v6697
      %v6699 = vpop.f32.mrf.mxu0
      %v6700 = vadd.f32 %v6637, %v6699
      %v6701 = vpop.f32.mrf.mxu0
      %v6702 = vadd.f32 %v6639, %v6701
      %6703 = vdwg.mxu0
      %6704 = vmatprep.subr.bf16.mxu0 %v6353
      %6705 = vmatpush1.bf16.msra.mxu0 %v6352
      %6706 = vmatprep.subr.bf16.mxu0 %v6351
      %6707 = vmatpush1.bf16.msra.mxu0 %v6350
      %6708 = vmatprep.subr.bf16.mxu0 %v6349
      %6709 = vmatpush1.bf16.msra.mxu0 %v6348
      %6710 = vmatprep.subr.bf16.mxu0 %v6347
      %6711 = vmatpush1.bf16.msra.mxu0 %v6346
      %6712 = vmatprep.subr.bf16.mxu0 %v6345
      %6713 = vmatpush1.bf16.msra.mxu0 %v6344
      %6714 = vmatprep.subr.bf16.mxu0 %v6343
      %6715 = vmatpush1.bf16.msra.mxu0 %v6342
      %6716 = vmatprep.subr.bf16.mxu0 %v6341
      %6717 = vmatpush1.bf16.msra.mxu0 %v6340
      %6718 = vmatprep.subr.bf16.mxu0 %v6339
      %6719 = vmatpush1.bf16.msra.mxu0 %v6338
      %6720 = vmatprep.subr.bf16.mxu0 %v6369
      %6721 = vmatpush2.bf16.msra.mxu0 %v6368
      %6722 = vmatprep.subr.bf16.mxu0 %v6367
      %6723 = vmatpush2.bf16.msra.mxu0 %v6366
      %6724 = vmatprep.subr.bf16.mxu0 %v6365
      %6725 = vmatpush2.bf16.msra.mxu0 %v6364
      %6726 = vmatprep.subr.bf16.mxu0 %v6363
      %6727 = vmatpush2.bf16.msra.mxu0 %v6362
      %6728 = vmatprep.subr.bf16.mxu0 %v6361
      %6729 = vmatpush2.bf16.msra.mxu0 %v6360
      %6730 = vmatprep.subr.bf16.mxu0 %v6359
      %6731 = vmatpush2.bf16.msra.mxu0 %v6358
      %6732 = vmatprep.subr.bf16.mxu0 %v6357
      %6733 = vmatpush2.bf16.msra.mxu0 %v6356
      %6734 = vmatprep.subr.bf16.mxu0 %v6355
      %6735 = vmatpush2.bf16.msra.mxu0 %v6354
      %6736 = vmatprep.mubr.bf16.mxu0 %v6535
      %6737 = vmatmul.mubr.bf16.gmra.mxu0 %v6534
      %v6738 = vpop.f32.mrf.mxu0
      %v6739 = vadd.f32 %v6676, %v6738
      %v6740 = vpop.f32.mrf.mxu0
      %v6741 = vadd.f32 %v6678, %v6740
      %v6742 = vpop.f32.mrf.mxu0
      %v6743 = vadd.f32 %v6680, %v6742
      %v6744 = vpop.f32.mrf.mxu0
      %v6745 = vadd.f32 %v6682, %v6744
      %6746 = vmatprep.mubr.bf16.mxu0 %v6551
      %6747 = vmatmul.mubr.bf16.gmra.mxu0 %v6550
      %v6748 = vpop.f32.mrf.mxu0
      %v6749 = vadd.f32 %v6686, %v6748
      %v6750 = vpop.f32.mrf.mxu0
      %v6751 = vadd.f32 %v6688, %v6750
      %v6752 = vpop.f32.mrf.mxu0
      %v6753 = vadd.f32 %v6690, %v6752
      %v6754 = vpop.f32.mrf.mxu0
      %v6755 = vadd.f32 %v6692, %v6754
      %6756 = vmatprep.mubr.bf16.mxu0 %v6567
      %6757 = vmatmul.mubr.bf16.gmra.mxu0 %v6566
      %v6758 = vpop.f32.mrf.mxu0
      %v6759 = vadd.f32 %v6696, %v6758
      %v6760 = vpop.f32.mrf.mxu0
      %v6761 = vadd.f32 %v6698, %v6760
      %v6762 = vpop.f32.mrf.mxu0
      %v6763 = vadd.f32 %v6700, %v6762
      %v6764 = vpop.f32.mrf.mxu0
      %v6765 = vadd.f32 %v6702, %v6764
      %6766 = vdwg.mxu0
      %6767 = vmatprep.subr.bf16.mxu0 %v6385
      %6768 = vmatpush1.bf16.msra.mxu0 %v6384
      %6769 = vmatprep.subr.bf16.mxu0 %v6383
      %6770 = vmatpush1.bf16.msra.mxu0 %v6382
      %6771 = vmatprep.subr.bf16.mxu0 %v6381
      %6772 = vmatpush1.bf16.msra.mxu0 %v6380
      %6773 = vmatprep.subr.bf16.mxu0 %v6379
      %6774 = vmatpush1.bf16.msra.mxu0 %v6378
      %6775 = vmatprep.subr.bf16.mxu0 %v6377
      %6776 = vmatpush1.bf16.msra.mxu0 %v6376
      %6777 = vmatprep.subr.bf16.mxu0 %v6375
      %6778 = vmatpush1.bf16.msra.mxu0 %v6374
      %6779 = vmatprep.subr.bf16.mxu0 %v6373
      %6780 = vmatpush1.bf16.msra.mxu0 %v6372
      %6781 = vmatprep.subr.bf16.mxu0 %v6371
      %6782 = vmatpush1.bf16.msra.mxu0 %v6370
      %6783 = vmatprep.subr.bf16.mxu0 %v6401
      %6784 = vmatpush2.bf16.msra.mxu0 %v6400
      %6785 = vmatprep.subr.bf16.mxu0 %v6399
      %6786 = vmatpush2.bf16.msra.mxu0 %v6398
      %6787 = vmatprep.subr.bf16.mxu0 %v6397
      %6788 = vmatpush2.bf16.msra.mxu0 %v6396
      %6789 = vmatprep.subr.bf16.mxu0 %v6395
      %6790 = vmatpush2.bf16.msra.mxu0 %v6394
      %6791 = vmatprep.subr.bf16.mxu0 %v6393
      %6792 = vmatpush2.bf16.msra.mxu0 %v6392
      %6793 = vmatprep.subr.bf16.mxu0 %v6391
      %6794 = vmatpush2.bf16.msra.mxu0 %v6390
      %6795 = vmatprep.subr.bf16.mxu0 %v6389
      %6796 = vmatpush2.bf16.msra.mxu0 %v6388
      %6797 = vmatprep.subr.bf16.mxu0 %v6387
      %6798 = vmatpush2.bf16.msra.mxu0 %v6386
      %6799 = vmatprep.mubr.bf16.mxu0 %v6537
      %6800 = vmatmul.mubr.bf16.gmra.mxu0 %v6536
      %v6801 = vpop.f32.mrf.mxu0
      %v6802 = vadd.f32 %v6739, %v6801
      %v6803 = vpop.f32.mrf.mxu0
      %v6804 = vadd.f32 %v6741, %v6803
      %v6805 = vpop.f32.mrf.mxu0
      %v6806 = vadd.f32 %v6743, %v6805
      %v6807 = vpop.f32.mrf.mxu0
      %v6808 = vadd.f32 %v6745, %v6807
      %6809 = vmatprep.mubr.bf16.mxu0 %v6553
      %6810 = vmatmul.mubr.bf16.gmra.mxu0 %v6552
      %v6811 = vpop.f32.mrf.mxu0
      %v6812 = vadd.f32 %v6749, %v6811
      %v6813 = vpop.f32.mrf.mxu0
      %v6814 = vadd.f32 %v6751, %v6813
      %v6815 = vpop.f32.mrf.mxu0
      %v6816 = vadd.f32 %v6753, %v6815
      %v6817 = vpop.f32.mrf.mxu0
      %v6818 = vadd.f32 %v6755, %v6817
      %6819 = vmatprep.mubr.bf16.mxu0 %v6569
      %6820 = vmatmul.mubr.bf16.gmra.mxu0 %v6568
      %v6821 = vpop.f32.mrf.mxu0
      %v6822 = vadd.f32 %v6759, %v6821
      %v6823 = vpop.f32.mrf.mxu0
      %v6824 = vadd.f32 %v6761, %v6823
      %v6825 = vpop.f32.mrf.mxu0
      %v6826 = vadd.f32 %v6763, %v6825
      %v6827 = vpop.f32.mrf.mxu0
      %v6828 = vadd.f32 %v6765, %v6827
      %6829 = vdwg.mxu0
      %6830 = vmatprep.subr.bf16.mxu0 %v6417
      %6831 = vmatpush1.bf16.msra.mxu0 %v6416
      %6832 = vmatprep.subr.bf16.mxu0 %v6415
      %6833 = vmatpush1.bf16.msra.mxu0 %v6414
      %6834 = vmatprep.subr.bf16.mxu0 %v6413
      %6835 = vmatpush1.bf16.msra.mxu0 %v6412
      %6836 = vmatprep.subr.bf16.mxu0 %v6411
      %6837 = vmatpush1.bf16.msra.mxu0 %v6410
      %6838 = vmatprep.subr.bf16.mxu0 %v6409
      %6839 = vmatpush1.bf16.msra.mxu0 %v6408
      %6840 = vmatprep.subr.bf16.mxu0 %v6407
      %6841 = vmatpush1.bf16.msra.mxu0 %v6406
      %6842 = vmatprep.subr.bf16.mxu0 %v6405
      %6843 = vmatpush1.bf16.msra.mxu0 %v6404
      %6844 = vmatprep.subr.bf16.mxu0 %v6403
      %6845 = vmatpush1.bf16.msra.mxu0 %v6402
      %6846 = vmatprep.subr.bf16.mxu0 %v6433
      %6847 = vmatpush2.bf16.msra.mxu0 %v6432
      %6848 = vmatprep.subr.bf16.mxu0 %v6431
      %6849 = vmatpush2.bf16.msra.mxu0 %v6430
      %6850 = vmatprep.subr.bf16.mxu0 %v6429
      %6851 = vmatpush2.bf16.msra.mxu0 %v6428
      %6852 = vmatprep.subr.bf16.mxu0 %v6427
      %6853 = vmatpush2.bf16.msra.mxu0 %v6426
      %6854 = vmatprep.subr.bf16.mxu0 %v6425
      %6855 = vmatpush2.bf16.msra.mxu0 %v6424
      %6856 = vmatprep.subr.bf16.mxu0 %v6423
      %6857 = vmatpush2.bf16.msra.mxu0 %v6422
      %6858 = vmatprep.subr.bf16.mxu0 %v6421
      %6859 = vmatpush2.bf16.msra.mxu0 %v6420
      %6860 = vmatprep.subr.bf16.mxu0 %v6419
      %6861 = vmatpush2.bf16.msra.mxu0 %v6418
      %6862 = vmatprep.mubr.bf16.mxu0 %v6539
      %6863 = vmatmul.mubr.bf16.gmra.mxu0 %v6538
      %v6864 = vpop.f32.mrf.mxu0
      %v6865 = vadd.f32 %v6802, %v6864
      %v6866 = vpop.f32.mrf.mxu0
      %v6867 = vadd.f32 %v6804, %v6866
      %v6868 = vpop.f32.mrf.mxu0
      %v6869 = vadd.f32 %v6806, %v6868
      %v6870 = vpop.f32.mrf.mxu0
      %v6871 = vadd.f32 %v6808, %v6870
      %6872 = vmatprep.mubr.bf16.mxu0 %v6555
      %6873 = vmatmul.mubr.bf16.gmra.mxu0 %v6554
      %v6874 = vpop.f32.mrf.mxu0
      %v6875 = vadd.f32 %v6812, %v6874
      %v6876 = vpop.f32.mrf.mxu0
      %v6877 = vadd.f32 %v6814, %v6876
      %v6878 = vpop.f32.mrf.mxu0
      %v6879 = vadd.f32 %v6816, %v6878
      %v6880 = vpop.f32.mrf.mxu0
      %v6881 = vadd.f32 %v6818, %v6880
      %6882 = vmatprep.mubr.bf16.mxu0 %v6571
      %6883 = vmatmul.mubr.bf16.gmra.mxu0 %v6570
      %v6884 = vpop.f32.mrf.mxu0
      %v6885 = vadd.f32 %v6822, %v6884
      %v6886 = vpop.f32.mrf.mxu0
      %v6887 = vadd.f32 %v6824, %v6886
      %v6888 = vpop.f32.mrf.mxu0
      %v6889 = vadd.f32 %v6826, %v6888
      %v6890 = vpop.f32.mrf.mxu0
      %v6891 = vadd.f32 %v6828, %v6890
      %6892 = vdwg.mxu0
      %6893 = vmatprep.subr.bf16.mxu0 %v6449
      %6894 = vmatpush1.bf16.msra.mxu0 %v6448
      %6895 = vmatprep.subr.bf16.mxu0 %v6447
      %6896 = vmatpush1.bf16.msra.mxu0 %v6446
      %6897 = vmatprep.subr.bf16.mxu0 %v6445
      %6898 = vmatpush1.bf16.msra.mxu0 %v6444
      %6899 = vmatprep.subr.bf16.mxu0 %v6443
      %6900 = vmatpush1.bf16.msra.mxu0 %v6442
      %6901 = vmatprep.subr.bf16.mxu0 %v6441
      %6902 = vmatpush1.bf16.msra.mxu0 %v6440
      %6903 = vmatprep.subr.bf16.mxu0 %v6439
      %6904 = vmatpush1.bf16.msra.mxu0 %v6438
      %6905 = vmatprep.subr.bf16.mxu0 %v6437
      %6906 = vmatpush1.bf16.msra.mxu0 %v6436
      %6907 = vmatprep.subr.bf16.mxu0 %v6435
      %6908 = vmatpush1.bf16.msra.mxu0 %v6434
      %6909 = vmatprep.subr.bf16.mxu0 %v6465
      %6910 = vmatpush2.bf16.msra.mxu0 %v6464
      %6911 = vmatprep.subr.bf16.mxu0 %v6463
      %6912 = vmatpush2.bf16.msra.mxu0 %v6462
      %6913 = vmatprep.subr.bf16.mxu0 %v6461
      %6914 = vmatpush2.bf16.msra.mxu0 %v6460
      %6915 = vmatprep.subr.bf16.mxu0 %v6459
      %6916 = vmatpush2.bf16.msra.mxu0 %v6458
      %6917 = vmatprep.subr.bf16.mxu0 %v6457
      %6918 = vmatpush2.bf16.msra.mxu0 %v6456
      %6919 = vmatprep.subr.bf16.mxu0 %v6455
      %6920 = vmatpush2.bf16.msra.mxu0 %v6454
      %6921 = vmatprep.subr.bf16.mxu0 %v6453
      %6922 = vmatpush2.bf16.msra.mxu0 %v6452
      %6923 = vmatprep.subr.bf16.mxu0 %v6451
      %6924 = vmatpush2.bf16.msra.mxu0 %v6450
      %6925 = vmatprep.mubr.bf16.mxu0 %v6541
      %6926 = vmatmul.mubr.bf16.gmra.mxu0 %v6540
      %v6927 = vpop.f32.mrf.mxu0
      %v6928 = vadd.f32 %v6865, %v6927
      %v6929 = vpop.f32.mrf.mxu0
      %v6930 = vadd.f32 %v6867, %v6929
      %v6931 = vpop.f32.mrf.mxu0
      %v6932 = vadd.f32 %v6869, %v6931
      %v6933 = vpop.f32.mrf.mxu0
      %v6934 = vadd.f32 %v6871, %v6933
      %6935 = vmatprep.mubr.bf16.mxu0 %v6557
      %6936 = vmatmul.mubr.bf16.gmra.mxu0 %v6556
      %v6937 = vpop.f32.mrf.mxu0
      %v6938 = vadd.f32 %v6875, %v6937
      %v6939 = vpop.f32.mrf.mxu0
      %v6940 = vadd.f32 %v6877, %v6939
      %v6941 = vpop.f32.mrf.mxu0
      %v6942 = vadd.f32 %v6879, %v6941
      %v6943 = vpop.f32.mrf.mxu0
      %v6944 = vadd.f32 %v6881, %v6943
      %6945 = vmatprep.mubr.bf16.mxu0 %v6573
      %6946 = vmatmul.mubr.bf16.gmra.mxu0 %v6572
      %v6947 = vpop.f32.mrf.mxu0
      %v6948 = vadd.f32 %v6885, %v6947
      %v6949 = vpop.f32.mrf.mxu0
      %v6950 = vadd.f32 %v6887, %v6949
      %v6951 = vpop.f32.mrf.mxu0
      %v6952 = vadd.f32 %v6889, %v6951
      %v6953 = vpop.f32.mrf.mxu0
      %v6954 = vadd.f32 %v6891, %v6953
      %6955 = vdwg.mxu0
      %6956 = vmatprep.subr.bf16.mxu0 %v6481
      %6957 = vmatpush1.bf16.msra.mxu0 %v6480
      %6958 = vmatprep.subr.bf16.mxu0 %v6479
      %6959 = vmatpush1.bf16.msra.mxu0 %v6478
      %6960 = vmatprep.subr.bf16.mxu0 %v6477
      %6961 = vmatpush1.bf16.msra.mxu0 %v6476
      %6962 = vmatprep.subr.bf16.mxu0 %v6475
      %6963 = vmatpush1.bf16.msra.mxu0 %v6474
      %6964 = vmatprep.subr.bf16.mxu0 %v6473
      %6965 = vmatpush1.bf16.msra.mxu0 %v6472
      %6966 = vmatprep.subr.bf16.mxu0 %v6471
      %6967 = vmatpush1.bf16.msra.mxu0 %v6470
      %6968 = vmatprep.subr.bf16.mxu0 %v6469
      %6969 = vmatpush1.bf16.msra.mxu0 %v6468
      %6970 = vmatprep.subr.bf16.mxu0 %v6467
      %6971 = vmatpush1.bf16.msra.mxu0 %v6466
      %6972 = vmatprep.subr.bf16.mxu0 %v6497
      %6973 = vmatpush2.bf16.msra.mxu0 %v6496
      %6974 = vmatprep.subr.bf16.mxu0 %v6495
      %6975 = vmatpush2.bf16.msra.mxu0 %v6494
      %6976 = vmatprep.subr.bf16.mxu0 %v6493
      %6977 = vmatpush2.bf16.msra.mxu0 %v6492
      %6978 = vmatprep.subr.bf16.mxu0 %v6491
      %6979 = vmatpush2.bf16.msra.mxu0 %v6490
      %6980 = vmatprep.subr.bf16.mxu0 %v6489
      %6981 = vmatpush2.bf16.msra.mxu0 %v6488
      %6982 = vmatprep.subr.bf16.mxu0 %v6487
      %6983 = vmatpush2.bf16.msra.mxu0 %v6486
      %6984 = vmatprep.subr.bf16.mxu0 %v6485
      %6985 = vmatpush2.bf16.msra.mxu0 %v6484
      %6986 = vmatprep.subr.bf16.mxu0 %v6483
      %6987 = vmatpush2.bf16.msra.mxu0 %v6482
      %6988 = vmatprep.mubr.bf16.mxu0 %v6543
      %6989 = vmatmul.mubr.bf16.gmra.mxu0 %v6542
      %v6990 = vpop.f32.mrf.mxu0
      %v6991 = vadd.f32 %v6928, %v6990
      %v6992 = vpop.f32.mrf.mxu0
      %v6993 = vadd.f32 %v6930, %v6992
      %v6994 = vpop.f32.mrf.mxu0
      %v6995 = vadd.f32 %v6932, %v6994
      %v6996 = vpop.f32.mrf.mxu0
      %v6997 = vadd.f32 %v6934, %v6996
      %6998 = vmatprep.mubr.bf16.mxu0 %v6559
      %6999 = vmatmul.mubr.bf16.gmra.mxu0 %v6558
      %v7000 = vpop.f32.mrf.mxu0
      %v7001 = vadd.f32 %v6938, %v7000
      %v7002 = vpop.f32.mrf.mxu0
      %v7003 = vadd.f32 %v6940, %v7002
      %v7004 = vpop.f32.mrf.mxu0
      %v7005 = vadd.f32 %v6942, %v7004
      %v7006 = vpop.f32.mrf.mxu0
      %v7007 = vadd.f32 %v6944, %v7006
      %7008 = vmatprep.mubr.bf16.mxu0 %v6575
      %7009 = vmatmul.mubr.bf16.gmra.mxu0 %v6574
      %v7010 = vpop.f32.mrf.mxu0
      %v7011 = vadd.f32 %v6948, %v7010
      %v7012 = vpop.f32.mrf.mxu0
      %v7013 = vadd.f32 %v6950, %v7012
      %v7014 = vpop.f32.mrf.mxu0
      %v7015 = vadd.f32 %v6952, %v7014
      %v7016 = vpop.f32.mrf.mxu0
      %v7017 = vadd.f32 %v6954, %v7016
      %7018 = vdwg.mxu0
      %7019 = vmatprep.subr.bf16.mxu0 %v6513
      %7020 = vmatpush1.bf16.msra.mxu0 %v6512
      %7021 = vmatprep.subr.bf16.mxu0 %v6511
      %7022 = vmatpush1.bf16.msra.mxu0 %v6510
      %7023 = vmatprep.subr.bf16.mxu0 %v6509
      %7024 = vmatpush1.bf16.msra.mxu0 %v6508
      %7025 = vmatprep.subr.bf16.mxu0 %v6507
      %7026 = vmatpush1.bf16.msra.mxu0 %v6506
      %7027 = vmatprep.subr.bf16.mxu0 %v6505
      %7028 = vmatpush1.bf16.msra.mxu0 %v6504
      %7029 = vmatprep.subr.bf16.mxu0 %v6503
      %7030 = vmatpush1.bf16.msra.mxu0 %v6502
      %7031 = vmatprep.subr.bf16.mxu0 %v6501
      %7032 = vmatpush1.bf16.msra.mxu0 %v6500
      %7033 = vmatprep.subr.bf16.mxu0 %v6499
      %7034 = vmatpush1.bf16.msra.mxu0 %v6498
      %7035 = vmatprep.subr.bf16.mxu0 %v6529
      %7036 = vmatpush2.bf16.msra.mxu0 %v6528
      %7037 = vmatprep.subr.bf16.mxu0 %v6527
      %7038 = vmatpush2.bf16.msra.mxu0 %v6526
      %7039 = vmatprep.subr.bf16.mxu0 %v6525
      %7040 = vmatpush2.bf16.msra.mxu0 %v6524
      %7041 = vmatprep.subr.bf16.mxu0 %v6523
      %7042 = vmatpush2.bf16.msra.mxu0 %v6522
      %7043 = vmatprep.subr.bf16.mxu0 %v6521
      %7044 = vmatpush2.bf16.msra.mxu0 %v6520
      %7045 = vmatprep.subr.bf16.mxu0 %v6519
      %7046 = vmatpush2.bf16.msra.mxu0 %v6518
      %7047 = vmatprep.subr.bf16.mxu0 %v6517
      %7048 = vmatpush2.bf16.msra.mxu0 %v6516
      %7049 = vmatprep.subr.bf16.mxu0 %v6515
      %7050 = vmatpush2.bf16.msra.mxu0 %v6514
      %7051 = vmatprep.mubr.bf16.mxu0 %v6545
      %7052 = vmatmul.mubr.bf16.gmra.mxu0 %v6544
      %v7053 = vpop.f32.mrf.mxu0
      %v7054 = vadd.f32 %v6991, %v7053
      %v7055 = vpop.f32.mrf.mxu0
      %v7056 = vadd.f32 %v6993, %v7055
      %v7057 = vpop.f32.mrf.mxu0
      %v7058 = vadd.f32 %v6995, %v7057
      %v7059 = vpop.f32.mrf.mxu0
      %v7060 = vadd.f32 %v6997, %v7059
      %7061 = vmatprep.mubr.bf16.mxu0 %v6561
      %7062 = vmatmul.mubr.bf16.gmra.mxu0 %v6560
      %v7063 = vpop.f32.mrf.mxu0
      %v7064 = vadd.f32 %v7001, %v7063
      %v7065 = vpop.f32.mrf.mxu0
      %v7066 = vadd.f32 %v7003, %v7065
      %v7067 = vpop.f32.mrf.mxu0
      %v7068 = vadd.f32 %v7005, %v7067
      %v7069 = vpop.f32.mrf.mxu0
      %v7070 = vadd.f32 %v7007, %v7069
      %7071 = vmatprep.mubr.bf16.mxu0 %v6577
      %7072 = vmatmul.mubr.bf16.gmra.mxu0 %v6576
      %v7073 = vpop.f32.mrf.mxu0
      %v7074 = vadd.f32 %v7011, %v7073
      %v7075 = vpop.f32.mrf.mxu0
      %v7076 = vadd.f32 %v7013, %v7075
      %v7077 = vpop.f32.mrf.mxu0
      %v7078 = vadd.f32 %v7015, %v7077
      %v7079 = vpop.f32.mrf.mxu0
      %v7080 = vadd.f32 %v7017, %v7079
      %7081 = vdwg.mxu0
      %v7082 = vlaneseq
      %v7083 = vshrl.u32 %v7082, 7
      %v7084 = vsub.s32 3, %v7083
      %v7085 = vrot.slane %v447, %v7084
      %v7086 = vlaneseq
      %v7087 = vshrl.u32 %v7086, 7
      %v7088 = vsub.s32 7, %v7087
      %v7089 = vrot.slane %v447, %v7088
      %v7092 = vlaneseq
      %v7093 = vshrl.u32 %v7092, 7
      %v7094 = vsub.s32 3, %v7093
      %v7095 = vrot.slane %v7085, %v7094
      %v7096 = vlaneseq
      %v7097 = vshrl.u32 %v7096, 7
      %v7098 = vsub.s32 3, %v7097
      %v7099 = vrot.slane %v7089, %v7098
      %v7100 = vmul.f32 %v7054, %v7095
      %v7101 = vmul.f32 %v7056, %v7099
      %v7102 = vmul.f32 %v7058, %v7095
      %v7103 = vmul.f32 %v7060, %v7099
      %v7104 = vmul.f32 %v7064, %v7095
      %v7105 = vmul.f32 %v7066, %v7099
      %v7106 = vmul.f32 %v7068, %v7095
      %v7107 = vmul.f32 %v7070, %v7099
      %v7108 = vmul.f32 %v7074, %v7095
      %v7109 = vmul.f32 %v7076, %v7099
      %v7110 = vmul.f32 %v7078, %v7095
      %v7111 = vmul.f32 %v7080, %v7099
      %v7112 = vlaneseq
      %v7113 = vshrl.u32 %v7112, 7
      %v7114 = vsub.s32 2, %v7113
      %v7115 = vrot.slane %v452, %v7114
      %v7116 = vlaneseq
      %v7117 = vshrl.u32 %v7116, 7
      %v7118 = vsub.s32 6, %v7117
      %v7119 = vrot.slane %v452, %v7118
      %v7122 = vlaneseq
      %v7123 = vshrl.u32 %v7122, 7
      %v7124 = vsub.s32 2, %v7123
      %v7125 = vrot.slane %v7115, %v7124
      %v7126 = vlaneseq
      %v7127 = vshrl.u32 %v7126, 7
      %v7128 = vsub.s32 2, %v7127
      %v7129 = vrot.slane %v7119, %v7128
      %v7130 = vadd.f32 %v7100, %v7125
      %v7131 = vadd.f32 %v7101, %v7129
      %v7132 = vadd.f32 %v7102, %v7125
      %v7133 = vadd.f32 %v7103, %v7129
      %v7134 = vadd.f32 %v7104, %v7125
      %v7135 = vadd.f32 %v7105, %v7129
      %v7136 = vadd.f32 %v7106, %v7125
      %v7137 = vadd.f32 %v7107, %v7129
      %v7138 = vadd.f32 %v7108, %v7125
      %v7139 = vadd.f32 %v7109, %v7129
      %v7140 = vadd.f32 %v7110, %v7125
      %v7141 = vadd.f32 %v7111, %v7129
      %v7142 = vadd.f32 %v3689, %v7130
      %v7143 = vadd.f32 %v3690, %v7131
      %v7144 = vadd.f32 %v3691, %v7132
      %v7145 = vadd.f32 %v3692, %v7133
      %v7146 = vadd.f32 %v3693, %v7134
      %v7147 = vadd.f32 %v3694, %v7135
      %v7148 = vadd.f32 %v3695, %v7136
      %v7149 = vadd.f32 %v3696, %v7137
      %v7150 = vadd.f32 %v3697, %v7138
      %v7151 = vadd.f32 %v3698, %v7139
      %v7152 = vadd.f32 %v3699, %v7140
      %v7153 = vadd.f32 %v3700, %v7141
      %v7154 = vsel %vm961, %v7143, 0.0
      %v7155 = vadd.f32 %v7142, %v7154
      %7156 = vadd.xlane.f32.xlu0 %v7155
      %v7157 = vpop.xlane.xlu0 %7156
      %v7158 = vsel %vm961, %v7145, 0.0
      %v7159 = vadd.f32 %v7144, %v7158
      %7160 = vadd.xlane.f32.xlu0 %v7159
      %v7161 = vpop.xlane.xlu0 %7160
      %v7162 = vsel %vm961, %v7147, 0.0
      %v7163 = vadd.f32 %v7146, %v7162
      %7164 = vadd.xlane.f32.xlu0 %v7163
      %v7165 = vpop.xlane.xlu0 %7164
      %v7166 = vsel %vm961, %v7149, 0.0
      %v7167 = vadd.f32 %v7148, %v7166
      %7168 = vadd.xlane.f32.xlu0 %v7167
      %v7169 = vpop.xlane.xlu0 %7168
      %v7170 = vsel %vm961, %v7151, 0.0
      %v7171 = vadd.f32 %v7150, %v7170
      %7172 = vadd.xlane.f32.xlu0 %v7171
      %v7173 = vpop.xlane.xlu0 %7172
      %v7174 = vsel %vm961, %v7153, 0.0
      %v7175 = vadd.f32 %v7152, %v7174
      %7176 = vadd.xlane.f32.xlu0 %v7175
      %v7177 = vpop.xlane.xlu0 %7176
      %v7178 = vmul.f32 %v7157, %v3554
      %v7179 = vmul.f32 %v7161, %v3554
      %v7180 = vmul.f32 %v7165, %v3554
      %v7181 = vmul.f32 %v7169, %v3554
      %v7182 = vmul.f32 %v7173, %v3554
      %v7183 = vmul.f32 %v7177, %v3554
      %v7184 = vsub.f32 %v7142, %v7178
      %v7185 = vsub.f32 %v7143, %v7178
      %v7186 = vsub.f32 %v7144, %v7179
      %v7187 = vsub.f32 %v7145, %v7179
      %v7188 = vsub.f32 %v7146, %v7180
      %v7189 = vsub.f32 %v7147, %v7180
      %v7190 = vsub.f32 %v7148, %v7181
      %v7191 = vsub.f32 %v7149, %v7181
      %v7192 = vsub.f32 %v7150, %v7182
      %v7193 = vsub.f32 %v7151, %v7182
      %v7194 = vsub.f32 %v7152, %v7183
      %v7195 = vsub.f32 %v7153, %v7183
      %v7196 = vmul.f32 %v7184, %v7184
      %v7197 = vmul.f32 %v7185, %v7185
      %v7198 = vmul.f32 %v7186, %v7186
      %v7199 = vmul.f32 %v7187, %v7187
      %v7200 = vmul.f32 %v7188, %v7188
      %v7201 = vmul.f32 %v7189, %v7189
      %v7202 = vmul.f32 %v7190, %v7190
      %v7203 = vmul.f32 %v7191, %v7191
      %v7204 = vmul.f32 %v7192, %v7192
      %v7205 = vmul.f32 %v7193, %v7193
      %v7206 = vmul.f32 %v7194, %v7194
      %v7207 = vmul.f32 %v7195, %v7195
      %v7208 = vsel %vm961, %v7197, 0.0
      %v7209 = vadd.f32 %v7196, %v7208
      %7210 = vadd.xlane.f32.xlu0 %v7209
      %v7211 = vpop.xlane.xlu0 %7210
      %v7212 = vsel %vm961, %v7199, 0.0
      %v7213 = vadd.f32 %v7198, %v7212
      %7214 = vadd.xlane.f32.xlu0 %v7213
      %v7215 = vpop.xlane.xlu0 %7214
      %v7216 = vsel %vm961, %v7201, 0.0
      %v7217 = vadd.f32 %v7200, %v7216
      %7218 = vadd.xlane.f32.xlu0 %v7217
      %v7219 = vpop.xlane.xlu0 %7218
      %v7220 = vsel %vm961, %v7203, 0.0
      %v7221 = vadd.f32 %v7202, %v7220
      %7222 = vadd.xlane.f32.xlu0 %v7221
      %v7223 = vpop.xlane.xlu0 %7222
      %v7224 = vsel %vm961, %v7205, 0.0
      %v7225 = vadd.f32 %v7204, %v7224
      %7226 = vadd.xlane.f32.xlu0 %v7225
      %v7227 = vpop.xlane.xlu0 %7226
      %v7228 = vsel %vm961, %v7207, 0.0
      %v7229 = vadd.f32 %v7206, %v7228
      %7230 = vadd.xlane.f32.xlu0 %v7229
      %v7231 = vpop.xlane.xlu0 %7230
      %v7232 = vmul.f32 %v7211, %v3554
      %v7233 = vmul.f32 %v7215, %v3554
      %v7234 = vmul.f32 %v7219, %v3554
      %v7235 = vmul.f32 %v7223, %v3554
      %v7236 = vmul.f32 %v7227, %v3554
      %v7237 = vmul.f32 %v7231, %v3554
      %v7238 = vadd.f32 %v7232, 1e-05
      %v7239 = vadd.f32 %v7233, 1e-05
      %v7240 = vadd.f32 %v7234, 1e-05
      %v7241 = vadd.f32 %v7235, 1e-05
      %v7242 = vadd.f32 %v7236, 1e-05
      %v7243 = vadd.f32 %v7237, 1e-05
      %v7244 = vrsqrt.pop %v7238
      %v7245 = vrsqrt.pop %v7239
      %v7246 = vrsqrt.pop %v7240
      %v7247 = vrsqrt.pop %v7241
      %v7248 = vrsqrt.pop %v7242
      %v7249 = vrsqrt.pop %v7243
      %v7250 = vmul.f32 %v7184, %v7244
      %v7251 = vmul.f32 %v7185, %v7244
      %v7252 = vmul.f32 %v7186, %v7245
      %v7253 = vmul.f32 %v7187, %v7245
      %v7254 = vmul.f32 %v7188, %v7246
      %v7255 = vmul.f32 %v7189, %v7246
      %v7256 = vmul.f32 %v7190, %v7247
      %v7257 = vmul.f32 %v7191, %v7247
      %v7258 = vmul.f32 %v7192, %v7248
      %v7259 = vmul.f32 %v7193, %v7248
      %v7260 = vmul.f32 %v7194, %v7249
      %v7261 = vmul.f32 %v7195, %v7249
      %v7262 = vlaneseq
      %v7263 = vshrl.u32 %v7262, 7
      %v7264 = vsub.s32 2, %v7263
      %v7265 = vrot.slane %v453, %v7264
      %v7266 = vlaneseq
      %v7267 = vshrl.u32 %v7266, 7
      %v7268 = vsub.s32 6, %v7267
      %v7269 = vrot.slane %v453, %v7268
      %v7272 = vlaneseq
      %v7273 = vshrl.u32 %v7272, 7
      %v7274 = vsub.s32 2, %v7273
      %v7275 = vrot.slane %v7265, %v7274
      %v7276 = vlaneseq
      %v7277 = vshrl.u32 %v7276, 7
      %v7278 = vsub.s32 2, %v7277
      %v7279 = vrot.slane %v7269, %v7278
      %v7280 = vmul.f32 %v7250, %v7275
      %v7281 = vmul.f32 %v7251, %v7279
      %v7282 = vmul.f32 %v7252, %v7275
      %v7283 = vmul.f32 %v7253, %v7279
      %v7284 = vmul.f32 %v7254, %v7275
      %v7285 = vmul.f32 %v7255, %v7279
      %v7286 = vmul.f32 %v7256, %v7275
      %v7287 = vmul.f32 %v7257, %v7279
      %v7288 = vmul.f32 %v7258, %v7275
      %v7289 = vmul.f32 %v7259, %v7279
      %v7290 = vmul.f32 %v7260, %v7275
      %v7291 = vmul.f32 %v7261, %v7279
      %v7292 = vlaneseq
      %v7293 = vshrl.u32 %v7292, 7
      %v7294 = vsub.s32 3, %v7293
      %v7295 = vrot.slane %v446, %v7294
      %v7296 = vlaneseq
      %v7297 = vshrl.u32 %v7296, 7
      %v7298 = vsub.s32 7, %v7297
      %v7299 = vrot.slane %v446, %v7298
      %v7302 = vlaneseq
      %v7303 = vshrl.u32 %v7302, 7
      %v7304 = vsub.s32 3, %v7303
      %v7305 = vrot.slane %v7295, %v7304
      %v7306 = vlaneseq
      %v7307 = vshrl.u32 %v7306, 7
      %v7308 = vsub.s32 3, %v7307
      %v7309 = vrot.slane %v7299, %v7308
      %v7310 = vadd.f32 %v7280, %v7305
      %v7311 = vadd.f32 %v7281, %v7309
      %v7312 = vadd.f32 %v7282, %v7305
      %v7313 = vadd.f32 %v7283, %v7309
      %v7314 = vadd.f32 %v7284, %v7305
      %v7315 = vadd.f32 %v7285, %v7309
      %v7316 = vadd.f32 %v7286, %v7305
      %v7317 = vadd.f32 %v7287, %v7309
      %v7318 = vadd.f32 %v7288, %v7305
      %v7319 = vadd.f32 %v7289, %v7309
      %v7320 = vadd.f32 %v7290, %v7305
      %v7321 = vadd.f32 %v7291, %v7309
      %7322 = vst [vmem:[#allocation2] sm:$0xff] %v7310
      %7323 = vst.msk [vmem:[#allocation2 + $0x8] sm:$0xff] %vm961, %v7311
      %7324 = vst [vmem:[#allocation2 + $0x10] sm:$0xff] %v7312
      %7325 = vst.msk [vmem:[#allocation2 + $0x18] sm:$0xff] %vm961, %v7313
      %7326 = vst [vmem:[#allocation2 + $0x20] sm:$0xff] %v7314
      %7327 = vst.msk [vmem:[#allocation2 + $0x28] sm:$0xff] %vm961, %v7315
      %7328 = vst [vmem:[#allocation2 + $0x30] sm:$0xff] %v7316
      %7329 = vst.msk [vmem:[#allocation2 + $0x38] sm:$0xff] %vm961, %v7317
      %7330 = vst [vmem:[#allocation2 + $0x40] sm:$0xff] %v7318
      %7331 = vst.msk [vmem:[#allocation2 + $0x48] sm:$0xff] %vm961, %v7319
      %7332 = vst [vmem:[#allocation2 + $0x50] sm:$0xff] %v7320
      %7333 = vst.msk [vmem:[#allocation2 + $0x58] sm:$0xff] %vm961, %v7321
      %p7334 = scmp.eq.s32.totalorder %s20, 11
      // Predicated region
      $region61: #{transformer_forward.1} parent=55 // pred_check
        %p7335 = pneg %p7334
      $region62: #{transformer_forward.1} parent=55 // pred_check_branch
        %7337 = sbr.rel (%p7335) target = $region64
      $region63: #{transformer_forward.1} parent=55 // pred_region
        %v7338 = vld [vmem:[%s7] sm:$0xff]
        %v7339 = vld [vmem:[%s7 + $0x8] sm:$0xff]
        %v7340 = vld [vmem:[%s7 + $0x10] sm:$0xff]
        %v7341 = vld [vmem:[%s7 + $0x18] sm:$0xff]
        %v7342 = vld [vmem:[%s7 + $0x20] sm:$0xff]
        %v7343 = vld [vmem:[%s7 + $0x28] sm:$0xff]
        %v7344 = vld [vmem:[%s7 + $0x30] sm:$0xff]
        %v7345 = vld [vmem:[%s7 + $0x38] sm:$0xff]
        %v7346 = vld [vmem:[%s7 + $0x40] sm:$0xff]
        %v7347 = vld [vmem:[%s7 + $0x48] sm:$0xff]
        %v7348 = vld [vmem:[%s7 + $0x50] sm:$0xff]
        %v7349 = vld [vmem:[%s7 + $0x58] sm:$0xff]
        %v7350 = vld [vmem:[%s7 + $0x60] sm:$0xff]
        %v7351 = vld [vmem:[%s7 + $0x68] sm:$0xff]
        %v7352 = vld [vmem:[%s7 + $0x70] sm:$0xff]
        %v7353 = vld [vmem:[%s7 + $0x78] sm:$0xff]
        %v7354 = vld [vmem:[%s7 + $0x80] sm:$0xff]
        %v7355 = vld [vmem:[%s7 + $0x88] sm:$0xff]
        %v7356 = vld [vmem:[%s7 + $0x90] sm:$0xff]
        %v7357 = vld [vmem:[%s7 + $0x98] sm:$0xff]
        %v7358 = vld [vmem:[%s7 + $0xa0] sm:$0xff]
        %v7359 = vld [vmem:[%s7 + $0xa8] sm:$0xff]
        %v7360 = vld [vmem:[%s7 + $0xb0] sm:$0xff]
        %v7361 = vld [vmem:[%s7 + $0xb8] sm:$0xff]
        %v7362 = vmul.f32 %v7338, %v7310
        %v7363 = vmul.f32 %v7339, %v7311
        %v7364 = vmul.f32 %v7340, %v7312
        %v7365 = vmul.f32 %v7341, %v7313
        %v7366 = vmul.f32 %v7342, %v7314
        %v7367 = vmul.f32 %v7343, %v7315
        %v7368 = vmul.f32 %v7344, %v7316
        %v7369 = vmul.f32 %v7345, %v7317
        %v7370 = vmul.f32 %v7346, %v7318
        %v7371 = vmul.f32 %v7347, %v7319
        %v7372 = vmul.f32 %v7348, %v7320
        %v7373 = vmul.f32 %v7349, %v7321
        %v7374 = vmul.f32 %v7350, %v7310
        %v7375 = vmul.f32 %v7351, %v7311
        %v7376 = vmul.f32 %v7352, %v7312
        %v7377 = vmul.f32 %v7353, %v7313
        %v7378 = vmul.f32 %v7354, %v7314
        %v7379 = vmul.f32 %v7355, %v7315
        %v7380 = vmul.f32 %v7356, %v7316
        %v7381 = vmul.f32 %v7357, %v7317
        %v7382 = vmul.f32 %v7358, %v7318
        %v7383 = vmul.f32 %v7359, %v7319
        %v7384 = vmul.f32 %v7360, %v7320
        %v7385 = vmul.f32 %v7361, %v7321
        %v7386 = vsel %vm961, %v7363, 0.0
        %v7387 = vadd.f32 %v7362, %v7386
        %7388 = vadd.xlane.f32.xlu0 %v7387
        %v7389 = vpop.xlane.xlu0 %7388
        %v7390 = vsel %vm961, %v7365, 0.0
        %v7391 = vadd.f32 %v7364, %v7390
        %7392 = vadd.xlane.f32.xlu0 %v7391
        %v7393 = vpop.xlane.xlu0 %7392
        %v7394 = vsel %vm961, %v7367, 0.0
        %v7395 = vadd.f32 %v7366, %v7394
        %7396 = vadd.xlane.f32.xlu0 %v7395
        %v7397 = vpop.xlane.xlu0 %7396
        %v7398 = vsel %vm961, %v7369, 0.0
        %v7399 = vadd.f32 %v7368, %v7398
        %7400 = vadd.xlane.f32.xlu0 %v7399
        %v7401 = vpop.xlane.xlu0 %7400
        %v7402 = vsel %vm961, %v7371, 0.0
        %v7403 = vadd.f32 %v7370, %v7402
        %7404 = vadd.xlane.f32.xlu0 %v7403
        %v7405 = vpop.xlane.xlu0 %7404
        %v7406 = vsel %vm961, %v7373, 0.0
        %v7407 = vadd.f32 %v7372, %v7406
        %7408 = vadd.xlane.f32.xlu0 %v7407
        %v7409 = vpop.xlane.xlu0 %7408
        %v7410 = vsel %vm961, %v7375, 0.0
        %v7411 = vadd.f32 %v7374, %v7410
        %7412 = vadd.xlane.f32.xlu0 %v7411
        %v7413 = vpop.xlane.xlu0 %7412
        %v7414 = vsel %vm961, %v7377, 0.0
        %v7415 = vadd.f32 %v7376, %v7414
        %7416 = vadd.xlane.f32.xlu0 %v7415
        %v7417 = vpop.xlane.xlu0 %7416
        %v7418 = vsel %vm961, %v7379, 0.0
        %v7419 = vadd.f32 %v7378, %v7418
        %7420 = vadd.xlane.f32.xlu0 %v7419
        %v7421 = vpop.xlane.xlu0 %7420
        %v7422 = vsel %vm961, %v7381, 0.0
        %v7423 = vadd.f32 %v7380, %v7422
        %7424 = vadd.xlane.f32.xlu0 %v7423
        %v7425 = vpop.xlane.xlu0 %7424
        %v7426 = vsel %vm961, %v7383, 0.0
        %v7427 = vadd.f32 %v7382, %v7426
        %7428 = vadd.xlane.f32.xlu0 %v7427
        %v7429 = vpop.xlane.xlu0 %7428
        %v7430 = vsel %vm961, %v7385, 0.0
        %v7431 = vadd.f32 %v7384, %v7430
        %7432 = vadd.xlane.f32.xlu0 %v7431
        %v7433 = vpop.xlane.xlu0 %7432
        %v7446 = vlaneseq
        %v7447 = vand.u32 %v7446, 127
        %v7448 = vlaneseq
        %v7449 = vshrl.u32 %v7448, 7
        %v7450 = vsub.s32 %v7447, %v7449
        %v7451 = vrot.slane %v7389, %v7450
        %v7452 = vadd.s32 %v7447, 4294967288
        %v7453 = vlaneseq
        %v7454 = vshrl.u32 %v7453, 7
        %v7455 = vsub.s32 %v7452, %v7454
        %v7456 = vrot.slane %v7393, %v7455
        %vm7457 = vcmask 130112
        %v7458 = vsel %vm7457, %v7456, %v7451
        %v7459 = vadd.s32 %v7447, 4294967280
        %v7460 = vlaneseq
        %v7461 = vshrl.u32 %v7460, 7
        %v7462 = vsub.s32 %v7459, %v7461
        %v7463 = vrot.slane %v7397, %v7462
        %vm7464 = vcmask 195712
        %v7465 = vsel %vm7464, %v7463, %v7458
        %v7466 = vadd.s32 %v7447, 4294967272
        %v7467 = vlaneseq
        %v7468 = vshrl.u32 %v7467, 7
        %v7469 = vsub.s32 %v7466, %v7468
        %v7470 = vrot.slane %v7401, %v7469
        %vm7471 = vcmask 261312
        %v7472 = vsel %vm7471, %v7470, %v7465
        %v7473 = vadd.s32 %v7447, 4294967264
        %v7474 = vlaneseq
        %v7475 = vshrl.u32 %v7474, 7
        %v7476 = vsub.s32 %v7473, %v7475
        %v7477 = vrot.slane %v7405, %v7476
        %vm7478 = vcmask 326912
        %v7479 = vsel %vm7478, %v7477, %v7472
        %v7480 = vadd.s32 %v7447, 4294967256
        %v7481 = vlaneseq
        %v7482 = vshrl.u32 %v7481, 7
        %v7483 = vsub.s32 %v7480, %v7482
        %v7484 = vrot.slane %v7409, %v7483
        %vm7485 = vcmask 392512
        %v7486 = vsel %vm7485, %v7484, %v7479
        %v7487 = vlaneseq
        %v7488 = vshrl.u32 %v7487, 7
        %v7489 = vsub.s32 %v7447, %v7488
        %v7490 = vrot.slane %v7413, %v7489
        %v7491 = vlaneseq
        %v7492 = vshrl.u32 %v7491, 7
        %v7493 = vsub.s32 %v7452, %v7492
        %v7494 = vrot.slane %v7417, %v7493
        %v7495 = vsel %vm7457, %v7494, %v7490
        %v7496 = vlaneseq
        %v7497 = vshrl.u32 %v7496, 7
        %v7498 = vsub.s32 %v7459, %v7497
        %v7499 = vrot.slane %v7421, %v7498
        %v7500 = vsel %vm7464, %v7499, %v7495
        %v7501 = vlaneseq
        %v7502 = vshrl.u32 %v7501, 7
        %v7503 = vsub.s32 %v7466, %v7502
        %v7504 = vrot.slane %v7425, %v7503
        %v7505 = vsel %vm7471, %v7504, %v7500
        %v7506 = vlaneseq
        %v7507 = vshrl.u32 %v7506, 7
        %v7508 = vsub.s32 %v7473, %v7507
        %v7509 = vrot.slane %v7429, %v7508
        %v7510 = vsel %vm7478, %v7509, %v7505
        %v7511 = vlaneseq
        %v7512 = vshrl.u32 %v7511, 7
        %v7513 = vsub.s32 %v7480, %v7512
        %v7514 = vrot.slane %v7433, %v7513
        %v7515 = vsel %vm7485, %v7514, %v7510
        %vm7516 = vcmask 1041409
        %v7517 = vsel %vm7516, %v7515, %v7486
        %vm7519 = vcmask 386048
        %v7520 = vsel %vm7519, %v7517, 0.0
        %7521 = vadd.xlane.f32.xlu0 %v7520
        %v7522 = vpop.xlane.xlu0 %7521
        %v7523 = vld [vmem:[%s8] sm:$0x3]
        %v7524 = vadd.f32 %v7522, %v7523
        %vm7525 = vcmask 1024
        %7526 = vst.msk [vmem:[%s9] sm:$0x3] %vm7525, %v7524
      $region64: #{transformer_forward.1} parent=55 // pred_fallthru
        _
      // Predicated region
      $region65: #{transformer_forward.1} parent=55 // pred_check
        %p7527 = pneg %p247
      $region66: #{transformer_forward.1} parent=55 // pred_check_branch
        %7529 = sbr.rel (%p7527) target = $region68
      $region67: #{transformer_forward.1} parent=55 // pred_region
        _
      $region68: #{transformer_forward.1} parent=55 // pred_fallthru
        _
      // Predicated region
      $region69: #{transformer_forward.1} parent=55 // pred_check
        %p7530 = pneg %p247
      $region70: #{transformer_forward.1} parent=55 // pred_check_branch
        %7532 = sbr.rel (%p7530) target = $region72
      $region71: #{transformer_forward.1} parent=55 // pred_region
        _
      $region72: #{transformer_forward.1} parent=55 // pred_fallthru
        _
    $region56: #{transformer_forward.1} parent=5 // pred_fallthru
      _
    %p7533 = scmp.le.s32.totalorder 2, %s15
    // Predicated region
    $region73: #{transformer_forward.1} parent=5 // pred_check
      %p7534 = pneg %p7533
    $region74: #{transformer_forward.1} parent=5 // pred_check_branch
      %7536 = sbr.rel (%p7534) target = $region76
    $region75: #{transformer_forward.1} parent=5 // pred_region
      %s7537 = ssub.s32 %s15, 2
    $region76: #{transformer_forward.1} parent=5 // pred_fallthru
      _
  $region6: #{transformer_forward.1} parent=0 // loop_footer
    %s19 = sadd.s32 1, %s15
  $region7: #{transformer_forward.1} parent=0 // loop_footer_branch
    %14 = sbr.rel target = $region3
  $region8: #{transformer_forward.1} parent=0 // loop_exit
    _

</llo_original>
